<compile_context>
chip_gen: v7x
topology: tpu7x:2x2x1
jax: 0.10.0
libtpu: 0.0.40
codegen_flags: <defaults>
</compile_context>

<pallas_src>
import functools

import jax
import jax.numpy as jnp
import numpy as np
from jax.experimental import pallas as pl
from jax.experimental.pallas import tpu as pltpu


def _round_up(x, m):
    return (x + m - 1) // m * m


def _swish(v, alpha_row, beta_row):
    """alpha * v * sigmoid(beta * v), all f32.
    sigmoid = 1 / (1 + exp(-t)): exp goes to the EUP, reciprocal uses the approx EUP vrcp."""
    t = beta_row * v
    sig = pl.reciprocal(1.0 + jnp.exp(-t), approx=True)
    return alpha_row * v * sig


def _encoder_kernel(x_ref, w0_ref, b0_ref, w_ref, b_ref,
                    aa_ref, ba_ref, ab_ref, bb_ref,
                    o_ref, x0_scr,
                    *, num_layers, prop_len, hidden_dim, use_fma_init):
    TB = o_ref.shape[0]
    H = hidden_dim

    # ---------------- init_linear: x0 = x @ W0 + b0 ----------------
    x_blk = x_ref[...].astype(jnp.float32)              # (TB, P)
    b0 = b0_ref[...].astype(jnp.float32)                # (1, H)
    if use_fma_init:
        # K = P is tiny: a P-step VPU broadcast-FMA beats a nearly-empty MXU contraction.
        w0 = w0_ref[...].astype(jnp.float32)             # (P, H)
        x0 = jnp.broadcast_to(b0, (TB, H))
        for p in range(prop_len):                        # static unroll, P is small
            x0 = x0 + x_blk[:, p:p + 1] * w0[p:p + 1, :]
    else:
        x0 = jnp.dot(x_blk.astype(jnp.bfloat16),
                     w0_ref[...].astype(jnp.bfloat16),
                     preferred_element_type=jnp.float32) + b0

    # The residual x0 stays in VMEM scratch for the whole grid step.
    x0_scr[...] = x0

    # Hoist the (small) per-layer parameter loads out of the layer loop.
    b_all = b_ref[...].astype(jnp.float32)               # (L, H)
    aa_all = aa_ref[...].astype(jnp.float32)
    ba_all = ba_ref[...].astype(jnp.float32)
    ab_all = ab_ref[...].astype(jnp.float32)
    bb_all = bb_ref[...].astype(jnp.float32)

    # ------------- residual MLP: [swish, linear, swish] * L, fully fused -------------
    y = x0
    for l in range(num_layers):                          # static unroll, L is small
        wl = w_ref[l]                                    # (H, H) bf16, VMEM-resident
        y = _swish(y, aa_all[l:l + 1, :], ba_all[l:l + 1, :])
        y = jnp.dot(y.astype(jnp.bfloat16), wl,
                    preferred_element_type=jnp.float32) + b_all[l:l + 1, :]
        y = _swish(y, ab_all[l:l + 1, :], bb_all[l:l + 1, :])

    # Single lane-dense (H multiple of 128) store per grid step.
    o_ref[...] = (x0_scr[...] + y).astype(o_ref.dtype)


def properties_encoder(x, params, *, block_batch=512):
    """Pallas forward pass of PropertiesEncoder.

    x: (B, P) float32
    params: dict with
      w0 (P, H), b0 (H,), w (L, H, H), b (L, H),
      alpha_a/beta_a/alpha_b/beta_b (L, H)   (pre- and post-linear Swish params)
    """
    w0, b0 = params["w0"], params["b0"]
    w, b = params["w"], params["b"]
    aa, ba = params["alpha_a"], params["beta_a"]
    ab, bb = params["alpha_b"], params["beta_b"]

    B, P = x.shape
    L, H, _ = w.shape

    TB = min(block_batch, _round_up(B, 8))
    B_pad = _round_up(B, TB)
    if B_pad != B:
        x = jnp.pad(x, ((0, B_pad - B), (0, 0)))
    nb = B_pad // TB

    # bf16 weights for the MXU; biases / swish params stay f32.
    w_bf16 = w.astype(jnp.bfloat16)
    b0_2d = b0.reshape(1, H).astype(jnp.float32)

    kernel = functools.partial(
        _encoder_kernel,
        num_layers=L, prop_len=P, hidden_dim=H,
        use_fma_init=(P <= 16),
    )

    def const_spec2(shape):
        return pl.BlockSpec(shape, lambda i: (0, 0))

    out = pl.pallas_call(
        kernel,
        out_shape=jax.ShapeDtypeStruct((B_pad, H), x.dtype),
        grid_spec=pltpu.PrefetchScalarGridSpec(
            num_scalar_prefetch=0,
            grid=(nb,),
            in_specs=[
                pl.BlockSpec((TB, P), lambda i: (i, 0)),        # x (streamed per batch tile)
                const_spec2((P, H)),                            # w0      (VMEM resident)
                const_spec2((1, H)),                            # b0
                pl.BlockSpec((L, H, H), lambda i: (0, 0, 0)),   # stacked layer weights
                const_spec2((L, H)),                            # stacked biases
                const_spec2((L, H)),                            # alpha (pre-linear swish)
                const_spec2((L, H)),                            # beta  (pre-linear swish)
                const_spec2((L, H)),                            # alpha (post-linear swish)
                const_spec2((L, H)),                            # beta  (post-linear swish)
            ],
            out_specs=pl.BlockSpec((TB, H), lambda i: (i, 0)),
            scratch_shapes=[pltpu.VMEM((TB, H), jnp.float32)],  # x0 residual
        ),
        compiler_params=pltpu.CompilerParams(
            dimension_semantics=("parallel",),                  # use both TCs on v7x
        ),
    )(x, w0.astype(jnp.float32), b0_2d, w_bf16,
      b.astype(jnp.float32), aa.astype(jnp.float32), ba.astype(jnp.float32),
      ab.astype(jnp.float32), bb.astype(jnp.float32))

    return out[:B]


# ---------------------------- pure-JAX reference ----------------------------

def properties_encoder_ref(x, params):
    w0, b0 = params["w0"], params["b0"]
    w, b = params["w"], params["b"]
    aa, ba = params["alpha_a"], params["beta_a"]
    ab, bb = params["alpha_b"], params["beta_b"]
    x0 = x @ w0 + b0
    y = x0
    for l in range(w.shape[0]):
        y = aa[l] * y * jax.nn.sigmoid(ba[l] * y)
        y = y @ w[l] + b[l]
        y = ab[l] * y * jax.nn.sigmoid(bb[l] * y)
    return x0 + y


def make_params(key, num_layers=3, properties_length=10, hidden_dim=128):
    P, H, L = properties_length, hidden_dim, num_layers
    keys = jax.random.split(key, 7)
    lim = 1.0 / np.sqrt(P)
    w0 = jax.random.uniform(keys[0], (P, H), jnp.float32, -lim, lim)
    b0 = jax.random.uniform(keys[1], (H,), jnp.float32, -lim, lim)
    # orthogonal layer weights (nn.init.orthogonal_), zero biases
    g = np.asarray(jax.random.normal(keys[2], (L, H, H), jnp.float32))
    w = jnp.asarray(np.stack([np.linalg.qr(g[l])[0] for l in range(L)]).astype(np.float32))
    b = jnp.zeros((L, H), jnp.float32)
    # learnable Swish params (torchmdnet defaults alpha=1.0, beta=1.702), slightly perturbed
    alpha_a = 1.0 + 0.05 * jax.random.normal(keys[3], (L, H), jnp.float32)
    beta_a = 1.702 + 0.05 * jax.random.normal(keys[4], (L, H), jnp.float32)
    alpha_b = 1.0 + 0.05 * jax.random.normal(keys[5], (L, H), jnp.float32)
    beta_b = 1.702 + 0.05 * jax.random.normal(keys[6], (L, H), jnp.float32)
    return dict(w0=w0, b0=b0, w=w, b=b,
                alpha_a=alpha_a, beta_a=beta_a, alpha_b=alpha_b, beta_b=beta_b)


if __name__ == "__main__":
    key = jax.random.PRNGKey(0)
    k_x, k_p = jax.random.split(key)

    B, P, H, L = 1024, 10, 128, 3
    params = make_params(k_p, num_layers=L, properties_length=P, hidden_dim=H)
    x = jax.random.normal(k_x, (B, P), jnp.float32)

    out = jax.block_until_ready(properties_encoder(x, params, block_batch=512))
    ref = jax.block_until_ready(properties_encoder_ref(x, params))

    assert out.shape == (B, H), out.shape
    err = float(jnp.max(jnp.abs(out - ref)) / (jnp.max(jnp.abs(ref)) + 1e-6))
    assert err < 5e-2, f"max relative error too large: {err}"
    print("KERNEL_OK")
</pallas_src>

<mosaic_0001>
module attributes {stable_mosaic.version = 11 : i64} {
  func.func @_encoder_kernel(%arg0: i32, %arg1: memref<512x10xf32, #tpu.memory_space<vmem>>, %arg2: memref<10x128xf32, #tpu.memory_space<vmem>>, %arg3: memref<1x128xf32, #tpu.memory_space<vmem>>, %arg4: memref<3x128x128xbf16, #tpu.memory_space<vmem>>, %arg5: memref<3x128xf32, #tpu.memory_space<vmem>>, %arg6: memref<3x128xf32, #tpu.memory_space<vmem>>, %arg7: memref<3x128xf32, #tpu.memory_space<vmem>>, %arg8: memref<3x128xf32, #tpu.memory_space<vmem>>, %arg9: memref<3x128xf32, #tpu.memory_space<vmem>>, %arg10: memref<512x128xf32, #tpu.memory_space<vmem>>, %arg11: memref<512x128xf32, #tpu.memory_space<vmem>>) attributes {dimension_semantics = [#tpu.dimension_semantics<parallel>], iteration_bounds = array<i64: 2>, scalar_prefetch = 0 : i64, scratch_operands = 1 : i64, tpu.core_type = #tpu.core_type<tc>, window_params = [{transform_indices = @transform_0, window_bounds = array<i64: 512, 10>}, {pipeline_mode = #tpu.pipeline_mode<synchronous>, transform_indices = @transform_1, window_bounds = array<i64: 10, 128>}, {pipeline_mode = #tpu.pipeline_mode<synchronous>, transform_indices = @transform_2, window_bounds = array<i64: 1, 128>}, {pipeline_mode = #tpu.pipeline_mode<synchronous>, transform_indices = @transform_3, window_bounds = array<i64: 3, 128, 128>}, {pipeline_mode = #tpu.pipeline_mode<synchronous>, transform_indices = @transform_4, window_bounds = array<i64: 3, 128>}, {pipeline_mode = #tpu.pipeline_mode<synchronous>, transform_indices = @transform_5, window_bounds = array<i64: 3, 128>}, {pipeline_mode = #tpu.pipeline_mode<synchronous>, transform_indices = @transform_6, window_bounds = array<i64: 3, 128>}, {pipeline_mode = #tpu.pipeline_mode<synchronous>, transform_indices = @transform_7, window_bounds = array<i64: 3, 128>}, {pipeline_mode = #tpu.pipeline_mode<synchronous>, transform_indices = @transform_8, window_bounds = array<i64: 3, 128>}, {transform_indices = @transform_9, window_bounds = array<i64: 512, 128>}]} {
    %c0 = arith.constant 0 : index
    %c0_0 = arith.constant 0 : index
    %0 = vector.load %arg1[%c0, %c0_0] : memref<512x10xf32, #tpu.memory_space<vmem>>, vector<512x10xf32>
    %c0_1 = arith.constant 0 : index
    %c0_2 = arith.constant 0 : index
    %1 = vector.load %arg3[%c0_1, %c0_2] : memref<1x128xf32, #tpu.memory_space<vmem>>, vector<1x128xf32>
    %c0_3 = arith.constant 0 : index
    %c0_4 = arith.constant 0 : index
    %2 = vector.load %arg2[%c0_3, %c0_4] : memref<10x128xf32, #tpu.memory_space<vmem>>, vector<10x128xf32>
    %3 = vector.shape_cast %1 : vector<1x128xf32> to vector<1x128xf32>
    %4 = vector.broadcast %3 : vector<1x128xf32> to vector<512x128xf32>
    %5 = vector.extract_strided_slice %0 {offsets = [0, 0], sizes = [512, 1], strides = [1, 1]} : vector<512x10xf32> to vector<512x1xf32>
    %6 = vector.extract_strided_slice %2 {offsets = [0, 0], sizes = [1, 128], strides = [1, 1]} : vector<10x128xf32> to vector<1x128xf32>
    %7 = vector.broadcast %5 : vector<512x1xf32> to vector<512x128xf32>
    %8 = vector.broadcast %6 : vector<1x128xf32> to vector<512x128xf32>
    %9 = arith.mulf %7, %8 : vector<512x128xf32>
    %10 = arith.addf %4, %9 : vector<512x128xf32>
    %11 = vector.extract_strided_slice %0 {offsets = [0, 1], sizes = [512, 1], strides = [1, 1]} : vector<512x10xf32> to vector<512x1xf32>
    %12 = vector.extract_strided_slice %2 {offsets = [1, 0], sizes = [1, 128], strides = [1, 1]} : vector<10x128xf32> to vector<1x128xf32>
    %13 = vector.broadcast %11 : vector<512x1xf32> to vector<512x128xf32>
    %14 = vector.broadcast %12 : vector<1x128xf32> to vector<512x128xf32>
    %15 = arith.mulf %13, %14 : vector<512x128xf32>
    %16 = arith.addf %10, %15 : vector<512x128xf32>
    %17 = vector.extract_strided_slice %0 {offsets = [0, 2], sizes = [512, 1], strides = [1, 1]} : vector<512x10xf32> to vector<512x1xf32>
    %18 = vector.extract_strided_slice %2 {offsets = [2, 0], sizes = [1, 128], strides = [1, 1]} : vector<10x128xf32> to vector<1x128xf32>
    %19 = vector.broadcast %17 : vector<512x1xf32> to vector<512x128xf32>
    %20 = vector.broadcast %18 : vector<1x128xf32> to vector<512x128xf32>
    %21 = arith.mulf %19, %20 : vector<512x128xf32>
    %22 = arith.addf %16, %21 : vector<512x128xf32>
    %23 = vector.extract_strided_slice %0 {offsets = [0, 3], sizes = [512, 1], strides = [1, 1]} : vector<512x10xf32> to vector<512x1xf32>
    %24 = vector.extract_strided_slice %2 {offsets = [3, 0], sizes = [1, 128], strides = [1, 1]} : vector<10x128xf32> to vector<1x128xf32>
    %25 = vector.broadcast %23 : vector<512x1xf32> to vector<512x128xf32>
    %26 = vector.broadcast %24 : vector<1x128xf32> to vector<512x128xf32>
    %27 = arith.mulf %25, %26 : vector<512x128xf32>
    %28 = arith.addf %22, %27 : vector<512x128xf32>
    %29 = vector.extract_strided_slice %0 {offsets = [0, 4], sizes = [512, 1], strides = [1, 1]} : vector<512x10xf32> to vector<512x1xf32>
    %30 = vector.extract_strided_slice %2 {offsets = [4, 0], sizes = [1, 128], strides = [1, 1]} : vector<10x128xf32> to vector<1x128xf32>
    %31 = vector.broadcast %29 : vector<512x1xf32> to vector<512x128xf32>
    %32 = vector.broadcast %30 : vector<1x128xf32> to vector<512x128xf32>
    %33 = arith.mulf %31, %32 : vector<512x128xf32>
    %34 = arith.addf %28, %33 : vector<512x128xf32>
    %35 = vector.extract_strided_slice %0 {offsets = [0, 5], sizes = [512, 1], strides = [1, 1]} : vector<512x10xf32> to vector<512x1xf32>
    %36 = vector.extract_strided_slice %2 {offsets = [5, 0], sizes = [1, 128], strides = [1, 1]} : vector<10x128xf32> to vector<1x128xf32>
    %37 = vector.broadcast %35 : vector<512x1xf32> to vector<512x128xf32>
    %38 = vector.broadcast %36 : vector<1x128xf32> to vector<512x128xf32>
    %39 = arith.mulf %37, %38 : vector<512x128xf32>
    %40 = arith.addf %34, %39 : vector<512x128xf32>
    %41 = vector.extract_strided_slice %0 {offsets = [0, 6], sizes = [512, 1], strides = [1, 1]} : vector<512x10xf32> to vector<512x1xf32>
    %42 = vector.extract_strided_slice %2 {offsets = [6, 0], sizes = [1, 128], strides = [1, 1]} : vector<10x128xf32> to vector<1x128xf32>
    %43 = vector.broadcast %41 : vector<512x1xf32> to vector<512x128xf32>
    %44 = vector.broadcast %42 : vector<1x128xf32> to vector<512x128xf32>
    %45 = arith.mulf %43, %44 : vector<512x128xf32>
    %46 = arith.addf %40, %45 : vector<512x128xf32>
    %47 = vector.extract_strided_slice %0 {offsets = [0, 7], sizes = [512, 1], strides = [1, 1]} : vector<512x10xf32> to vector<512x1xf32>
    %48 = vector.extract_strided_slice %2 {offsets = [7, 0], sizes = [1, 128], strides = [1, 1]} : vector<10x128xf32> to vector<1x128xf32>
    %49 = vector.broadcast %47 : vector<512x1xf32> to vector<512x128xf32>
    %50 = vector.broadcast %48 : vector<1x128xf32> to vector<512x128xf32>
    %51 = arith.mulf %49, %50 : vector<512x128xf32>
    %52 = arith.addf %46, %51 : vector<512x128xf32>
    %53 = vector.extract_strided_slice %0 {offsets = [0, 8], sizes = [512, 1], strides = [1, 1]} : vector<512x10xf32> to vector<512x1xf32>
    %54 = vector.extract_strided_slice %2 {offsets = [8, 0], sizes = [1, 128], strides = [1, 1]} : vector<10x128xf32> to vector<1x128xf32>
    %55 = vector.broadcast %53 : vector<512x1xf32> to vector<512x128xf32>
    %56 = vector.broadcast %54 : vector<1x128xf32> to vector<512x128xf32>
    %57 = arith.mulf %55, %56 : vector<512x128xf32>
    %58 = arith.addf %52, %57 : vector<512x128xf32>
    %59 = vector.extract_strided_slice %0 {offsets = [0, 9], sizes = [512, 1], strides = [1, 1]} : vector<512x10xf32> to vector<512x1xf32>
    %60 = vector.extract_strided_slice %2 {offsets = [9, 0], sizes = [1, 128], strides = [1, 1]} : vector<10x128xf32> to vector<1x128xf32>
    %61 = vector.broadcast %59 : vector<512x1xf32> to vector<512x128xf32>
    %62 = vector.broadcast %60 : vector<1x128xf32> to vector<512x128xf32>
    %63 = arith.mulf %61, %62 : vector<512x128xf32>
    %64 = arith.addf %58, %63 : vector<512x128xf32>
    %c0_5 = arith.constant 0 : index
    %c0_6 = arith.constant 0 : index
    %65 = vector.load %arg11[%c0_5, %c0_6] : memref<512x128xf32, #tpu.memory_space<vmem>>, vector<512x128xf32>
    tpu.vector_store %arg11[%c0_5, %c0_6], %64 {strides = array<i32>} : memref<512x128xf32, #tpu.memory_space<vmem>>, vector<512x128xf32>,
    %c0_7 = arith.constant 0 : index
    %c0_8 = arith.constant 0 : index
    %66 = vector.load %arg5[%c0_7, %c0_8] : memref<3x128xf32, #tpu.memory_space<vmem>>, vector<3x128xf32>
    %c0_9 = arith.constant 0 : index
    %c0_10 = arith.constant 0 : index
    %67 = vector.load %arg6[%c0_9, %c0_10] : memref<3x128xf32, #tpu.memory_space<vmem>>, vector<3x128xf32>
    %c0_11 = arith.constant 0 : index
    %c0_12 = arith.constant 0 : index
    %68 = vector.load %arg7[%c0_11, %c0_12] : memref<3x128xf32, #tpu.memory_space<vmem>>, vector<3x128xf32>
    %c0_13 = arith.constant 0 : index
    %c0_14 = arith.constant 0 : index
    %69 = vector.load %arg8[%c0_13, %c0_14] : memref<3x128xf32, #tpu.memory_space<vmem>>, vector<3x128xf32>
    %c0_15 = arith.constant 0 : index
    %c0_16 = arith.constant 0 : index
    %70 = vector.load %arg9[%c0_15, %c0_16] : memref<3x128xf32, #tpu.memory_space<vmem>>, vector<3x128xf32>
    %c0_17 = arith.constant 0 : index
    %c0_18 = arith.constant 0 : index
    %c0_19 = arith.constant 0 : index
    %71 = vector.load %arg4[%c0_17, %c0_18, %c0_19] : memref<3x128x128xbf16, #tpu.memory_space<vmem>>, vector<1x128x128xbf16>
    %72 = vector.shape_cast %71 : vector<1x128x128xbf16> to vector<128x128xbf16>
    %73 = vector.extract_strided_slice %67 {offsets = [0, 0], sizes = [1, 128], strides = [1, 1]} : vector<3x128xf32> to vector<1x128xf32>
    %74 = vector.extract_strided_slice %68 {offsets = [0, 0], sizes = [1, 128], strides = [1, 1]} : vector<3x128xf32> to vector<1x128xf32>
    %75 = vector.broadcast %74 : vector<1x128xf32> to vector<512x128xf32>
    %76 = arith.mulf %75, %64 : vector<512x128xf32>
    %cst = arith.constant 0.000000e+00 : f32
    %77 = vector.broadcast %cst : f32 to vector<512x128xf32>
    %78 = arith.subf %77, %76 : vector<512x128xf32>
    %79 = math.exp %78 : vector<512x128xf32>
    %cst_20 = arith.constant 1.000000e+00 : f32
    %80 = vector.broadcast %cst_20 : f32 to vector<512x128xf32>
    %81 = arith.addf %80, %79 : vector<512x128xf32>
    %82 = tpu.reciprocal %81 {approx = true} : vector<512x128xf32> -> vector<512x128xf32>
    %83 = vector.broadcast %73 : vector<1x128xf32> to vector<512x128xf32>
    %84 = arith.mulf %83, %64 : vector<512x128xf32>
    %85 = arith.mulf %84, %82 : vector<512x128xf32>
    %86 = arith.truncf %85 : vector<512x128xf32> to vector<512x128xbf16>
    %cst_21 = arith.constant dense<0.000000e+00> : vector<512x128xf32>
    %87 = tpu.matmul %86, %72, %cst_21 {dimension_numbers = #tpu.dot_dimension_numbers<[1], [0], [0], [1], [0, 0, 1, 1], [], []>} : vector<512x128xbf16>, vector<128x128xbf16>, vector<512x128xf32> -> vector<512x128xf32>
    %88 = vector.extract_strided_slice %66 {offsets = [0, 0], sizes = [1, 128], strides = [1, 1]} : vector<3x128xf32> to vector<1x128xf32>
    %89 = vector.broadcast %88 : vector<1x128xf32> to vector<512x128xf32>
    %90 = arith.addf %87, %89 : vector<512x128xf32>
    %91 = vector.extract_strided_slice %69 {offsets = [0, 0], sizes = [1, 128], strides = [1, 1]} : vector<3x128xf32> to vector<1x128xf32>
    %92 = vector.extract_strided_slice %70 {offsets = [0, 0], sizes = [1, 128], strides = [1, 1]} : vector<3x128xf32> to vector<1x128xf32>
    %93 = vector.broadcast %92 : vector<1x128xf32> to vector<512x128xf32>
    %94 = arith.mulf %93, %90 : vector<512x128xf32>
    %cst_22 = arith.constant 0.000000e+00 : f32
    %95 = vector.broadcast %cst_22 : f32 to vector<512x128xf32>
    %96 = arith.subf %95, %94 : vector<512x128xf32>
    %97 = math.exp %96 : vector<512x128xf32>
    %cst_23 = arith.constant 1.000000e+00 : f32
    %98 = vector.broadcast %cst_23 : f32 to vector<512x128xf32>
    %99 = arith.addf %98, %97 : vector<512x128xf32>
    %100 = tpu.reciprocal %99 {approx = true} : vector<512x128xf32> -> vector<512x128xf32>
    %101 = vector.broadcast %91 : vector<1x128xf32> to vector<512x128xf32>
    %102 = arith.mulf %101, %90 : vector<512x128xf32>
    %103 = arith.mulf %102, %100 : vector<512x128xf32>
    %c1 = arith.constant 1 : index
    %c0_24 = arith.constant 0 : index
    %c0_25 = arith.constant 0 : index
    %104 = vector.load %arg4[%c1, %c0_24, %c0_25] : memref<3x128x128xbf16, #tpu.memory_space<vmem>>, vector<1x128x128xbf16>
    %105 = vector.shape_cast %104 : vector<1x128x128xbf16> to vector<128x128xbf16>
    %106 = vector.extract_strided_slice %67 {offsets = [1, 0], sizes = [1, 128], strides = [1, 1]} : vector<3x128xf32> to vector<1x128xf32>
    %107 = vector.extract_strided_slice %68 {offsets = [1, 0], sizes = [1, 128], strides = [1, 1]} : vector<3x128xf32> to vector<1x128xf32>
    %108 = vector.broadcast %107 : vector<1x128xf32> to vector<512x128xf32>
    %109 = arith.mulf %108, %103 : vector<512x128xf32>
    %cst_26 = arith.constant 0.000000e+00 : f32
    %110 = vector.broadcast %cst_26 : f32 to vector<512x128xf32>
    %111 = arith.subf %110, %109 : vector<512x128xf32>
    %112 = math.exp %111 : vector<512x128xf32>
    %cst_27 = arith.constant 1.000000e+00 : f32
    %113 = vector.broadcast %cst_27 : f32 to vector<512x128xf32>
    %114 = arith.addf %113, %112 : vector<512x128xf32>
    %115 = tpu.reciprocal %114 {approx = true} : vector<512x128xf32> -> vector<512x128xf32>
    %116 = vector.broadcast %106 : vector<1x128xf32> to vector<512x128xf32>
    %117 = arith.mulf %116, %103 : vector<512x128xf32>
    %118 = arith.mulf %117, %115 : vector<512x128xf32>
    %119 = arith.truncf %118 : vector<512x128xf32> to vector<512x128xbf16>
    %cst_28 = arith.constant dense<0.000000e+00> : vector<512x128xf32>
    %120 = tpu.matmul %119, %105, %cst_28 {dimension_numbers = #tpu.dot_dimension_numbers<[1], [0], [0], [1], [0, 0, 1, 1], [], []>} : vector<512x128xbf16>, vector<128x128xbf16>, vector<512x128xf32> -> vector<512x128xf32>
    %121 = vector.extract_strided_slice %66 {offsets = [1, 0], sizes = [1, 128], strides = [1, 1]} : vector<3x128xf32> to vector<1x128xf32>
    %122 = vector.broadcast %121 : vector<1x128xf32> to vector<512x128xf32>
    %123 = arith.addf %120, %122 : vector<512x128xf32>
    %124 = vector.extract_strided_slice %69 {offsets = [1, 0], sizes = [1, 128], strides = [1, 1]} : vector<3x128xf32> to vector<1x128xf32>
    %125 = vector.extract_strided_slice %70 {offsets = [1, 0], sizes = [1, 128], strides = [1, 1]} : vector<3x128xf32> to vector<1x128xf32>
    %126 = vector.broadcast %125 : vector<1x128xf32> to vector<512x128xf32>
    %127 = arith.mulf %126, %123 : vector<512x128xf32>
    %cst_29 = arith.constant 0.000000e+00 : f32
    %128 = vector.broadcast %cst_29 : f32 to vector<512x128xf32>
    %129 = arith.subf %128, %127 : vector<512x128xf32>
    %130 = math.exp %129 : vector<512x128xf32>
    %cst_30 = arith.constant 1.000000e+00 : f32
    %131 = vector.broadcast %cst_30 : f32 to vector<512x128xf32>
    %132 = arith.addf %131, %130 : vector<512x128xf32>
    %133 = tpu.reciprocal %132 {approx = true} : vector<512x128xf32> -> vector<512x128xf32>
    %134 = vector.broadcast %124 : vector<1x128xf32> to vector<512x128xf32>
    %135 = arith.mulf %134, %123 : vector<512x128xf32>
    %136 = arith.mulf %135, %133 : vector<512x128xf32>
    %c2 = arith.constant 2 : index
    %c0_31 = arith.constant 0 : index
    %c0_32 = arith.constant 0 : index
    %137 = vector.load %arg4[%c2, %c0_31, %c0_32] : memref<3x128x128xbf16, #tpu.memory_space<vmem>>, vector<1x128x128xbf16>
    %138 = vector.shape_cast %137 : vector<1x128x128xbf16> to vector<128x128xbf16>
    %139 = vector.extract_strided_slice %67 {offsets = [2, 0], sizes = [1, 128], strides = [1, 1]} : vector<3x128xf32> to vector<1x128xf32>
    %140 = vector.extract_strided_slice %68 {offsets = [2, 0], sizes = [1, 128], strides = [1, 1]} : vector<3x128xf32> to vector<1x128xf32>
    %141 = vector.broadcast %140 : vector<1x128xf32> to vector<512x128xf32>
    %142 = arith.mulf %141, %136 : vector<512x128xf32>
    %cst_33 = arith.constant 0.000000e+00 : f32
    %143 = vector.broadcast %cst_33 : f32 to vector<512x128xf32>
    %144 = arith.subf %143, %142 : vector<512x128xf32>
    %145 = math.exp %144 : vector<512x128xf32>
    %cst_34 = arith.constant 1.000000e+00 : f32
    %146 = vector.broadcast %cst_34 : f32 to vector<512x128xf32>
    %147 = arith.addf %146, %145 : vector<512x128xf32>
    %148 = tpu.reciprocal %147 {approx = true} : vector<512x128xf32> -> vector<512x128xf32>
    %149 = vector.broadcast %139 : vector<1x128xf32> to vector<512x128xf32>
    %150 = arith.mulf %149, %136 : vector<512x128xf32>
    %151 = arith.mulf %150, %148 : vector<512x128xf32>
    %152 = arith.truncf %151 : vector<512x128xf32> to vector<512x128xbf16>
    %cst_35 = arith.constant dense<0.000000e+00> : vector<512x128xf32>
    %153 = tpu.matmul %152, %138, %cst_35 {dimension_numbers = #tpu.dot_dimension_numbers<[1], [0], [0], [1], [0, 0, 1, 1], [], []>} : vector<512x128xbf16>, vector<128x128xbf16>, vector<512x128xf32> -> vector<512x128xf32>
    %154 = vector.extract_strided_slice %66 {offsets = [2, 0], sizes = [1, 128], strides = [1, 1]} : vector<3x128xf32> to vector<1x128xf32>
    %155 = vector.broadcast %154 : vector<1x128xf32> to vector<512x128xf32>
    %156 = arith.addf %153, %155 : vector<512x128xf32>
    %157 = vector.extract_strided_slice %69 {offsets = [2, 0], sizes = [1, 128], strides = [1, 1]} : vector<3x128xf32> to vector<1x128xf32>
    %158 = vector.extract_strided_slice %70 {offsets = [2, 0], sizes = [1, 128], strides = [1, 1]} : vector<3x128xf32> to vector<1x128xf32>
    %159 = vector.broadcast %158 : vector<1x128xf32> to vector<512x128xf32>
    %160 = arith.mulf %159, %156 : vector<512x128xf32>
    %cst_36 = arith.constant 0.000000e+00 : f32
    %161 = vector.broadcast %cst_36 : f32 to vector<512x128xf32>
    %162 = arith.subf %161, %160 : vector<512x128xf32>
    %163 = math.exp %162 : vector<512x128xf32>
    %cst_37 = arith.constant 1.000000e+00 : f32
    %164 = vector.broadcast %cst_37 : f32 to vector<512x128xf32>
    %165 = arith.addf %164, %163 : vector<512x128xf32>
    %166 = tpu.reciprocal %165 {approx = true} : vector<512x128xf32> -> vector<512x128xf32>
    %167 = vector.broadcast %157 : vector<1x128xf32> to vector<512x128xf32>
    %168 = arith.mulf %167, %156 : vector<512x128xf32>
    %169 = arith.mulf %168, %166 : vector<512x128xf32>
    %c0_38 = arith.constant 0 : index
    %c0_39 = arith.constant 0 : index
    %170 = vector.load %arg11[%c0_38, %c0_39] : memref<512x128xf32, #tpu.memory_space<vmem>>, vector<512x128xf32>
    %171 = arith.addf %170, %169 : vector<512x128xf32>
    %c0_40 = arith.constant 0 : index
    %c0_41 = arith.constant 0 : index
    %172 = vector.load %arg10[%c0_40, %c0_41] : memref<512x128xf32, #tpu.memory_space<vmem>>, vector<512x128xf32>
    tpu.vector_store %arg10[%c0_40, %c0_41], %171 {strides = array<i32>} : memref<512x128xf32, #tpu.memory_space<vmem>>, vector<512x128xf32>,
    return
  }
  func.func @transform_0(%arg0: i32) -> (i32, i32) {
    %c0_i32 = arith.constant 0 : i32
    %c0_i32_0 = arith.constant 0 : i32
    return %arg0, %c0_i32 : i32, i32
  }
  func.func @transform_1(%arg0: i32) -> (i32, i32) {
    %c0_i32 = arith.constant 0 : i32
    %c0_i32_0 = arith.constant 0 : i32
    %c0_i32_1 = arith.constant 0 : i32
    return %c0_i32, %c0_i32_0 : i32, i32
  }
  func.func @transform_2(%arg0: i32) -> (i32, i32) {
    %c0_i32 = arith.constant 0 : i32
    %c0_i32_0 = arith.constant 0 : i32
    %c0_i32_1 = arith.constant 0 : i32
    return %c0_i32, %c0_i32_0 : i32, i32
  }
  func.func @transform_3(%arg0: i32) -> (i32, i32, i32) {
    %c0_i32 = arith.constant 0 : i32
    %c0_i32_0 = arith.constant 0 : i32
    %c0_i32_1 = arith.constant 0 : i32
    %c0_i32_2 = arith.constant 0 : i32
    return %c0_i32, %c0_i32_0, %c0_i32_1 : i32, i32, i32
  }
  func.func @transform_4(%arg0: i32) -> (i32, i32) {
    %c0_i32 = arith.constant 0 : i32
    %c0_i32_0 = arith.constant 0 : i32
    %c0_i32_1 = arith.constant 0 : i32
    return %c0_i32, %c0_i32_0 : i32, i32
  }
  func.func @transform_5(%arg0: i32) -> (i32, i32) {
    %c0_i32 = arith.constant 0 : i32
    %c0_i32_0 = arith.constant 0 : i32
    %c0_i32_1 = arith.constant 0 : i32
    return %c0_i32, %c0_i32_0 : i32, i32
  }
  func.func @transform_6(%arg0: i32) -> (i32, i32) {
    %c0_i32 = arith.constant 0 : i32
    %c0_i32_0 = arith.constant 0 : i32
    %c0_i32_1 = arith.constant 0 : i32
    return %c0_i32, %c0_i32_0 : i32, i32
  }
  func.func @transform_7(%arg0: i32) -> (i32, i32) {
    %c0_i32 = arith.constant 0 : i32
    %c0_i32_0 = arith.constant 0 : i32
    %c0_i32_1 = arith.constant 0 : i32
    return %c0_i32, %c0_i32_0 : i32, i32
  }
  func.func @transform_8(%arg0: i32) -> (i32, i32) {
    %c0_i32 = arith.constant 0 : i32
    %c0_i32_0 = arith.constant 0 : i32
    %c0_i32_1 = arith.constant 0 : i32
    return %c0_i32, %c0_i32_0 : i32, i32
  }
  func.func @transform_9(%arg0: i32) -> (i32, i32) {
    %c0_i32 = arith.constant 0 : i32
    %c0_i32_0 = arith.constant 0 : i32
    return %arg0, %c0_i32 : i32, i32
  }
}

</mosaic_0001>

<llo_original>
// kernel: tpu_custom_call.1
$region0: #{tpu_custom_call.1}
  #allocation0 [shape = 'u32[]', space=smem, size = 0x4, offset = 0x4, fixed_abs, tag = 'smem constant byte address 0x4 - core index']
  #allocation1 [shape = 'u32[144,128]{1,0:T(1,128)}', space=vmem, size = 0x12000, scoped, tag = 'internal scratch']
  #allocation2 [shape = 'f32[512,128]{1,0:T(8,128)}', space=vmem, size = 0x40000, scoped, tag = 'scratch operand']
  %s0 = inlined_call_operand.vmem [shape: f32[1024,10], index: 0, kind: input, shape index: {}]
  %s1 = inlined_call_operand.vmem [shape: f32[10,128], index: 1, kind: input, shape index: {}]
  %s2 = inlined_call_operand.vmem [shape: f32[1,128], index: 2, kind: input, shape index: {}]
  %s3 = inlined_call_operand.vmem [shape: bf16[3,128,128], index: 3, kind: input, shape index: {}]
  %s4 = inlined_call_operand.vmem [shape: f32[3,128], index: 4, kind: input, shape index: {}]
  %s5 = inlined_call_operand.vmem [shape: f32[3,128], index: 5, kind: input, shape index: {}]
  %s6 = inlined_call_operand.vmem [shape: f32[3,128], index: 6, kind: input, shape index: {}]
  %s7 = inlined_call_operand.vmem [shape: f32[3,128], index: 7, kind: input, shape index: {}]
  %s8 = inlined_call_operand.vmem [shape: f32[3,128], index: 8, kind: input, shape index: {}]
  %s9 = inlined_call_operand.hbm [shape: f32[1024,128], index: 9, kind: output, shape index: {}]
  %s10 = sld [smem:[#allocation0]]
  $region69: #{tpu_custom_call.1} parent=0
    _
  %s12 = ssub.s32 1, %s10
  %s13 = scalar_select 0, %s12, %s10
  $region1: #{tpu_custom_call.1} parent=0
    #allocation3 [shape = 'u8[524288]{0}', space=vmem, size = 0x80000, scoped, tag = 'output window, operand 0']
    #allocation4 [shape = 's32[2]{0}', space=sflag, size = 0x8, scoped, tag = 'scoped memory for tpu_custom_call.1']
    %14 = vsyncpa [#allocation4], 0
    %s15 = scalar_lea.sflag [#allocation4], 1
    %16 = vsyncpa %s15, 0
    loop: start=0, step=1, limit=4
    $region2: #{tpu_custom_call.1} parent=1 // loop_pre_header
      _
    $region3: #{tpu_custom_call.1} parent=1 // loop_header
      %s18 = sphi 0, %s22
      %p19 = scmp.ge.s32.totalorder %s18, 4
      %s28 = sphi 0, %s30
      %s31 = sphi 0, %s28
      %s32 = sphi 0, %s31
      %s48 = sphi 0, %s32
      %s52 = sphi 0, %s52
      %s54 = sphi 0, %s52
      %s55 = sphi 0, %s54
      %s69 = sphi 0, %s55
      %s73 = sphi 0, %s73
      %s75 = sphi 0, %s73
      %s76 = sphi 0, %s75
      %s90 = sphi 0, %s76
      %s94 = sphi 0, %s94
      %s96 = sphi 0, %s94
      %s97 = sphi 0, %s96
      %s111 = sphi 0, %s97
      %s115 = sphi 0, %s115
      %s117 = sphi 0, %s115
      %s118 = sphi 0, %s117
      %s132 = sphi 0, %s118
      %s136 = sphi 0, %s136
      %s138 = sphi 0, %s136
      %s139 = sphi 0, %s138
      %s153 = sphi 0, %s139
      %s157 = sphi 0, %s157
      %s159 = sphi 0, %s157
      %s160 = sphi 0, %s159
      %s174 = sphi 0, %s160
      %s178 = sphi 0, %s178
      %s180 = sphi 0, %s178
      %s181 = sphi 0, %s180
      %s195 = sphi 0, %s181
      %s199 = sphi 0, %s199
      %s201 = sphi 0, %s199
      %s202 = sphi 0, %s201
      %s216 = sphi 0, %s202
      %s222 = sphi 0, %s224
      %s225 = sphi 0, %s222
      %s226 = sphi 0, %s225
      %s242 = sphi 0, %s226
    $region4: #{tpu_custom_call.1} parent=1 // loop_header_branch
      %21 = sbr.rel (%p19) target = $region8
    $region5: #{tpu_custom_call.1} parent=1 // loop_body
      %s23 = ssub.s32 %s18, 1
      %s24 = ssub.s32 %s18, 2
      %s25 = sadd.s32 %s18, 1
      %s26 = ssub.s32 %s18, %s25
      %p27 = scmp.eq.s32.totalorder %s26, 0
      %s29 = sadd.s32 %s28, 1
      %s30 = scalar_select %p27, %s28, %s29
      %p33 = pneg %p27
      %p34 = scmp.eq.s32.totalorder %s18, 1
      %p35 = por %p33, %p34
      %p36 = scmp.ne.s32.totalorder %s28, %s31
      %p37 = scmp.eq.s32.totalorder %s18, 0
      %p38 = por %p36, %p37
      %p39 = scmp.ne.s32.totalorder %s28, %s31
      %p40 = scmp.eq.s32.totalorder %s23, 1
      %p41 = por %p39, %p40
      %p42 = scmp.ne.s32.totalorder %s31, %s32
      %p43 = scmp.eq.s32.totalorder %s23, 0
      %p44 = por %p42, %p43
      %p45 = scmp.ne.s32.totalorder %s31, %s32
      %p46 = scmp.eq.s32.totalorder %s24, 1
      %p47 = por %p45, %p46
      %p49 = scmp.ne.s32.totalorder %s32, %s48
      %p50 = scmp.eq.s32.totalorder %s24, 0
      %p51 = por %p49, %p50
      %s53 = sadd.s32 %s52, 1
      %p56 = scmp.eq.s32.totalorder %s18, 1
      %p57 = scmp.ne.s32.totalorder %s52, %s54
      %p58 = scmp.eq.s32.totalorder %s18, 0
      %p59 = por %p57, %p58
      %p60 = scmp.ne.s32.totalorder %s52, %s54
      %p61 = scmp.eq.s32.totalorder %s23, 1
      %p62 = por %p60, %p61
      %p63 = scmp.ne.s32.totalorder %s54, %s55
      %p64 = scmp.eq.s32.totalorder %s23, 0
      %p65 = por %p63, %p64
      %p66 = scmp.ne.s32.totalorder %s54, %s55
      %p67 = scmp.eq.s32.totalorder %s24, 1
      %p68 = por %p66, %p67
      %p70 = scmp.ne.s32.totalorder %s55, %s69
      %p71 = scmp.eq.s32.totalorder %s24, 0
      %p72 = por %p70, %p71
      %s74 = sadd.s32 %s73, 1
      %p77 = scmp.eq.s32.totalorder %s18, 1
      %p78 = scmp.ne.s32.totalorder %s73, %s75
      %p79 = scmp.eq.s32.totalorder %s18, 0
      %p80 = por %p78, %p79
      %p81 = scmp.ne.s32.totalorder %s73, %s75
      %p82 = scmp.eq.s32.totalorder %s23, 1
      %p83 = por %p81, %p82
      %p84 = scmp.ne.s32.totalorder %s75, %s76
      %p85 = scmp.eq.s32.totalorder %s23, 0
      %p86 = por %p84, %p85
      %p87 = scmp.ne.s32.totalorder %s75, %s76
      %p88 = scmp.eq.s32.totalorder %s24, 1
      %p89 = por %p87, %p88
      %p91 = scmp.ne.s32.totalorder %s76, %s90
      %p92 = scmp.eq.s32.totalorder %s24, 0
      %p93 = por %p91, %p92
      %s95 = sadd.s32 %s94, 1
      %p98 = scmp.eq.s32.totalorder %s18, 1
      %p99 = scmp.ne.s32.totalorder %s94, %s96
      %p100 = scmp.eq.s32.totalorder %s18, 0
      %p101 = por %p99, %p100
      %p102 = scmp.ne.s32.totalorder %s94, %s96
      %p103 = scmp.eq.s32.totalorder %s23, 1
      %p104 = por %p102, %p103
      %p105 = scmp.ne.s32.totalorder %s96, %s97
      %p106 = scmp.eq.s32.totalorder %s23, 0
      %p107 = por %p105, %p106
      %p108 = scmp.ne.s32.totalorder %s96, %s97
      %p109 = scmp.eq.s32.totalorder %s24, 1
      %p110 = por %p108, %p109
      %p112 = scmp.ne.s32.totalorder %s97, %s111
      %p113 = scmp.eq.s32.totalorder %s24, 0
      %p114 = por %p112, %p113
      %s116 = sadd.s32 %s115, 1
      %p119 = scmp.eq.s32.totalorder %s18, 1
      %p120 = scmp.ne.s32.totalorder %s115, %s117
      %p121 = scmp.eq.s32.totalorder %s18, 0
      %p122 = por %p120, %p121
      %p123 = scmp.ne.s32.totalorder %s115, %s117
      %p124 = scmp.eq.s32.totalorder %s23, 1
      %p125 = por %p123, %p124
      %p126 = scmp.ne.s32.totalorder %s117, %s118
      %p127 = scmp.eq.s32.totalorder %s23, 0
      %p128 = por %p126, %p127
      %p129 = scmp.ne.s32.totalorder %s117, %s118
      %p130 = scmp.eq.s32.totalorder %s24, 1
      %p131 = por %p129, %p130
      %p133 = scmp.ne.s32.totalorder %s118, %s132
      %p134 = scmp.eq.s32.totalorder %s24, 0
      %p135 = por %p133, %p134
      %s137 = sadd.s32 %s136, 1
      %p140 = scmp.eq.s32.totalorder %s18, 1
      %p141 = scmp.ne.s32.totalorder %s136, %s138
      %p142 = scmp.eq.s32.totalorder %s18, 0
      %p143 = por %p141, %p142
      %p144 = scmp.ne.s32.totalorder %s136, %s138
      %p145 = scmp.eq.s32.totalorder %s23, 1
      %p146 = por %p144, %p145
      %p147 = scmp.ne.s32.totalorder %s138, %s139
      %p148 = scmp.eq.s32.totalorder %s23, 0
      %p149 = por %p147, %p148
      %p150 = scmp.ne.s32.totalorder %s138, %s139
      %p151 = scmp.eq.s32.totalorder %s24, 1
      %p152 = por %p150, %p151
      %p154 = scmp.ne.s32.totalorder %s139, %s153
      %p155 = scmp.eq.s32.totalorder %s24, 0
      %p156 = por %p154, %p155
      %s158 = sadd.s32 %s157, 1
      %p161 = scmp.eq.s32.totalorder %s18, 1
      %p162 = scmp.ne.s32.totalorder %s157, %s159
      %p163 = scmp.eq.s32.totalorder %s18, 0
      %p164 = por %p162, %p163
      %p165 = scmp.ne.s32.totalorder %s157, %s159
      %p166 = scmp.eq.s32.totalorder %s23, 1
      %p167 = por %p165, %p166
      %p168 = scmp.ne.s32.totalorder %s159, %s160
      %p169 = scmp.eq.s32.totalorder %s23, 0
      %p170 = por %p168, %p169
      %p171 = scmp.ne.s32.totalorder %s159, %s160
      %p172 = scmp.eq.s32.totalorder %s24, 1
      %p173 = por %p171, %p172
      %p175 = scmp.ne.s32.totalorder %s160, %s174
      %p176 = scmp.eq.s32.totalorder %s24, 0
      %p177 = por %p175, %p176
      %s179 = sadd.s32 %s178, 1
      %p182 = scmp.eq.s32.totalorder %s18, 1
      %p183 = scmp.ne.s32.totalorder %s178, %s180
      %p184 = scmp.eq.s32.totalorder %s18, 0
      %p185 = por %p183, %p184
      %p186 = scmp.ne.s32.totalorder %s178, %s180
      %p187 = scmp.eq.s32.totalorder %s23, 1
      %p188 = por %p186, %p187
      %p189 = scmp.ne.s32.totalorder %s180, %s181
      %p190 = scmp.eq.s32.totalorder %s23, 0
      %p191 = por %p189, %p190
      %p192 = scmp.ne.s32.totalorder %s180, %s181
      %p193 = scmp.eq.s32.totalorder %s24, 1
      %p194 = por %p192, %p193
      %p196 = scmp.ne.s32.totalorder %s181, %s195
      %p197 = scmp.eq.s32.totalorder %s24, 0
      %p198 = por %p196, %p197
      %s200 = sadd.s32 %s199, 1
      %p203 = scmp.eq.s32.totalorder %s18, 1
      %p204 = scmp.ne.s32.totalorder %s199, %s201
      %p205 = scmp.eq.s32.totalorder %s18, 0
      %p206 = por %p204, %p205
      %p207 = scmp.ne.s32.totalorder %s199, %s201
      %p208 = scmp.eq.s32.totalorder %s23, 1
      %p209 = por %p207, %p208
      %p210 = scmp.ne.s32.totalorder %s201, %s202
      %p211 = scmp.eq.s32.totalorder %s23, 0
      %p212 = por %p210, %p211
      %p213 = scmp.ne.s32.totalorder %s201, %s202
      %p214 = scmp.eq.s32.totalorder %s24, 1
      %p215 = por %p213, %p214
      %p217 = scmp.ne.s32.totalorder %s202, %s216
      %p218 = scmp.eq.s32.totalorder %s24, 0
      %p219 = por %p217, %p218
      %s220 = ssub.s32 %s18, %s25
      %p221 = scmp.eq.s32.totalorder %s220, 0
      %s223 = sadd.s32 %s222, 1
      %s224 = scalar_select %p221, %s222, %s223
      %p227 = pneg %p221
      %p228 = scmp.eq.s32.totalorder %s18, 1
      %p229 = por %p227, %p228
      %p230 = scmp.ne.s32.totalorder %s222, %s225
      %p231 = scmp.eq.s32.totalorder %s18, 0
      %p232 = por %p230, %p231
      %p233 = scmp.ne.s32.totalorder %s222, %s225
      %p234 = scmp.eq.s32.totalorder %s23, 1
      %p235 = por %p233, %p234
      %p236 = scmp.ne.s32.totalorder %s225, %s226
      %p237 = scmp.eq.s32.totalorder %s23, 0
      %p238 = por %p236, %p237
      %p239 = scmp.ne.s32.totalorder %s225, %s226
      %p240 = scmp.eq.s32.totalorder %s24, 1
      %p241 = por %p239, %p240
      %p243 = scmp.ne.s32.totalorder %s226, %s242
      %p244 = scmp.eq.s32.totalorder %s24, 0
      %p245 = por %p243, %p244
      %p246 = scmp.le.s32.totalorder 1, %s18
      %p247 = scmp.lt.s32.totalorder %s18, 3
      %p248 = pnand %p246, %p247
      %p249 = pneg %p248
      // Predicated region
      $region9: #{tpu_custom_call.1} parent=5 // pred_check
        _
      $region10: #{tpu_custom_call.1} parent=5 // pred_check_branch
        %251 = sbr.rel (%p248) target = $region12
      $region11: #{tpu_custom_call.1} parent=5 // pred_region
        %s252 = ssub.s32 %s18, 1
        // Predicated region
        $region13: #{tpu_custom_call.1} parent=11 // pred_check
          %p253 = pneg %p65
        $region14: #{tpu_custom_call.1} parent=11 // pred_check_branch
          %255 = sbr.rel (%p253) target = $region16
        $region15: #{tpu_custom_call.1} parent=11 // pred_region
          _
        $region16: #{tpu_custom_call.1} parent=11 // pred_fallthru
          _
        // Predicated region
        $region17: #{tpu_custom_call.1} parent=11 // pred_check
          %p256 = pneg %p86
        $region18: #{tpu_custom_call.1} parent=11 // pred_check_branch
          %258 = sbr.rel (%p256) target = $region20
        $region19: #{tpu_custom_call.1} parent=11 // pred_region
          _
        $region20: #{tpu_custom_call.1} parent=11 // pred_fallthru
          _
        // Predicated region
        $region21: #{tpu_custom_call.1} parent=11 // pred_check
          %p259 = pneg %p107
        $region22: #{tpu_custom_call.1} parent=11 // pred_check_branch
          %261 = sbr.rel (%p259) target = $region24
        $region23: #{tpu_custom_call.1} parent=11 // pred_region
          _
        $region24: #{tpu_custom_call.1} parent=11 // pred_fallthru
          _
        // Predicated region
        $region25: #{tpu_custom_call.1} parent=11 // pred_check
          %p262 = pneg %p128
        $region26: #{tpu_custom_call.1} parent=11 // pred_check_branch
          %264 = sbr.rel (%p262) target = $region28
        $region27: #{tpu_custom_call.1} parent=11 // pred_region
          _
        $region28: #{tpu_custom_call.1} parent=11 // pred_fallthru
          _
        // Predicated region
        $region29: #{tpu_custom_call.1} parent=11 // pred_check
          %p265 = pneg %p149
        $region30: #{tpu_custom_call.1} parent=11 // pred_check_branch
          %267 = sbr.rel (%p265) target = $region32
        $region31: #{tpu_custom_call.1} parent=11 // pred_region
          _
        $region32: #{tpu_custom_call.1} parent=11 // pred_fallthru
          _
        // Predicated region
        $region33: #{tpu_custom_call.1} parent=11 // pred_check
          %p268 = pneg %p170
        $region34: #{tpu_custom_call.1} parent=11 // pred_check_branch
          %270 = sbr.rel (%p268) target = $region36
        $region35: #{tpu_custom_call.1} parent=11 // pred_region
          _
        $region36: #{tpu_custom_call.1} parent=11 // pred_fallthru
          _
        // Predicated region
        $region37: #{tpu_custom_call.1} parent=11 // pred_check
          %p271 = pneg %p191
        $region38: #{tpu_custom_call.1} parent=11 // pred_check_branch
          %273 = sbr.rel (%p271) target = $region40
        $region39: #{tpu_custom_call.1} parent=11 // pred_region
          _
        $region40: #{tpu_custom_call.1} parent=11 // pred_fallthru
          _
        // Predicated region
        $region41: #{tpu_custom_call.1} parent=11 // pred_check
          %p274 = pneg %p212
        $region42: #{tpu_custom_call.1} parent=11 // pred_check_branch
          %276 = sbr.rel (%p274) target = $region44
        $region43: #{tpu_custom_call.1} parent=11 // pred_region
          _
        $region44: #{tpu_custom_call.1} parent=11 // pred_fallthru
          _
      $region12: #{tpu_custom_call.1} parent=5 // pred_fallthru
        _
      %p277 = scmp.lt.s32.totalorder %s18, 2
      // Predicated region
      $region45: #{tpu_custom_call.1} parent=5 // pred_check
        %p278 = pneg %p277
      $region46: #{tpu_custom_call.1} parent=5 // pred_check_branch
        %280 = sbr.rel (%p278) target = $region48
      $region47: #{tpu_custom_call.1} parent=5 // pred_region
        // Predicated region
        $region49: #{tpu_custom_call.1} parent=47 // pred_check
          %p281 = pneg %p38
        $region50: #{tpu_custom_call.1} parent=47 // pred_check_branch
          %283 = sbr.rel (%p281) target = $region52
        $region51: #{tpu_custom_call.1} parent=47 // pred_region
          %s284 = smul.u32 64, %s18
          %p285 = scmp.lt.s32.totalorder %s284, 127
          %s286 = scalar_select %p285, %s284, 127
          %s287 = smul.addr %s286, 8
          %s288 = scalar_lea.vmem %s0, %s287
          %s289 = smul.u32 64, %s18
        $region52: #{tpu_custom_call.1} parent=47 // pred_fallthru
          _
      $region48: #{tpu_custom_call.1} parent=5 // pred_fallthru
        _
      %p290 = scmp.le.s32.totalorder 1, %s18
      %p291 = scmp.lt.s32.totalorder %s18, 3
      %p292 = pnand %p290, %p291
      %p293 = pneg %p292
      // Predicated region
      $region53: #{tpu_custom_call.1} parent=5 // pred_check
        _
      $region54: #{tpu_custom_call.1} parent=5 // pred_check_branch
        %295 = sbr.rel (%p292) target = $region56
      $region55: #{tpu_custom_call.1} parent=5 // pred_region
        %s296 = ssub.s32 %s18, 1
        %s297 = smul.u32 64, %s23
        %p298 = scmp.lt.s32.totalorder %s297, 127
        %s299 = scalar_select %p298, %s297, 127
        %s300 = smul.addr %s299, 8
        %s301 = scalar_lea.vmem %s0, %s300
        %p302 = pneg %p44
        %p303 = pneg %p41
        %p304 = pneg %p65
        %p305 = pneg %p62
        %p306 = pneg %p86
        %p307 = pneg %p83
        %p308 = pneg %p107
        %p309 = pneg %p104
        %p310 = pneg %p128
        %p311 = pneg %p125
        %p312 = pneg %p149
        %p313 = pneg %p146
        %p314 = pneg %p170
        %p315 = pneg %p167
        %p316 = pneg %p191
        %p317 = pneg %p188
        %p318 = pneg %p212
        %p319 = pneg %p209
        %p320 = pneg %p238
        %p321 = pneg %p235
        %s322 = sand.u32 %s225, 1
        %s323 = scalar_lea.sflag [#allocation4], %s322
        %s324 = sand.u32 %s225, 1
        %s325 = smul.addr %s324, 512
        %s326 = scalar_lea.vmem [#allocation3], %s325
        %s327 = smul.u32 64, %s23
        %p328 = scmp.lt.s32.totalorder %s327, 127
        %s329 = scalar_select %p328, %s327, 127
        %s330 = smul.addr %s329, 8
        %s331 = scalar_lea.vmem %s0, %s330
        %s332 = smul.u32 64, %s23
        %s333 = smul.u32 64, %s23
        %v335 = vld [vmem:[%s331] sm:$0xff]
        %v336 = vld [vmem:[%s331 + $0x8] sm:$0xff]
        %v337 = vld [vmem:[%s331 + $0x10] sm:$0xff]
        %v338 = vld [vmem:[%s331 + $0x18] sm:$0xff]
        %v339 = vld [vmem:[%s331 + $0x20] sm:$0xff]
        %v340 = vld [vmem:[%s331 + $0x28] sm:$0xff]
        %v341 = vld [vmem:[%s331 + $0x30] sm:$0xff]
        %v342 = vld [vmem:[%s331 + $0x38] sm:$0xff]
        %v343 = vld [vmem:[%s331 + $0x40] sm:$0xff]
        %v344 = vld [vmem:[%s331 + $0x48] sm:$0xff]
        %v345 = vld [vmem:[%s331 + $0x50] sm:$0xff]
        %v346 = vld [vmem:[%s331 + $0x58] sm:$0xff]
        %v347 = vld [vmem:[%s331 + $0x60] sm:$0xff]
        %v348 = vld [vmem:[%s331 + $0x68] sm:$0xff]
        %v349 = vld [vmem:[%s331 + $0x70] sm:$0xff]
        %v350 = vld [vmem:[%s331 + $0x78] sm:$0xff]
        %v351 = vld [vmem:[%s331 + $0x80] sm:$0xff]
        %v352 = vld [vmem:[%s331 + $0x88] sm:$0xff]
        %v353 = vld [vmem:[%s331 + $0x90] sm:$0xff]
        %v354 = vld [vmem:[%s331 + $0x98] sm:$0xff]
        %v355 = vld [vmem:[%s331 + $0xa0] sm:$0xff]
        %v356 = vld [vmem:[%s331 + $0xa8] sm:$0xff]
        %v357 = vld [vmem:[%s331 + $0xb0] sm:$0xff]
        %v358 = vld [vmem:[%s331 + $0xb8] sm:$0xff]
        %v359 = vld [vmem:[%s331 + $0xc0] sm:$0xff]
        %v360 = vld [vmem:[%s331 + $0xc8] sm:$0xff]
        %v361 = vld [vmem:[%s331 + $0xd0] sm:$0xff]
        %v362 = vld [vmem:[%s331 + $0xd8] sm:$0xff]
        %v363 = vld [vmem:[%s331 + $0xe0] sm:$0xff]
        %v364 = vld [vmem:[%s331 + $0xe8] sm:$0xff]
        %v365 = vld [vmem:[%s331 + $0xf0] sm:$0xff]
        %v366 = vld [vmem:[%s331 + $0xf8] sm:$0xff]
        %v367 = vld [vmem:[%s331 + $0x100] sm:$0xff]
        %v368 = vld [vmem:[%s331 + $0x108] sm:$0xff]
        %v369 = vld [vmem:[%s331 + $0x110] sm:$0xff]
        %v370 = vld [vmem:[%s331 + $0x118] sm:$0xff]
        %v371 = vld [vmem:[%s331 + $0x120] sm:$0xff]
        %v372 = vld [vmem:[%s331 + $0x128] sm:$0xff]
        %v373 = vld [vmem:[%s331 + $0x130] sm:$0xff]
        %v374 = vld [vmem:[%s331 + $0x138] sm:$0xff]
        %v375 = vld [vmem:[%s331 + $0x140] sm:$0xff]
        %v376 = vld [vmem:[%s331 + $0x148] sm:$0xff]
        %v377 = vld [vmem:[%s331 + $0x150] sm:$0xff]
        %v378 = vld [vmem:[%s331 + $0x158] sm:$0xff]
        %v379 = vld [vmem:[%s331 + $0x160] sm:$0xff]
        %v380 = vld [vmem:[%s331 + $0x168] sm:$0xff]
        %v381 = vld [vmem:[%s331 + $0x170] sm:$0xff]
        %v382 = vld [vmem:[%s331 + $0x178] sm:$0xff]
        %v383 = vld [vmem:[%s331 + $0x180] sm:$0xff]
        %v384 = vld [vmem:[%s331 + $0x188] sm:$0xff]
        %v385 = vld [vmem:[%s331 + $0x190] sm:$0xff]
        %v386 = vld [vmem:[%s331 + $0x198] sm:$0xff]
        %v387 = vld [vmem:[%s331 + $0x1a0] sm:$0xff]
        %v388 = vld [vmem:[%s331 + $0x1a8] sm:$0xff]
        %v389 = vld [vmem:[%s331 + $0x1b0] sm:$0xff]
        %v390 = vld [vmem:[%s331 + $0x1b8] sm:$0xff]
        %v391 = vld [vmem:[%s331 + $0x1c0] sm:$0xff]
        %v392 = vld [vmem:[%s331 + $0x1c8] sm:$0xff]
        %v393 = vld [vmem:[%s331 + $0x1d0] sm:$0xff]
        %v394 = vld [vmem:[%s331 + $0x1d8] sm:$0xff]
        %v395 = vld [vmem:[%s331 + $0x1e0] sm:$0xff]
        %v396 = vld [vmem:[%s331 + $0x1e8] sm:$0xff]
        %v397 = vld [vmem:[%s331 + $0x1f0] sm:$0xff]
        %v398 = vld [vmem:[%s331 + $0x1f8] sm:$0xff]
        %v399 = vld [vmem:[%s2] sm:$0x1]
        %v400 = vld [vmem:[%s1] sm:$0xff]
        %v401 = vld [vmem:[%s1 + $0x8] sm:$0x3]
        %v403 = vlaneseq
        %v404 = vshrl.u32 %v403, 7
        %v405 = vsub.s32 0, %v404
        %v406 = vrot.slane %v399, %v405
        %409 = vset.pattern.permute.xlu0 0
        %410 = vperm.xlu0 %409, %v335
        %v411 = vpop.permute.xlu0 %410
        %414 = vset.pattern.permute.xlu0 0
        %415 = vperm.xlu0 %414, %v336
        %v416 = vpop.permute.xlu0 %415
        %419 = vset.pattern.permute.xlu0 0
        %420 = vperm.xlu0 %419, %v337
        %v421 = vpop.permute.xlu0 %420
        %424 = vset.pattern.permute.xlu0 0
        %425 = vperm.xlu0 %424, %v338
        %v426 = vpop.permute.xlu0 %425
        %429 = vset.pattern.permute.xlu0 0
        %430 = vperm.xlu0 %429, %v339
        %v431 = vpop.permute.xlu0 %430
        %434 = vset.pattern.permute.xlu0 0
        %435 = vperm.xlu0 %434, %v340
        %v436 = vpop.permute.xlu0 %435
        %439 = vset.pattern.permute.xlu0 0
        %440 = vperm.xlu0 %439, %v341
        %v441 = vpop.permute.xlu0 %440
        %444 = vset.pattern.permute.xlu0 0
        %445 = vperm.xlu0 %444, %v342
        %v446 = vpop.permute.xlu0 %445
        %449 = vset.pattern.permute.xlu0 0
        %450 = vperm.xlu0 %449, %v343
        %v451 = vpop.permute.xlu0 %450
        %454 = vset.pattern.permute.xlu0 0
        %455 = vperm.xlu0 %454, %v344
        %v456 = vpop.permute.xlu0 %455
        %459 = vset.pattern.permute.xlu0 0
        %460 = vperm.xlu0 %459, %v345
        %v461 = vpop.permute.xlu0 %460
        %464 = vset.pattern.permute.xlu0 0
        %465 = vperm.xlu0 %464, %v346
        %v466 = vpop.permute.xlu0 %465
        %469 = vset.pattern.permute.xlu0 0
        %470 = vperm.xlu0 %469, %v347
        %v471 = vpop.permute.xlu0 %470
        %474 = vset.pattern.permute.xlu0 0
        %475 = vperm.xlu0 %474, %v348
        %v476 = vpop.permute.xlu0 %475
        %479 = vset.pattern.permute.xlu0 0
        %480 = vperm.xlu0 %479, %v349
        %v481 = vpop.permute.xlu0 %480
        %484 = vset.pattern.permute.xlu0 0
        %485 = vperm.xlu0 %484, %v350
        %v486 = vpop.permute.xlu0 %485
        %489 = vset.pattern.permute.xlu0 0
        %490 = vperm.xlu0 %489, %v351
        %v491 = vpop.permute.xlu0 %490
        %494 = vset.pattern.permute.xlu0 0
        %495 = vperm.xlu0 %494, %v352
        %v496 = vpop.permute.xlu0 %495
        %499 = vset.pattern.permute.xlu0 0
        %500 = vperm.xlu0 %499, %v353
        %v501 = vpop.permute.xlu0 %500
        %504 = vset.pattern.permute.xlu0 0
        %505 = vperm.xlu0 %504, %v354
        %v506 = vpop.permute.xlu0 %505
        %509 = vset.pattern.permute.xlu0 0
        %510 = vperm.xlu0 %509, %v355
        %v511 = vpop.permute.xlu0 %510
        %514 = vset.pattern.permute.xlu0 0
        %515 = vperm.xlu0 %514, %v356
        %v516 = vpop.permute.xlu0 %515
        %519 = vset.pattern.permute.xlu0 0
        %520 = vperm.xlu0 %519, %v357
        %v521 = vpop.permute.xlu0 %520
        %524 = vset.pattern.permute.xlu0 0
        %525 = vperm.xlu0 %524, %v358
        %v526 = vpop.permute.xlu0 %525
        %529 = vset.pattern.permute.xlu0 0
        %530 = vperm.xlu0 %529, %v359
        %v531 = vpop.permute.xlu0 %530
        %534 = vset.pattern.permute.xlu0 0
        %535 = vperm.xlu0 %534, %v360
        %v536 = vpop.permute.xlu0 %535
        %539 = vset.pattern.permute.xlu0 0
        %540 = vperm.xlu0 %539, %v361
        %v541 = vpop.permute.xlu0 %540
        %544 = vset.pattern.permute.xlu0 0
        %545 = vperm.xlu0 %544, %v362
        %v546 = vpop.permute.xlu0 %545
        %549 = vset.pattern.permute.xlu0 0
        %550 = vperm.xlu0 %549, %v363
        %v551 = vpop.permute.xlu0 %550
        %554 = vset.pattern.permute.xlu0 0
        %555 = vperm.xlu0 %554, %v364
        %v556 = vpop.permute.xlu0 %555
        %559 = vset.pattern.permute.xlu0 0
        %560 = vperm.xlu0 %559, %v365
        %v561 = vpop.permute.xlu0 %560
        %564 = vset.pattern.permute.xlu0 0
        %565 = vperm.xlu0 %564, %v366
        %v566 = vpop.permute.xlu0 %565
        %569 = vset.pattern.permute.xlu0 0
        %570 = vperm.xlu0 %569, %v367
        %v571 = vpop.permute.xlu0 %570
        %574 = vset.pattern.permute.xlu0 0
        %575 = vperm.xlu0 %574, %v368
        %v576 = vpop.permute.xlu0 %575
        %579 = vset.pattern.permute.xlu0 0
        %580 = vperm.xlu0 %579, %v369
        %v581 = vpop.permute.xlu0 %580
        %584 = vset.pattern.permute.xlu0 0
        %585 = vperm.xlu0 %584, %v370
        %v586 = vpop.permute.xlu0 %585
        %589 = vset.pattern.permute.xlu0 0
        %590 = vperm.xlu0 %589, %v371
        %v591 = vpop.permute.xlu0 %590
        %594 = vset.pattern.permute.xlu0 0
        %595 = vperm.xlu0 %594, %v372
        %v596 = vpop.permute.xlu0 %595
        %599 = vset.pattern.permute.xlu0 0
        %600 = vperm.xlu0 %599, %v373
        %v601 = vpop.permute.xlu0 %600
        %604 = vset.pattern.permute.xlu0 0
        %605 = vperm.xlu0 %604, %v374
        %v606 = vpop.permute.xlu0 %605
        %609 = vset.pattern.permute.xlu0 0
        %610 = vperm.xlu0 %609, %v375
        %v611 = vpop.permute.xlu0 %610
        %614 = vset.pattern.permute.xlu0 0
        %615 = vperm.xlu0 %614, %v376
        %v616 = vpop.permute.xlu0 %615
        %619 = vset.pattern.permute.xlu0 0
        %620 = vperm.xlu0 %619, %v377
        %v621 = vpop.permute.xlu0 %620
        %624 = vset.pattern.permute.xlu0 0
        %625 = vperm.xlu0 %624, %v378
        %v626 = vpop.permute.xlu0 %625
        %629 = vset.pattern.permute.xlu0 0
        %630 = vperm.xlu0 %629, %v379
        %v631 = vpop.permute.xlu0 %630
        %634 = vset.pattern.permute.xlu0 0
        %635 = vperm.xlu0 %634, %v380
        %v636 = vpop.permute.xlu0 %635
        %639 = vset.pattern.permute.xlu0 0
        %640 = vperm.xlu0 %639, %v381
        %v641 = vpop.permute.xlu0 %640
        %644 = vset.pattern.permute.xlu0 0
        %645 = vperm.xlu0 %644, %v382
        %v646 = vpop.permute.xlu0 %645
        %649 = vset.pattern.permute.xlu0 0
        %650 = vperm.xlu0 %649, %v383
        %v651 = vpop.permute.xlu0 %650
        %654 = vset.pattern.permute.xlu0 0
        %655 = vperm.xlu0 %654, %v384
        %v656 = vpop.permute.xlu0 %655
        %659 = vset.pattern.permute.xlu0 0
        %660 = vperm.xlu0 %659, %v385
        %v661 = vpop.permute.xlu0 %660
        %664 = vset.pattern.permute.xlu0 0
        %665 = vperm.xlu0 %664, %v386
        %v666 = vpop.permute.xlu0 %665
        %669 = vset.pattern.permute.xlu0 0
        %670 = vperm.xlu0 %669, %v387
        %v671 = vpop.permute.xlu0 %670
        %674 = vset.pattern.permute.xlu0 0
        %675 = vperm.xlu0 %674, %v388
        %v676 = vpop.permute.xlu0 %675
        %679 = vset.pattern.permute.xlu0 0
        %680 = vperm.xlu0 %679, %v389
        %v681 = vpop.permute.xlu0 %680
        %684 = vset.pattern.permute.xlu0 0
        %685 = vperm.xlu0 %684, %v390
        %v686 = vpop.permute.xlu0 %685
        %689 = vset.pattern.permute.xlu0 0
        %690 = vperm.xlu0 %689, %v391
        %v691 = vpop.permute.xlu0 %690
        %694 = vset.pattern.permute.xlu0 0
        %695 = vperm.xlu0 %694, %v392
        %v696 = vpop.permute.xlu0 %695
        %699 = vset.pattern.permute.xlu0 0
        %700 = vperm.xlu0 %699, %v393
        %v701 = vpop.permute.xlu0 %700
        %704 = vset.pattern.permute.xlu0 0
        %705 = vperm.xlu0 %704, %v394
        %v706 = vpop.permute.xlu0 %705
        %709 = vset.pattern.permute.xlu0 0
        %710 = vperm.xlu0 %709, %v395
        %v711 = vpop.permute.xlu0 %710
        %714 = vset.pattern.permute.xlu0 0
        %715 = vperm.xlu0 %714, %v396
        %v716 = vpop.permute.xlu0 %715
        %719 = vset.pattern.permute.xlu0 0
        %720 = vperm.xlu0 %719, %v397
        %v721 = vpop.permute.xlu0 %720
        %724 = vset.pattern.permute.xlu0 0
        %725 = vperm.xlu0 %724, %v398
        %v726 = vpop.permute.xlu0 %725
        %v728 = vlaneseq
        %v729 = vshrl.u32 %v728, 7
        %v730 = vsub.s32 0, %v729
        %v731 = vrot.slane %v400, %v730
        %v732 = vmul.f32 %v411, %v731
        %v733 = vmul.f32 %v416, %v731
        %v734 = vmul.f32 %v421, %v731
        %v735 = vmul.f32 %v426, %v731
        %v736 = vmul.f32 %v431, %v731
        %v737 = vmul.f32 %v436, %v731
        %v738 = vmul.f32 %v441, %v731
        %v739 = vmul.f32 %v446, %v731
        %v740 = vmul.f32 %v451, %v731
        %v741 = vmul.f32 %v456, %v731
        %v742 = vmul.f32 %v461, %v731
        %v743 = vmul.f32 %v466, %v731
        %v744 = vmul.f32 %v471, %v731
        %v745 = vmul.f32 %v476, %v731
        %v746 = vmul.f32 %v481, %v731
        %v747 = vmul.f32 %v486, %v731
        %v748 = vmul.f32 %v491, %v731
        %v749 = vmul.f32 %v496, %v731
        %v750 = vmul.f32 %v501, %v731
        %v751 = vmul.f32 %v506, %v731
        %v752 = vmul.f32 %v511, %v731
        %v753 = vmul.f32 %v516, %v731
        %v754 = vmul.f32 %v521, %v731
        %v755 = vmul.f32 %v526, %v731
        %v756 = vmul.f32 %v531, %v731
        %v757 = vmul.f32 %v536, %v731
        %v758 = vmul.f32 %v541, %v731
        %v759 = vmul.f32 %v546, %v731
        %v760 = vmul.f32 %v551, %v731
        %v761 = vmul.f32 %v556, %v731
        %v762 = vmul.f32 %v561, %v731
        %v763 = vmul.f32 %v566, %v731
        %v764 = vmul.f32 %v571, %v731
        %v765 = vmul.f32 %v576, %v731
        %v766 = vmul.f32 %v581, %v731
        %v767 = vmul.f32 %v586, %v731
        %v768 = vmul.f32 %v591, %v731
        %v769 = vmul.f32 %v596, %v731
        %v770 = vmul.f32 %v601, %v731
        %v771 = vmul.f32 %v606, %v731
        %v772 = vmul.f32 %v611, %v731
        %v773 = vmul.f32 %v616, %v731
        %v774 = vmul.f32 %v621, %v731
        %v775 = vmul.f32 %v626, %v731
        %v776 = vmul.f32 %v631, %v731
        %v777 = vmul.f32 %v636, %v731
        %v778 = vmul.f32 %v641, %v731
        %v779 = vmul.f32 %v646, %v731
        %v780 = vmul.f32 %v651, %v731
        %v781 = vmul.f32 %v656, %v731
        %v782 = vmul.f32 %v661, %v731
        %v783 = vmul.f32 %v666, %v731
        %v784 = vmul.f32 %v671, %v731
        %v785 = vmul.f32 %v676, %v731
        %v786 = vmul.f32 %v681, %v731
        %v787 = vmul.f32 %v686, %v731
        %v788 = vmul.f32 %v691, %v731
        %v789 = vmul.f32 %v696, %v731
        %v790 = vmul.f32 %v701, %v731
        %v791 = vmul.f32 %v706, %v731
        %v792 = vmul.f32 %v711, %v731
        %v793 = vmul.f32 %v716, %v731
        %v794 = vmul.f32 %v721, %v731
        %v795 = vmul.f32 %v726, %v731
        %v796 = vadd.f32 %v406, %v732
        %v797 = vadd.f32 %v406, %v733
        %v798 = vadd.f32 %v406, %v734
        %v799 = vadd.f32 %v406, %v735
        %v800 = vadd.f32 %v406, %v736
        %v801 = vadd.f32 %v406, %v737
        %v802 = vadd.f32 %v406, %v738
        %v803 = vadd.f32 %v406, %v739
        %v804 = vadd.f32 %v406, %v740
        %v805 = vadd.f32 %v406, %v741
        %v806 = vadd.f32 %v406, %v742
        %v807 = vadd.f32 %v406, %v743
        %v808 = vadd.f32 %v406, %v744
        %v809 = vadd.f32 %v406, %v745
        %v810 = vadd.f32 %v406, %v746
        %v811 = vadd.f32 %v406, %v747
        %v812 = vadd.f32 %v406, %v748
        %v813 = vadd.f32 %v406, %v749
        %v814 = vadd.f32 %v406, %v750
        %v815 = vadd.f32 %v406, %v751
        %v816 = vadd.f32 %v406, %v752
        %v817 = vadd.f32 %v406, %v753
        %v818 = vadd.f32 %v406, %v754
        %v819 = vadd.f32 %v406, %v755
        %v820 = vadd.f32 %v406, %v756
        %v821 = vadd.f32 %v406, %v757
        %v822 = vadd.f32 %v406, %v758
        %v823 = vadd.f32 %v406, %v759
        %v824 = vadd.f32 %v406, %v760
        %v825 = vadd.f32 %v406, %v761
        %v826 = vadd.f32 %v406, %v762
        %v827 = vadd.f32 %v406, %v763
        %v828 = vadd.f32 %v406, %v764
        %v829 = vadd.f32 %v406, %v765
        %v830 = vadd.f32 %v406, %v766
        %v831 = vadd.f32 %v406, %v767
        %v832 = vadd.f32 %v406, %v768
        %v833 = vadd.f32 %v406, %v769
        %v834 = vadd.f32 %v406, %v770
        %v835 = vadd.f32 %v406, %v771
        %v836 = vadd.f32 %v406, %v772
        %v837 = vadd.f32 %v406, %v773
        %v838 = vadd.f32 %v406, %v774
        %v839 = vadd.f32 %v406, %v775
        %v840 = vadd.f32 %v406, %v776
        %v841 = vadd.f32 %v406, %v777
        %v842 = vadd.f32 %v406, %v778
        %v843 = vadd.f32 %v406, %v779
        %v844 = vadd.f32 %v406, %v780
        %v845 = vadd.f32 %v406, %v781
        %v846 = vadd.f32 %v406, %v782
        %v847 = vadd.f32 %v406, %v783
        %v848 = vadd.f32 %v406, %v784
        %v849 = vadd.f32 %v406, %v785
        %v850 = vadd.f32 %v406, %v786
        %v851 = vadd.f32 %v406, %v787
        %v852 = vadd.f32 %v406, %v788
        %v853 = vadd.f32 %v406, %v789
        %v854 = vadd.f32 %v406, %v790
        %v855 = vadd.f32 %v406, %v791
        %v856 = vadd.f32 %v406, %v792
        %v857 = vadd.f32 %v406, %v793
        %v858 = vadd.f32 %v406, %v794
        %v859 = vadd.f32 %v406, %v795
        %860 = vset.pattern.permute.xlu0 1
        %861 = vperm.xlu0 %860, %v335
        %v862 = vpop.permute.xlu0 %861
        %864 = vset.pattern.permute.xlu0 1
        %865 = vperm.xlu0 %864, %v336
        %v866 = vpop.permute.xlu0 %865
        %868 = vset.pattern.permute.xlu0 1
        %869 = vperm.xlu0 %868, %v337
        %v870 = vpop.permute.xlu0 %869
        %872 = vset.pattern.permute.xlu0 1
        %873 = vperm.xlu0 %872, %v338
        %v874 = vpop.permute.xlu0 %873
        %876 = vset.pattern.permute.xlu0 1
        %877 = vperm.xlu0 %876, %v339
        %v878 = vpop.permute.xlu0 %877
        %880 = vset.pattern.permute.xlu0 1
        %881 = vperm.xlu0 %880, %v340
        %v882 = vpop.permute.xlu0 %881
        %884 = vset.pattern.permute.xlu0 1
        %885 = vperm.xlu0 %884, %v341
        %v886 = vpop.permute.xlu0 %885
        %888 = vset.pattern.permute.xlu0 1
        %889 = vperm.xlu0 %888, %v342
        %v890 = vpop.permute.xlu0 %889
        %892 = vset.pattern.permute.xlu0 1
        %893 = vperm.xlu0 %892, %v343
        %v894 = vpop.permute.xlu0 %893
        %896 = vset.pattern.permute.xlu0 1
        %897 = vperm.xlu0 %896, %v344
        %v898 = vpop.permute.xlu0 %897
        %900 = vset.pattern.permute.xlu0 1
        %901 = vperm.xlu0 %900, %v345
        %v902 = vpop.permute.xlu0 %901
        %904 = vset.pattern.permute.xlu0 1
        %905 = vperm.xlu0 %904, %v346
        %v906 = vpop.permute.xlu0 %905
        %908 = vset.pattern.permute.xlu0 1
        %909 = vperm.xlu0 %908, %v347
        %v910 = vpop.permute.xlu0 %909
        %912 = vset.pattern.permute.xlu0 1
        %913 = vperm.xlu0 %912, %v348
        %v914 = vpop.permute.xlu0 %913
        %916 = vset.pattern.permute.xlu0 1
        %917 = vperm.xlu0 %916, %v349
        %v918 = vpop.permute.xlu0 %917
        %920 = vset.pattern.permute.xlu0 1
        %921 = vperm.xlu0 %920, %v350
        %v922 = vpop.permute.xlu0 %921
        %924 = vset.pattern.permute.xlu0 1
        %925 = vperm.xlu0 %924, %v351
        %v926 = vpop.permute.xlu0 %925
        %928 = vset.pattern.permute.xlu0 1
        %929 = vperm.xlu0 %928, %v352
        %v930 = vpop.permute.xlu0 %929
        %932 = vset.pattern.permute.xlu0 1
        %933 = vperm.xlu0 %932, %v353
        %v934 = vpop.permute.xlu0 %933
        %936 = vset.pattern.permute.xlu0 1
        %937 = vperm.xlu0 %936, %v354
        %v938 = vpop.permute.xlu0 %937
        %940 = vset.pattern.permute.xlu0 1
        %941 = vperm.xlu0 %940, %v355
        %v942 = vpop.permute.xlu0 %941
        %944 = vset.pattern.permute.xlu0 1
        %945 = vperm.xlu0 %944, %v356
        %v946 = vpop.permute.xlu0 %945
        %948 = vset.pattern.permute.xlu0 1
        %949 = vperm.xlu0 %948, %v357
        %v950 = vpop.permute.xlu0 %949
        %952 = vset.pattern.permute.xlu0 1
        %953 = vperm.xlu0 %952, %v358
        %v954 = vpop.permute.xlu0 %953
        %956 = vset.pattern.permute.xlu0 1
        %957 = vperm.xlu0 %956, %v359
        %v958 = vpop.permute.xlu0 %957
        %960 = vset.pattern.permute.xlu0 1
        %961 = vperm.xlu0 %960, %v360
        %v962 = vpop.permute.xlu0 %961
        %964 = vset.pattern.permute.xlu0 1
        %965 = vperm.xlu0 %964, %v361
        %v966 = vpop.permute.xlu0 %965
        %968 = vset.pattern.permute.xlu0 1
        %969 = vperm.xlu0 %968, %v362
        %v970 = vpop.permute.xlu0 %969
        %972 = vset.pattern.permute.xlu0 1
        %973 = vperm.xlu0 %972, %v363
        %v974 = vpop.permute.xlu0 %973
        %976 = vset.pattern.permute.xlu0 1
        %977 = vperm.xlu0 %976, %v364
        %v978 = vpop.permute.xlu0 %977
        %980 = vset.pattern.permute.xlu0 1
        %981 = vperm.xlu0 %980, %v365
        %v982 = vpop.permute.xlu0 %981
        %984 = vset.pattern.permute.xlu0 1
        %985 = vperm.xlu0 %984, %v366
        %v986 = vpop.permute.xlu0 %985
        %988 = vset.pattern.permute.xlu0 1
        %989 = vperm.xlu0 %988, %v367
        %v990 = vpop.permute.xlu0 %989
        %992 = vset.pattern.permute.xlu0 1
        %993 = vperm.xlu0 %992, %v368
        %v994 = vpop.permute.xlu0 %993
        %996 = vset.pattern.permute.xlu0 1
        %997 = vperm.xlu0 %996, %v369
        %v998 = vpop.permute.xlu0 %997
        %1000 = vset.pattern.permute.xlu0 1
        %1001 = vperm.xlu0 %1000, %v370
        %v1002 = vpop.permute.xlu0 %1001
        %1004 = vset.pattern.permute.xlu0 1
        %1005 = vperm.xlu0 %1004, %v371
        %v1006 = vpop.permute.xlu0 %1005
        %1008 = vset.pattern.permute.xlu0 1
        %1009 = vperm.xlu0 %1008, %v372
        %v1010 = vpop.permute.xlu0 %1009
        %1012 = vset.pattern.permute.xlu0 1
        %1013 = vperm.xlu0 %1012, %v373
        %v1014 = vpop.permute.xlu0 %1013
        %1016 = vset.pattern.permute.xlu0 1
        %1017 = vperm.xlu0 %1016, %v374
        %v1018 = vpop.permute.xlu0 %1017
        %1020 = vset.pattern.permute.xlu0 1
        %1021 = vperm.xlu0 %1020, %v375
        %v1022 = vpop.permute.xlu0 %1021
        %1024 = vset.pattern.permute.xlu0 1
        %1025 = vperm.xlu0 %1024, %v376
        %v1026 = vpop.permute.xlu0 %1025
        %1028 = vset.pattern.permute.xlu0 1
        %1029 = vperm.xlu0 %1028, %v377
        %v1030 = vpop.permute.xlu0 %1029
        %1032 = vset.pattern.permute.xlu0 1
        %1033 = vperm.xlu0 %1032, %v378
        %v1034 = vpop.permute.xlu0 %1033
        %1036 = vset.pattern.permute.xlu0 1
        %1037 = vperm.xlu0 %1036, %v379
        %v1038 = vpop.permute.xlu0 %1037
        %1040 = vset.pattern.permute.xlu0 1
        %1041 = vperm.xlu0 %1040, %v380
        %v1042 = vpop.permute.xlu0 %1041
        %1044 = vset.pattern.permute.xlu0 1
        %1045 = vperm.xlu0 %1044, %v381
        %v1046 = vpop.permute.xlu0 %1045
        %1048 = vset.pattern.permute.xlu0 1
        %1049 = vperm.xlu0 %1048, %v382
        %v1050 = vpop.permute.xlu0 %1049
        %1052 = vset.pattern.permute.xlu0 1
        %1053 = vperm.xlu0 %1052, %v383
        %v1054 = vpop.permute.xlu0 %1053
        %1056 = vset.pattern.permute.xlu0 1
        %1057 = vperm.xlu0 %1056, %v384
        %v1058 = vpop.permute.xlu0 %1057
        %1060 = vset.pattern.permute.xlu0 1
        %1061 = vperm.xlu0 %1060, %v385
        %v1062 = vpop.permute.xlu0 %1061
        %1064 = vset.pattern.permute.xlu0 1
        %1065 = vperm.xlu0 %1064, %v386
        %v1066 = vpop.permute.xlu0 %1065
        %1068 = vset.pattern.permute.xlu0 1
        %1069 = vperm.xlu0 %1068, %v387
        %v1070 = vpop.permute.xlu0 %1069
        %1072 = vset.pattern.permute.xlu0 1
        %1073 = vperm.xlu0 %1072, %v388
        %v1074 = vpop.permute.xlu0 %1073
        %1076 = vset.pattern.permute.xlu0 1
        %1077 = vperm.xlu0 %1076, %v389
        %v1078 = vpop.permute.xlu0 %1077
        %1080 = vset.pattern.permute.xlu0 1
        %1081 = vperm.xlu0 %1080, %v390
        %v1082 = vpop.permute.xlu0 %1081
        %1084 = vset.pattern.permute.xlu0 1
        %1085 = vperm.xlu0 %1084, %v391
        %v1086 = vpop.permute.xlu0 %1085
        %1088 = vset.pattern.permute.xlu0 1
        %1089 = vperm.xlu0 %1088, %v392
        %v1090 = vpop.permute.xlu0 %1089
        %1092 = vset.pattern.permute.xlu0 1
        %1093 = vperm.xlu0 %1092, %v393
        %v1094 = vpop.permute.xlu0 %1093
        %1096 = vset.pattern.permute.xlu0 1
        %1097 = vperm.xlu0 %1096, %v394
        %v1098 = vpop.permute.xlu0 %1097
        %1100 = vset.pattern.permute.xlu0 1
        %1101 = vperm.xlu0 %1100, %v395
        %v1102 = vpop.permute.xlu0 %1101
        %1104 = vset.pattern.permute.xlu0 1
        %1105 = vperm.xlu0 %1104, %v396
        %v1106 = vpop.permute.xlu0 %1105
        %1108 = vset.pattern.permute.xlu0 1
        %1109 = vperm.xlu0 %1108, %v397
        %v1110 = vpop.permute.xlu0 %1109
        %1112 = vset.pattern.permute.xlu0 1
        %1113 = vperm.xlu0 %1112, %v398
        %v1114 = vpop.permute.xlu0 %1113
        %v1116 = vlaneseq
        %v1117 = vshrl.u32 %v1116, 7
        %v1118 = vsub.s32 1, %v1117
        %v1119 = vrot.slane %v400, %v1118
        %v1120 = vmul.f32 %v862, %v1119
        %v1121 = vmul.f32 %v866, %v1119
        %v1122 = vmul.f32 %v870, %v1119
        %v1123 = vmul.f32 %v874, %v1119
        %v1124 = vmul.f32 %v878, %v1119
        %v1125 = vmul.f32 %v882, %v1119
        %v1126 = vmul.f32 %v886, %v1119
        %v1127 = vmul.f32 %v890, %v1119
        %v1128 = vmul.f32 %v894, %v1119
        %v1129 = vmul.f32 %v898, %v1119
        %v1130 = vmul.f32 %v902, %v1119
        %v1131 = vmul.f32 %v906, %v1119
        %v1132 = vmul.f32 %v910, %v1119
        %v1133 = vmul.f32 %v914, %v1119
        %v1134 = vmul.f32 %v918, %v1119
        %v1135 = vmul.f32 %v922, %v1119
        %v1136 = vmul.f32 %v926, %v1119
        %v1137 = vmul.f32 %v930, %v1119
        %v1138 = vmul.f32 %v934, %v1119
        %v1139 = vmul.f32 %v938, %v1119
        %v1140 = vmul.f32 %v942, %v1119
        %v1141 = vmul.f32 %v946, %v1119
        %v1142 = vmul.f32 %v950, %v1119
        %v1143 = vmul.f32 %v954, %v1119
        %v1144 = vmul.f32 %v958, %v1119
        %v1145 = vmul.f32 %v962, %v1119
        %v1146 = vmul.f32 %v966, %v1119
        %v1147 = vmul.f32 %v970, %v1119
        %v1148 = vmul.f32 %v974, %v1119
        %v1149 = vmul.f32 %v978, %v1119
        %v1150 = vmul.f32 %v982, %v1119
        %v1151 = vmul.f32 %v986, %v1119
        %v1152 = vmul.f32 %v990, %v1119
        %v1153 = vmul.f32 %v994, %v1119
        %v1154 = vmul.f32 %v998, %v1119
        %v1155 = vmul.f32 %v1002, %v1119
        %v1156 = vmul.f32 %v1006, %v1119
        %v1157 = vmul.f32 %v1010, %v1119
        %v1158 = vmul.f32 %v1014, %v1119
        %v1159 = vmul.f32 %v1018, %v1119
        %v1160 = vmul.f32 %v1022, %v1119
        %v1161 = vmul.f32 %v1026, %v1119
        %v1162 = vmul.f32 %v1030, %v1119
        %v1163 = vmul.f32 %v1034, %v1119
        %v1164 = vmul.f32 %v1038, %v1119
        %v1165 = vmul.f32 %v1042, %v1119
        %v1166 = vmul.f32 %v1046, %v1119
        %v1167 = vmul.f32 %v1050, %v1119
        %v1168 = vmul.f32 %v1054, %v1119
        %v1169 = vmul.f32 %v1058, %v1119
        %v1170 = vmul.f32 %v1062, %v1119
        %v1171 = vmul.f32 %v1066, %v1119
        %v1172 = vmul.f32 %v1070, %v1119
        %v1173 = vmul.f32 %v1074, %v1119
        %v1174 = vmul.f32 %v1078, %v1119
        %v1175 = vmul.f32 %v1082, %v1119
        %v1176 = vmul.f32 %v1086, %v1119
        %v1177 = vmul.f32 %v1090, %v1119
        %v1178 = vmul.f32 %v1094, %v1119
        %v1179 = vmul.f32 %v1098, %v1119
        %v1180 = vmul.f32 %v1102, %v1119
        %v1181 = vmul.f32 %v1106, %v1119
        %v1182 = vmul.f32 %v1110, %v1119
        %v1183 = vmul.f32 %v1114, %v1119
        %v1184 = vadd.f32 %v796, %v1120
        %v1185 = vadd.f32 %v797, %v1121
        %v1186 = vadd.f32 %v798, %v1122
        %v1187 = vadd.f32 %v799, %v1123
        %v1188 = vadd.f32 %v800, %v1124
        %v1189 = vadd.f32 %v801, %v1125
        %v1190 = vadd.f32 %v802, %v1126
        %v1191 = vadd.f32 %v803, %v1127
        %v1192 = vadd.f32 %v804, %v1128
        %v1193 = vadd.f32 %v805, %v1129
        %v1194 = vadd.f32 %v806, %v1130
        %v1195 = vadd.f32 %v807, %v1131
        %v1196 = vadd.f32 %v808, %v1132
        %v1197 = vadd.f32 %v809, %v1133
        %v1198 = vadd.f32 %v810, %v1134
        %v1199 = vadd.f32 %v811, %v1135
        %v1200 = vadd.f32 %v812, %v1136
        %v1201 = vadd.f32 %v813, %v1137
        %v1202 = vadd.f32 %v814, %v1138
        %v1203 = vadd.f32 %v815, %v1139
        %v1204 = vadd.f32 %v816, %v1140
        %v1205 = vadd.f32 %v817, %v1141
        %v1206 = vadd.f32 %v818, %v1142
        %v1207 = vadd.f32 %v819, %v1143
        %v1208 = vadd.f32 %v820, %v1144
        %v1209 = vadd.f32 %v821, %v1145
        %v1210 = vadd.f32 %v822, %v1146
        %v1211 = vadd.f32 %v823, %v1147
        %v1212 = vadd.f32 %v824, %v1148
        %v1213 = vadd.f32 %v825, %v1149
        %v1214 = vadd.f32 %v826, %v1150
        %v1215 = vadd.f32 %v827, %v1151
        %v1216 = vadd.f32 %v828, %v1152
        %v1217 = vadd.f32 %v829, %v1153
        %v1218 = vadd.f32 %v830, %v1154
        %v1219 = vadd.f32 %v831, %v1155
        %v1220 = vadd.f32 %v832, %v1156
        %v1221 = vadd.f32 %v833, %v1157
        %v1222 = vadd.f32 %v834, %v1158
        %v1223 = vadd.f32 %v835, %v1159
        %v1224 = vadd.f32 %v836, %v1160
        %v1225 = vadd.f32 %v837, %v1161
        %v1226 = vadd.f32 %v838, %v1162
        %v1227 = vadd.f32 %v839, %v1163
        %v1228 = vadd.f32 %v840, %v1164
        %v1229 = vadd.f32 %v841, %v1165
        %v1230 = vadd.f32 %v842, %v1166
        %v1231 = vadd.f32 %v843, %v1167
        %v1232 = vadd.f32 %v844, %v1168
        %v1233 = vadd.f32 %v845, %v1169
        %v1234 = vadd.f32 %v846, %v1170
        %v1235 = vadd.f32 %v847, %v1171
        %v1236 = vadd.f32 %v848, %v1172
        %v1237 = vadd.f32 %v849, %v1173
        %v1238 = vadd.f32 %v850, %v1174
        %v1239 = vadd.f32 %v851, %v1175
        %v1240 = vadd.f32 %v852, %v1176
        %v1241 = vadd.f32 %v853, %v1177
        %v1242 = vadd.f32 %v854, %v1178
        %v1243 = vadd.f32 %v855, %v1179
        %v1244 = vadd.f32 %v856, %v1180
        %v1245 = vadd.f32 %v857, %v1181
        %v1246 = vadd.f32 %v858, %v1182
        %v1247 = vadd.f32 %v859, %v1183
        %1248 = vset.pattern.permute.xlu0 2
        %1249 = vperm.xlu0 %1248, %v335
        %v1250 = vpop.permute.xlu0 %1249
        %1252 = vset.pattern.permute.xlu0 2
        %1253 = vperm.xlu0 %1252, %v336
        %v1254 = vpop.permute.xlu0 %1253
        %1256 = vset.pattern.permute.xlu0 2
        %1257 = vperm.xlu0 %1256, %v337
        %v1258 = vpop.permute.xlu0 %1257
        %1260 = vset.pattern.permute.xlu0 2
        %1261 = vperm.xlu0 %1260, %v338
        %v1262 = vpop.permute.xlu0 %1261
        %1264 = vset.pattern.permute.xlu0 2
        %1265 = vperm.xlu0 %1264, %v339
        %v1266 = vpop.permute.xlu0 %1265
        %1268 = vset.pattern.permute.xlu0 2
        %1269 = vperm.xlu0 %1268, %v340
        %v1270 = vpop.permute.xlu0 %1269
        %1272 = vset.pattern.permute.xlu0 2
        %1273 = vperm.xlu0 %1272, %v341
        %v1274 = vpop.permute.xlu0 %1273
        %1276 = vset.pattern.permute.xlu0 2
        %1277 = vperm.xlu0 %1276, %v342
        %v1278 = vpop.permute.xlu0 %1277
        %1280 = vset.pattern.permute.xlu0 2
        %1281 = vperm.xlu0 %1280, %v343
        %v1282 = vpop.permute.xlu0 %1281
        %1284 = vset.pattern.permute.xlu0 2
        %1285 = vperm.xlu0 %1284, %v344
        %v1286 = vpop.permute.xlu0 %1285
        %1288 = vset.pattern.permute.xlu0 2
        %1289 = vperm.xlu0 %1288, %v345
        %v1290 = vpop.permute.xlu0 %1289
        %1292 = vset.pattern.permute.xlu0 2
        %1293 = vperm.xlu0 %1292, %v346
        %v1294 = vpop.permute.xlu0 %1293
        %1296 = vset.pattern.permute.xlu0 2
        %1297 = vperm.xlu0 %1296, %v347
        %v1298 = vpop.permute.xlu0 %1297
        %1300 = vset.pattern.permute.xlu0 2
        %1301 = vperm.xlu0 %1300, %v348
        %v1302 = vpop.permute.xlu0 %1301
        %1304 = vset.pattern.permute.xlu0 2
        %1305 = vperm.xlu0 %1304, %v349
        %v1306 = vpop.permute.xlu0 %1305
        %1308 = vset.pattern.permute.xlu0 2
        %1309 = vperm.xlu0 %1308, %v350
        %v1310 = vpop.permute.xlu0 %1309
        %1312 = vset.pattern.permute.xlu0 2
        %1313 = vperm.xlu0 %1312, %v351
        %v1314 = vpop.permute.xlu0 %1313
        %1316 = vset.pattern.permute.xlu0 2
        %1317 = vperm.xlu0 %1316, %v352
        %v1318 = vpop.permute.xlu0 %1317
        %1320 = vset.pattern.permute.xlu0 2
        %1321 = vperm.xlu0 %1320, %v353
        %v1322 = vpop.permute.xlu0 %1321
        %1324 = vset.pattern.permute.xlu0 2
        %1325 = vperm.xlu0 %1324, %v354
        %v1326 = vpop.permute.xlu0 %1325
        %1328 = vset.pattern.permute.xlu0 2
        %1329 = vperm.xlu0 %1328, %v355
        %v1330 = vpop.permute.xlu0 %1329
        %1332 = vset.pattern.permute.xlu0 2
        %1333 = vperm.xlu0 %1332, %v356
        %v1334 = vpop.permute.xlu0 %1333
        %1336 = vset.pattern.permute.xlu0 2
        %1337 = vperm.xlu0 %1336, %v357
        %v1338 = vpop.permute.xlu0 %1337
        %1340 = vset.pattern.permute.xlu0 2
        %1341 = vperm.xlu0 %1340, %v358
        %v1342 = vpop.permute.xlu0 %1341
        %1344 = vset.pattern.permute.xlu0 2
        %1345 = vperm.xlu0 %1344, %v359
        %v1346 = vpop.permute.xlu0 %1345
        %1348 = vset.pattern.permute.xlu0 2
        %1349 = vperm.xlu0 %1348, %v360
        %v1350 = vpop.permute.xlu0 %1349
        %1352 = vset.pattern.permute.xlu0 2
        %1353 = vperm.xlu0 %1352, %v361
        %v1354 = vpop.permute.xlu0 %1353
        %1356 = vset.pattern.permute.xlu0 2
        %1357 = vperm.xlu0 %1356, %v362
        %v1358 = vpop.permute.xlu0 %1357
        %1360 = vset.pattern.permute.xlu0 2
        %1361 = vperm.xlu0 %1360, %v363
        %v1362 = vpop.permute.xlu0 %1361
        %1364 = vset.pattern.permute.xlu0 2
        %1365 = vperm.xlu0 %1364, %v364
        %v1366 = vpop.permute.xlu0 %1365
        %1368 = vset.pattern.permute.xlu0 2
        %1369 = vperm.xlu0 %1368, %v365
        %v1370 = vpop.permute.xlu0 %1369
        %1372 = vset.pattern.permute.xlu0 2
        %1373 = vperm.xlu0 %1372, %v366
        %v1374 = vpop.permute.xlu0 %1373
        %1376 = vset.pattern.permute.xlu0 2
        %1377 = vperm.xlu0 %1376, %v367
        %v1378 = vpop.permute.xlu0 %1377
        %1380 = vset.pattern.permute.xlu0 2
        %1381 = vperm.xlu0 %1380, %v368
        %v1382 = vpop.permute.xlu0 %1381
        %1384 = vset.pattern.permute.xlu0 2
        %1385 = vperm.xlu0 %1384, %v369
        %v1386 = vpop.permute.xlu0 %1385
        %1388 = vset.pattern.permute.xlu0 2
        %1389 = vperm.xlu0 %1388, %v370
        %v1390 = vpop.permute.xlu0 %1389
        %1392 = vset.pattern.permute.xlu0 2
        %1393 = vperm.xlu0 %1392, %v371
        %v1394 = vpop.permute.xlu0 %1393
        %1396 = vset.pattern.permute.xlu0 2
        %1397 = vperm.xlu0 %1396, %v372
        %v1398 = vpop.permute.xlu0 %1397
        %1400 = vset.pattern.permute.xlu0 2
        %1401 = vperm.xlu0 %1400, %v373
        %v1402 = vpop.permute.xlu0 %1401
        %1404 = vset.pattern.permute.xlu0 2
        %1405 = vperm.xlu0 %1404, %v374
        %v1406 = vpop.permute.xlu0 %1405
        %1408 = vset.pattern.permute.xlu0 2
        %1409 = vperm.xlu0 %1408, %v375
        %v1410 = vpop.permute.xlu0 %1409
        %1412 = vset.pattern.permute.xlu0 2
        %1413 = vperm.xlu0 %1412, %v376
        %v1414 = vpop.permute.xlu0 %1413
        %1416 = vset.pattern.permute.xlu0 2
        %1417 = vperm.xlu0 %1416, %v377
        %v1418 = vpop.permute.xlu0 %1417
        %1420 = vset.pattern.permute.xlu0 2
        %1421 = vperm.xlu0 %1420, %v378
        %v1422 = vpop.permute.xlu0 %1421
        %1424 = vset.pattern.permute.xlu0 2
        %1425 = vperm.xlu0 %1424, %v379
        %v1426 = vpop.permute.xlu0 %1425
        %1428 = vset.pattern.permute.xlu0 2
        %1429 = vperm.xlu0 %1428, %v380
        %v1430 = vpop.permute.xlu0 %1429
        %1432 = vset.pattern.permute.xlu0 2
        %1433 = vperm.xlu0 %1432, %v381
        %v1434 = vpop.permute.xlu0 %1433
        %1436 = vset.pattern.permute.xlu0 2
        %1437 = vperm.xlu0 %1436, %v382
        %v1438 = vpop.permute.xlu0 %1437
        %1440 = vset.pattern.permute.xlu0 2
        %1441 = vperm.xlu0 %1440, %v383
        %v1442 = vpop.permute.xlu0 %1441
        %1444 = vset.pattern.permute.xlu0 2
        %1445 = vperm.xlu0 %1444, %v384
        %v1446 = vpop.permute.xlu0 %1445
        %1448 = vset.pattern.permute.xlu0 2
        %1449 = vperm.xlu0 %1448, %v385
        %v1450 = vpop.permute.xlu0 %1449
        %1452 = vset.pattern.permute.xlu0 2
        %1453 = vperm.xlu0 %1452, %v386
        %v1454 = vpop.permute.xlu0 %1453
        %1456 = vset.pattern.permute.xlu0 2
        %1457 = vperm.xlu0 %1456, %v387
        %v1458 = vpop.permute.xlu0 %1457
        %1460 = vset.pattern.permute.xlu0 2
        %1461 = vperm.xlu0 %1460, %v388
        %v1462 = vpop.permute.xlu0 %1461
        %1464 = vset.pattern.permute.xlu0 2
        %1465 = vperm.xlu0 %1464, %v389
        %v1466 = vpop.permute.xlu0 %1465
        %1468 = vset.pattern.permute.xlu0 2
        %1469 = vperm.xlu0 %1468, %v390
        %v1470 = vpop.permute.xlu0 %1469
        %1472 = vset.pattern.permute.xlu0 2
        %1473 = vperm.xlu0 %1472, %v391
        %v1474 = vpop.permute.xlu0 %1473
        %1476 = vset.pattern.permute.xlu0 2
        %1477 = vperm.xlu0 %1476, %v392
        %v1478 = vpop.permute.xlu0 %1477
        %1480 = vset.pattern.permute.xlu0 2
        %1481 = vperm.xlu0 %1480, %v393
        %v1482 = vpop.permute.xlu0 %1481
        %1484 = vset.pattern.permute.xlu0 2
        %1485 = vperm.xlu0 %1484, %v394
        %v1486 = vpop.permute.xlu0 %1485
        %1488 = vset.pattern.permute.xlu0 2
        %1489 = vperm.xlu0 %1488, %v395
        %v1490 = vpop.permute.xlu0 %1489
        %1492 = vset.pattern.permute.xlu0 2
        %1493 = vperm.xlu0 %1492, %v396
        %v1494 = vpop.permute.xlu0 %1493
        %1496 = vset.pattern.permute.xlu0 2
        %1497 = vperm.xlu0 %1496, %v397
        %v1498 = vpop.permute.xlu0 %1497
        %1500 = vset.pattern.permute.xlu0 2
        %1501 = vperm.xlu0 %1500, %v398
        %v1502 = vpop.permute.xlu0 %1501
        %v1504 = vlaneseq
        %v1505 = vshrl.u32 %v1504, 7
        %v1506 = vsub.s32 2, %v1505
        %v1507 = vrot.slane %v400, %v1506
        %v1508 = vmul.f32 %v1250, %v1507
        %v1509 = vmul.f32 %v1254, %v1507
        %v1510 = vmul.f32 %v1258, %v1507
        %v1511 = vmul.f32 %v1262, %v1507
        %v1512 = vmul.f32 %v1266, %v1507
        %v1513 = vmul.f32 %v1270, %v1507
        %v1514 = vmul.f32 %v1274, %v1507
        %v1515 = vmul.f32 %v1278, %v1507
        %v1516 = vmul.f32 %v1282, %v1507
        %v1517 = vmul.f32 %v1286, %v1507
        %v1518 = vmul.f32 %v1290, %v1507
        %v1519 = vmul.f32 %v1294, %v1507
        %v1520 = vmul.f32 %v1298, %v1507
        %v1521 = vmul.f32 %v1302, %v1507
        %v1522 = vmul.f32 %v1306, %v1507
        %v1523 = vmul.f32 %v1310, %v1507
        %v1524 = vmul.f32 %v1314, %v1507
        %v1525 = vmul.f32 %v1318, %v1507
        %v1526 = vmul.f32 %v1322, %v1507
        %v1527 = vmul.f32 %v1326, %v1507
        %v1528 = vmul.f32 %v1330, %v1507
        %v1529 = vmul.f32 %v1334, %v1507
        %v1530 = vmul.f32 %v1338, %v1507
        %v1531 = vmul.f32 %v1342, %v1507
        %v1532 = vmul.f32 %v1346, %v1507
        %v1533 = vmul.f32 %v1350, %v1507
        %v1534 = vmul.f32 %v1354, %v1507
        %v1535 = vmul.f32 %v1358, %v1507
        %v1536 = vmul.f32 %v1362, %v1507
        %v1537 = vmul.f32 %v1366, %v1507
        %v1538 = vmul.f32 %v1370, %v1507
        %v1539 = vmul.f32 %v1374, %v1507
        %v1540 = vmul.f32 %v1378, %v1507
        %v1541 = vmul.f32 %v1382, %v1507
        %v1542 = vmul.f32 %v1386, %v1507
        %v1543 = vmul.f32 %v1390, %v1507
        %v1544 = vmul.f32 %v1394, %v1507
        %v1545 = vmul.f32 %v1398, %v1507
        %v1546 = vmul.f32 %v1402, %v1507
        %v1547 = vmul.f32 %v1406, %v1507
        %v1548 = vmul.f32 %v1410, %v1507
        %v1549 = vmul.f32 %v1414, %v1507
        %v1550 = vmul.f32 %v1418, %v1507
        %v1551 = vmul.f32 %v1422, %v1507
        %v1552 = vmul.f32 %v1426, %v1507
        %v1553 = vmul.f32 %v1430, %v1507
        %v1554 = vmul.f32 %v1434, %v1507
        %v1555 = vmul.f32 %v1438, %v1507
        %v1556 = vmul.f32 %v1442, %v1507
        %v1557 = vmul.f32 %v1446, %v1507
        %v1558 = vmul.f32 %v1450, %v1507
        %v1559 = vmul.f32 %v1454, %v1507
        %v1560 = vmul.f32 %v1458, %v1507
        %v1561 = vmul.f32 %v1462, %v1507
        %v1562 = vmul.f32 %v1466, %v1507
        %v1563 = vmul.f32 %v1470, %v1507
        %v1564 = vmul.f32 %v1474, %v1507
        %v1565 = vmul.f32 %v1478, %v1507
        %v1566 = vmul.f32 %v1482, %v1507
        %v1567 = vmul.f32 %v1486, %v1507
        %v1568 = vmul.f32 %v1490, %v1507
        %v1569 = vmul.f32 %v1494, %v1507
        %v1570 = vmul.f32 %v1498, %v1507
        %v1571 = vmul.f32 %v1502, %v1507
        %v1572 = vadd.f32 %v1184, %v1508
        %v1573 = vadd.f32 %v1185, %v1509
        %v1574 = vadd.f32 %v1186, %v1510
        %v1575 = vadd.f32 %v1187, %v1511
        %v1576 = vadd.f32 %v1188, %v1512
        %v1577 = vadd.f32 %v1189, %v1513
        %v1578 = vadd.f32 %v1190, %v1514
        %v1579 = vadd.f32 %v1191, %v1515
        %v1580 = vadd.f32 %v1192, %v1516
        %v1581 = vadd.f32 %v1193, %v1517
        %v1582 = vadd.f32 %v1194, %v1518
        %v1583 = vadd.f32 %v1195, %v1519
        %v1584 = vadd.f32 %v1196, %v1520
        %v1585 = vadd.f32 %v1197, %v1521
        %v1586 = vadd.f32 %v1198, %v1522
        %v1587 = vadd.f32 %v1199, %v1523
        %v1588 = vadd.f32 %v1200, %v1524
        %v1589 = vadd.f32 %v1201, %v1525
        %v1590 = vadd.f32 %v1202, %v1526
        %v1591 = vadd.f32 %v1203, %v1527
        %v1592 = vadd.f32 %v1204, %v1528
        %v1593 = vadd.f32 %v1205, %v1529
        %v1594 = vadd.f32 %v1206, %v1530
        %v1595 = vadd.f32 %v1207, %v1531
        %v1596 = vadd.f32 %v1208, %v1532
        %v1597 = vadd.f32 %v1209, %v1533
        %v1598 = vadd.f32 %v1210, %v1534
        %v1599 = vadd.f32 %v1211, %v1535
        %v1600 = vadd.f32 %v1212, %v1536
        %v1601 = vadd.f32 %v1213, %v1537
        %v1602 = vadd.f32 %v1214, %v1538
        %v1603 = vadd.f32 %v1215, %v1539
        %v1604 = vadd.f32 %v1216, %v1540
        %v1605 = vadd.f32 %v1217, %v1541
        %v1606 = vadd.f32 %v1218, %v1542
        %v1607 = vadd.f32 %v1219, %v1543
        %v1608 = vadd.f32 %v1220, %v1544
        %v1609 = vadd.f32 %v1221, %v1545
        %v1610 = vadd.f32 %v1222, %v1546
        %v1611 = vadd.f32 %v1223, %v1547
        %v1612 = vadd.f32 %v1224, %v1548
        %v1613 = vadd.f32 %v1225, %v1549
        %v1614 = vadd.f32 %v1226, %v1550
        %v1615 = vadd.f32 %v1227, %v1551
        %v1616 = vadd.f32 %v1228, %v1552
        %v1617 = vadd.f32 %v1229, %v1553
        %v1618 = vadd.f32 %v1230, %v1554
        %v1619 = vadd.f32 %v1231, %v1555
        %v1620 = vadd.f32 %v1232, %v1556
        %v1621 = vadd.f32 %v1233, %v1557
        %v1622 = vadd.f32 %v1234, %v1558
        %v1623 = vadd.f32 %v1235, %v1559
        %v1624 = vadd.f32 %v1236, %v1560
        %v1625 = vadd.f32 %v1237, %v1561
        %v1626 = vadd.f32 %v1238, %v1562
        %v1627 = vadd.f32 %v1239, %v1563
        %v1628 = vadd.f32 %v1240, %v1564
        %v1629 = vadd.f32 %v1241, %v1565
        %v1630 = vadd.f32 %v1242, %v1566
        %v1631 = vadd.f32 %v1243, %v1567
        %v1632 = vadd.f32 %v1244, %v1568
        %v1633 = vadd.f32 %v1245, %v1569
        %v1634 = vadd.f32 %v1246, %v1570
        %v1635 = vadd.f32 %v1247, %v1571
        %1636 = vset.pattern.permute.xlu0 3
        %1637 = vperm.xlu0 %1636, %v335
        %v1638 = vpop.permute.xlu0 %1637
        %1640 = vset.pattern.permute.xlu0 3
        %1641 = vperm.xlu0 %1640, %v336
        %v1642 = vpop.permute.xlu0 %1641
        %1644 = vset.pattern.permute.xlu0 3
        %1645 = vperm.xlu0 %1644, %v337
        %v1646 = vpop.permute.xlu0 %1645
        %1648 = vset.pattern.permute.xlu0 3
        %1649 = vperm.xlu0 %1648, %v338
        %v1650 = vpop.permute.xlu0 %1649
        %1652 = vset.pattern.permute.xlu0 3
        %1653 = vperm.xlu0 %1652, %v339
        %v1654 = vpop.permute.xlu0 %1653
        %1656 = vset.pattern.permute.xlu0 3
        %1657 = vperm.xlu0 %1656, %v340
        %v1658 = vpop.permute.xlu0 %1657
        %1660 = vset.pattern.permute.xlu0 3
        %1661 = vperm.xlu0 %1660, %v341
        %v1662 = vpop.permute.xlu0 %1661
        %1664 = vset.pattern.permute.xlu0 3
        %1665 = vperm.xlu0 %1664, %v342
        %v1666 = vpop.permute.xlu0 %1665
        %1668 = vset.pattern.permute.xlu0 3
        %1669 = vperm.xlu0 %1668, %v343
        %v1670 = vpop.permute.xlu0 %1669
        %1672 = vset.pattern.permute.xlu0 3
        %1673 = vperm.xlu0 %1672, %v344
        %v1674 = vpop.permute.xlu0 %1673
        %1676 = vset.pattern.permute.xlu0 3
        %1677 = vperm.xlu0 %1676, %v345
        %v1678 = vpop.permute.xlu0 %1677
        %1680 = vset.pattern.permute.xlu0 3
        %1681 = vperm.xlu0 %1680, %v346
        %v1682 = vpop.permute.xlu0 %1681
        %1684 = vset.pattern.permute.xlu0 3
        %1685 = vperm.xlu0 %1684, %v347
        %v1686 = vpop.permute.xlu0 %1685
        %1688 = vset.pattern.permute.xlu0 3
        %1689 = vperm.xlu0 %1688, %v348
        %v1690 = vpop.permute.xlu0 %1689
        %1692 = vset.pattern.permute.xlu0 3
        %1693 = vperm.xlu0 %1692, %v349
        %v1694 = vpop.permute.xlu0 %1693
        %1696 = vset.pattern.permute.xlu0 3
        %1697 = vperm.xlu0 %1696, %v350
        %v1698 = vpop.permute.xlu0 %1697
        %1700 = vset.pattern.permute.xlu0 3
        %1701 = vperm.xlu0 %1700, %v351
        %v1702 = vpop.permute.xlu0 %1701
        %1704 = vset.pattern.permute.xlu0 3
        %1705 = vperm.xlu0 %1704, %v352
        %v1706 = vpop.permute.xlu0 %1705
        %1708 = vset.pattern.permute.xlu0 3
        %1709 = vperm.xlu0 %1708, %v353
        %v1710 = vpop.permute.xlu0 %1709
        %1712 = vset.pattern.permute.xlu0 3
        %1713 = vperm.xlu0 %1712, %v354
        %v1714 = vpop.permute.xlu0 %1713
        %1716 = vset.pattern.permute.xlu0 3
        %1717 = vperm.xlu0 %1716, %v355
        %v1718 = vpop.permute.xlu0 %1717
        %1720 = vset.pattern.permute.xlu0 3
        %1721 = vperm.xlu0 %1720, %v356
        %v1722 = vpop.permute.xlu0 %1721
        %1724 = vset.pattern.permute.xlu0 3
        %1725 = vperm.xlu0 %1724, %v357
        %v1726 = vpop.permute.xlu0 %1725
        %1728 = vset.pattern.permute.xlu0 3
        %1729 = vperm.xlu0 %1728, %v358
        %v1730 = vpop.permute.xlu0 %1729
        %1732 = vset.pattern.permute.xlu0 3
        %1733 = vperm.xlu0 %1732, %v359
        %v1734 = vpop.permute.xlu0 %1733
        %1736 = vset.pattern.permute.xlu0 3
        %1737 = vperm.xlu0 %1736, %v360
        %v1738 = vpop.permute.xlu0 %1737
        %1740 = vset.pattern.permute.xlu0 3
        %1741 = vperm.xlu0 %1740, %v361
        %v1742 = vpop.permute.xlu0 %1741
        %1744 = vset.pattern.permute.xlu0 3
        %1745 = vperm.xlu0 %1744, %v362
        %v1746 = vpop.permute.xlu0 %1745
        %1748 = vset.pattern.permute.xlu0 3
        %1749 = vperm.xlu0 %1748, %v363
        %v1750 = vpop.permute.xlu0 %1749
        %1752 = vset.pattern.permute.xlu0 3
        %1753 = vperm.xlu0 %1752, %v364
        %v1754 = vpop.permute.xlu0 %1753
        %1756 = vset.pattern.permute.xlu0 3
        %1757 = vperm.xlu0 %1756, %v365
        %v1758 = vpop.permute.xlu0 %1757
        %1760 = vset.pattern.permute.xlu0 3
        %1761 = vperm.xlu0 %1760, %v366
        %v1762 = vpop.permute.xlu0 %1761
        %1764 = vset.pattern.permute.xlu0 3
        %1765 = vperm.xlu0 %1764, %v367
        %v1766 = vpop.permute.xlu0 %1765
        %1768 = vset.pattern.permute.xlu0 3
        %1769 = vperm.xlu0 %1768, %v368
        %v1770 = vpop.permute.xlu0 %1769
        %1772 = vset.pattern.permute.xlu0 3
        %1773 = vperm.xlu0 %1772, %v369
        %v1774 = vpop.permute.xlu0 %1773
        %1776 = vset.pattern.permute.xlu0 3
        %1777 = vperm.xlu0 %1776, %v370
        %v1778 = vpop.permute.xlu0 %1777
        %1780 = vset.pattern.permute.xlu0 3
        %1781 = vperm.xlu0 %1780, %v371
        %v1782 = vpop.permute.xlu0 %1781
        %1784 = vset.pattern.permute.xlu0 3
        %1785 = vperm.xlu0 %1784, %v372
        %v1786 = vpop.permute.xlu0 %1785
        %1788 = vset.pattern.permute.xlu0 3
        %1789 = vperm.xlu0 %1788, %v373
        %v1790 = vpop.permute.xlu0 %1789
        %1792 = vset.pattern.permute.xlu0 3
        %1793 = vperm.xlu0 %1792, %v374
        %v1794 = vpop.permute.xlu0 %1793
        %1796 = vset.pattern.permute.xlu0 3
        %1797 = vperm.xlu0 %1796, %v375
        %v1798 = vpop.permute.xlu0 %1797
        %1800 = vset.pattern.permute.xlu0 3
        %1801 = vperm.xlu0 %1800, %v376
        %v1802 = vpop.permute.xlu0 %1801
        %1804 = vset.pattern.permute.xlu0 3
        %1805 = vperm.xlu0 %1804, %v377
        %v1806 = vpop.permute.xlu0 %1805
        %1808 = vset.pattern.permute.xlu0 3
        %1809 = vperm.xlu0 %1808, %v378
        %v1810 = vpop.permute.xlu0 %1809
        %1812 = vset.pattern.permute.xlu0 3
        %1813 = vperm.xlu0 %1812, %v379
        %v1814 = vpop.permute.xlu0 %1813
        %1816 = vset.pattern.permute.xlu0 3
        %1817 = vperm.xlu0 %1816, %v380
        %v1818 = vpop.permute.xlu0 %1817
        %1820 = vset.pattern.permute.xlu0 3
        %1821 = vperm.xlu0 %1820, %v381
        %v1822 = vpop.permute.xlu0 %1821
        %1824 = vset.pattern.permute.xlu0 3
        %1825 = vperm.xlu0 %1824, %v382
        %v1826 = vpop.permute.xlu0 %1825
        %1828 = vset.pattern.permute.xlu0 3
        %1829 = vperm.xlu0 %1828, %v383
        %v1830 = vpop.permute.xlu0 %1829
        %1832 = vset.pattern.permute.xlu0 3
        %1833 = vperm.xlu0 %1832, %v384
        %v1834 = vpop.permute.xlu0 %1833
        %1836 = vset.pattern.permute.xlu0 3
        %1837 = vperm.xlu0 %1836, %v385
        %v1838 = vpop.permute.xlu0 %1837
        %1840 = vset.pattern.permute.xlu0 3
        %1841 = vperm.xlu0 %1840, %v386
        %v1842 = vpop.permute.xlu0 %1841
        %1844 = vset.pattern.permute.xlu0 3
        %1845 = vperm.xlu0 %1844, %v387
        %v1846 = vpop.permute.xlu0 %1845
        %1848 = vset.pattern.permute.xlu0 3
        %1849 = vperm.xlu0 %1848, %v388
        %v1850 = vpop.permute.xlu0 %1849
        %1852 = vset.pattern.permute.xlu0 3
        %1853 = vperm.xlu0 %1852, %v389
        %v1854 = vpop.permute.xlu0 %1853
        %1856 = vset.pattern.permute.xlu0 3
        %1857 = vperm.xlu0 %1856, %v390
        %v1858 = vpop.permute.xlu0 %1857
        %1860 = vset.pattern.permute.xlu0 3
        %1861 = vperm.xlu0 %1860, %v391
        %v1862 = vpop.permute.xlu0 %1861
        %1864 = vset.pattern.permute.xlu0 3
        %1865 = vperm.xlu0 %1864, %v392
        %v1866 = vpop.permute.xlu0 %1865
        %1868 = vset.pattern.permute.xlu0 3
        %1869 = vperm.xlu0 %1868, %v393
        %v1870 = vpop.permute.xlu0 %1869
        %1872 = vset.pattern.permute.xlu0 3
        %1873 = vperm.xlu0 %1872, %v394
        %v1874 = vpop.permute.xlu0 %1873
        %1876 = vset.pattern.permute.xlu0 3
        %1877 = vperm.xlu0 %1876, %v395
        %v1878 = vpop.permute.xlu0 %1877
        %1880 = vset.pattern.permute.xlu0 3
        %1881 = vperm.xlu0 %1880, %v396
        %v1882 = vpop.permute.xlu0 %1881
        %1884 = vset.pattern.permute.xlu0 3
        %1885 = vperm.xlu0 %1884, %v397
        %v1886 = vpop.permute.xlu0 %1885
        %1888 = vset.pattern.permute.xlu0 3
        %1889 = vperm.xlu0 %1888, %v398
        %v1890 = vpop.permute.xlu0 %1889
        %v1892 = vlaneseq
        %v1893 = vshrl.u32 %v1892, 7
        %v1894 = vsub.s32 3, %v1893
        %v1895 = vrot.slane %v400, %v1894
        %v1896 = vmul.f32 %v1638, %v1895
        %v1897 = vmul.f32 %v1642, %v1895
        %v1898 = vmul.f32 %v1646, %v1895
        %v1899 = vmul.f32 %v1650, %v1895
        %v1900 = vmul.f32 %v1654, %v1895
        %v1901 = vmul.f32 %v1658, %v1895
        %v1902 = vmul.f32 %v1662, %v1895
        %v1903 = vmul.f32 %v1666, %v1895
        %v1904 = vmul.f32 %v1670, %v1895
        %v1905 = vmul.f32 %v1674, %v1895
        %v1906 = vmul.f32 %v1678, %v1895
        %v1907 = vmul.f32 %v1682, %v1895
        %v1908 = vmul.f32 %v1686, %v1895
        %v1909 = vmul.f32 %v1690, %v1895
        %v1910 = vmul.f32 %v1694, %v1895
        %v1911 = vmul.f32 %v1698, %v1895
        %v1912 = vmul.f32 %v1702, %v1895
        %v1913 = vmul.f32 %v1706, %v1895
        %v1914 = vmul.f32 %v1710, %v1895
        %v1915 = vmul.f32 %v1714, %v1895
        %v1916 = vmul.f32 %v1718, %v1895
        %v1917 = vmul.f32 %v1722, %v1895
        %v1918 = vmul.f32 %v1726, %v1895
        %v1919 = vmul.f32 %v1730, %v1895
        %v1920 = vmul.f32 %v1734, %v1895
        %v1921 = vmul.f32 %v1738, %v1895
        %v1922 = vmul.f32 %v1742, %v1895
        %v1923 = vmul.f32 %v1746, %v1895
        %v1924 = vmul.f32 %v1750, %v1895
        %v1925 = vmul.f32 %v1754, %v1895
        %v1926 = vmul.f32 %v1758, %v1895
        %v1927 = vmul.f32 %v1762, %v1895
        %v1928 = vmul.f32 %v1766, %v1895
        %v1929 = vmul.f32 %v1770, %v1895
        %v1930 = vmul.f32 %v1774, %v1895
        %v1931 = vmul.f32 %v1778, %v1895
        %v1932 = vmul.f32 %v1782, %v1895
        %v1933 = vmul.f32 %v1786, %v1895
        %v1934 = vmul.f32 %v1790, %v1895
        %v1935 = vmul.f32 %v1794, %v1895
        %v1936 = vmul.f32 %v1798, %v1895
        %v1937 = vmul.f32 %v1802, %v1895
        %v1938 = vmul.f32 %v1806, %v1895
        %v1939 = vmul.f32 %v1810, %v1895
        %v1940 = vmul.f32 %v1814, %v1895
        %v1941 = vmul.f32 %v1818, %v1895
        %v1942 = vmul.f32 %v1822, %v1895
        %v1943 = vmul.f32 %v1826, %v1895
        %v1944 = vmul.f32 %v1830, %v1895
        %v1945 = vmul.f32 %v1834, %v1895
        %v1946 = vmul.f32 %v1838, %v1895
        %v1947 = vmul.f32 %v1842, %v1895
        %v1948 = vmul.f32 %v1846, %v1895
        %v1949 = vmul.f32 %v1850, %v1895
        %v1950 = vmul.f32 %v1854, %v1895
        %v1951 = vmul.f32 %v1858, %v1895
        %v1952 = vmul.f32 %v1862, %v1895
        %v1953 = vmul.f32 %v1866, %v1895
        %v1954 = vmul.f32 %v1870, %v1895
        %v1955 = vmul.f32 %v1874, %v1895
        %v1956 = vmul.f32 %v1878, %v1895
        %v1957 = vmul.f32 %v1882, %v1895
        %v1958 = vmul.f32 %v1886, %v1895
        %v1959 = vmul.f32 %v1890, %v1895
        %v1960 = vadd.f32 %v1572, %v1896
        %v1961 = vadd.f32 %v1573, %v1897
        %v1962 = vadd.f32 %v1574, %v1898
        %v1963 = vadd.f32 %v1575, %v1899
        %v1964 = vadd.f32 %v1576, %v1900
        %v1965 = vadd.f32 %v1577, %v1901
        %v1966 = vadd.f32 %v1578, %v1902
        %v1967 = vadd.f32 %v1579, %v1903
        %v1968 = vadd.f32 %v1580, %v1904
        %v1969 = vadd.f32 %v1581, %v1905
        %v1970 = vadd.f32 %v1582, %v1906
        %v1971 = vadd.f32 %v1583, %v1907
        %v1972 = vadd.f32 %v1584, %v1908
        %v1973 = vadd.f32 %v1585, %v1909
        %v1974 = vadd.f32 %v1586, %v1910
        %v1975 = vadd.f32 %v1587, %v1911
        %v1976 = vadd.f32 %v1588, %v1912
        %v1977 = vadd.f32 %v1589, %v1913
        %v1978 = vadd.f32 %v1590, %v1914
        %v1979 = vadd.f32 %v1591, %v1915
        %v1980 = vadd.f32 %v1592, %v1916
        %v1981 = vadd.f32 %v1593, %v1917
        %v1982 = vadd.f32 %v1594, %v1918
        %v1983 = vadd.f32 %v1595, %v1919
        %v1984 = vadd.f32 %v1596, %v1920
        %v1985 = vadd.f32 %v1597, %v1921
        %v1986 = vadd.f32 %v1598, %v1922
        %v1987 = vadd.f32 %v1599, %v1923
        %v1988 = vadd.f32 %v1600, %v1924
        %v1989 = vadd.f32 %v1601, %v1925
        %v1990 = vadd.f32 %v1602, %v1926
        %v1991 = vadd.f32 %v1603, %v1927
        %v1992 = vadd.f32 %v1604, %v1928
        %v1993 = vadd.f32 %v1605, %v1929
        %v1994 = vadd.f32 %v1606, %v1930
        %v1995 = vadd.f32 %v1607, %v1931
        %v1996 = vadd.f32 %v1608, %v1932
        %v1997 = vadd.f32 %v1609, %v1933
        %v1998 = vadd.f32 %v1610, %v1934
        %v1999 = vadd.f32 %v1611, %v1935
        %v2000 = vadd.f32 %v1612, %v1936
        %v2001 = vadd.f32 %v1613, %v1937
        %v2002 = vadd.f32 %v1614, %v1938
        %v2003 = vadd.f32 %v1615, %v1939
        %v2004 = vadd.f32 %v1616, %v1940
        %v2005 = vadd.f32 %v1617, %v1941
        %v2006 = vadd.f32 %v1618, %v1942
        %v2007 = vadd.f32 %v1619, %v1943
        %v2008 = vadd.f32 %v1620, %v1944
        %v2009 = vadd.f32 %v1621, %v1945
        %v2010 = vadd.f32 %v1622, %v1946
        %v2011 = vadd.f32 %v1623, %v1947
        %v2012 = vadd.f32 %v1624, %v1948
        %v2013 = vadd.f32 %v1625, %v1949
        %v2014 = vadd.f32 %v1626, %v1950
        %v2015 = vadd.f32 %v1627, %v1951
        %v2016 = vadd.f32 %v1628, %v1952
        %v2017 = vadd.f32 %v1629, %v1953
        %v2018 = vadd.f32 %v1630, %v1954
        %v2019 = vadd.f32 %v1631, %v1955
        %v2020 = vadd.f32 %v1632, %v1956
        %v2021 = vadd.f32 %v1633, %v1957
        %v2022 = vadd.f32 %v1634, %v1958
        %v2023 = vadd.f32 %v1635, %v1959
        %2024 = vset.pattern.permute.xlu0 4
        %2025 = vperm.xlu0 %2024, %v335
        %v2026 = vpop.permute.xlu0 %2025
        %2028 = vset.pattern.permute.xlu0 4
        %2029 = vperm.xlu0 %2028, %v336
        %v2030 = vpop.permute.xlu0 %2029
        %2032 = vset.pattern.permute.xlu0 4
        %2033 = vperm.xlu0 %2032, %v337
        %v2034 = vpop.permute.xlu0 %2033
        %2036 = vset.pattern.permute.xlu0 4
        %2037 = vperm.xlu0 %2036, %v338
        %v2038 = vpop.permute.xlu0 %2037
        %2040 = vset.pattern.permute.xlu0 4
        %2041 = vperm.xlu0 %2040, %v339
        %v2042 = vpop.permute.xlu0 %2041
        %2044 = vset.pattern.permute.xlu0 4
        %2045 = vperm.xlu0 %2044, %v340
        %v2046 = vpop.permute.xlu0 %2045
        %2048 = vset.pattern.permute.xlu0 4
        %2049 = vperm.xlu0 %2048, %v341
        %v2050 = vpop.permute.xlu0 %2049
        %2052 = vset.pattern.permute.xlu0 4
        %2053 = vperm.xlu0 %2052, %v342
        %v2054 = vpop.permute.xlu0 %2053
        %2056 = vset.pattern.permute.xlu0 4
        %2057 = vperm.xlu0 %2056, %v343
        %v2058 = vpop.permute.xlu0 %2057
        %2060 = vset.pattern.permute.xlu0 4
        %2061 = vperm.xlu0 %2060, %v344
        %v2062 = vpop.permute.xlu0 %2061
        %2064 = vset.pattern.permute.xlu0 4
        %2065 = vperm.xlu0 %2064, %v345
        %v2066 = vpop.permute.xlu0 %2065
        %2068 = vset.pattern.permute.xlu0 4
        %2069 = vperm.xlu0 %2068, %v346
        %v2070 = vpop.permute.xlu0 %2069
        %2072 = vset.pattern.permute.xlu0 4
        %2073 = vperm.xlu0 %2072, %v347
        %v2074 = vpop.permute.xlu0 %2073
        %2076 = vset.pattern.permute.xlu0 4
        %2077 = vperm.xlu0 %2076, %v348
        %v2078 = vpop.permute.xlu0 %2077
        %2080 = vset.pattern.permute.xlu0 4
        %2081 = vperm.xlu0 %2080, %v349
        %v2082 = vpop.permute.xlu0 %2081
        %2084 = vset.pattern.permute.xlu0 4
        %2085 = vperm.xlu0 %2084, %v350
        %v2086 = vpop.permute.xlu0 %2085
        %2088 = vset.pattern.permute.xlu0 4
        %2089 = vperm.xlu0 %2088, %v351
        %v2090 = vpop.permute.xlu0 %2089
        %2092 = vset.pattern.permute.xlu0 4
        %2093 = vperm.xlu0 %2092, %v352
        %v2094 = vpop.permute.xlu0 %2093
        %2096 = vset.pattern.permute.xlu0 4
        %2097 = vperm.xlu0 %2096, %v353
        %v2098 = vpop.permute.xlu0 %2097
        %2100 = vset.pattern.permute.xlu0 4
        %2101 = vperm.xlu0 %2100, %v354
        %v2102 = vpop.permute.xlu0 %2101
        %2104 = vset.pattern.permute.xlu0 4
        %2105 = vperm.xlu0 %2104, %v355
        %v2106 = vpop.permute.xlu0 %2105
        %2108 = vset.pattern.permute.xlu0 4
        %2109 = vperm.xlu0 %2108, %v356
        %v2110 = vpop.permute.xlu0 %2109
        %2112 = vset.pattern.permute.xlu0 4
        %2113 = vperm.xlu0 %2112, %v357
        %v2114 = vpop.permute.xlu0 %2113
        %2116 = vset.pattern.permute.xlu0 4
        %2117 = vperm.xlu0 %2116, %v358
        %v2118 = vpop.permute.xlu0 %2117
        %2120 = vset.pattern.permute.xlu0 4
        %2121 = vperm.xlu0 %2120, %v359
        %v2122 = vpop.permute.xlu0 %2121
        %2124 = vset.pattern.permute.xlu0 4
        %2125 = vperm.xlu0 %2124, %v360
        %v2126 = vpop.permute.xlu0 %2125
        %2128 = vset.pattern.permute.xlu0 4
        %2129 = vperm.xlu0 %2128, %v361
        %v2130 = vpop.permute.xlu0 %2129
        %2132 = vset.pattern.permute.xlu0 4
        %2133 = vperm.xlu0 %2132, %v362
        %v2134 = vpop.permute.xlu0 %2133
        %2136 = vset.pattern.permute.xlu0 4
        %2137 = vperm.xlu0 %2136, %v363
        %v2138 = vpop.permute.xlu0 %2137
        %2140 = vset.pattern.permute.xlu0 4
        %2141 = vperm.xlu0 %2140, %v364
        %v2142 = vpop.permute.xlu0 %2141
        %2144 = vset.pattern.permute.xlu0 4
        %2145 = vperm.xlu0 %2144, %v365
        %v2146 = vpop.permute.xlu0 %2145
        %2148 = vset.pattern.permute.xlu0 4
        %2149 = vperm.xlu0 %2148, %v366
        %v2150 = vpop.permute.xlu0 %2149
        %2152 = vset.pattern.permute.xlu0 4
        %2153 = vperm.xlu0 %2152, %v367
        %v2154 = vpop.permute.xlu0 %2153
        %2156 = vset.pattern.permute.xlu0 4
        %2157 = vperm.xlu0 %2156, %v368
        %v2158 = vpop.permute.xlu0 %2157
        %2160 = vset.pattern.permute.xlu0 4
        %2161 = vperm.xlu0 %2160, %v369
        %v2162 = vpop.permute.xlu0 %2161
        %2164 = vset.pattern.permute.xlu0 4
        %2165 = vperm.xlu0 %2164, %v370
        %v2166 = vpop.permute.xlu0 %2165
        %2168 = vset.pattern.permute.xlu0 4
        %2169 = vperm.xlu0 %2168, %v371
        %v2170 = vpop.permute.xlu0 %2169
        %2172 = vset.pattern.permute.xlu0 4
        %2173 = vperm.xlu0 %2172, %v372
        %v2174 = vpop.permute.xlu0 %2173
        %2176 = vset.pattern.permute.xlu0 4
        %2177 = vperm.xlu0 %2176, %v373
        %v2178 = vpop.permute.xlu0 %2177
        %2180 = vset.pattern.permute.xlu0 4
        %2181 = vperm.xlu0 %2180, %v374
        %v2182 = vpop.permute.xlu0 %2181
        %2184 = vset.pattern.permute.xlu0 4
        %2185 = vperm.xlu0 %2184, %v375
        %v2186 = vpop.permute.xlu0 %2185
        %2188 = vset.pattern.permute.xlu0 4
        %2189 = vperm.xlu0 %2188, %v376
        %v2190 = vpop.permute.xlu0 %2189
        %2192 = vset.pattern.permute.xlu0 4
        %2193 = vperm.xlu0 %2192, %v377
        %v2194 = vpop.permute.xlu0 %2193
        %2196 = vset.pattern.permute.xlu0 4
        %2197 = vperm.xlu0 %2196, %v378
        %v2198 = vpop.permute.xlu0 %2197
        %2200 = vset.pattern.permute.xlu0 4
        %2201 = vperm.xlu0 %2200, %v379
        %v2202 = vpop.permute.xlu0 %2201
        %2204 = vset.pattern.permute.xlu0 4
        %2205 = vperm.xlu0 %2204, %v380
        %v2206 = vpop.permute.xlu0 %2205
        %2208 = vset.pattern.permute.xlu0 4
        %2209 = vperm.xlu0 %2208, %v381
        %v2210 = vpop.permute.xlu0 %2209
        %2212 = vset.pattern.permute.xlu0 4
        %2213 = vperm.xlu0 %2212, %v382
        %v2214 = vpop.permute.xlu0 %2213
        %2216 = vset.pattern.permute.xlu0 4
        %2217 = vperm.xlu0 %2216, %v383
        %v2218 = vpop.permute.xlu0 %2217
        %2220 = vset.pattern.permute.xlu0 4
        %2221 = vperm.xlu0 %2220, %v384
        %v2222 = vpop.permute.xlu0 %2221
        %2224 = vset.pattern.permute.xlu0 4
        %2225 = vperm.xlu0 %2224, %v385
        %v2226 = vpop.permute.xlu0 %2225
        %2228 = vset.pattern.permute.xlu0 4
        %2229 = vperm.xlu0 %2228, %v386
        %v2230 = vpop.permute.xlu0 %2229
        %2232 = vset.pattern.permute.xlu0 4
        %2233 = vperm.xlu0 %2232, %v387
        %v2234 = vpop.permute.xlu0 %2233
        %2236 = vset.pattern.permute.xlu0 4
        %2237 = vperm.xlu0 %2236, %v388
        %v2238 = vpop.permute.xlu0 %2237
        %2240 = vset.pattern.permute.xlu0 4
        %2241 = vperm.xlu0 %2240, %v389
        %v2242 = vpop.permute.xlu0 %2241
        %2244 = vset.pattern.permute.xlu0 4
        %2245 = vperm.xlu0 %2244, %v390
        %v2246 = vpop.permute.xlu0 %2245
        %2248 = vset.pattern.permute.xlu0 4
        %2249 = vperm.xlu0 %2248, %v391
        %v2250 = vpop.permute.xlu0 %2249
        %2252 = vset.pattern.permute.xlu0 4
        %2253 = vperm.xlu0 %2252, %v392
        %v2254 = vpop.permute.xlu0 %2253
        %2256 = vset.pattern.permute.xlu0 4
        %2257 = vperm.xlu0 %2256, %v393
        %v2258 = vpop.permute.xlu0 %2257
        %2260 = vset.pattern.permute.xlu0 4
        %2261 = vperm.xlu0 %2260, %v394
        %v2262 = vpop.permute.xlu0 %2261
        %2264 = vset.pattern.permute.xlu0 4
        %2265 = vperm.xlu0 %2264, %v395
        %v2266 = vpop.permute.xlu0 %2265
        %2268 = vset.pattern.permute.xlu0 4
        %2269 = vperm.xlu0 %2268, %v396
        %v2270 = vpop.permute.xlu0 %2269
        %2272 = vset.pattern.permute.xlu0 4
        %2273 = vperm.xlu0 %2272, %v397
        %v2274 = vpop.permute.xlu0 %2273
        %2276 = vset.pattern.permute.xlu0 4
        %2277 = vperm.xlu0 %2276, %v398
        %v2278 = vpop.permute.xlu0 %2277
        %v2280 = vlaneseq
        %v2281 = vshrl.u32 %v2280, 7
        %v2282 = vsub.s32 4, %v2281
        %v2283 = vrot.slane %v400, %v2282
        %v2284 = vmul.f32 %v2026, %v2283
        %v2285 = vmul.f32 %v2030, %v2283
        %v2286 = vmul.f32 %v2034, %v2283
        %v2287 = vmul.f32 %v2038, %v2283
        %v2288 = vmul.f32 %v2042, %v2283
        %v2289 = vmul.f32 %v2046, %v2283
        %v2290 = vmul.f32 %v2050, %v2283
        %v2291 = vmul.f32 %v2054, %v2283
        %v2292 = vmul.f32 %v2058, %v2283
        %v2293 = vmul.f32 %v2062, %v2283
        %v2294 = vmul.f32 %v2066, %v2283
        %v2295 = vmul.f32 %v2070, %v2283
        %v2296 = vmul.f32 %v2074, %v2283
        %v2297 = vmul.f32 %v2078, %v2283
        %v2298 = vmul.f32 %v2082, %v2283
        %v2299 = vmul.f32 %v2086, %v2283
        %v2300 = vmul.f32 %v2090, %v2283
        %v2301 = vmul.f32 %v2094, %v2283
        %v2302 = vmul.f32 %v2098, %v2283
        %v2303 = vmul.f32 %v2102, %v2283
        %v2304 = vmul.f32 %v2106, %v2283
        %v2305 = vmul.f32 %v2110, %v2283
        %v2306 = vmul.f32 %v2114, %v2283
        %v2307 = vmul.f32 %v2118, %v2283
        %v2308 = vmul.f32 %v2122, %v2283
        %v2309 = vmul.f32 %v2126, %v2283
        %v2310 = vmul.f32 %v2130, %v2283
        %v2311 = vmul.f32 %v2134, %v2283
        %v2312 = vmul.f32 %v2138, %v2283
        %v2313 = vmul.f32 %v2142, %v2283
        %v2314 = vmul.f32 %v2146, %v2283
        %v2315 = vmul.f32 %v2150, %v2283
        %v2316 = vmul.f32 %v2154, %v2283
        %v2317 = vmul.f32 %v2158, %v2283
        %v2318 = vmul.f32 %v2162, %v2283
        %v2319 = vmul.f32 %v2166, %v2283
        %v2320 = vmul.f32 %v2170, %v2283
        %v2321 = vmul.f32 %v2174, %v2283
        %v2322 = vmul.f32 %v2178, %v2283
        %v2323 = vmul.f32 %v2182, %v2283
        %v2324 = vmul.f32 %v2186, %v2283
        %v2325 = vmul.f32 %v2190, %v2283
        %v2326 = vmul.f32 %v2194, %v2283
        %v2327 = vmul.f32 %v2198, %v2283
        %v2328 = vmul.f32 %v2202, %v2283
        %v2329 = vmul.f32 %v2206, %v2283
        %v2330 = vmul.f32 %v2210, %v2283
        %v2331 = vmul.f32 %v2214, %v2283
        %v2332 = vmul.f32 %v2218, %v2283
        %v2333 = vmul.f32 %v2222, %v2283
        %v2334 = vmul.f32 %v2226, %v2283
        %v2335 = vmul.f32 %v2230, %v2283
        %v2336 = vmul.f32 %v2234, %v2283
        %v2337 = vmul.f32 %v2238, %v2283
        %v2338 = vmul.f32 %v2242, %v2283
        %v2339 = vmul.f32 %v2246, %v2283
        %v2340 = vmul.f32 %v2250, %v2283
        %v2341 = vmul.f32 %v2254, %v2283
        %v2342 = vmul.f32 %v2258, %v2283
        %v2343 = vmul.f32 %v2262, %v2283
        %v2344 = vmul.f32 %v2266, %v2283
        %v2345 = vmul.f32 %v2270, %v2283
        %v2346 = vmul.f32 %v2274, %v2283
        %v2347 = vmul.f32 %v2278, %v2283
        %v2348 = vadd.f32 %v1960, %v2284
        %v2349 = vadd.f32 %v1961, %v2285
        %v2350 = vadd.f32 %v1962, %v2286
        %v2351 = vadd.f32 %v1963, %v2287
        %v2352 = vadd.f32 %v1964, %v2288
        %v2353 = vadd.f32 %v1965, %v2289
        %v2354 = vadd.f32 %v1966, %v2290
        %v2355 = vadd.f32 %v1967, %v2291
        %v2356 = vadd.f32 %v1968, %v2292
        %v2357 = vadd.f32 %v1969, %v2293
        %v2358 = vadd.f32 %v1970, %v2294
        %v2359 = vadd.f32 %v1971, %v2295
        %v2360 = vadd.f32 %v1972, %v2296
        %v2361 = vadd.f32 %v1973, %v2297
        %v2362 = vadd.f32 %v1974, %v2298
        %v2363 = vadd.f32 %v1975, %v2299
        %v2364 = vadd.f32 %v1976, %v2300
        %v2365 = vadd.f32 %v1977, %v2301
        %v2366 = vadd.f32 %v1978, %v2302
        %v2367 = vadd.f32 %v1979, %v2303
        %v2368 = vadd.f32 %v1980, %v2304
        %v2369 = vadd.f32 %v1981, %v2305
        %v2370 = vadd.f32 %v1982, %v2306
        %v2371 = vadd.f32 %v1983, %v2307
        %v2372 = vadd.f32 %v1984, %v2308
        %v2373 = vadd.f32 %v1985, %v2309
        %v2374 = vadd.f32 %v1986, %v2310
        %v2375 = vadd.f32 %v1987, %v2311
        %v2376 = vadd.f32 %v1988, %v2312
        %v2377 = vadd.f32 %v1989, %v2313
        %v2378 = vadd.f32 %v1990, %v2314
        %v2379 = vadd.f32 %v1991, %v2315
        %v2380 = vadd.f32 %v1992, %v2316
        %v2381 = vadd.f32 %v1993, %v2317
        %v2382 = vadd.f32 %v1994, %v2318
        %v2383 = vadd.f32 %v1995, %v2319
        %v2384 = vadd.f32 %v1996, %v2320
        %v2385 = vadd.f32 %v1997, %v2321
        %v2386 = vadd.f32 %v1998, %v2322
        %v2387 = vadd.f32 %v1999, %v2323
        %v2388 = vadd.f32 %v2000, %v2324
        %v2389 = vadd.f32 %v2001, %v2325
        %v2390 = vadd.f32 %v2002, %v2326
        %v2391 = vadd.f32 %v2003, %v2327
        %v2392 = vadd.f32 %v2004, %v2328
        %v2393 = vadd.f32 %v2005, %v2329
        %v2394 = vadd.f32 %v2006, %v2330
        %v2395 = vadd.f32 %v2007, %v2331
        %v2396 = vadd.f32 %v2008, %v2332
        %v2397 = vadd.f32 %v2009, %v2333
        %v2398 = vadd.f32 %v2010, %v2334
        %v2399 = vadd.f32 %v2011, %v2335
        %v2400 = vadd.f32 %v2012, %v2336
        %v2401 = vadd.f32 %v2013, %v2337
        %v2402 = vadd.f32 %v2014, %v2338
        %v2403 = vadd.f32 %v2015, %v2339
        %v2404 = vadd.f32 %v2016, %v2340
        %v2405 = vadd.f32 %v2017, %v2341
        %v2406 = vadd.f32 %v2018, %v2342
        %v2407 = vadd.f32 %v2019, %v2343
        %v2408 = vadd.f32 %v2020, %v2344
        %v2409 = vadd.f32 %v2021, %v2345
        %v2410 = vadd.f32 %v2022, %v2346
        %v2411 = vadd.f32 %v2023, %v2347
        %2412 = vset.pattern.permute.xlu0 5
        %2413 = vperm.xlu0 %2412, %v335
        %v2414 = vpop.permute.xlu0 %2413
        %2416 = vset.pattern.permute.xlu0 5
        %2417 = vperm.xlu0 %2416, %v336
        %v2418 = vpop.permute.xlu0 %2417
        %2420 = vset.pattern.permute.xlu0 5
        %2421 = vperm.xlu0 %2420, %v337
        %v2422 = vpop.permute.xlu0 %2421
        %2424 = vset.pattern.permute.xlu0 5
        %2425 = vperm.xlu0 %2424, %v338
        %v2426 = vpop.permute.xlu0 %2425
        %2428 = vset.pattern.permute.xlu0 5
        %2429 = vperm.xlu0 %2428, %v339
        %v2430 = vpop.permute.xlu0 %2429
        %2432 = vset.pattern.permute.xlu0 5
        %2433 = vperm.xlu0 %2432, %v340
        %v2434 = vpop.permute.xlu0 %2433
        %2436 = vset.pattern.permute.xlu0 5
        %2437 = vperm.xlu0 %2436, %v341
        %v2438 = vpop.permute.xlu0 %2437
        %2440 = vset.pattern.permute.xlu0 5
        %2441 = vperm.xlu0 %2440, %v342
        %v2442 = vpop.permute.xlu0 %2441
        %2444 = vset.pattern.permute.xlu0 5
        %2445 = vperm.xlu0 %2444, %v343
        %v2446 = vpop.permute.xlu0 %2445
        %2448 = vset.pattern.permute.xlu0 5
        %2449 = vperm.xlu0 %2448, %v344
        %v2450 = vpop.permute.xlu0 %2449
        %2452 = vset.pattern.permute.xlu0 5
        %2453 = vperm.xlu0 %2452, %v345
        %v2454 = vpop.permute.xlu0 %2453
        %2456 = vset.pattern.permute.xlu0 5
        %2457 = vperm.xlu0 %2456, %v346
        %v2458 = vpop.permute.xlu0 %2457
        %2460 = vset.pattern.permute.xlu0 5
        %2461 = vperm.xlu0 %2460, %v347
        %v2462 = vpop.permute.xlu0 %2461
        %2464 = vset.pattern.permute.xlu0 5
        %2465 = vperm.xlu0 %2464, %v348
        %v2466 = vpop.permute.xlu0 %2465
        %2468 = vset.pattern.permute.xlu0 5
        %2469 = vperm.xlu0 %2468, %v349
        %v2470 = vpop.permute.xlu0 %2469
        %2472 = vset.pattern.permute.xlu0 5
        %2473 = vperm.xlu0 %2472, %v350
        %v2474 = vpop.permute.xlu0 %2473
        %2476 = vset.pattern.permute.xlu0 5
        %2477 = vperm.xlu0 %2476, %v351
        %v2478 = vpop.permute.xlu0 %2477
        %2480 = vset.pattern.permute.xlu0 5
        %2481 = vperm.xlu0 %2480, %v352
        %v2482 = vpop.permute.xlu0 %2481
        %2484 = vset.pattern.permute.xlu0 5
        %2485 = vperm.xlu0 %2484, %v353
        %v2486 = vpop.permute.xlu0 %2485
        %2488 = vset.pattern.permute.xlu0 5
        %2489 = vperm.xlu0 %2488, %v354
        %v2490 = vpop.permute.xlu0 %2489
        %2492 = vset.pattern.permute.xlu0 5
        %2493 = vperm.xlu0 %2492, %v355
        %v2494 = vpop.permute.xlu0 %2493
        %2496 = vset.pattern.permute.xlu0 5
        %2497 = vperm.xlu0 %2496, %v356
        %v2498 = vpop.permute.xlu0 %2497
        %2500 = vset.pattern.permute.xlu0 5
        %2501 = vperm.xlu0 %2500, %v357
        %v2502 = vpop.permute.xlu0 %2501
        %2504 = vset.pattern.permute.xlu0 5
        %2505 = vperm.xlu0 %2504, %v358
        %v2506 = vpop.permute.xlu0 %2505
        %2508 = vset.pattern.permute.xlu0 5
        %2509 = vperm.xlu0 %2508, %v359
        %v2510 = vpop.permute.xlu0 %2509
        %2512 = vset.pattern.permute.xlu0 5
        %2513 = vperm.xlu0 %2512, %v360
        %v2514 = vpop.permute.xlu0 %2513
        %2516 = vset.pattern.permute.xlu0 5
        %2517 = vperm.xlu0 %2516, %v361
        %v2518 = vpop.permute.xlu0 %2517
        %2520 = vset.pattern.permute.xlu0 5
        %2521 = vperm.xlu0 %2520, %v362
        %v2522 = vpop.permute.xlu0 %2521
        %2524 = vset.pattern.permute.xlu0 5
        %2525 = vperm.xlu0 %2524, %v363
        %v2526 = vpop.permute.xlu0 %2525
        %2528 = vset.pattern.permute.xlu0 5
        %2529 = vperm.xlu0 %2528, %v364
        %v2530 = vpop.permute.xlu0 %2529
        %2532 = vset.pattern.permute.xlu0 5
        %2533 = vperm.xlu0 %2532, %v365
        %v2534 = vpop.permute.xlu0 %2533
        %2536 = vset.pattern.permute.xlu0 5
        %2537 = vperm.xlu0 %2536, %v366
        %v2538 = vpop.permute.xlu0 %2537
        %2540 = vset.pattern.permute.xlu0 5
        %2541 = vperm.xlu0 %2540, %v367
        %v2542 = vpop.permute.xlu0 %2541
        %2544 = vset.pattern.permute.xlu0 5
        %2545 = vperm.xlu0 %2544, %v368
        %v2546 = vpop.permute.xlu0 %2545
        %2548 = vset.pattern.permute.xlu0 5
        %2549 = vperm.xlu0 %2548, %v369
        %v2550 = vpop.permute.xlu0 %2549
        %2552 = vset.pattern.permute.xlu0 5
        %2553 = vperm.xlu0 %2552, %v370
        %v2554 = vpop.permute.xlu0 %2553
        %2556 = vset.pattern.permute.xlu0 5
        %2557 = vperm.xlu0 %2556, %v371
        %v2558 = vpop.permute.xlu0 %2557
        %2560 = vset.pattern.permute.xlu0 5
        %2561 = vperm.xlu0 %2560, %v372
        %v2562 = vpop.permute.xlu0 %2561
        %2564 = vset.pattern.permute.xlu0 5
        %2565 = vperm.xlu0 %2564, %v373
        %v2566 = vpop.permute.xlu0 %2565
        %2568 = vset.pattern.permute.xlu0 5
        %2569 = vperm.xlu0 %2568, %v374
        %v2570 = vpop.permute.xlu0 %2569
        %2572 = vset.pattern.permute.xlu0 5
        %2573 = vperm.xlu0 %2572, %v375
        %v2574 = vpop.permute.xlu0 %2573
        %2576 = vset.pattern.permute.xlu0 5
        %2577 = vperm.xlu0 %2576, %v376
        %v2578 = vpop.permute.xlu0 %2577
        %2580 = vset.pattern.permute.xlu0 5
        %2581 = vperm.xlu0 %2580, %v377
        %v2582 = vpop.permute.xlu0 %2581
        %2584 = vset.pattern.permute.xlu0 5
        %2585 = vperm.xlu0 %2584, %v378
        %v2586 = vpop.permute.xlu0 %2585
        %2588 = vset.pattern.permute.xlu0 5
        %2589 = vperm.xlu0 %2588, %v379
        %v2590 = vpop.permute.xlu0 %2589
        %2592 = vset.pattern.permute.xlu0 5
        %2593 = vperm.xlu0 %2592, %v380
        %v2594 = vpop.permute.xlu0 %2593
        %2596 = vset.pattern.permute.xlu0 5
        %2597 = vperm.xlu0 %2596, %v381
        %v2598 = vpop.permute.xlu0 %2597
        %2600 = vset.pattern.permute.xlu0 5
        %2601 = vperm.xlu0 %2600, %v382
        %v2602 = vpop.permute.xlu0 %2601
        %2604 = vset.pattern.permute.xlu0 5
        %2605 = vperm.xlu0 %2604, %v383
        %v2606 = vpop.permute.xlu0 %2605
        %2608 = vset.pattern.permute.xlu0 5
        %2609 = vperm.xlu0 %2608, %v384
        %v2610 = vpop.permute.xlu0 %2609
        %2612 = vset.pattern.permute.xlu0 5
        %2613 = vperm.xlu0 %2612, %v385
        %v2614 = vpop.permute.xlu0 %2613
        %2616 = vset.pattern.permute.xlu0 5
        %2617 = vperm.xlu0 %2616, %v386
        %v2618 = vpop.permute.xlu0 %2617
        %2620 = vset.pattern.permute.xlu0 5
        %2621 = vperm.xlu0 %2620, %v387
        %v2622 = vpop.permute.xlu0 %2621
        %2624 = vset.pattern.permute.xlu0 5
        %2625 = vperm.xlu0 %2624, %v388
        %v2626 = vpop.permute.xlu0 %2625
        %2628 = vset.pattern.permute.xlu0 5
        %2629 = vperm.xlu0 %2628, %v389
        %v2630 = vpop.permute.xlu0 %2629
        %2632 = vset.pattern.permute.xlu0 5
        %2633 = vperm.xlu0 %2632, %v390
        %v2634 = vpop.permute.xlu0 %2633
        %2636 = vset.pattern.permute.xlu0 5
        %2637 = vperm.xlu0 %2636, %v391
        %v2638 = vpop.permute.xlu0 %2637
        %2640 = vset.pattern.permute.xlu0 5
        %2641 = vperm.xlu0 %2640, %v392
        %v2642 = vpop.permute.xlu0 %2641
        %2644 = vset.pattern.permute.xlu0 5
        %2645 = vperm.xlu0 %2644, %v393
        %v2646 = vpop.permute.xlu0 %2645
        %2648 = vset.pattern.permute.xlu0 5
        %2649 = vperm.xlu0 %2648, %v394
        %v2650 = vpop.permute.xlu0 %2649
        %2652 = vset.pattern.permute.xlu0 5
        %2653 = vperm.xlu0 %2652, %v395
        %v2654 = vpop.permute.xlu0 %2653
        %2656 = vset.pattern.permute.xlu0 5
        %2657 = vperm.xlu0 %2656, %v396
        %v2658 = vpop.permute.xlu0 %2657
        %2660 = vset.pattern.permute.xlu0 5
        %2661 = vperm.xlu0 %2660, %v397
        %v2662 = vpop.permute.xlu0 %2661
        %2664 = vset.pattern.permute.xlu0 5
        %2665 = vperm.xlu0 %2664, %v398
        %v2666 = vpop.permute.xlu0 %2665
        %v2668 = vlaneseq
        %v2669 = vshrl.u32 %v2668, 7
        %v2670 = vsub.s32 5, %v2669
        %v2671 = vrot.slane %v400, %v2670
        %v2672 = vmul.f32 %v2414, %v2671
        %v2673 = vmul.f32 %v2418, %v2671
        %v2674 = vmul.f32 %v2422, %v2671
        %v2675 = vmul.f32 %v2426, %v2671
        %v2676 = vmul.f32 %v2430, %v2671
        %v2677 = vmul.f32 %v2434, %v2671
        %v2678 = vmul.f32 %v2438, %v2671
        %v2679 = vmul.f32 %v2442, %v2671
        %v2680 = vmul.f32 %v2446, %v2671
        %v2681 = vmul.f32 %v2450, %v2671
        %v2682 = vmul.f32 %v2454, %v2671
        %v2683 = vmul.f32 %v2458, %v2671
        %v2684 = vmul.f32 %v2462, %v2671
        %v2685 = vmul.f32 %v2466, %v2671
        %v2686 = vmul.f32 %v2470, %v2671
        %v2687 = vmul.f32 %v2474, %v2671
        %v2688 = vmul.f32 %v2478, %v2671
        %v2689 = vmul.f32 %v2482, %v2671
        %v2690 = vmul.f32 %v2486, %v2671
        %v2691 = vmul.f32 %v2490, %v2671
        %v2692 = vmul.f32 %v2494, %v2671
        %v2693 = vmul.f32 %v2498, %v2671
        %v2694 = vmul.f32 %v2502, %v2671
        %v2695 = vmul.f32 %v2506, %v2671
        %v2696 = vmul.f32 %v2510, %v2671
        %v2697 = vmul.f32 %v2514, %v2671
        %v2698 = vmul.f32 %v2518, %v2671
        %v2699 = vmul.f32 %v2522, %v2671
        %v2700 = vmul.f32 %v2526, %v2671
        %v2701 = vmul.f32 %v2530, %v2671
        %v2702 = vmul.f32 %v2534, %v2671
        %v2703 = vmul.f32 %v2538, %v2671
        %v2704 = vmul.f32 %v2542, %v2671
        %v2705 = vmul.f32 %v2546, %v2671
        %v2706 = vmul.f32 %v2550, %v2671
        %v2707 = vmul.f32 %v2554, %v2671
        %v2708 = vmul.f32 %v2558, %v2671
        %v2709 = vmul.f32 %v2562, %v2671
        %v2710 = vmul.f32 %v2566, %v2671
        %v2711 = vmul.f32 %v2570, %v2671
        %v2712 = vmul.f32 %v2574, %v2671
        %v2713 = vmul.f32 %v2578, %v2671
        %v2714 = vmul.f32 %v2582, %v2671
        %v2715 = vmul.f32 %v2586, %v2671
        %v2716 = vmul.f32 %v2590, %v2671
        %v2717 = vmul.f32 %v2594, %v2671
        %v2718 = vmul.f32 %v2598, %v2671
        %v2719 = vmul.f32 %v2602, %v2671
        %v2720 = vmul.f32 %v2606, %v2671
        %v2721 = vmul.f32 %v2610, %v2671
        %v2722 = vmul.f32 %v2614, %v2671
        %v2723 = vmul.f32 %v2618, %v2671
        %v2724 = vmul.f32 %v2622, %v2671
        %v2725 = vmul.f32 %v2626, %v2671
        %v2726 = vmul.f32 %v2630, %v2671
        %v2727 = vmul.f32 %v2634, %v2671
        %v2728 = vmul.f32 %v2638, %v2671
        %v2729 = vmul.f32 %v2642, %v2671
        %v2730 = vmul.f32 %v2646, %v2671
        %v2731 = vmul.f32 %v2650, %v2671
        %v2732 = vmul.f32 %v2654, %v2671
        %v2733 = vmul.f32 %v2658, %v2671
        %v2734 = vmul.f32 %v2662, %v2671
        %v2735 = vmul.f32 %v2666, %v2671
        %v2736 = vadd.f32 %v2348, %v2672
        %v2737 = vadd.f32 %v2349, %v2673
        %v2738 = vadd.f32 %v2350, %v2674
        %v2739 = vadd.f32 %v2351, %v2675
        %v2740 = vadd.f32 %v2352, %v2676
        %v2741 = vadd.f32 %v2353, %v2677
        %v2742 = vadd.f32 %v2354, %v2678
        %v2743 = vadd.f32 %v2355, %v2679
        %v2744 = vadd.f32 %v2356, %v2680
        %v2745 = vadd.f32 %v2357, %v2681
        %v2746 = vadd.f32 %v2358, %v2682
        %v2747 = vadd.f32 %v2359, %v2683
        %v2748 = vadd.f32 %v2360, %v2684
        %v2749 = vadd.f32 %v2361, %v2685
        %v2750 = vadd.f32 %v2362, %v2686
        %v2751 = vadd.f32 %v2363, %v2687
        %v2752 = vadd.f32 %v2364, %v2688
        %v2753 = vadd.f32 %v2365, %v2689
        %v2754 = vadd.f32 %v2366, %v2690
        %v2755 = vadd.f32 %v2367, %v2691
        %v2756 = vadd.f32 %v2368, %v2692
        %v2757 = vadd.f32 %v2369, %v2693
        %v2758 = vadd.f32 %v2370, %v2694
        %v2759 = vadd.f32 %v2371, %v2695
        %v2760 = vadd.f32 %v2372, %v2696
        %v2761 = vadd.f32 %v2373, %v2697
        %v2762 = vadd.f32 %v2374, %v2698
        %v2763 = vadd.f32 %v2375, %v2699
        %v2764 = vadd.f32 %v2376, %v2700
        %v2765 = vadd.f32 %v2377, %v2701
        %v2766 = vadd.f32 %v2378, %v2702
        %v2767 = vadd.f32 %v2379, %v2703
        %v2768 = vadd.f32 %v2380, %v2704
        %v2769 = vadd.f32 %v2381, %v2705
        %v2770 = vadd.f32 %v2382, %v2706
        %v2771 = vadd.f32 %v2383, %v2707
        %v2772 = vadd.f32 %v2384, %v2708
        %v2773 = vadd.f32 %v2385, %v2709
        %v2774 = vadd.f32 %v2386, %v2710
        %v2775 = vadd.f32 %v2387, %v2711
        %v2776 = vadd.f32 %v2388, %v2712
        %v2777 = vadd.f32 %v2389, %v2713
        %v2778 = vadd.f32 %v2390, %v2714
        %v2779 = vadd.f32 %v2391, %v2715
        %v2780 = vadd.f32 %v2392, %v2716
        %v2781 = vadd.f32 %v2393, %v2717
        %v2782 = vadd.f32 %v2394, %v2718
        %v2783 = vadd.f32 %v2395, %v2719
        %v2784 = vadd.f32 %v2396, %v2720
        %v2785 = vadd.f32 %v2397, %v2721
        %v2786 = vadd.f32 %v2398, %v2722
        %v2787 = vadd.f32 %v2399, %v2723
        %v2788 = vadd.f32 %v2400, %v2724
        %v2789 = vadd.f32 %v2401, %v2725
        %v2790 = vadd.f32 %v2402, %v2726
        %v2791 = vadd.f32 %v2403, %v2727
        %v2792 = vadd.f32 %v2404, %v2728
        %v2793 = vadd.f32 %v2405, %v2729
        %v2794 = vadd.f32 %v2406, %v2730
        %v2795 = vadd.f32 %v2407, %v2731
        %v2796 = vadd.f32 %v2408, %v2732
        %v2797 = vadd.f32 %v2409, %v2733
        %v2798 = vadd.f32 %v2410, %v2734
        %v2799 = vadd.f32 %v2411, %v2735
        %2800 = vset.pattern.permute.xlu0 6
        %2801 = vperm.xlu0 %2800, %v335
        %v2802 = vpop.permute.xlu0 %2801
        %2804 = vset.pattern.permute.xlu0 6
        %2805 = vperm.xlu0 %2804, %v336
        %v2806 = vpop.permute.xlu0 %2805
        %2808 = vset.pattern.permute.xlu0 6
        %2809 = vperm.xlu0 %2808, %v337
        %v2810 = vpop.permute.xlu0 %2809
        %2812 = vset.pattern.permute.xlu0 6
        %2813 = vperm.xlu0 %2812, %v338
        %v2814 = vpop.permute.xlu0 %2813
        %2816 = vset.pattern.permute.xlu0 6
        %2817 = vperm.xlu0 %2816, %v339
        %v2818 = vpop.permute.xlu0 %2817
        %2820 = vset.pattern.permute.xlu0 6
        %2821 = vperm.xlu0 %2820, %v340
        %v2822 = vpop.permute.xlu0 %2821
        %2824 = vset.pattern.permute.xlu0 6
        %2825 = vperm.xlu0 %2824, %v341
        %v2826 = vpop.permute.xlu0 %2825
        %2828 = vset.pattern.permute.xlu0 6
        %2829 = vperm.xlu0 %2828, %v342
        %v2830 = vpop.permute.xlu0 %2829
        %2832 = vset.pattern.permute.xlu0 6
        %2833 = vperm.xlu0 %2832, %v343
        %v2834 = vpop.permute.xlu0 %2833
        %2836 = vset.pattern.permute.xlu0 6
        %2837 = vperm.xlu0 %2836, %v344
        %v2838 = vpop.permute.xlu0 %2837
        %2840 = vset.pattern.permute.xlu0 6
        %2841 = vperm.xlu0 %2840, %v345
        %v2842 = vpop.permute.xlu0 %2841
        %2844 = vset.pattern.permute.xlu0 6
        %2845 = vperm.xlu0 %2844, %v346
        %v2846 = vpop.permute.xlu0 %2845
        %2848 = vset.pattern.permute.xlu0 6
        %2849 = vperm.xlu0 %2848, %v347
        %v2850 = vpop.permute.xlu0 %2849
        %2852 = vset.pattern.permute.xlu0 6
        %2853 = vperm.xlu0 %2852, %v348
        %v2854 = vpop.permute.xlu0 %2853
        %2856 = vset.pattern.permute.xlu0 6
        %2857 = vperm.xlu0 %2856, %v349
        %v2858 = vpop.permute.xlu0 %2857
        %2860 = vset.pattern.permute.xlu0 6
        %2861 = vperm.xlu0 %2860, %v350
        %v2862 = vpop.permute.xlu0 %2861
        %2864 = vset.pattern.permute.xlu0 6
        %2865 = vperm.xlu0 %2864, %v351
        %v2866 = vpop.permute.xlu0 %2865
        %2868 = vset.pattern.permute.xlu0 6
        %2869 = vperm.xlu0 %2868, %v352
        %v2870 = vpop.permute.xlu0 %2869
        %2872 = vset.pattern.permute.xlu0 6
        %2873 = vperm.xlu0 %2872, %v353
        %v2874 = vpop.permute.xlu0 %2873
        %2876 = vset.pattern.permute.xlu0 6
        %2877 = vperm.xlu0 %2876, %v354
        %v2878 = vpop.permute.xlu0 %2877
        %2880 = vset.pattern.permute.xlu0 6
        %2881 = vperm.xlu0 %2880, %v355
        %v2882 = vpop.permute.xlu0 %2881
        %2884 = vset.pattern.permute.xlu0 6
        %2885 = vperm.xlu0 %2884, %v356
        %v2886 = vpop.permute.xlu0 %2885
        %2888 = vset.pattern.permute.xlu0 6
        %2889 = vperm.xlu0 %2888, %v357
        %v2890 = vpop.permute.xlu0 %2889
        %2892 = vset.pattern.permute.xlu0 6
        %2893 = vperm.xlu0 %2892, %v358
        %v2894 = vpop.permute.xlu0 %2893
        %2896 = vset.pattern.permute.xlu0 6
        %2897 = vperm.xlu0 %2896, %v359
        %v2898 = vpop.permute.xlu0 %2897
        %2900 = vset.pattern.permute.xlu0 6
        %2901 = vperm.xlu0 %2900, %v360
        %v2902 = vpop.permute.xlu0 %2901
        %2904 = vset.pattern.permute.xlu0 6
        %2905 = vperm.xlu0 %2904, %v361
        %v2906 = vpop.permute.xlu0 %2905
        %2908 = vset.pattern.permute.xlu0 6
        %2909 = vperm.xlu0 %2908, %v362
        %v2910 = vpop.permute.xlu0 %2909
        %2912 = vset.pattern.permute.xlu0 6
        %2913 = vperm.xlu0 %2912, %v363
        %v2914 = vpop.permute.xlu0 %2913
        %2916 = vset.pattern.permute.xlu0 6
        %2917 = vperm.xlu0 %2916, %v364
        %v2918 = vpop.permute.xlu0 %2917
        %2920 = vset.pattern.permute.xlu0 6
        %2921 = vperm.xlu0 %2920, %v365
        %v2922 = vpop.permute.xlu0 %2921
        %2924 = vset.pattern.permute.xlu0 6
        %2925 = vperm.xlu0 %2924, %v366
        %v2926 = vpop.permute.xlu0 %2925
        %2928 = vset.pattern.permute.xlu0 6
        %2929 = vperm.xlu0 %2928, %v367
        %v2930 = vpop.permute.xlu0 %2929
        %2932 = vset.pattern.permute.xlu0 6
        %2933 = vperm.xlu0 %2932, %v368
        %v2934 = vpop.permute.xlu0 %2933
        %2936 = vset.pattern.permute.xlu0 6
        %2937 = vperm.xlu0 %2936, %v369
        %v2938 = vpop.permute.xlu0 %2937
        %2940 = vset.pattern.permute.xlu0 6
        %2941 = vperm.xlu0 %2940, %v370
        %v2942 = vpop.permute.xlu0 %2941
        %2944 = vset.pattern.permute.xlu0 6
        %2945 = vperm.xlu0 %2944, %v371
        %v2946 = vpop.permute.xlu0 %2945
        %2948 = vset.pattern.permute.xlu0 6
        %2949 = vperm.xlu0 %2948, %v372
        %v2950 = vpop.permute.xlu0 %2949
        %2952 = vset.pattern.permute.xlu0 6
        %2953 = vperm.xlu0 %2952, %v373
        %v2954 = vpop.permute.xlu0 %2953
        %2956 = vset.pattern.permute.xlu0 6
        %2957 = vperm.xlu0 %2956, %v374
        %v2958 = vpop.permute.xlu0 %2957
        %2960 = vset.pattern.permute.xlu0 6
        %2961 = vperm.xlu0 %2960, %v375
        %v2962 = vpop.permute.xlu0 %2961
        %2964 = vset.pattern.permute.xlu0 6
        %2965 = vperm.xlu0 %2964, %v376
        %v2966 = vpop.permute.xlu0 %2965
        %2968 = vset.pattern.permute.xlu0 6
        %2969 = vperm.xlu0 %2968, %v377
        %v2970 = vpop.permute.xlu0 %2969
        %2972 = vset.pattern.permute.xlu0 6
        %2973 = vperm.xlu0 %2972, %v378
        %v2974 = vpop.permute.xlu0 %2973
        %2976 = vset.pattern.permute.xlu0 6
        %2977 = vperm.xlu0 %2976, %v379
        %v2978 = vpop.permute.xlu0 %2977
        %2980 = vset.pattern.permute.xlu0 6
        %2981 = vperm.xlu0 %2980, %v380
        %v2982 = vpop.permute.xlu0 %2981
        %2984 = vset.pattern.permute.xlu0 6
        %2985 = vperm.xlu0 %2984, %v381
        %v2986 = vpop.permute.xlu0 %2985
        %2988 = vset.pattern.permute.xlu0 6
        %2989 = vperm.xlu0 %2988, %v382
        %v2990 = vpop.permute.xlu0 %2989
        %2992 = vset.pattern.permute.xlu0 6
        %2993 = vperm.xlu0 %2992, %v383
        %v2994 = vpop.permute.xlu0 %2993
        %2996 = vset.pattern.permute.xlu0 6
        %2997 = vperm.xlu0 %2996, %v384
        %v2998 = vpop.permute.xlu0 %2997
        %3000 = vset.pattern.permute.xlu0 6
        %3001 = vperm.xlu0 %3000, %v385
        %v3002 = vpop.permute.xlu0 %3001
        %3004 = vset.pattern.permute.xlu0 6
        %3005 = vperm.xlu0 %3004, %v386
        %v3006 = vpop.permute.xlu0 %3005
        %3008 = vset.pattern.permute.xlu0 6
        %3009 = vperm.xlu0 %3008, %v387
        %v3010 = vpop.permute.xlu0 %3009
        %3012 = vset.pattern.permute.xlu0 6
        %3013 = vperm.xlu0 %3012, %v388
        %v3014 = vpop.permute.xlu0 %3013
        %3016 = vset.pattern.permute.xlu0 6
        %3017 = vperm.xlu0 %3016, %v389
        %v3018 = vpop.permute.xlu0 %3017
        %3020 = vset.pattern.permute.xlu0 6
        %3021 = vperm.xlu0 %3020, %v390
        %v3022 = vpop.permute.xlu0 %3021
        %3024 = vset.pattern.permute.xlu0 6
        %3025 = vperm.xlu0 %3024, %v391
        %v3026 = vpop.permute.xlu0 %3025
        %3028 = vset.pattern.permute.xlu0 6
        %3029 = vperm.xlu0 %3028, %v392
        %v3030 = vpop.permute.xlu0 %3029
        %3032 = vset.pattern.permute.xlu0 6
        %3033 = vperm.xlu0 %3032, %v393
        %v3034 = vpop.permute.xlu0 %3033
        %3036 = vset.pattern.permute.xlu0 6
        %3037 = vperm.xlu0 %3036, %v394
        %v3038 = vpop.permute.xlu0 %3037
        %3040 = vset.pattern.permute.xlu0 6
        %3041 = vperm.xlu0 %3040, %v395
        %v3042 = vpop.permute.xlu0 %3041
        %3044 = vset.pattern.permute.xlu0 6
        %3045 = vperm.xlu0 %3044, %v396
        %v3046 = vpop.permute.xlu0 %3045
        %3048 = vset.pattern.permute.xlu0 6
        %3049 = vperm.xlu0 %3048, %v397
        %v3050 = vpop.permute.xlu0 %3049
        %3052 = vset.pattern.permute.xlu0 6
        %3053 = vperm.xlu0 %3052, %v398
        %v3054 = vpop.permute.xlu0 %3053
        %v3056 = vlaneseq
        %v3057 = vshrl.u32 %v3056, 7
        %v3058 = vsub.s32 6, %v3057
        %v3059 = vrot.slane %v400, %v3058
        %v3060 = vmul.f32 %v2802, %v3059
        %v3061 = vmul.f32 %v2806, %v3059
        %v3062 = vmul.f32 %v2810, %v3059
        %v3063 = vmul.f32 %v2814, %v3059
        %v3064 = vmul.f32 %v2818, %v3059
        %v3065 = vmul.f32 %v2822, %v3059
        %v3066 = vmul.f32 %v2826, %v3059
        %v3067 = vmul.f32 %v2830, %v3059
        %v3068 = vmul.f32 %v2834, %v3059
        %v3069 = vmul.f32 %v2838, %v3059
        %v3070 = vmul.f32 %v2842, %v3059
        %v3071 = vmul.f32 %v2846, %v3059
        %v3072 = vmul.f32 %v2850, %v3059
        %v3073 = vmul.f32 %v2854, %v3059
        %v3074 = vmul.f32 %v2858, %v3059
        %v3075 = vmul.f32 %v2862, %v3059
        %v3076 = vmul.f32 %v2866, %v3059
        %v3077 = vmul.f32 %v2870, %v3059
        %v3078 = vmul.f32 %v2874, %v3059
        %v3079 = vmul.f32 %v2878, %v3059
        %v3080 = vmul.f32 %v2882, %v3059
        %v3081 = vmul.f32 %v2886, %v3059
        %v3082 = vmul.f32 %v2890, %v3059
        %v3083 = vmul.f32 %v2894, %v3059
        %v3084 = vmul.f32 %v2898, %v3059
        %v3085 = vmul.f32 %v2902, %v3059
        %v3086 = vmul.f32 %v2906, %v3059
        %v3087 = vmul.f32 %v2910, %v3059
        %v3088 = vmul.f32 %v2914, %v3059
        %v3089 = vmul.f32 %v2918, %v3059
        %v3090 = vmul.f32 %v2922, %v3059
        %v3091 = vmul.f32 %v2926, %v3059
        %v3092 = vmul.f32 %v2930, %v3059
        %v3093 = vmul.f32 %v2934, %v3059
        %v3094 = vmul.f32 %v2938, %v3059
        %v3095 = vmul.f32 %v2942, %v3059
        %v3096 = vmul.f32 %v2946, %v3059
        %v3097 = vmul.f32 %v2950, %v3059
        %v3098 = vmul.f32 %v2954, %v3059
        %v3099 = vmul.f32 %v2958, %v3059
        %v3100 = vmul.f32 %v2962, %v3059
        %v3101 = vmul.f32 %v2966, %v3059
        %v3102 = vmul.f32 %v2970, %v3059
        %v3103 = vmul.f32 %v2974, %v3059
        %v3104 = vmul.f32 %v2978, %v3059
        %v3105 = vmul.f32 %v2982, %v3059
        %v3106 = vmul.f32 %v2986, %v3059
        %v3107 = vmul.f32 %v2990, %v3059
        %v3108 = vmul.f32 %v2994, %v3059
        %v3109 = vmul.f32 %v2998, %v3059
        %v3110 = vmul.f32 %v3002, %v3059
        %v3111 = vmul.f32 %v3006, %v3059
        %v3112 = vmul.f32 %v3010, %v3059
        %v3113 = vmul.f32 %v3014, %v3059
        %v3114 = vmul.f32 %v3018, %v3059
        %v3115 = vmul.f32 %v3022, %v3059
        %v3116 = vmul.f32 %v3026, %v3059
        %v3117 = vmul.f32 %v3030, %v3059
        %v3118 = vmul.f32 %v3034, %v3059
        %v3119 = vmul.f32 %v3038, %v3059
        %v3120 = vmul.f32 %v3042, %v3059
        %v3121 = vmul.f32 %v3046, %v3059
        %v3122 = vmul.f32 %v3050, %v3059
        %v3123 = vmul.f32 %v3054, %v3059
        %v3124 = vadd.f32 %v2736, %v3060
        %v3125 = vadd.f32 %v2737, %v3061
        %v3126 = vadd.f32 %v2738, %v3062
        %v3127 = vadd.f32 %v2739, %v3063
        %v3128 = vadd.f32 %v2740, %v3064
        %v3129 = vadd.f32 %v2741, %v3065
        %v3130 = vadd.f32 %v2742, %v3066
        %v3131 = vadd.f32 %v2743, %v3067
        %v3132 = vadd.f32 %v2744, %v3068
        %v3133 = vadd.f32 %v2745, %v3069
        %v3134 = vadd.f32 %v2746, %v3070
        %v3135 = vadd.f32 %v2747, %v3071
        %v3136 = vadd.f32 %v2748, %v3072
        %v3137 = vadd.f32 %v2749, %v3073
        %v3138 = vadd.f32 %v2750, %v3074
        %v3139 = vadd.f32 %v2751, %v3075
        %v3140 = vadd.f32 %v2752, %v3076
        %v3141 = vadd.f32 %v2753, %v3077
        %v3142 = vadd.f32 %v2754, %v3078
        %v3143 = vadd.f32 %v2755, %v3079
        %v3144 = vadd.f32 %v2756, %v3080
        %v3145 = vadd.f32 %v2757, %v3081
        %v3146 = vadd.f32 %v2758, %v3082
        %v3147 = vadd.f32 %v2759, %v3083
        %v3148 = vadd.f32 %v2760, %v3084
        %v3149 = vadd.f32 %v2761, %v3085
        %v3150 = vadd.f32 %v2762, %v3086
        %v3151 = vadd.f32 %v2763, %v3087
        %v3152 = vadd.f32 %v2764, %v3088
        %v3153 = vadd.f32 %v2765, %v3089
        %v3154 = vadd.f32 %v2766, %v3090
        %v3155 = vadd.f32 %v2767, %v3091
        %v3156 = vadd.f32 %v2768, %v3092
        %v3157 = vadd.f32 %v2769, %v3093
        %v3158 = vadd.f32 %v2770, %v3094
        %v3159 = vadd.f32 %v2771, %v3095
        %v3160 = vadd.f32 %v2772, %v3096
        %v3161 = vadd.f32 %v2773, %v3097
        %v3162 = vadd.f32 %v2774, %v3098
        %v3163 = vadd.f32 %v2775, %v3099
        %v3164 = vadd.f32 %v2776, %v3100
        %v3165 = vadd.f32 %v2777, %v3101
        %v3166 = vadd.f32 %v2778, %v3102
        %v3167 = vadd.f32 %v2779, %v3103
        %v3168 = vadd.f32 %v2780, %v3104
        %v3169 = vadd.f32 %v2781, %v3105
        %v3170 = vadd.f32 %v2782, %v3106
        %v3171 = vadd.f32 %v2783, %v3107
        %v3172 = vadd.f32 %v2784, %v3108
        %v3173 = vadd.f32 %v2785, %v3109
        %v3174 = vadd.f32 %v2786, %v3110
        %v3175 = vadd.f32 %v2787, %v3111
        %v3176 = vadd.f32 %v2788, %v3112
        %v3177 = vadd.f32 %v2789, %v3113
        %v3178 = vadd.f32 %v2790, %v3114
        %v3179 = vadd.f32 %v2791, %v3115
        %v3180 = vadd.f32 %v2792, %v3116
        %v3181 = vadd.f32 %v2793, %v3117
        %v3182 = vadd.f32 %v2794, %v3118
        %v3183 = vadd.f32 %v2795, %v3119
        %v3184 = vadd.f32 %v2796, %v3120
        %v3185 = vadd.f32 %v2797, %v3121
        %v3186 = vadd.f32 %v2798, %v3122
        %v3187 = vadd.f32 %v2799, %v3123
        %3188 = vset.pattern.permute.xlu0 7
        %3189 = vperm.xlu0 %3188, %v335
        %v3190 = vpop.permute.xlu0 %3189
        %3192 = vset.pattern.permute.xlu0 7
        %3193 = vperm.xlu0 %3192, %v336
        %v3194 = vpop.permute.xlu0 %3193
        %3196 = vset.pattern.permute.xlu0 7
        %3197 = vperm.xlu0 %3196, %v337
        %v3198 = vpop.permute.xlu0 %3197
        %3200 = vset.pattern.permute.xlu0 7
        %3201 = vperm.xlu0 %3200, %v338
        %v3202 = vpop.permute.xlu0 %3201
        %3204 = vset.pattern.permute.xlu0 7
        %3205 = vperm.xlu0 %3204, %v339
        %v3206 = vpop.permute.xlu0 %3205
        %3208 = vset.pattern.permute.xlu0 7
        %3209 = vperm.xlu0 %3208, %v340
        %v3210 = vpop.permute.xlu0 %3209
        %3212 = vset.pattern.permute.xlu0 7
        %3213 = vperm.xlu0 %3212, %v341
        %v3214 = vpop.permute.xlu0 %3213
        %3216 = vset.pattern.permute.xlu0 7
        %3217 = vperm.xlu0 %3216, %v342
        %v3218 = vpop.permute.xlu0 %3217
        %3220 = vset.pattern.permute.xlu0 7
        %3221 = vperm.xlu0 %3220, %v343
        %v3222 = vpop.permute.xlu0 %3221
        %3224 = vset.pattern.permute.xlu0 7
        %3225 = vperm.xlu0 %3224, %v344
        %v3226 = vpop.permute.xlu0 %3225
        %3228 = vset.pattern.permute.xlu0 7
        %3229 = vperm.xlu0 %3228, %v345
        %v3230 = vpop.permute.xlu0 %3229
        %3232 = vset.pattern.permute.xlu0 7
        %3233 = vperm.xlu0 %3232, %v346
        %v3234 = vpop.permute.xlu0 %3233
        %3236 = vset.pattern.permute.xlu0 7
        %3237 = vperm.xlu0 %3236, %v347
        %v3238 = vpop.permute.xlu0 %3237
        %3240 = vset.pattern.permute.xlu0 7
        %3241 = vperm.xlu0 %3240, %v348
        %v3242 = vpop.permute.xlu0 %3241
        %3244 = vset.pattern.permute.xlu0 7
        %3245 = vperm.xlu0 %3244, %v349
        %v3246 = vpop.permute.xlu0 %3245
        %3248 = vset.pattern.permute.xlu0 7
        %3249 = vperm.xlu0 %3248, %v350
        %v3250 = vpop.permute.xlu0 %3249
        %3252 = vset.pattern.permute.xlu0 7
        %3253 = vperm.xlu0 %3252, %v351
        %v3254 = vpop.permute.xlu0 %3253
        %3256 = vset.pattern.permute.xlu0 7
        %3257 = vperm.xlu0 %3256, %v352
        %v3258 = vpop.permute.xlu0 %3257
        %3260 = vset.pattern.permute.xlu0 7
        %3261 = vperm.xlu0 %3260, %v353
        %v3262 = vpop.permute.xlu0 %3261
        %3264 = vset.pattern.permute.xlu0 7
        %3265 = vperm.xlu0 %3264, %v354
        %v3266 = vpop.permute.xlu0 %3265
        %3268 = vset.pattern.permute.xlu0 7
        %3269 = vperm.xlu0 %3268, %v355
        %v3270 = vpop.permute.xlu0 %3269
        %3272 = vset.pattern.permute.xlu0 7
        %3273 = vperm.xlu0 %3272, %v356
        %v3274 = vpop.permute.xlu0 %3273
        %3276 = vset.pattern.permute.xlu0 7
        %3277 = vperm.xlu0 %3276, %v357
        %v3278 = vpop.permute.xlu0 %3277
        %3280 = vset.pattern.permute.xlu0 7
        %3281 = vperm.xlu0 %3280, %v358
        %v3282 = vpop.permute.xlu0 %3281
        %3284 = vset.pattern.permute.xlu0 7
        %3285 = vperm.xlu0 %3284, %v359
        %v3286 = vpop.permute.xlu0 %3285
        %3288 = vset.pattern.permute.xlu0 7
        %3289 = vperm.xlu0 %3288, %v360
        %v3290 = vpop.permute.xlu0 %3289
        %3292 = vset.pattern.permute.xlu0 7
        %3293 = vperm.xlu0 %3292, %v361
        %v3294 = vpop.permute.xlu0 %3293
        %3296 = vset.pattern.permute.xlu0 7
        %3297 = vperm.xlu0 %3296, %v362
        %v3298 = vpop.permute.xlu0 %3297
        %3300 = vset.pattern.permute.xlu0 7
        %3301 = vperm.xlu0 %3300, %v363
        %v3302 = vpop.permute.xlu0 %3301
        %3304 = vset.pattern.permute.xlu0 7
        %3305 = vperm.xlu0 %3304, %v364
        %v3306 = vpop.permute.xlu0 %3305
        %3308 = vset.pattern.permute.xlu0 7
        %3309 = vperm.xlu0 %3308, %v365
        %v3310 = vpop.permute.xlu0 %3309
        %3312 = vset.pattern.permute.xlu0 7
        %3313 = vperm.xlu0 %3312, %v366
        %v3314 = vpop.permute.xlu0 %3313
        %3316 = vset.pattern.permute.xlu0 7
        %3317 = vperm.xlu0 %3316, %v367
        %v3318 = vpop.permute.xlu0 %3317
        %3320 = vset.pattern.permute.xlu0 7
        %3321 = vperm.xlu0 %3320, %v368
        %v3322 = vpop.permute.xlu0 %3321
        %3324 = vset.pattern.permute.xlu0 7
        %3325 = vperm.xlu0 %3324, %v369
        %v3326 = vpop.permute.xlu0 %3325
        %3328 = vset.pattern.permute.xlu0 7
        %3329 = vperm.xlu0 %3328, %v370
        %v3330 = vpop.permute.xlu0 %3329
        %3332 = vset.pattern.permute.xlu0 7
        %3333 = vperm.xlu0 %3332, %v371
        %v3334 = vpop.permute.xlu0 %3333
        %3336 = vset.pattern.permute.xlu0 7
        %3337 = vperm.xlu0 %3336, %v372
        %v3338 = vpop.permute.xlu0 %3337
        %3340 = vset.pattern.permute.xlu0 7
        %3341 = vperm.xlu0 %3340, %v373
        %v3342 = vpop.permute.xlu0 %3341
        %3344 = vset.pattern.permute.xlu0 7
        %3345 = vperm.xlu0 %3344, %v374
        %v3346 = vpop.permute.xlu0 %3345
        %3348 = vset.pattern.permute.xlu0 7
        %3349 = vperm.xlu0 %3348, %v375
        %v3350 = vpop.permute.xlu0 %3349
        %3352 = vset.pattern.permute.xlu0 7
        %3353 = vperm.xlu0 %3352, %v376
        %v3354 = vpop.permute.xlu0 %3353
        %3356 = vset.pattern.permute.xlu0 7
        %3357 = vperm.xlu0 %3356, %v377
        %v3358 = vpop.permute.xlu0 %3357
        %3360 = vset.pattern.permute.xlu0 7
        %3361 = vperm.xlu0 %3360, %v378
        %v3362 = vpop.permute.xlu0 %3361
        %3364 = vset.pattern.permute.xlu0 7
        %3365 = vperm.xlu0 %3364, %v379
        %v3366 = vpop.permute.xlu0 %3365
        %3368 = vset.pattern.permute.xlu0 7
        %3369 = vperm.xlu0 %3368, %v380
        %v3370 = vpop.permute.xlu0 %3369
        %3372 = vset.pattern.permute.xlu0 7
        %3373 = vperm.xlu0 %3372, %v381
        %v3374 = vpop.permute.xlu0 %3373
        %3376 = vset.pattern.permute.xlu0 7
        %3377 = vperm.xlu0 %3376, %v382
        %v3378 = vpop.permute.xlu0 %3377
        %3380 = vset.pattern.permute.xlu0 7
        %3381 = vperm.xlu0 %3380, %v383
        %v3382 = vpop.permute.xlu0 %3381
        %3384 = vset.pattern.permute.xlu0 7
        %3385 = vperm.xlu0 %3384, %v384
        %v3386 = vpop.permute.xlu0 %3385
        %3388 = vset.pattern.permute.xlu0 7
        %3389 = vperm.xlu0 %3388, %v385
        %v3390 = vpop.permute.xlu0 %3389
        %3392 = vset.pattern.permute.xlu0 7
        %3393 = vperm.xlu0 %3392, %v386
        %v3394 = vpop.permute.xlu0 %3393
        %3396 = vset.pattern.permute.xlu0 7
        %3397 = vperm.xlu0 %3396, %v387
        %v3398 = vpop.permute.xlu0 %3397
        %3400 = vset.pattern.permute.xlu0 7
        %3401 = vperm.xlu0 %3400, %v388
        %v3402 = vpop.permute.xlu0 %3401
        %3404 = vset.pattern.permute.xlu0 7
        %3405 = vperm.xlu0 %3404, %v389
        %v3406 = vpop.permute.xlu0 %3405
        %3408 = vset.pattern.permute.xlu0 7
        %3409 = vperm.xlu0 %3408, %v390
        %v3410 = vpop.permute.xlu0 %3409
        %3412 = vset.pattern.permute.xlu0 7
        %3413 = vperm.xlu0 %3412, %v391
        %v3414 = vpop.permute.xlu0 %3413
        %3416 = vset.pattern.permute.xlu0 7
        %3417 = vperm.xlu0 %3416, %v392
        %v3418 = vpop.permute.xlu0 %3417
        %3420 = vset.pattern.permute.xlu0 7
        %3421 = vperm.xlu0 %3420, %v393
        %v3422 = vpop.permute.xlu0 %3421
        %3424 = vset.pattern.permute.xlu0 7
        %3425 = vperm.xlu0 %3424, %v394
        %v3426 = vpop.permute.xlu0 %3425
        %3428 = vset.pattern.permute.xlu0 7
        %3429 = vperm.xlu0 %3428, %v395
        %v3430 = vpop.permute.xlu0 %3429
        %3432 = vset.pattern.permute.xlu0 7
        %3433 = vperm.xlu0 %3432, %v396
        %v3434 = vpop.permute.xlu0 %3433
        %3436 = vset.pattern.permute.xlu0 7
        %3437 = vperm.xlu0 %3436, %v397
        %v3438 = vpop.permute.xlu0 %3437
        %3440 = vset.pattern.permute.xlu0 7
        %3441 = vperm.xlu0 %3440, %v398
        %v3442 = vpop.permute.xlu0 %3441
        %v3444 = vlaneseq
        %v3445 = vshrl.u32 %v3444, 7
        %v3446 = vsub.s32 7, %v3445
        %v3447 = vrot.slane %v400, %v3446
        %v3448 = vmul.f32 %v3190, %v3447
        %v3449 = vmul.f32 %v3194, %v3447
        %v3450 = vmul.f32 %v3198, %v3447
        %v3451 = vmul.f32 %v3202, %v3447
        %v3452 = vmul.f32 %v3206, %v3447
        %v3453 = vmul.f32 %v3210, %v3447
        %v3454 = vmul.f32 %v3214, %v3447
        %v3455 = vmul.f32 %v3218, %v3447
        %v3456 = vmul.f32 %v3222, %v3447
        %v3457 = vmul.f32 %v3226, %v3447
        %v3458 = vmul.f32 %v3230, %v3447
        %v3459 = vmul.f32 %v3234, %v3447
        %v3460 = vmul.f32 %v3238, %v3447
        %v3461 = vmul.f32 %v3242, %v3447
        %v3462 = vmul.f32 %v3246, %v3447
        %v3463 = vmul.f32 %v3250, %v3447
        %v3464 = vmul.f32 %v3254, %v3447
        %v3465 = vmul.f32 %v3258, %v3447
        %v3466 = vmul.f32 %v3262, %v3447
        %v3467 = vmul.f32 %v3266, %v3447
        %v3468 = vmul.f32 %v3270, %v3447
        %v3469 = vmul.f32 %v3274, %v3447
        %v3470 = vmul.f32 %v3278, %v3447
        %v3471 = vmul.f32 %v3282, %v3447
        %v3472 = vmul.f32 %v3286, %v3447
        %v3473 = vmul.f32 %v3290, %v3447
        %v3474 = vmul.f32 %v3294, %v3447
        %v3475 = vmul.f32 %v3298, %v3447
        %v3476 = vmul.f32 %v3302, %v3447
        %v3477 = vmul.f32 %v3306, %v3447
        %v3478 = vmul.f32 %v3310, %v3447
        %v3479 = vmul.f32 %v3314, %v3447
        %v3480 = vmul.f32 %v3318, %v3447
        %v3481 = vmul.f32 %v3322, %v3447
        %v3482 = vmul.f32 %v3326, %v3447
        %v3483 = vmul.f32 %v3330, %v3447
        %v3484 = vmul.f32 %v3334, %v3447
        %v3485 = vmul.f32 %v3338, %v3447
        %v3486 = vmul.f32 %v3342, %v3447
        %v3487 = vmul.f32 %v3346, %v3447
        %v3488 = vmul.f32 %v3350, %v3447
        %v3489 = vmul.f32 %v3354, %v3447
        %v3490 = vmul.f32 %v3358, %v3447
        %v3491 = vmul.f32 %v3362, %v3447
        %v3492 = vmul.f32 %v3366, %v3447
        %v3493 = vmul.f32 %v3370, %v3447
        %v3494 = vmul.f32 %v3374, %v3447
        %v3495 = vmul.f32 %v3378, %v3447
        %v3496 = vmul.f32 %v3382, %v3447
        %v3497 = vmul.f32 %v3386, %v3447
        %v3498 = vmul.f32 %v3390, %v3447
        %v3499 = vmul.f32 %v3394, %v3447
        %v3500 = vmul.f32 %v3398, %v3447
        %v3501 = vmul.f32 %v3402, %v3447
        %v3502 = vmul.f32 %v3406, %v3447
        %v3503 = vmul.f32 %v3410, %v3447
        %v3504 = vmul.f32 %v3414, %v3447
        %v3505 = vmul.f32 %v3418, %v3447
        %v3506 = vmul.f32 %v3422, %v3447
        %v3507 = vmul.f32 %v3426, %v3447
        %v3508 = vmul.f32 %v3430, %v3447
        %v3509 = vmul.f32 %v3434, %v3447
        %v3510 = vmul.f32 %v3438, %v3447
        %v3511 = vmul.f32 %v3442, %v3447
        %v3512 = vadd.f32 %v3124, %v3448
        %v3513 = vadd.f32 %v3125, %v3449
        %v3514 = vadd.f32 %v3126, %v3450
        %v3515 = vadd.f32 %v3127, %v3451
        %v3516 = vadd.f32 %v3128, %v3452
        %v3517 = vadd.f32 %v3129, %v3453
        %v3518 = vadd.f32 %v3130, %v3454
        %v3519 = vadd.f32 %v3131, %v3455
        %v3520 = vadd.f32 %v3132, %v3456
        %v3521 = vadd.f32 %v3133, %v3457
        %v3522 = vadd.f32 %v3134, %v3458
        %v3523 = vadd.f32 %v3135, %v3459
        %v3524 = vadd.f32 %v3136, %v3460
        %v3525 = vadd.f32 %v3137, %v3461
        %v3526 = vadd.f32 %v3138, %v3462
        %v3527 = vadd.f32 %v3139, %v3463
        %v3528 = vadd.f32 %v3140, %v3464
        %v3529 = vadd.f32 %v3141, %v3465
        %v3530 = vadd.f32 %v3142, %v3466
        %v3531 = vadd.f32 %v3143, %v3467
        %v3532 = vadd.f32 %v3144, %v3468
        %v3533 = vadd.f32 %v3145, %v3469
        %v3534 = vadd.f32 %v3146, %v3470
        %v3535 = vadd.f32 %v3147, %v3471
        %v3536 = vadd.f32 %v3148, %v3472
        %v3537 = vadd.f32 %v3149, %v3473
        %v3538 = vadd.f32 %v3150, %v3474
        %v3539 = vadd.f32 %v3151, %v3475
        %v3540 = vadd.f32 %v3152, %v3476
        %v3541 = vadd.f32 %v3153, %v3477
        %v3542 = vadd.f32 %v3154, %v3478
        %v3543 = vadd.f32 %v3155, %v3479
        %v3544 = vadd.f32 %v3156, %v3480
        %v3545 = vadd.f32 %v3157, %v3481
        %v3546 = vadd.f32 %v3158, %v3482
        %v3547 = vadd.f32 %v3159, %v3483
        %v3548 = vadd.f32 %v3160, %v3484
        %v3549 = vadd.f32 %v3161, %v3485
        %v3550 = vadd.f32 %v3162, %v3486
        %v3551 = vadd.f32 %v3163, %v3487
        %v3552 = vadd.f32 %v3164, %v3488
        %v3553 = vadd.f32 %v3165, %v3489
        %v3554 = vadd.f32 %v3166, %v3490
        %v3555 = vadd.f32 %v3167, %v3491
        %v3556 = vadd.f32 %v3168, %v3492
        %v3557 = vadd.f32 %v3169, %v3493
        %v3558 = vadd.f32 %v3170, %v3494
        %v3559 = vadd.f32 %v3171, %v3495
        %v3560 = vadd.f32 %v3172, %v3496
        %v3561 = vadd.f32 %v3173, %v3497
        %v3562 = vadd.f32 %v3174, %v3498
        %v3563 = vadd.f32 %v3175, %v3499
        %v3564 = vadd.f32 %v3176, %v3500
        %v3565 = vadd.f32 %v3177, %v3501
        %v3566 = vadd.f32 %v3178, %v3502
        %v3567 = vadd.f32 %v3179, %v3503
        %v3568 = vadd.f32 %v3180, %v3504
        %v3569 = vadd.f32 %v3181, %v3505
        %v3570 = vadd.f32 %v3182, %v3506
        %v3571 = vadd.f32 %v3183, %v3507
        %v3572 = vadd.f32 %v3184, %v3508
        %v3573 = vadd.f32 %v3185, %v3509
        %v3574 = vadd.f32 %v3186, %v3510
        %v3575 = vadd.f32 %v3187, %v3511
        %3576 = vset.pattern.permute.xlu0 8
        %3577 = vperm.xlu0 %3576, %v335
        %v3578 = vpop.permute.xlu0 %3577
        %3580 = vset.pattern.permute.xlu0 8
        %3581 = vperm.xlu0 %3580, %v336
        %v3582 = vpop.permute.xlu0 %3581
        %3584 = vset.pattern.permute.xlu0 8
        %3585 = vperm.xlu0 %3584, %v337
        %v3586 = vpop.permute.xlu0 %3585
        %3588 = vset.pattern.permute.xlu0 8
        %3589 = vperm.xlu0 %3588, %v338
        %v3590 = vpop.permute.xlu0 %3589
        %3592 = vset.pattern.permute.xlu0 8
        %3593 = vperm.xlu0 %3592, %v339
        %v3594 = vpop.permute.xlu0 %3593
        %3596 = vset.pattern.permute.xlu0 8
        %3597 = vperm.xlu0 %3596, %v340
        %v3598 = vpop.permute.xlu0 %3597
        %3600 = vset.pattern.permute.xlu0 8
        %3601 = vperm.xlu0 %3600, %v341
        %v3602 = vpop.permute.xlu0 %3601
        %3604 = vset.pattern.permute.xlu0 8
        %3605 = vperm.xlu0 %3604, %v342
        %v3606 = vpop.permute.xlu0 %3605
        %3608 = vset.pattern.permute.xlu0 8
        %3609 = vperm.xlu0 %3608, %v343
        %v3610 = vpop.permute.xlu0 %3609
        %3612 = vset.pattern.permute.xlu0 8
        %3613 = vperm.xlu0 %3612, %v344
        %v3614 = vpop.permute.xlu0 %3613
        %3616 = vset.pattern.permute.xlu0 8
        %3617 = vperm.xlu0 %3616, %v345
        %v3618 = vpop.permute.xlu0 %3617
        %3620 = vset.pattern.permute.xlu0 8
        %3621 = vperm.xlu0 %3620, %v346
        %v3622 = vpop.permute.xlu0 %3621
        %3624 = vset.pattern.permute.xlu0 8
        %3625 = vperm.xlu0 %3624, %v347
        %v3626 = vpop.permute.xlu0 %3625
        %3628 = vset.pattern.permute.xlu0 8
        %3629 = vperm.xlu0 %3628, %v348
        %v3630 = vpop.permute.xlu0 %3629
        %3632 = vset.pattern.permute.xlu0 8
        %3633 = vperm.xlu0 %3632, %v349
        %v3634 = vpop.permute.xlu0 %3633
        %3636 = vset.pattern.permute.xlu0 8
        %3637 = vperm.xlu0 %3636, %v350
        %v3638 = vpop.permute.xlu0 %3637
        %3640 = vset.pattern.permute.xlu0 8
        %3641 = vperm.xlu0 %3640, %v351
        %v3642 = vpop.permute.xlu0 %3641
        %3644 = vset.pattern.permute.xlu0 8
        %3645 = vperm.xlu0 %3644, %v352
        %v3646 = vpop.permute.xlu0 %3645
        %3648 = vset.pattern.permute.xlu0 8
        %3649 = vperm.xlu0 %3648, %v353
        %v3650 = vpop.permute.xlu0 %3649
        %3652 = vset.pattern.permute.xlu0 8
        %3653 = vperm.xlu0 %3652, %v354
        %v3654 = vpop.permute.xlu0 %3653
        %3656 = vset.pattern.permute.xlu0 8
        %3657 = vperm.xlu0 %3656, %v355
        %v3658 = vpop.permute.xlu0 %3657
        %3660 = vset.pattern.permute.xlu0 8
        %3661 = vperm.xlu0 %3660, %v356
        %v3662 = vpop.permute.xlu0 %3661
        %3664 = vset.pattern.permute.xlu0 8
        %3665 = vperm.xlu0 %3664, %v357
        %v3666 = vpop.permute.xlu0 %3665
        %3668 = vset.pattern.permute.xlu0 8
        %3669 = vperm.xlu0 %3668, %v358
        %v3670 = vpop.permute.xlu0 %3669
        %3672 = vset.pattern.permute.xlu0 8
        %3673 = vperm.xlu0 %3672, %v359
        %v3674 = vpop.permute.xlu0 %3673
        %3676 = vset.pattern.permute.xlu0 8
        %3677 = vperm.xlu0 %3676, %v360
        %v3678 = vpop.permute.xlu0 %3677
        %3680 = vset.pattern.permute.xlu0 8
        %3681 = vperm.xlu0 %3680, %v361
        %v3682 = vpop.permute.xlu0 %3681
        %3684 = vset.pattern.permute.xlu0 8
        %3685 = vperm.xlu0 %3684, %v362
        %v3686 = vpop.permute.xlu0 %3685
        %3688 = vset.pattern.permute.xlu0 8
        %3689 = vperm.xlu0 %3688, %v363
        %v3690 = vpop.permute.xlu0 %3689
        %3692 = vset.pattern.permute.xlu0 8
        %3693 = vperm.xlu0 %3692, %v364
        %v3694 = vpop.permute.xlu0 %3693
        %3696 = vset.pattern.permute.xlu0 8
        %3697 = vperm.xlu0 %3696, %v365
        %v3698 = vpop.permute.xlu0 %3697
        %3700 = vset.pattern.permute.xlu0 8
        %3701 = vperm.xlu0 %3700, %v366
        %v3702 = vpop.permute.xlu0 %3701
        %3704 = vset.pattern.permute.xlu0 8
        %3705 = vperm.xlu0 %3704, %v367
        %v3706 = vpop.permute.xlu0 %3705
        %3708 = vset.pattern.permute.xlu0 8
        %3709 = vperm.xlu0 %3708, %v368
        %v3710 = vpop.permute.xlu0 %3709
        %3712 = vset.pattern.permute.xlu0 8
        %3713 = vperm.xlu0 %3712, %v369
        %v3714 = vpop.permute.xlu0 %3713
        %3716 = vset.pattern.permute.xlu0 8
        %3717 = vperm.xlu0 %3716, %v370
        %v3718 = vpop.permute.xlu0 %3717
        %3720 = vset.pattern.permute.xlu0 8
        %3721 = vperm.xlu0 %3720, %v371
        %v3722 = vpop.permute.xlu0 %3721
        %3724 = vset.pattern.permute.xlu0 8
        %3725 = vperm.xlu0 %3724, %v372
        %v3726 = vpop.permute.xlu0 %3725
        %3728 = vset.pattern.permute.xlu0 8
        %3729 = vperm.xlu0 %3728, %v373
        %v3730 = vpop.permute.xlu0 %3729
        %3732 = vset.pattern.permute.xlu0 8
        %3733 = vperm.xlu0 %3732, %v374
        %v3734 = vpop.permute.xlu0 %3733
        %3736 = vset.pattern.permute.xlu0 8
        %3737 = vperm.xlu0 %3736, %v375
        %v3738 = vpop.permute.xlu0 %3737
        %3740 = vset.pattern.permute.xlu0 8
        %3741 = vperm.xlu0 %3740, %v376
        %v3742 = vpop.permute.xlu0 %3741
        %3744 = vset.pattern.permute.xlu0 8
        %3745 = vperm.xlu0 %3744, %v377
        %v3746 = vpop.permute.xlu0 %3745
        %3748 = vset.pattern.permute.xlu0 8
        %3749 = vperm.xlu0 %3748, %v378
        %v3750 = vpop.permute.xlu0 %3749
        %3752 = vset.pattern.permute.xlu0 8
        %3753 = vperm.xlu0 %3752, %v379
        %v3754 = vpop.permute.xlu0 %3753
        %3756 = vset.pattern.permute.xlu0 8
        %3757 = vperm.xlu0 %3756, %v380
        %v3758 = vpop.permute.xlu0 %3757
        %3760 = vset.pattern.permute.xlu0 8
        %3761 = vperm.xlu0 %3760, %v381
        %v3762 = vpop.permute.xlu0 %3761
        %3764 = vset.pattern.permute.xlu0 8
        %3765 = vperm.xlu0 %3764, %v382
        %v3766 = vpop.permute.xlu0 %3765
        %3768 = vset.pattern.permute.xlu0 8
        %3769 = vperm.xlu0 %3768, %v383
        %v3770 = vpop.permute.xlu0 %3769
        %3772 = vset.pattern.permute.xlu0 8
        %3773 = vperm.xlu0 %3772, %v384
        %v3774 = vpop.permute.xlu0 %3773
        %3776 = vset.pattern.permute.xlu0 8
        %3777 = vperm.xlu0 %3776, %v385
        %v3778 = vpop.permute.xlu0 %3777
        %3780 = vset.pattern.permute.xlu0 8
        %3781 = vperm.xlu0 %3780, %v386
        %v3782 = vpop.permute.xlu0 %3781
        %3784 = vset.pattern.permute.xlu0 8
        %3785 = vperm.xlu0 %3784, %v387
        %v3786 = vpop.permute.xlu0 %3785
        %3788 = vset.pattern.permute.xlu0 8
        %3789 = vperm.xlu0 %3788, %v388
        %v3790 = vpop.permute.xlu0 %3789
        %3792 = vset.pattern.permute.xlu0 8
        %3793 = vperm.xlu0 %3792, %v389
        %v3794 = vpop.permute.xlu0 %3793
        %3796 = vset.pattern.permute.xlu0 8
        %3797 = vperm.xlu0 %3796, %v390
        %v3798 = vpop.permute.xlu0 %3797
        %3800 = vset.pattern.permute.xlu0 8
        %3801 = vperm.xlu0 %3800, %v391
        %v3802 = vpop.permute.xlu0 %3801
        %3804 = vset.pattern.permute.xlu0 8
        %3805 = vperm.xlu0 %3804, %v392
        %v3806 = vpop.permute.xlu0 %3805
        %3808 = vset.pattern.permute.xlu0 8
        %3809 = vperm.xlu0 %3808, %v393
        %v3810 = vpop.permute.xlu0 %3809
        %3812 = vset.pattern.permute.xlu0 8
        %3813 = vperm.xlu0 %3812, %v394
        %v3814 = vpop.permute.xlu0 %3813
        %3816 = vset.pattern.permute.xlu0 8
        %3817 = vperm.xlu0 %3816, %v395
        %v3818 = vpop.permute.xlu0 %3817
        %3820 = vset.pattern.permute.xlu0 8
        %3821 = vperm.xlu0 %3820, %v396
        %v3822 = vpop.permute.xlu0 %3821
        %3824 = vset.pattern.permute.xlu0 8
        %3825 = vperm.xlu0 %3824, %v397
        %v3826 = vpop.permute.xlu0 %3825
        %3828 = vset.pattern.permute.xlu0 8
        %3829 = vperm.xlu0 %3828, %v398
        %v3830 = vpop.permute.xlu0 %3829
        %v3832 = vlaneseq
        %v3833 = vshrl.u32 %v3832, 7
        %v3834 = vsub.s32 0, %v3833
        %v3835 = vrot.slane %v401, %v3834
        %v3836 = vmul.f32 %v3578, %v3835
        %v3837 = vmul.f32 %v3582, %v3835
        %v3838 = vmul.f32 %v3586, %v3835
        %v3839 = vmul.f32 %v3590, %v3835
        %v3840 = vmul.f32 %v3594, %v3835
        %v3841 = vmul.f32 %v3598, %v3835
        %v3842 = vmul.f32 %v3602, %v3835
        %v3843 = vmul.f32 %v3606, %v3835
        %v3844 = vmul.f32 %v3610, %v3835
        %v3845 = vmul.f32 %v3614, %v3835
        %v3846 = vmul.f32 %v3618, %v3835
        %v3847 = vmul.f32 %v3622, %v3835
        %v3848 = vmul.f32 %v3626, %v3835
        %v3849 = vmul.f32 %v3630, %v3835
        %v3850 = vmul.f32 %v3634, %v3835
        %v3851 = vmul.f32 %v3638, %v3835
        %v3852 = vmul.f32 %v3642, %v3835
        %v3853 = vmul.f32 %v3646, %v3835
        %v3854 = vmul.f32 %v3650, %v3835
        %v3855 = vmul.f32 %v3654, %v3835
        %v3856 = vmul.f32 %v3658, %v3835
        %v3857 = vmul.f32 %v3662, %v3835
        %v3858 = vmul.f32 %v3666, %v3835
        %v3859 = vmul.f32 %v3670, %v3835
        %v3860 = vmul.f32 %v3674, %v3835
        %v3861 = vmul.f32 %v3678, %v3835
        %v3862 = vmul.f32 %v3682, %v3835
        %v3863 = vmul.f32 %v3686, %v3835
        %v3864 = vmul.f32 %v3690, %v3835
        %v3865 = vmul.f32 %v3694, %v3835
        %v3866 = vmul.f32 %v3698, %v3835
        %v3867 = vmul.f32 %v3702, %v3835
        %v3868 = vmul.f32 %v3706, %v3835
        %v3869 = vmul.f32 %v3710, %v3835
        %v3870 = vmul.f32 %v3714, %v3835
        %v3871 = vmul.f32 %v3718, %v3835
        %v3872 = vmul.f32 %v3722, %v3835
        %v3873 = vmul.f32 %v3726, %v3835
        %v3874 = vmul.f32 %v3730, %v3835
        %v3875 = vmul.f32 %v3734, %v3835
        %v3876 = vmul.f32 %v3738, %v3835
        %v3877 = vmul.f32 %v3742, %v3835
        %v3878 = vmul.f32 %v3746, %v3835
        %v3879 = vmul.f32 %v3750, %v3835
        %v3880 = vmul.f32 %v3754, %v3835
        %v3881 = vmul.f32 %v3758, %v3835
        %v3882 = vmul.f32 %v3762, %v3835
        %v3883 = vmul.f32 %v3766, %v3835
        %v3884 = vmul.f32 %v3770, %v3835
        %v3885 = vmul.f32 %v3774, %v3835
        %v3886 = vmul.f32 %v3778, %v3835
        %v3887 = vmul.f32 %v3782, %v3835
        %v3888 = vmul.f32 %v3786, %v3835
        %v3889 = vmul.f32 %v3790, %v3835
        %v3890 = vmul.f32 %v3794, %v3835
        %v3891 = vmul.f32 %v3798, %v3835
        %v3892 = vmul.f32 %v3802, %v3835
        %v3893 = vmul.f32 %v3806, %v3835
        %v3894 = vmul.f32 %v3810, %v3835
        %v3895 = vmul.f32 %v3814, %v3835
        %v3896 = vmul.f32 %v3818, %v3835
        %v3897 = vmul.f32 %v3822, %v3835
        %v3898 = vmul.f32 %v3826, %v3835
        %v3899 = vmul.f32 %v3830, %v3835
        %v3900 = vadd.f32 %v3512, %v3836
        %v3901 = vadd.f32 %v3513, %v3837
        %v3902 = vadd.f32 %v3514, %v3838
        %v3903 = vadd.f32 %v3515, %v3839
        %v3904 = vadd.f32 %v3516, %v3840
        %v3905 = vadd.f32 %v3517, %v3841
        %v3906 = vadd.f32 %v3518, %v3842
        %v3907 = vadd.f32 %v3519, %v3843
        %v3908 = vadd.f32 %v3520, %v3844
        %v3909 = vadd.f32 %v3521, %v3845
        %v3910 = vadd.f32 %v3522, %v3846
        %v3911 = vadd.f32 %v3523, %v3847
        %v3912 = vadd.f32 %v3524, %v3848
        %v3913 = vadd.f32 %v3525, %v3849
        %v3914 = vadd.f32 %v3526, %v3850
        %v3915 = vadd.f32 %v3527, %v3851
        %v3916 = vadd.f32 %v3528, %v3852
        %v3917 = vadd.f32 %v3529, %v3853
        %v3918 = vadd.f32 %v3530, %v3854
        %v3919 = vadd.f32 %v3531, %v3855
        %v3920 = vadd.f32 %v3532, %v3856
        %v3921 = vadd.f32 %v3533, %v3857
        %v3922 = vadd.f32 %v3534, %v3858
        %v3923 = vadd.f32 %v3535, %v3859
        %v3924 = vadd.f32 %v3536, %v3860
        %v3925 = vadd.f32 %v3537, %v3861
        %v3926 = vadd.f32 %v3538, %v3862
        %v3927 = vadd.f32 %v3539, %v3863
        %v3928 = vadd.f32 %v3540, %v3864
        %v3929 = vadd.f32 %v3541, %v3865
        %v3930 = vadd.f32 %v3542, %v3866
        %v3931 = vadd.f32 %v3543, %v3867
        %v3932 = vadd.f32 %v3544, %v3868
        %v3933 = vadd.f32 %v3545, %v3869
        %v3934 = vadd.f32 %v3546, %v3870
        %v3935 = vadd.f32 %v3547, %v3871
        %v3936 = vadd.f32 %v3548, %v3872
        %v3937 = vadd.f32 %v3549, %v3873
        %v3938 = vadd.f32 %v3550, %v3874
        %v3939 = vadd.f32 %v3551, %v3875
        %v3940 = vadd.f32 %v3552, %v3876
        %v3941 = vadd.f32 %v3553, %v3877
        %v3942 = vadd.f32 %v3554, %v3878
        %v3943 = vadd.f32 %v3555, %v3879
        %v3944 = vadd.f32 %v3556, %v3880
        %v3945 = vadd.f32 %v3557, %v3881
        %v3946 = vadd.f32 %v3558, %v3882
        %v3947 = vadd.f32 %v3559, %v3883
        %v3948 = vadd.f32 %v3560, %v3884
        %v3949 = vadd.f32 %v3561, %v3885
        %v3950 = vadd.f32 %v3562, %v3886
        %v3951 = vadd.f32 %v3563, %v3887
        %v3952 = vadd.f32 %v3564, %v3888
        %v3953 = vadd.f32 %v3565, %v3889
        %v3954 = vadd.f32 %v3566, %v3890
        %v3955 = vadd.f32 %v3567, %v3891
        %v3956 = vadd.f32 %v3568, %v3892
        %v3957 = vadd.f32 %v3569, %v3893
        %v3958 = vadd.f32 %v3570, %v3894
        %v3959 = vadd.f32 %v3571, %v3895
        %v3960 = vadd.f32 %v3572, %v3896
        %v3961 = vadd.f32 %v3573, %v3897
        %v3962 = vadd.f32 %v3574, %v3898
        %v3963 = vadd.f32 %v3575, %v3899
        %3964 = vset.pattern.permute.xlu0 9
        %3965 = vperm.xlu0 %3964, %v335
        %v3966 = vpop.permute.xlu0 %3965
        %3968 = vset.pattern.permute.xlu0 9
        %3969 = vperm.xlu0 %3968, %v336
        %v3970 = vpop.permute.xlu0 %3969
        %3972 = vset.pattern.permute.xlu0 9
        %3973 = vperm.xlu0 %3972, %v337
        %v3974 = vpop.permute.xlu0 %3973
        %3976 = vset.pattern.permute.xlu0 9
        %3977 = vperm.xlu0 %3976, %v338
        %v3978 = vpop.permute.xlu0 %3977
        %3980 = vset.pattern.permute.xlu0 9
        %3981 = vperm.xlu0 %3980, %v339
        %v3982 = vpop.permute.xlu0 %3981
        %3984 = vset.pattern.permute.xlu0 9
        %3985 = vperm.xlu0 %3984, %v340
        %v3986 = vpop.permute.xlu0 %3985
        %3988 = vset.pattern.permute.xlu0 9
        %3989 = vperm.xlu0 %3988, %v341
        %v3990 = vpop.permute.xlu0 %3989
        %3992 = vset.pattern.permute.xlu0 9
        %3993 = vperm.xlu0 %3992, %v342
        %v3994 = vpop.permute.xlu0 %3993
        %3996 = vset.pattern.permute.xlu0 9
        %3997 = vperm.xlu0 %3996, %v343
        %v3998 = vpop.permute.xlu0 %3997
        %4000 = vset.pattern.permute.xlu0 9
        %4001 = vperm.xlu0 %4000, %v344
        %v4002 = vpop.permute.xlu0 %4001
        %4004 = vset.pattern.permute.xlu0 9
        %4005 = vperm.xlu0 %4004, %v345
        %v4006 = vpop.permute.xlu0 %4005
        %4008 = vset.pattern.permute.xlu0 9
        %4009 = vperm.xlu0 %4008, %v346
        %v4010 = vpop.permute.xlu0 %4009
        %4012 = vset.pattern.permute.xlu0 9
        %4013 = vperm.xlu0 %4012, %v347
        %v4014 = vpop.permute.xlu0 %4013
        %4016 = vset.pattern.permute.xlu0 9
        %4017 = vperm.xlu0 %4016, %v348
        %v4018 = vpop.permute.xlu0 %4017
        %4020 = vset.pattern.permute.xlu0 9
        %4021 = vperm.xlu0 %4020, %v349
        %v4022 = vpop.permute.xlu0 %4021
        %4024 = vset.pattern.permute.xlu0 9
        %4025 = vperm.xlu0 %4024, %v350
        %v4026 = vpop.permute.xlu0 %4025
        %4028 = vset.pattern.permute.xlu0 9
        %4029 = vperm.xlu0 %4028, %v351
        %v4030 = vpop.permute.xlu0 %4029
        %4032 = vset.pattern.permute.xlu0 9
        %4033 = vperm.xlu0 %4032, %v352
        %v4034 = vpop.permute.xlu0 %4033
        %4036 = vset.pattern.permute.xlu0 9
        %4037 = vperm.xlu0 %4036, %v353
        %v4038 = vpop.permute.xlu0 %4037
        %4040 = vset.pattern.permute.xlu0 9
        %4041 = vperm.xlu0 %4040, %v354
        %v4042 = vpop.permute.xlu0 %4041
        %4044 = vset.pattern.permute.xlu0 9
        %4045 = vperm.xlu0 %4044, %v355
        %v4046 = vpop.permute.xlu0 %4045
        %4048 = vset.pattern.permute.xlu0 9
        %4049 = vperm.xlu0 %4048, %v356
        %v4050 = vpop.permute.xlu0 %4049
        %4052 = vset.pattern.permute.xlu0 9
        %4053 = vperm.xlu0 %4052, %v357
        %v4054 = vpop.permute.xlu0 %4053
        %4056 = vset.pattern.permute.xlu0 9
        %4057 = vperm.xlu0 %4056, %v358
        %v4058 = vpop.permute.xlu0 %4057
        %4060 = vset.pattern.permute.xlu0 9
        %4061 = vperm.xlu0 %4060, %v359
        %v4062 = vpop.permute.xlu0 %4061
        %4064 = vset.pattern.permute.xlu0 9
        %4065 = vperm.xlu0 %4064, %v360
        %v4066 = vpop.permute.xlu0 %4065
        %4068 = vset.pattern.permute.xlu0 9
        %4069 = vperm.xlu0 %4068, %v361
        %v4070 = vpop.permute.xlu0 %4069
        %4072 = vset.pattern.permute.xlu0 9
        %4073 = vperm.xlu0 %4072, %v362
        %v4074 = vpop.permute.xlu0 %4073
        %4076 = vset.pattern.permute.xlu0 9
        %4077 = vperm.xlu0 %4076, %v363
        %v4078 = vpop.permute.xlu0 %4077
        %4080 = vset.pattern.permute.xlu0 9
        %4081 = vperm.xlu0 %4080, %v364
        %v4082 = vpop.permute.xlu0 %4081
        %4084 = vset.pattern.permute.xlu0 9
        %4085 = vperm.xlu0 %4084, %v365
        %v4086 = vpop.permute.xlu0 %4085
        %4088 = vset.pattern.permute.xlu0 9
        %4089 = vperm.xlu0 %4088, %v366
        %v4090 = vpop.permute.xlu0 %4089
        %4092 = vset.pattern.permute.xlu0 9
        %4093 = vperm.xlu0 %4092, %v367
        %v4094 = vpop.permute.xlu0 %4093
        %4096 = vset.pattern.permute.xlu0 9
        %4097 = vperm.xlu0 %4096, %v368
        %v4098 = vpop.permute.xlu0 %4097
        %4100 = vset.pattern.permute.xlu0 9
        %4101 = vperm.xlu0 %4100, %v369
        %v4102 = vpop.permute.xlu0 %4101
        %4104 = vset.pattern.permute.xlu0 9
        %4105 = vperm.xlu0 %4104, %v370
        %v4106 = vpop.permute.xlu0 %4105
        %4108 = vset.pattern.permute.xlu0 9
        %4109 = vperm.xlu0 %4108, %v371
        %v4110 = vpop.permute.xlu0 %4109
        %4112 = vset.pattern.permute.xlu0 9
        %4113 = vperm.xlu0 %4112, %v372
        %v4114 = vpop.permute.xlu0 %4113
        %4116 = vset.pattern.permute.xlu0 9
        %4117 = vperm.xlu0 %4116, %v373
        %v4118 = vpop.permute.xlu0 %4117
        %4120 = vset.pattern.permute.xlu0 9
        %4121 = vperm.xlu0 %4120, %v374
        %v4122 = vpop.permute.xlu0 %4121
        %4124 = vset.pattern.permute.xlu0 9
        %4125 = vperm.xlu0 %4124, %v375
        %v4126 = vpop.permute.xlu0 %4125
        %4128 = vset.pattern.permute.xlu0 9
        %4129 = vperm.xlu0 %4128, %v376
        %v4130 = vpop.permute.xlu0 %4129
        %4132 = vset.pattern.permute.xlu0 9
        %4133 = vperm.xlu0 %4132, %v377
        %v4134 = vpop.permute.xlu0 %4133
        %4136 = vset.pattern.permute.xlu0 9
        %4137 = vperm.xlu0 %4136, %v378
        %v4138 = vpop.permute.xlu0 %4137
        %4140 = vset.pattern.permute.xlu0 9
        %4141 = vperm.xlu0 %4140, %v379
        %v4142 = vpop.permute.xlu0 %4141
        %4144 = vset.pattern.permute.xlu0 9
        %4145 = vperm.xlu0 %4144, %v380
        %v4146 = vpop.permute.xlu0 %4145
        %4148 = vset.pattern.permute.xlu0 9
        %4149 = vperm.xlu0 %4148, %v381
        %v4150 = vpop.permute.xlu0 %4149
        %4152 = vset.pattern.permute.xlu0 9
        %4153 = vperm.xlu0 %4152, %v382
        %v4154 = vpop.permute.xlu0 %4153
        %4156 = vset.pattern.permute.xlu0 9
        %4157 = vperm.xlu0 %4156, %v383
        %v4158 = vpop.permute.xlu0 %4157
        %4160 = vset.pattern.permute.xlu0 9
        %4161 = vperm.xlu0 %4160, %v384
        %v4162 = vpop.permute.xlu0 %4161
        %4164 = vset.pattern.permute.xlu0 9
        %4165 = vperm.xlu0 %4164, %v385
        %v4166 = vpop.permute.xlu0 %4165
        %4168 = vset.pattern.permute.xlu0 9
        %4169 = vperm.xlu0 %4168, %v386
        %v4170 = vpop.permute.xlu0 %4169
        %4172 = vset.pattern.permute.xlu0 9
        %4173 = vperm.xlu0 %4172, %v387
        %v4174 = vpop.permute.xlu0 %4173
        %4176 = vset.pattern.permute.xlu0 9
        %4177 = vperm.xlu0 %4176, %v388
        %v4178 = vpop.permute.xlu0 %4177
        %4180 = vset.pattern.permute.xlu0 9
        %4181 = vperm.xlu0 %4180, %v389
        %v4182 = vpop.permute.xlu0 %4181
        %4184 = vset.pattern.permute.xlu0 9
        %4185 = vperm.xlu0 %4184, %v390
        %v4186 = vpop.permute.xlu0 %4185
        %4188 = vset.pattern.permute.xlu0 9
        %4189 = vperm.xlu0 %4188, %v391
        %v4190 = vpop.permute.xlu0 %4189
        %4192 = vset.pattern.permute.xlu0 9
        %4193 = vperm.xlu0 %4192, %v392
        %v4194 = vpop.permute.xlu0 %4193
        %4196 = vset.pattern.permute.xlu0 9
        %4197 = vperm.xlu0 %4196, %v393
        %v4198 = vpop.permute.xlu0 %4197
        %4200 = vset.pattern.permute.xlu0 9
        %4201 = vperm.xlu0 %4200, %v394
        %v4202 = vpop.permute.xlu0 %4201
        %4204 = vset.pattern.permute.xlu0 9
        %4205 = vperm.xlu0 %4204, %v395
        %v4206 = vpop.permute.xlu0 %4205
        %4208 = vset.pattern.permute.xlu0 9
        %4209 = vperm.xlu0 %4208, %v396
        %v4210 = vpop.permute.xlu0 %4209
        %4212 = vset.pattern.permute.xlu0 9
        %4213 = vperm.xlu0 %4212, %v397
        %v4214 = vpop.permute.xlu0 %4213
        %4216 = vset.pattern.permute.xlu0 9
        %4217 = vperm.xlu0 %4216, %v398
        %v4218 = vpop.permute.xlu0 %4217
        %v4220 = vlaneseq
        %v4221 = vshrl.u32 %v4220, 7
        %v4222 = vsub.s32 1, %v4221
        %v4223 = vrot.slane %v401, %v4222
        %v4224 = vmul.f32 %v3966, %v4223
        %v4225 = vmul.f32 %v3970, %v4223
        %v4226 = vmul.f32 %v3974, %v4223
        %v4227 = vmul.f32 %v3978, %v4223
        %v4228 = vmul.f32 %v3982, %v4223
        %v4229 = vmul.f32 %v3986, %v4223
        %v4230 = vmul.f32 %v3990, %v4223
        %v4231 = vmul.f32 %v3994, %v4223
        %v4232 = vmul.f32 %v3998, %v4223
        %v4233 = vmul.f32 %v4002, %v4223
        %v4234 = vmul.f32 %v4006, %v4223
        %v4235 = vmul.f32 %v4010, %v4223
        %v4236 = vmul.f32 %v4014, %v4223
        %v4237 = vmul.f32 %v4018, %v4223
        %v4238 = vmul.f32 %v4022, %v4223
        %v4239 = vmul.f32 %v4026, %v4223
        %v4240 = vmul.f32 %v4030, %v4223
        %v4241 = vmul.f32 %v4034, %v4223
        %v4242 = vmul.f32 %v4038, %v4223
        %v4243 = vmul.f32 %v4042, %v4223
        %v4244 = vmul.f32 %v4046, %v4223
        %v4245 = vmul.f32 %v4050, %v4223
        %v4246 = vmul.f32 %v4054, %v4223
        %v4247 = vmul.f32 %v4058, %v4223
        %v4248 = vmul.f32 %v4062, %v4223
        %v4249 = vmul.f32 %v4066, %v4223
        %v4250 = vmul.f32 %v4070, %v4223
        %v4251 = vmul.f32 %v4074, %v4223
        %v4252 = vmul.f32 %v4078, %v4223
        %v4253 = vmul.f32 %v4082, %v4223
        %v4254 = vmul.f32 %v4086, %v4223
        %v4255 = vmul.f32 %v4090, %v4223
        %v4256 = vmul.f32 %v4094, %v4223
        %v4257 = vmul.f32 %v4098, %v4223
        %v4258 = vmul.f32 %v4102, %v4223
        %v4259 = vmul.f32 %v4106, %v4223
        %v4260 = vmul.f32 %v4110, %v4223
        %v4261 = vmul.f32 %v4114, %v4223
        %v4262 = vmul.f32 %v4118, %v4223
        %v4263 = vmul.f32 %v4122, %v4223
        %v4264 = vmul.f32 %v4126, %v4223
        %v4265 = vmul.f32 %v4130, %v4223
        %v4266 = vmul.f32 %v4134, %v4223
        %v4267 = vmul.f32 %v4138, %v4223
        %v4268 = vmul.f32 %v4142, %v4223
        %v4269 = vmul.f32 %v4146, %v4223
        %v4270 = vmul.f32 %v4150, %v4223
        %v4271 = vmul.f32 %v4154, %v4223
        %v4272 = vmul.f32 %v4158, %v4223
        %v4273 = vmul.f32 %v4162, %v4223
        %v4274 = vmul.f32 %v4166, %v4223
        %v4275 = vmul.f32 %v4170, %v4223
        %v4276 = vmul.f32 %v4174, %v4223
        %v4277 = vmul.f32 %v4178, %v4223
        %v4278 = vmul.f32 %v4182, %v4223
        %v4279 = vmul.f32 %v4186, %v4223
        %v4280 = vmul.f32 %v4190, %v4223
        %v4281 = vmul.f32 %v4194, %v4223
        %v4282 = vmul.f32 %v4198, %v4223
        %v4283 = vmul.f32 %v4202, %v4223
        %v4284 = vmul.f32 %v4206, %v4223
        %v4285 = vmul.f32 %v4210, %v4223
        %v4286 = vmul.f32 %v4214, %v4223
        %v4287 = vmul.f32 %v4218, %v4223
        %v4288 = vadd.f32 %v3900, %v4224
        %v4289 = vadd.f32 %v3901, %v4225
        %v4290 = vadd.f32 %v3902, %v4226
        %v4291 = vadd.f32 %v3903, %v4227
        %v4292 = vadd.f32 %v3904, %v4228
        %v4293 = vadd.f32 %v3905, %v4229
        %v4294 = vadd.f32 %v3906, %v4230
        %v4295 = vadd.f32 %v3907, %v4231
        %v4296 = vadd.f32 %v3908, %v4232
        %v4297 = vadd.f32 %v3909, %v4233
        %v4298 = vadd.f32 %v3910, %v4234
        %v4299 = vadd.f32 %v3911, %v4235
        %v4300 = vadd.f32 %v3912, %v4236
        %v4301 = vadd.f32 %v3913, %v4237
        %v4302 = vadd.f32 %v3914, %v4238
        %v4303 = vadd.f32 %v3915, %v4239
        %v4304 = vadd.f32 %v3916, %v4240
        %v4305 = vadd.f32 %v3917, %v4241
        %v4306 = vadd.f32 %v3918, %v4242
        %v4307 = vadd.f32 %v3919, %v4243
        %v4308 = vadd.f32 %v3920, %v4244
        %v4309 = vadd.f32 %v3921, %v4245
        %v4310 = vadd.f32 %v3922, %v4246
        %v4311 = vadd.f32 %v3923, %v4247
        %v4312 = vadd.f32 %v3924, %v4248
        %v4313 = vadd.f32 %v3925, %v4249
        %v4314 = vadd.f32 %v3926, %v4250
        %v4315 = vadd.f32 %v3927, %v4251
        %v4316 = vadd.f32 %v3928, %v4252
        %v4317 = vadd.f32 %v3929, %v4253
        %v4318 = vadd.f32 %v3930, %v4254
        %v4319 = vadd.f32 %v3931, %v4255
        %v4320 = vadd.f32 %v3932, %v4256
        %v4321 = vadd.f32 %v3933, %v4257
        %v4322 = vadd.f32 %v3934, %v4258
        %v4323 = vadd.f32 %v3935, %v4259
        %v4324 = vadd.f32 %v3936, %v4260
        %v4325 = vadd.f32 %v3937, %v4261
        %v4326 = vadd.f32 %v3938, %v4262
        %v4327 = vadd.f32 %v3939, %v4263
        %v4328 = vadd.f32 %v3940, %v4264
        %v4329 = vadd.f32 %v3941, %v4265
        %v4330 = vadd.f32 %v3942, %v4266
        %v4331 = vadd.f32 %v3943, %v4267
        %v4332 = vadd.f32 %v3944, %v4268
        %v4333 = vadd.f32 %v3945, %v4269
        %v4334 = vadd.f32 %v3946, %v4270
        %v4335 = vadd.f32 %v3947, %v4271
        %v4336 = vadd.f32 %v3948, %v4272
        %v4337 = vadd.f32 %v3949, %v4273
        %v4338 = vadd.f32 %v3950, %v4274
        %v4339 = vadd.f32 %v3951, %v4275
        %v4340 = vadd.f32 %v3952, %v4276
        %v4341 = vadd.f32 %v3953, %v4277
        %v4342 = vadd.f32 %v3954, %v4278
        %v4343 = vadd.f32 %v3955, %v4279
        %v4344 = vadd.f32 %v3956, %v4280
        %v4345 = vadd.f32 %v3957, %v4281
        %v4346 = vadd.f32 %v3958, %v4282
        %v4347 = vadd.f32 %v3959, %v4283
        %v4348 = vadd.f32 %v3960, %v4284
        %v4349 = vadd.f32 %v3961, %v4285
        %v4350 = vadd.f32 %v3962, %v4286
        %v4351 = vadd.f32 %v3963, %v4287
        %4352 = vst [vmem:[#allocation2] sm:$0xff] %v4288
        %4353 = vst [vmem:[#allocation2 + $0x8] sm:$0xff] %v4289
        %4354 = vst [vmem:[#allocation2 + $0x10] sm:$0xff] %v4290
        %4355 = vst [vmem:[#allocation2 + $0x18] sm:$0xff] %v4291
        %4356 = vst [vmem:[#allocation2 + $0x20] sm:$0xff] %v4292
        %4357 = vst [vmem:[#allocation2 + $0x28] sm:$0xff] %v4293
        %4358 = vst [vmem:[#allocation2 + $0x30] sm:$0xff] %v4294
        %4359 = vst [vmem:[#allocation2 + $0x38] sm:$0xff] %v4295
        %4360 = vst [vmem:[#allocation2 + $0x40] sm:$0xff] %v4296
        %4361 = vst [vmem:[#allocation2 + $0x48] sm:$0xff] %v4297
        %4362 = vst [vmem:[#allocation2 + $0x50] sm:$0xff] %v4298
        %4363 = vst [vmem:[#allocation2 + $0x58] sm:$0xff] %v4299
        %4364 = vst [vmem:[#allocation2 + $0x60] sm:$0xff] %v4300
        %4365 = vst [vmem:[#allocation2 + $0x68] sm:$0xff] %v4301
        %4366 = vst [vmem:[#allocation2 + $0x70] sm:$0xff] %v4302
        %4367 = vst [vmem:[#allocation2 + $0x78] sm:$0xff] %v4303
        %4368 = vst [vmem:[#allocation2 + $0x80] sm:$0xff] %v4304
        %4369 = vst [vmem:[#allocation2 + $0x88] sm:$0xff] %v4305
        %4370 = vst [vmem:[#allocation2 + $0x90] sm:$0xff] %v4306
        %4371 = vst [vmem:[#allocation2 + $0x98] sm:$0xff] %v4307
        %4372 = vst [vmem:[#allocation2 + $0xa0] sm:$0xff] %v4308
        %4373 = vst [vmem:[#allocation2 + $0xa8] sm:$0xff] %v4309
        %4374 = vst [vmem:[#allocation2 + $0xb0] sm:$0xff] %v4310
        %4375 = vst [vmem:[#allocation2 + $0xb8] sm:$0xff] %v4311
        %4376 = vst [vmem:[#allocation2 + $0xc0] sm:$0xff] %v4312
        %4377 = vst [vmem:[#allocation2 + $0xc8] sm:$0xff] %v4313
        %4378 = vst [vmem:[#allocation2 + $0xd0] sm:$0xff] %v4314
        %4379 = vst [vmem:[#allocation2 + $0xd8] sm:$0xff] %v4315
        %4380 = vst [vmem:[#allocation2 + $0xe0] sm:$0xff] %v4316
        %4381 = vst [vmem:[#allocation2 + $0xe8] sm:$0xff] %v4317
        %4382 = vst [vmem:[#allocation2 + $0xf0] sm:$0xff] %v4318
        %4383 = vst [vmem:[#allocation2 + $0xf8] sm:$0xff] %v4319
        %4384 = vst [vmem:[#allocation2 + $0x100] sm:$0xff] %v4320
        %4385 = vst [vmem:[#allocation2 + $0x108] sm:$0xff] %v4321
        %4386 = vst [vmem:[#allocation2 + $0x110] sm:$0xff] %v4322
        %4387 = vst [vmem:[#allocation2 + $0x118] sm:$0xff] %v4323
        %4388 = vst [vmem:[#allocation2 + $0x120] sm:$0xff] %v4324
        %4389 = vst [vmem:[#allocation2 + $0x128] sm:$0xff] %v4325
        %4390 = vst [vmem:[#allocation2 + $0x130] sm:$0xff] %v4326
        %4391 = vst [vmem:[#allocation2 + $0x138] sm:$0xff] %v4327
        %4392 = vst [vmem:[#allocation2 + $0x140] sm:$0xff] %v4328
        %4393 = vst [vmem:[#allocation2 + $0x148] sm:$0xff] %v4329
        %4394 = vst [vmem:[#allocation2 + $0x150] sm:$0xff] %v4330
        %4395 = vst [vmem:[#allocation2 + $0x158] sm:$0xff] %v4331
        %4396 = vst [vmem:[#allocation2 + $0x160] sm:$0xff] %v4332
        %4397 = vst [vmem:[#allocation2 + $0x168] sm:$0xff] %v4333
        %4398 = vst [vmem:[#allocation2 + $0x170] sm:$0xff] %v4334
        %4399 = vst [vmem:[#allocation2 + $0x178] sm:$0xff] %v4335
        %4400 = vst [vmem:[#allocation2 + $0x180] sm:$0xff] %v4336
        %4401 = vst [vmem:[#allocation2 + $0x188] sm:$0xff] %v4337
        %4402 = vst [vmem:[#allocation2 + $0x190] sm:$0xff] %v4338
        %4403 = vst [vmem:[#allocation2 + $0x198] sm:$0xff] %v4339
        %4404 = vst [vmem:[#allocation2 + $0x1a0] sm:$0xff] %v4340
        %4405 = vst [vmem:[#allocation2 + $0x1a8] sm:$0xff] %v4341
        %4406 = vst [vmem:[#allocation2 + $0x1b0] sm:$0xff] %v4342
        %4407 = vst [vmem:[#allocation2 + $0x1b8] sm:$0xff] %v4343
        %4408 = vst [vmem:[#allocation2 + $0x1c0] sm:$0xff] %v4344
        %4409 = vst [vmem:[#allocation2 + $0x1c8] sm:$0xff] %v4345
        %4410 = vst [vmem:[#allocation2 + $0x1d0] sm:$0xff] %v4346
        %4411 = vst [vmem:[#allocation2 + $0x1d8] sm:$0xff] %v4347
        %4412 = vst [vmem:[#allocation2 + $0x1e0] sm:$0xff] %v4348
        %4413 = vst [vmem:[#allocation2 + $0x1e8] sm:$0xff] %v4349
        %4414 = vst [vmem:[#allocation2 + $0x1f0] sm:$0xff] %v4350
        %4415 = vst [vmem:[#allocation2 + $0x1f8] sm:$0xff] %v4351
        %v4416 = vld [vmem:[%s4] sm:$0x7]
        %v4417 = vld [vmem:[%s5] sm:$0x7]
        %v4418 = vld [vmem:[%s6] sm:$0x7]
        %v4419 = vld [vmem:[%s7] sm:$0x7]
        %v4420 = vld [vmem:[%s8] sm:$0x7]
        %v4421 = vld [vmem:[%s3] sm:$0xf]
        %v4422 = vld [vmem:[%s3 + $0x4] sm:$0xf]
        %v4423 = vld [vmem:[%s3 + $0x8] sm:$0xf]
        %v4424 = vld [vmem:[%s3 + $0xc] sm:$0xf]
        %v4425 = vld [vmem:[%s3 + $0x10] sm:$0xf]
        %v4426 = vld [vmem:[%s3 + $0x14] sm:$0xf]
        %v4427 = vld [vmem:[%s3 + $0x18] sm:$0xf]
        %v4428 = vld [vmem:[%s3 + $0x1c] sm:$0xf]
        %v4429 = vld [vmem:[%s3 + $0x20] sm:$0xf]
        %v4430 = vld [vmem:[%s3 + $0x24] sm:$0xf]
        %v4431 = vld [vmem:[%s3 + $0x28] sm:$0xf]
        %v4432 = vld [vmem:[%s3 + $0x2c] sm:$0xf]
        %v4433 = vld [vmem:[%s3 + $0x30] sm:$0xf]
        %v4434 = vld [vmem:[%s3 + $0x34] sm:$0xf]
        %v4435 = vld [vmem:[%s3 + $0x38] sm:$0xf]
        %v4436 = vld [vmem:[%s3 + $0x3c] sm:$0xf]
        %v4437 = vlaneseq
        %v4438 = vshrl.u32 %v4437, 7
        %v4439 = vsub.s32 0, %v4438
        %v4440 = vrot.slane %v4418, %v4439
        %v4441 = vmul.f32 %v4440, %v4288
        %v4442 = vmul.f32 %v4440, %v4289
        %v4443 = vmul.f32 %v4440, %v4290
        %v4444 = vmul.f32 %v4440, %v4291
        %v4445 = vmul.f32 %v4440, %v4292
        %v4446 = vmul.f32 %v4440, %v4293
        %v4447 = vmul.f32 %v4440, %v4294
        %v4448 = vmul.f32 %v4440, %v4295
        %v4449 = vmul.f32 %v4440, %v4296
        %v4450 = vmul.f32 %v4440, %v4297
        %v4451 = vmul.f32 %v4440, %v4298
        %v4452 = vmul.f32 %v4440, %v4299
        %v4453 = vmul.f32 %v4440, %v4300
        %v4454 = vmul.f32 %v4440, %v4301
        %v4455 = vmul.f32 %v4440, %v4302
        %v4456 = vmul.f32 %v4440, %v4303
        %v4457 = vmul.f32 %v4440, %v4304
        %v4458 = vmul.f32 %v4440, %v4305
        %v4459 = vmul.f32 %v4440, %v4306
        %v4460 = vmul.f32 %v4440, %v4307
        %v4461 = vmul.f32 %v4440, %v4308
        %v4462 = vmul.f32 %v4440, %v4309
        %v4463 = vmul.f32 %v4440, %v4310
        %v4464 = vmul.f32 %v4440, %v4311
        %v4465 = vmul.f32 %v4440, %v4312
        %v4466 = vmul.f32 %v4440, %v4313
        %v4467 = vmul.f32 %v4440, %v4314
        %v4468 = vmul.f32 %v4440, %v4315
        %v4469 = vmul.f32 %v4440, %v4316
        %v4470 = vmul.f32 %v4440, %v4317
        %v4471 = vmul.f32 %v4440, %v4318
        %v4472 = vmul.f32 %v4440, %v4319
        %v4473 = vmul.f32 %v4440, %v4320
        %v4474 = vmul.f32 %v4440, %v4321
        %v4475 = vmul.f32 %v4440, %v4322
        %v4476 = vmul.f32 %v4440, %v4323
        %v4477 = vmul.f32 %v4440, %v4324
        %v4478 = vmul.f32 %v4440, %v4325
        %v4479 = vmul.f32 %v4440, %v4326
        %v4480 = vmul.f32 %v4440, %v4327
        %v4481 = vmul.f32 %v4440, %v4328
        %v4482 = vmul.f32 %v4440, %v4329
        %v4483 = vmul.f32 %v4440, %v4330
        %v4484 = vmul.f32 %v4440, %v4331
        %v4485 = vmul.f32 %v4440, %v4332
        %v4486 = vmul.f32 %v4440, %v4333
        %v4487 = vmul.f32 %v4440, %v4334
        %v4488 = vmul.f32 %v4440, %v4335
        %v4489 = vmul.f32 %v4440, %v4336
        %v4490 = vmul.f32 %v4440, %v4337
        %v4491 = vmul.f32 %v4440, %v4338
        %v4492 = vmul.f32 %v4440, %v4339
        %v4493 = vmul.f32 %v4440, %v4340
        %v4494 = vmul.f32 %v4440, %v4341
        %v4495 = vmul.f32 %v4440, %v4342
        %v4496 = vmul.f32 %v4440, %v4343
        %v4497 = vmul.f32 %v4440, %v4344
        %v4498 = vmul.f32 %v4440, %v4345
        %v4499 = vmul.f32 %v4440, %v4346
        %v4500 = vmul.f32 %v4440, %v4347
        %v4501 = vmul.f32 %v4440, %v4348
        %v4502 = vmul.f32 %v4440, %v4349
        %v4503 = vmul.f32 %v4440, %v4350
        %v4504 = vmul.f32 %v4440, %v4351
        %v4505 = vsub.f32 0.0, %v4441
        %v4506 = vsub.f32 0.0, %v4442
        %v4507 = vsub.f32 0.0, %v4443
        %v4508 = vsub.f32 0.0, %v4444
        %v4509 = vsub.f32 0.0, %v4445
        %v4510 = vsub.f32 0.0, %v4446
        %v4511 = vsub.f32 0.0, %v4447
        %v4512 = vsub.f32 0.0, %v4448
        %v4513 = vsub.f32 0.0, %v4449
        %v4514 = vsub.f32 0.0, %v4450
        %v4515 = vsub.f32 0.0, %v4451
        %v4516 = vsub.f32 0.0, %v4452
        %v4517 = vsub.f32 0.0, %v4453
        %v4518 = vsub.f32 0.0, %v4454
        %v4519 = vsub.f32 0.0, %v4455
        %v4520 = vsub.f32 0.0, %v4456
        %v4521 = vsub.f32 0.0, %v4457
        %v4522 = vsub.f32 0.0, %v4458
        %v4523 = vsub.f32 0.0, %v4459
        %v4524 = vsub.f32 0.0, %v4460
        %v4525 = vsub.f32 0.0, %v4461
        %v4526 = vsub.f32 0.0, %v4462
        %v4527 = vsub.f32 0.0, %v4463
        %v4528 = vsub.f32 0.0, %v4464
        %v4529 = vsub.f32 0.0, %v4465
        %v4530 = vsub.f32 0.0, %v4466
        %v4531 = vsub.f32 0.0, %v4467
        %v4532 = vsub.f32 0.0, %v4468
        %v4533 = vsub.f32 0.0, %v4469
        %v4534 = vsub.f32 0.0, %v4470
        %v4535 = vsub.f32 0.0, %v4471
        %v4536 = vsub.f32 0.0, %v4472
        %v4537 = vsub.f32 0.0, %v4473
        %v4538 = vsub.f32 0.0, %v4474
        %v4539 = vsub.f32 0.0, %v4475
        %v4540 = vsub.f32 0.0, %v4476
        %v4541 = vsub.f32 0.0, %v4477
        %v4542 = vsub.f32 0.0, %v4478
        %v4543 = vsub.f32 0.0, %v4479
        %v4544 = vsub.f32 0.0, %v4480
        %v4545 = vsub.f32 0.0, %v4481
        %v4546 = vsub.f32 0.0, %v4482
        %v4547 = vsub.f32 0.0, %v4483
        %v4548 = vsub.f32 0.0, %v4484
        %v4549 = vsub.f32 0.0, %v4485
        %v4550 = vsub.f32 0.0, %v4486
        %v4551 = vsub.f32 0.0, %v4487
        %v4552 = vsub.f32 0.0, %v4488
        %v4553 = vsub.f32 0.0, %v4489
        %v4554 = vsub.f32 0.0, %v4490
        %v4555 = vsub.f32 0.0, %v4491
        %v4556 = vsub.f32 0.0, %v4492
        %v4557 = vsub.f32 0.0, %v4493
        %v4558 = vsub.f32 0.0, %v4494
        %v4559 = vsub.f32 0.0, %v4495
        %v4560 = vsub.f32 0.0, %v4496
        %v4561 = vsub.f32 0.0, %v4497
        %v4562 = vsub.f32 0.0, %v4498
        %v4563 = vsub.f32 0.0, %v4499
        %v4564 = vsub.f32 0.0, %v4500
        %v4565 = vsub.f32 0.0, %v4501
        %v4566 = vsub.f32 0.0, %v4502
        %v4567 = vsub.f32 0.0, %v4503
        %v4568 = vsub.f32 0.0, %v4504
        %v4569 = vmul.f32 %v4505, 1.442695
        %v4570 = vpow.pop %v4569
        %v4571 = vmul.f32 %v4506, 1.442695
        %v4572 = vpow.pop %v4571
        %v4573 = vmul.f32 %v4507, 1.442695
        %v4574 = vpow.pop %v4573
        %v4575 = vmul.f32 %v4508, 1.442695
        %v4576 = vpow.pop %v4575
        %v4577 = vmul.f32 %v4509, 1.442695
        %v4578 = vpow.pop %v4577
        %v4579 = vmul.f32 %v4510, 1.442695
        %v4580 = vpow.pop %v4579
        %v4581 = vmul.f32 %v4511, 1.442695
        %v4582 = vpow.pop %v4581
        %v4583 = vmul.f32 %v4512, 1.442695
        %v4584 = vpow.pop %v4583
        %v4585 = vmul.f32 %v4513, 1.442695
        %v4586 = vpow.pop %v4585
        %v4587 = vmul.f32 %v4514, 1.442695
        %v4588 = vpow.pop %v4587
        %v4589 = vmul.f32 %v4515, 1.442695
        %v4590 = vpow.pop %v4589
        %v4591 = vmul.f32 %v4516, 1.442695
        %v4592 = vpow.pop %v4591
        %v4593 = vmul.f32 %v4517, 1.442695
        %v4594 = vpow.pop %v4593
        %v4595 = vmul.f32 %v4518, 1.442695
        %v4596 = vpow.pop %v4595
        %v4597 = vmul.f32 %v4519, 1.442695
        %v4598 = vpow.pop %v4597
        %v4599 = vmul.f32 %v4520, 1.442695
        %v4600 = vpow.pop %v4599
        %v4601 = vmul.f32 %v4521, 1.442695
        %v4602 = vpow.pop %v4601
        %v4603 = vmul.f32 %v4522, 1.442695
        %v4604 = vpow.pop %v4603
        %v4605 = vmul.f32 %v4523, 1.442695
        %v4606 = vpow.pop %v4605
        %v4607 = vmul.f32 %v4524, 1.442695
        %v4608 = vpow.pop %v4607
        %v4609 = vmul.f32 %v4525, 1.442695
        %v4610 = vpow.pop %v4609
        %v4611 = vmul.f32 %v4526, 1.442695
        %v4612 = vpow.pop %v4611
        %v4613 = vmul.f32 %v4527, 1.442695
        %v4614 = vpow.pop %v4613
        %v4615 = vmul.f32 %v4528, 1.442695
        %v4616 = vpow.pop %v4615
        %v4617 = vmul.f32 %v4529, 1.442695
        %v4618 = vpow.pop %v4617
        %v4619 = vmul.f32 %v4530, 1.442695
        %v4620 = vpow.pop %v4619
        %v4621 = vmul.f32 %v4531, 1.442695
        %v4622 = vpow.pop %v4621
        %v4623 = vmul.f32 %v4532, 1.442695
        %v4624 = vpow.pop %v4623
        %v4625 = vmul.f32 %v4533, 1.442695
        %v4626 = vpow.pop %v4625
        %v4627 = vmul.f32 %v4534, 1.442695
        %v4628 = vpow.pop %v4627
        %v4629 = vmul.f32 %v4535, 1.442695
        %v4630 = vpow.pop %v4629
        %v4631 = vmul.f32 %v4536, 1.442695
        %v4632 = vpow.pop %v4631
        %v4633 = vmul.f32 %v4537, 1.442695
        %v4634 = vpow.pop %v4633
        %v4635 = vmul.f32 %v4538, 1.442695
        %v4636 = vpow.pop %v4635
        %v4637 = vmul.f32 %v4539, 1.442695
        %v4638 = vpow.pop %v4637
        %v4639 = vmul.f32 %v4540, 1.442695
        %v4640 = vpow.pop %v4639
        %v4641 = vmul.f32 %v4541, 1.442695
        %v4642 = vpow.pop %v4641
        %v4643 = vmul.f32 %v4542, 1.442695
        %v4644 = vpow.pop %v4643
        %v4645 = vmul.f32 %v4543, 1.442695
        %v4646 = vpow.pop %v4645
        %v4647 = vmul.f32 %v4544, 1.442695
        %v4648 = vpow.pop %v4647
        %v4649 = vmul.f32 %v4545, 1.442695
        %v4650 = vpow.pop %v4649
        %v4651 = vmul.f32 %v4546, 1.442695
        %v4652 = vpow.pop %v4651
        %v4653 = vmul.f32 %v4547, 1.442695
        %v4654 = vpow.pop %v4653
        %v4655 = vmul.f32 %v4548, 1.442695
        %v4656 = vpow.pop %v4655
        %v4657 = vmul.f32 %v4549, 1.442695
        %v4658 = vpow.pop %v4657
        %v4659 = vmul.f32 %v4550, 1.442695
        %v4660 = vpow.pop %v4659
        %v4661 = vmul.f32 %v4551, 1.442695
        %v4662 = vpow.pop %v4661
        %v4663 = vmul.f32 %v4552, 1.442695
        %v4664 = vpow.pop %v4663
        %v4665 = vmul.f32 %v4553, 1.442695
        %v4666 = vpow.pop %v4665
        %v4667 = vmul.f32 %v4554, 1.442695
        %v4668 = vpow.pop %v4667
        %v4669 = vmul.f32 %v4555, 1.442695
        %v4670 = vpow.pop %v4669
        %v4671 = vmul.f32 %v4556, 1.442695
        %v4672 = vpow.pop %v4671
        %v4673 = vmul.f32 %v4557, 1.442695
        %v4674 = vpow.pop %v4673
        %v4675 = vmul.f32 %v4558, 1.442695
        %v4676 = vpow.pop %v4675
        %v4677 = vmul.f32 %v4559, 1.442695
        %v4678 = vpow.pop %v4677
        %v4679 = vmul.f32 %v4560, 1.442695
        %v4680 = vpow.pop %v4679
        %v4681 = vmul.f32 %v4561, 1.442695
        %v4682 = vpow.pop %v4681
        %v4683 = vmul.f32 %v4562, 1.442695
        %v4684 = vpow.pop %v4683
        %v4685 = vmul.f32 %v4563, 1.442695
        %v4686 = vpow.pop %v4685
        %v4687 = vmul.f32 %v4564, 1.442695
        %v4688 = vpow.pop %v4687
        %v4689 = vmul.f32 %v4565, 1.442695
        %v4690 = vpow.pop %v4689
        %v4691 = vmul.f32 %v4566, 1.442695
        %v4692 = vpow.pop %v4691
        %v4693 = vmul.f32 %v4567, 1.442695
        %v4694 = vpow.pop %v4693
        %v4695 = vmul.f32 %v4568, 1.442695
        %v4696 = vpow.pop %v4695
        %v4697 = vadd.f32 %v4570, 1.0
        %v4698 = vadd.f32 %v4572, 1.0
        %v4699 = vadd.f32 %v4574, 1.0
        %v4700 = vadd.f32 %v4576, 1.0
        %v4701 = vadd.f32 %v4578, 1.0
        %v4702 = vadd.f32 %v4580, 1.0
        %v4703 = vadd.f32 %v4582, 1.0
        %v4704 = vadd.f32 %v4584, 1.0
        %v4705 = vadd.f32 %v4586, 1.0
        %v4706 = vadd.f32 %v4588, 1.0
        %v4707 = vadd.f32 %v4590, 1.0
        %v4708 = vadd.f32 %v4592, 1.0
        %v4709 = vadd.f32 %v4594, 1.0
        %v4710 = vadd.f32 %v4596, 1.0
        %v4711 = vadd.f32 %v4598, 1.0
        %v4712 = vadd.f32 %v4600, 1.0
        %v4713 = vadd.f32 %v4602, 1.0
        %v4714 = vadd.f32 %v4604, 1.0
        %v4715 = vadd.f32 %v4606, 1.0
        %v4716 = vadd.f32 %v4608, 1.0
        %v4717 = vadd.f32 %v4610, 1.0
        %v4718 = vadd.f32 %v4612, 1.0
        %v4719 = vadd.f32 %v4614, 1.0
        %v4720 = vadd.f32 %v4616, 1.0
        %v4721 = vadd.f32 %v4618, 1.0
        %v4722 = vadd.f32 %v4620, 1.0
        %v4723 = vadd.f32 %v4622, 1.0
        %v4724 = vadd.f32 %v4624, 1.0
        %v4725 = vadd.f32 %v4626, 1.0
        %v4726 = vadd.f32 %v4628, 1.0
        %v4727 = vadd.f32 %v4630, 1.0
        %v4728 = vadd.f32 %v4632, 1.0
        %v4729 = vadd.f32 %v4634, 1.0
        %v4730 = vadd.f32 %v4636, 1.0
        %v4731 = vadd.f32 %v4638, 1.0
        %v4732 = vadd.f32 %v4640, 1.0
        %v4733 = vadd.f32 %v4642, 1.0
        %v4734 = vadd.f32 %v4644, 1.0
        %v4735 = vadd.f32 %v4646, 1.0
        %v4736 = vadd.f32 %v4648, 1.0
        %v4737 = vadd.f32 %v4650, 1.0
        %v4738 = vadd.f32 %v4652, 1.0
        %v4739 = vadd.f32 %v4654, 1.0
        %v4740 = vadd.f32 %v4656, 1.0
        %v4741 = vadd.f32 %v4658, 1.0
        %v4742 = vadd.f32 %v4660, 1.0
        %v4743 = vadd.f32 %v4662, 1.0
        %v4744 = vadd.f32 %v4664, 1.0
        %v4745 = vadd.f32 %v4666, 1.0
        %v4746 = vadd.f32 %v4668, 1.0
        %v4747 = vadd.f32 %v4670, 1.0
        %v4748 = vadd.f32 %v4672, 1.0
        %v4749 = vadd.f32 %v4674, 1.0
        %v4750 = vadd.f32 %v4676, 1.0
        %v4751 = vadd.f32 %v4678, 1.0
        %v4752 = vadd.f32 %v4680, 1.0
        %v4753 = vadd.f32 %v4682, 1.0
        %v4754 = vadd.f32 %v4684, 1.0
        %v4755 = vadd.f32 %v4686, 1.0
        %v4756 = vadd.f32 %v4688, 1.0
        %v4757 = vadd.f32 %v4690, 1.0
        %v4758 = vadd.f32 %v4692, 1.0
        %v4759 = vadd.f32 %v4694, 1.0
        %v4760 = vadd.f32 %v4696, 1.0
        %v4761 = vrcp.pop %v4697
        %v4762 = vrcp.pop %v4698
        %v4763 = vrcp.pop %v4699
        %v4764 = vrcp.pop %v4700
        %v4765 = vrcp.pop %v4701
        %v4766 = vrcp.pop %v4702
        %v4767 = vrcp.pop %v4703
        %v4768 = vrcp.pop %v4704
        %v4769 = vrcp.pop %v4705
        %v4770 = vrcp.pop %v4706
        %v4771 = vrcp.pop %v4707
        %v4772 = vrcp.pop %v4708
        %v4773 = vrcp.pop %v4709
        %v4774 = vrcp.pop %v4710
        %v4775 = vrcp.pop %v4711
        %v4776 = vrcp.pop %v4712
        %v4777 = vrcp.pop %v4713
        %v4778 = vrcp.pop %v4714
        %v4779 = vrcp.pop %v4715
        %v4780 = vrcp.pop %v4716
        %v4781 = vrcp.pop %v4717
        %v4782 = vrcp.pop %v4718
        %v4783 = vrcp.pop %v4719
        %v4784 = vrcp.pop %v4720
        %v4785 = vrcp.pop %v4721
        %v4786 = vrcp.pop %v4722
        %v4787 = vrcp.pop %v4723
        %v4788 = vrcp.pop %v4724
        %v4789 = vrcp.pop %v4725
        %v4790 = vrcp.pop %v4726
        %v4791 = vrcp.pop %v4727
        %v4792 = vrcp.pop %v4728
        %v4793 = vrcp.pop %v4729
        %v4794 = vrcp.pop %v4730
        %v4795 = vrcp.pop %v4731
        %v4796 = vrcp.pop %v4732
        %v4797 = vrcp.pop %v4733
        %v4798 = vrcp.pop %v4734
        %v4799 = vrcp.pop %v4735
        %v4800 = vrcp.pop %v4736
        %v4801 = vrcp.pop %v4737
        %v4802 = vrcp.pop %v4738
        %v4803 = vrcp.pop %v4739
        %v4804 = vrcp.pop %v4740
        %v4805 = vrcp.pop %v4741
        %v4806 = vrcp.pop %v4742
        %v4807 = vrcp.pop %v4743
        %v4808 = vrcp.pop %v4744
        %v4809 = vrcp.pop %v4745
        %v4810 = vrcp.pop %v4746
        %v4811 = vrcp.pop %v4747
        %v4812 = vrcp.pop %v4748
        %v4813 = vrcp.pop %v4749
        %v4814 = vrcp.pop %v4750
        %v4815 = vrcp.pop %v4751
        %v4816 = vrcp.pop %v4752
        %v4817 = vrcp.pop %v4753
        %v4818 = vrcp.pop %v4754
        %v4819 = vrcp.pop %v4755
        %v4820 = vrcp.pop %v4756
        %v4821 = vrcp.pop %v4757
        %v4822 = vrcp.pop %v4758
        %v4823 = vrcp.pop %v4759
        %v4824 = vrcp.pop %v4760
        %v4825 = vlaneseq
        %v4826 = vshrl.u32 %v4825, 7
        %v4827 = vsub.s32 0, %v4826
        %v4828 = vrot.slane %v4417, %v4827
        %v4829 = vmul.f32 %v4828, %v4288
        %v4830 = vmul.f32 %v4828, %v4289
        %v4831 = vmul.f32 %v4828, %v4290
        %v4832 = vmul.f32 %v4828, %v4291
        %v4833 = vmul.f32 %v4828, %v4292
        %v4834 = vmul.f32 %v4828, %v4293
        %v4835 = vmul.f32 %v4828, %v4294
        %v4836 = vmul.f32 %v4828, %v4295
        %v4837 = vmul.f32 %v4828, %v4296
        %v4838 = vmul.f32 %v4828, %v4297
        %v4839 = vmul.f32 %v4828, %v4298
        %v4840 = vmul.f32 %v4828, %v4299
        %v4841 = vmul.f32 %v4828, %v4300
        %v4842 = vmul.f32 %v4828, %v4301
        %v4843 = vmul.f32 %v4828, %v4302
        %v4844 = vmul.f32 %v4828, %v4303
        %v4845 = vmul.f32 %v4828, %v4304
        %v4846 = vmul.f32 %v4828, %v4305
        %v4847 = vmul.f32 %v4828, %v4306
        %v4848 = vmul.f32 %v4828, %v4307
        %v4849 = vmul.f32 %v4828, %v4308
        %v4850 = vmul.f32 %v4828, %v4309
        %v4851 = vmul.f32 %v4828, %v4310
        %v4852 = vmul.f32 %v4828, %v4311
        %v4853 = vmul.f32 %v4828, %v4312
        %v4854 = vmul.f32 %v4828, %v4313
        %v4855 = vmul.f32 %v4828, %v4314
        %v4856 = vmul.f32 %v4828, %v4315
        %v4857 = vmul.f32 %v4828, %v4316
        %v4858 = vmul.f32 %v4828, %v4317
        %v4859 = vmul.f32 %v4828, %v4318
        %v4860 = vmul.f32 %v4828, %v4319
        %v4861 = vmul.f32 %v4828, %v4320
        %v4862 = vmul.f32 %v4828, %v4321
        %v4863 = vmul.f32 %v4828, %v4322
        %v4864 = vmul.f32 %v4828, %v4323
        %v4865 = vmul.f32 %v4828, %v4324
        %v4866 = vmul.f32 %v4828, %v4325
        %v4867 = vmul.f32 %v4828, %v4326
        %v4868 = vmul.f32 %v4828, %v4327
        %v4869 = vmul.f32 %v4828, %v4328
        %v4870 = vmul.f32 %v4828, %v4329
        %v4871 = vmul.f32 %v4828, %v4330
        %v4872 = vmul.f32 %v4828, %v4331
        %v4873 = vmul.f32 %v4828, %v4332
        %v4874 = vmul.f32 %v4828, %v4333
        %v4875 = vmul.f32 %v4828, %v4334
        %v4876 = vmul.f32 %v4828, %v4335
        %v4877 = vmul.f32 %v4828, %v4336
        %v4878 = vmul.f32 %v4828, %v4337
        %v4879 = vmul.f32 %v4828, %v4338
        %v4880 = vmul.f32 %v4828, %v4339
        %v4881 = vmul.f32 %v4828, %v4340
        %v4882 = vmul.f32 %v4828, %v4341
        %v4883 = vmul.f32 %v4828, %v4342
        %v4884 = vmul.f32 %v4828, %v4343
        %v4885 = vmul.f32 %v4828, %v4344
        %v4886 = vmul.f32 %v4828, %v4345
        %v4887 = vmul.f32 %v4828, %v4346
        %v4888 = vmul.f32 %v4828, %v4347
        %v4889 = vmul.f32 %v4828, %v4348
        %v4890 = vmul.f32 %v4828, %v4349
        %v4891 = vmul.f32 %v4828, %v4350
        %v4892 = vmul.f32 %v4828, %v4351
        %v4893 = vmul.f32 %v4829, %v4761
        %v4894 = vmul.f32 %v4830, %v4762
        %v4895 = vmul.f32 %v4831, %v4763
        %v4896 = vmul.f32 %v4832, %v4764
        %v4897 = vmul.f32 %v4833, %v4765
        %v4898 = vmul.f32 %v4834, %v4766
        %v4899 = vmul.f32 %v4835, %v4767
        %v4900 = vmul.f32 %v4836, %v4768
        %v4901 = vmul.f32 %v4837, %v4769
        %v4902 = vmul.f32 %v4838, %v4770
        %v4903 = vmul.f32 %v4839, %v4771
        %v4904 = vmul.f32 %v4840, %v4772
        %v4905 = vmul.f32 %v4841, %v4773
        %v4906 = vmul.f32 %v4842, %v4774
        %v4907 = vmul.f32 %v4843, %v4775
        %v4908 = vmul.f32 %v4844, %v4776
        %v4909 = vmul.f32 %v4845, %v4777
        %v4910 = vmul.f32 %v4846, %v4778
        %v4911 = vmul.f32 %v4847, %v4779
        %v4912 = vmul.f32 %v4848, %v4780
        %v4913 = vmul.f32 %v4849, %v4781
        %v4914 = vmul.f32 %v4850, %v4782
        %v4915 = vmul.f32 %v4851, %v4783
        %v4916 = vmul.f32 %v4852, %v4784
        %v4917 = vmul.f32 %v4853, %v4785
        %v4918 = vmul.f32 %v4854, %v4786
        %v4919 = vmul.f32 %v4855, %v4787
        %v4920 = vmul.f32 %v4856, %v4788
        %v4921 = vmul.f32 %v4857, %v4789
        %v4922 = vmul.f32 %v4858, %v4790
        %v4923 = vmul.f32 %v4859, %v4791
        %v4924 = vmul.f32 %v4860, %v4792
        %v4925 = vmul.f32 %v4861, %v4793
        %v4926 = vmul.f32 %v4862, %v4794
        %v4927 = vmul.f32 %v4863, %v4795
        %v4928 = vmul.f32 %v4864, %v4796
        %v4929 = vmul.f32 %v4865, %v4797
        %v4930 = vmul.f32 %v4866, %v4798
        %v4931 = vmul.f32 %v4867, %v4799
        %v4932 = vmul.f32 %v4868, %v4800
        %v4933 = vmul.f32 %v4869, %v4801
        %v4934 = vmul.f32 %v4870, %v4802
        %v4935 = vmul.f32 %v4871, %v4803
        %v4936 = vmul.f32 %v4872, %v4804
        %v4937 = vmul.f32 %v4873, %v4805
        %v4938 = vmul.f32 %v4874, %v4806
        %v4939 = vmul.f32 %v4875, %v4807
        %v4940 = vmul.f32 %v4876, %v4808
        %v4941 = vmul.f32 %v4877, %v4809
        %v4942 = vmul.f32 %v4878, %v4810
        %v4943 = vmul.f32 %v4879, %v4811
        %v4944 = vmul.f32 %v4880, %v4812
        %v4945 = vmul.f32 %v4881, %v4813
        %v4946 = vmul.f32 %v4882, %v4814
        %v4947 = vmul.f32 %v4883, %v4815
        %v4948 = vmul.f32 %v4884, %v4816
        %v4949 = vmul.f32 %v4885, %v4817
        %v4950 = vmul.f32 %v4886, %v4818
        %v4951 = vmul.f32 %v4887, %v4819
        %v4952 = vmul.f32 %v4888, %v4820
        %v4953 = vmul.f32 %v4889, %v4821
        %v4954 = vmul.f32 %v4890, %v4822
        %v4955 = vmul.f32 %v4891, %v4823
        %v4956 = vmul.f32 %v4892, %v4824
        %v4957 = vpack.c.bf16 %v4894, %v4893
        %v4958 = vpack.c.bf16 %v4896, %v4895
        %v4959 = vpack.c.bf16 %v4898, %v4897
        %v4960 = vpack.c.bf16 %v4900, %v4899
        %v4961 = vpack.c.bf16 %v4902, %v4901
        %v4962 = vpack.c.bf16 %v4904, %v4903
        %v4963 = vpack.c.bf16 %v4906, %v4905
        %v4964 = vpack.c.bf16 %v4908, %v4907
        %v4965 = vpack.c.bf16 %v4910, %v4909
        %v4966 = vpack.c.bf16 %v4912, %v4911
        %v4967 = vpack.c.bf16 %v4914, %v4913
        %v4968 = vpack.c.bf16 %v4916, %v4915
        %v4969 = vpack.c.bf16 %v4918, %v4917
        %v4970 = vpack.c.bf16 %v4920, %v4919
        %v4971 = vpack.c.bf16 %v4922, %v4921
        %v4972 = vpack.c.bf16 %v4924, %v4923
        %v4973 = vpack.c.bf16 %v4926, %v4925
        %v4974 = vpack.c.bf16 %v4928, %v4927
        %v4975 = vpack.c.bf16 %v4930, %v4929
        %v4976 = vpack.c.bf16 %v4932, %v4931
        %v4977 = vpack.c.bf16 %v4934, %v4933
        %v4978 = vpack.c.bf16 %v4936, %v4935
        %v4979 = vpack.c.bf16 %v4938, %v4937
        %v4980 = vpack.c.bf16 %v4940, %v4939
        %v4981 = vpack.c.bf16 %v4942, %v4941
        %v4982 = vpack.c.bf16 %v4944, %v4943
        %v4983 = vpack.c.bf16 %v4946, %v4945
        %v4984 = vpack.c.bf16 %v4948, %v4947
        %v4985 = vpack.c.bf16 %v4950, %v4949
        %v4986 = vpack.c.bf16 %v4952, %v4951
        %v4987 = vpack.c.bf16 %v4954, %v4953
        %v4988 = vpack.c.bf16 %v4956, %v4955
        %v4989 = vlaneseq
        %v4990 = vshrl.u32 %v4989, 7
        %v4991 = vsub.s32 0, %v4990
        %v4992 = vrot.slane %v4416, %v4991
        %v5009 = vunpack.c.l.b16 %v4421
        %v5010 = vunpack.c.l.b16 %v4422
        %v5011 = vunpack.c.l.b16 %v4423
        %v5012 = vunpack.c.l.b16 %v4424
        %v5013 = vunpack.c.l.b16 %v4425
        %v5014 = vunpack.c.l.b16 %v4426
        %v5015 = vunpack.c.l.b16 %v4427
        %v5016 = vunpack.c.l.b16 %v4428
        %v5017 = vunpack.c.l.b16 %v4429
        %v5018 = vunpack.c.l.b16 %v4430
        %v5019 = vunpack.c.l.b16 %v4431
        %v5020 = vunpack.c.l.b16 %v4432
        %v5021 = vunpack.c.l.b16 %v4433
        %v5022 = vunpack.c.l.b16 %v4434
        %v5023 = vunpack.c.l.b16 %v4435
        %v5024 = vunpack.c.l.b16 %v4436
        %v5025 = vpack.c.b16 %v5010, %v5009
        %v5026 = vpack.c.b16 %v5012, %v5011
        %v5027 = vpack.c.b16 %v5014, %v5013
        %v5028 = vpack.c.b16 %v5016, %v5015
        %v5029 = vpack.c.b16 %v5018, %v5017
        %v5030 = vpack.c.b16 %v5020, %v5019
        %v5031 = vpack.c.b16 %v5022, %v5021
        %v5032 = vpack.c.b16 %v5024, %v5023
        %5041 = vmatprep.subr.bf16.mxu0 0
        %5042 = vmatpush1.bf16.msra.mxu0 %v5025
        %5043 = vmatprep.subr.bf16.mxu0 0
        %5044 = vmatpush1.bf16.msra.mxu0 %v5026
        %5045 = vmatprep.subr.bf16.mxu0 0
        %5046 = vmatpush1.bf16.msra.mxu0 %v5027
        %5047 = vmatprep.subr.bf16.mxu0 0
        %5048 = vmatpush1.bf16.msra.mxu0 %v5028
        %5049 = vmatprep.subr.bf16.mxu0 0
        %5050 = vmatpush1.bf16.msra.mxu0 %v5029
        %5051 = vmatprep.subr.bf16.mxu0 0
        %5052 = vmatpush1.bf16.msra.mxu0 %v5030
        %5053 = vmatprep.subr.bf16.mxu0 0
        %5054 = vmatpush1.bf16.msra.mxu0 %v5031
        %5055 = vmatprep.subr.bf16.mxu0 0
        %5056 = vmatpush1.bf16.msra.mxu0 %v5032
        %5057 = vmatprep.subr.bf16.mxu0 0
        %5058 = vmatpush1.bf16.msra.mxu0 0
        %5059 = vmatprep.subr.bf16.mxu0 0
        %5060 = vmatpush1.bf16.msra.mxu0 0
        %5061 = vmatprep.subr.bf16.mxu0 0
        %5062 = vmatpush1.bf16.msra.mxu0 0
        %5063 = vmatprep.subr.bf16.mxu0 0
        %5064 = vmatpush1.bf16.msra.mxu0 0
        %5065 = vmatprep.subr.bf16.mxu0 0
        %5066 = vmatpush1.bf16.msra.mxu0 0
        %5067 = vmatprep.subr.bf16.mxu0 0
        %5068 = vmatpush1.bf16.msra.mxu0 0
        %5069 = vmatprep.subr.bf16.mxu0 0
        %5070 = vmatpush1.bf16.msra.mxu0 0
        %5071 = vmatprep.subr.bf16.mxu0 0
        %5072 = vmatpush1.bf16.msra.mxu0 0
        %5073 = vmatprep.mubr.bf16.mxu0 0
        %5074 = vmatmul.mubr.bf16.gmra.mrb[0].mxu0 %v4957
        %v5075 = vpop.f32.mrb[0].mxu0
        %v5076 = vadd.f32 %v4992, %v5075
        %v5077 = vpop.f32.mrb[0].mxu0
        %v5078 = vpop.f32.mrb[0].mxu0
        %v5079 = vadd.f32 %v4992, %v5078
        %v5080 = vpop.f32.mrb[0].mxu0
        %5081 = vmatprep.mubr.bf16.mxu0 0
        %5082 = vmatmul.mubr.bf16.gmra.mrb[0].mxu0 %v4958
        %v5083 = vpop.f32.mrb[0].mxu0
        %v5084 = vadd.f32 %v4992, %v5083
        %v5085 = vpop.f32.mrb[0].mxu0
        %v5086 = vpop.f32.mrb[0].mxu0
        %v5087 = vadd.f32 %v4992, %v5086
        %v5088 = vpop.f32.mrb[0].mxu0
        %5089 = vmatprep.mubr.bf16.mxu0 0
        %5090 = vmatmul.mubr.bf16.gmra.mrb[0].mxu0 %v4959
        %v5091 = vpop.f32.mrb[0].mxu0
        %v5092 = vadd.f32 %v4992, %v5091
        %v5093 = vpop.f32.mrb[0].mxu0
        %v5094 = vpop.f32.mrb[0].mxu0
        %v5095 = vadd.f32 %v4992, %v5094
        %v5096 = vpop.f32.mrb[0].mxu0
        %5097 = vmatprep.mubr.bf16.mxu0 0
        %5098 = vmatmul.mubr.bf16.gmra.mrb[0].mxu0 %v4960
        %v5099 = vpop.f32.mrb[0].mxu0
        %v5100 = vadd.f32 %v4992, %v5099
        %v5101 = vpop.f32.mrb[0].mxu0
        %v5102 = vpop.f32.mrb[0].mxu0
        %v5103 = vadd.f32 %v4992, %v5102
        %v5104 = vpop.f32.mrb[0].mxu0
        %5105 = vmatprep.mubr.bf16.mxu0 0
        %5106 = vmatmul.mubr.bf16.gmra.mrb[0].mxu0 %v4961
        %v5107 = vpop.f32.mrb[0].mxu0
        %v5108 = vadd.f32 %v4992, %v5107
        %v5109 = vpop.f32.mrb[0].mxu0
        %v5110 = vpop.f32.mrb[0].mxu0
        %v5111 = vadd.f32 %v4992, %v5110
        %v5112 = vpop.f32.mrb[0].mxu0
        %5113 = vmatprep.mubr.bf16.mxu0 0
        %5114 = vmatmul.mubr.bf16.gmra.mrb[0].mxu0 %v4962
        %v5115 = vpop.f32.mrb[0].mxu0
        %v5116 = vadd.f32 %v4992, %v5115
        %v5117 = vpop.f32.mrb[0].mxu0
        %v5118 = vpop.f32.mrb[0].mxu0
        %v5119 = vadd.f32 %v4992, %v5118
        %v5120 = vpop.f32.mrb[0].mxu0
        %5121 = vmatprep.mubr.bf16.mxu0 0
        %5122 = vmatmul.mubr.bf16.gmra.mrb[0].mxu0 %v4963
        %v5123 = vpop.f32.mrb[0].mxu0
        %v5124 = vadd.f32 %v4992, %v5123
        %v5125 = vpop.f32.mrb[0].mxu0
        %v5126 = vpop.f32.mrb[0].mxu0
        %v5127 = vadd.f32 %v4992, %v5126
        %v5128 = vpop.f32.mrb[0].mxu0
        %5129 = vmatprep.mubr.bf16.mxu0 0
        %5130 = vmatmul.mubr.bf16.gmra.mrb[0].mxu0 %v4964
        %v5131 = vpop.f32.mrb[0].mxu0
        %v5132 = vadd.f32 %v4992, %v5131
        %v5133 = vpop.f32.mrb[0].mxu0
        %v5134 = vpop.f32.mrb[0].mxu0
        %v5135 = vadd.f32 %v4992, %v5134
        %v5136 = vpop.f32.mrb[0].mxu0
        %5137 = vmatprep.mubr.bf16.mxu0 0
        %5138 = vmatmul.mubr.bf16.gmra.mrb[0].mxu0 %v4965
        %v5139 = vpop.f32.mrb[0].mxu0
        %v5140 = vadd.f32 %v4992, %v5139
        %v5141 = vpop.f32.mrb[0].mxu0
        %v5142 = vpop.f32.mrb[0].mxu0
        %v5143 = vadd.f32 %v4992, %v5142
        %v5144 = vpop.f32.mrb[0].mxu0
        %5145 = vmatprep.mubr.bf16.mxu0 0
        %5146 = vmatmul.mubr.bf16.gmra.mrb[0].mxu0 %v4966
        %v5147 = vpop.f32.mrb[0].mxu0
        %v5148 = vadd.f32 %v4992, %v5147
        %v5149 = vpop.f32.mrb[0].mxu0
        %v5150 = vpop.f32.mrb[0].mxu0
        %v5151 = vadd.f32 %v4992, %v5150
        %v5152 = vpop.f32.mrb[0].mxu0
        %5153 = vmatprep.mubr.bf16.mxu0 0
        %5154 = vmatmul.mubr.bf16.gmra.mrb[0].mxu0 %v4967
        %v5155 = vpop.f32.mrb[0].mxu0
        %v5156 = vadd.f32 %v4992, %v5155
        %v5157 = vpop.f32.mrb[0].mxu0
        %v5158 = vpop.f32.mrb[0].mxu0
        %v5159 = vadd.f32 %v4992, %v5158
        %v5160 = vpop.f32.mrb[0].mxu0
        %5161 = vmatprep.mubr.bf16.mxu0 0
        %5162 = vmatmul.mubr.bf16.gmra.mrb[0].mxu0 %v4968
        %v5163 = vpop.f32.mrb[0].mxu0
        %v5164 = vadd.f32 %v4992, %v5163
        %v5165 = vpop.f32.mrb[0].mxu0
        %v5166 = vpop.f32.mrb[0].mxu0
        %v5167 = vadd.f32 %v4992, %v5166
        %v5168 = vpop.f32.mrb[0].mxu0
        %5169 = vmatprep.mubr.bf16.mxu0 0
        %5170 = vmatmul.mubr.bf16.gmra.mrb[0].mxu0 %v4969
        %v5171 = vpop.f32.mrb[0].mxu0
        %v5172 = vadd.f32 %v4992, %v5171
        %v5173 = vpop.f32.mrb[0].mxu0
        %v5174 = vpop.f32.mrb[0].mxu0
        %v5175 = vadd.f32 %v4992, %v5174
        %v5176 = vpop.f32.mrb[0].mxu0
        %5177 = vmatprep.mubr.bf16.mxu0 0
        %5178 = vmatmul.mubr.bf16.gmra.mrb[0].mxu0 %v4970
        %v5179 = vpop.f32.mrb[0].mxu0
        %v5180 = vadd.f32 %v4992, %v5179
        %v5181 = vpop.f32.mrb[0].mxu0
        %v5182 = vpop.f32.mrb[0].mxu0
        %v5183 = vadd.f32 %v4992, %v5182
        %v5184 = vpop.f32.mrb[0].mxu0
        %5185 = vmatprep.mubr.bf16.mxu0 0
        %5186 = vmatmul.mubr.bf16.gmra.mrb[0].mxu0 %v4971
        %v5187 = vpop.f32.mrb[0].mxu0
        %v5188 = vadd.f32 %v4992, %v5187
        %v5189 = vpop.f32.mrb[0].mxu0
        %v5190 = vpop.f32.mrb[0].mxu0
        %v5191 = vadd.f32 %v4992, %v5190
        %v5192 = vpop.f32.mrb[0].mxu0
        %5193 = vmatprep.mubr.bf16.mxu0 0
        %5194 = vmatmul.mubr.bf16.gmra.mrb[0].mxu0 %v4972
        %v5195 = vpop.f32.mrb[0].mxu0
        %v5196 = vadd.f32 %v4992, %v5195
        %v5197 = vpop.f32.mrb[0].mxu0
        %v5198 = vpop.f32.mrb[0].mxu0
        %v5199 = vadd.f32 %v4992, %v5198
        %v5200 = vpop.f32.mrb[0].mxu0
        %5201 = vmatprep.mubr.bf16.mxu0 0
        %5202 = vmatmul.mubr.bf16.gmra.mrb[0].mxu0 %v4973
        %v5203 = vpop.f32.mrb[0].mxu0
        %v5204 = vadd.f32 %v4992, %v5203
        %v5205 = vpop.f32.mrb[0].mxu0
        %v5206 = vpop.f32.mrb[0].mxu0
        %v5207 = vadd.f32 %v4992, %v5206
        %v5208 = vpop.f32.mrb[0].mxu0
        %5209 = vmatprep.mubr.bf16.mxu0 0
        %5210 = vmatmul.mubr.bf16.gmra.mrb[0].mxu0 %v4974
        %v5211 = vpop.f32.mrb[0].mxu0
        %v5212 = vadd.f32 %v4992, %v5211
        %v5213 = vpop.f32.mrb[0].mxu0
        %v5214 = vpop.f32.mrb[0].mxu0
        %v5215 = vadd.f32 %v4992, %v5214
        %v5216 = vpop.f32.mrb[0].mxu0
        %5217 = vmatprep.mubr.bf16.mxu0 0
        %5218 = vmatmul.mubr.bf16.gmra.mrb[0].mxu0 %v4975
        %v5219 = vpop.f32.mrb[0].mxu0
        %v5220 = vadd.f32 %v4992, %v5219
        %v5221 = vpop.f32.mrb[0].mxu0
        %v5222 = vpop.f32.mrb[0].mxu0
        %v5223 = vadd.f32 %v4992, %v5222
        %v5224 = vpop.f32.mrb[0].mxu0
        %5225 = vmatprep.mubr.bf16.mxu0 0
        %5226 = vmatmul.mubr.bf16.gmra.mrb[0].mxu0 %v4976
        %v5227 = vpop.f32.mrb[0].mxu0
        %v5228 = vadd.f32 %v4992, %v5227
        %v5229 = vpop.f32.mrb[0].mxu0
        %v5230 = vpop.f32.mrb[0].mxu0
        %v5231 = vadd.f32 %v4992, %v5230
        %v5232 = vpop.f32.mrb[0].mxu0
        %5233 = vmatprep.mubr.bf16.mxu0 0
        %5234 = vmatmul.mubr.bf16.gmra.mrb[0].mxu0 %v4977
        %v5235 = vpop.f32.mrb[0].mxu0
        %v5236 = vadd.f32 %v4992, %v5235
        %v5237 = vpop.f32.mrb[0].mxu0
        %v5238 = vpop.f32.mrb[0].mxu0
        %v5239 = vadd.f32 %v4992, %v5238
        %v5240 = vpop.f32.mrb[0].mxu0
        %5241 = vmatprep.mubr.bf16.mxu0 0
        %5242 = vmatmul.mubr.bf16.gmra.mrb[0].mxu0 %v4978
        %v5243 = vpop.f32.mrb[0].mxu0
        %v5244 = vadd.f32 %v4992, %v5243
        %v5245 = vpop.f32.mrb[0].mxu0
        %v5246 = vpop.f32.mrb[0].mxu0
        %v5247 = vadd.f32 %v4992, %v5246
        %v5248 = vpop.f32.mrb[0].mxu0
        %5249 = vmatprep.mubr.bf16.mxu0 0
        %5250 = vmatmul.mubr.bf16.gmra.mrb[0].mxu0 %v4979
        %v5251 = vpop.f32.mrb[0].mxu0
        %v5252 = vadd.f32 %v4992, %v5251
        %v5253 = vpop.f32.mrb[0].mxu0
        %v5254 = vpop.f32.mrb[0].mxu0
        %v5255 = vadd.f32 %v4992, %v5254
        %v5256 = vpop.f32.mrb[0].mxu0
        %5257 = vmatprep.mubr.bf16.mxu0 0
        %5258 = vmatmul.mubr.bf16.gmra.mrb[0].mxu0 %v4980
        %v5259 = vpop.f32.mrb[0].mxu0
        %v5260 = vadd.f32 %v4992, %v5259
        %v5261 = vpop.f32.mrb[0].mxu0
        %v5262 = vpop.f32.mrb[0].mxu0
        %v5263 = vadd.f32 %v4992, %v5262
        %v5264 = vpop.f32.mrb[0].mxu0
        %5265 = vmatprep.mubr.bf16.mxu0 0
        %5266 = vmatmul.mubr.bf16.gmra.mrb[0].mxu0 %v4981
        %v5267 = vpop.f32.mrb[0].mxu0
        %v5268 = vadd.f32 %v4992, %v5267
        %v5269 = vpop.f32.mrb[0].mxu0
        %v5270 = vpop.f32.mrb[0].mxu0
        %v5271 = vadd.f32 %v4992, %v5270
        %v5272 = vpop.f32.mrb[0].mxu0
        %5273 = vmatprep.mubr.bf16.mxu0 0
        %5274 = vmatmul.mubr.bf16.gmra.mrb[0].mxu0 %v4982
        %v5275 = vpop.f32.mrb[0].mxu0
        %v5276 = vadd.f32 %v4992, %v5275
        %v5277 = vpop.f32.mrb[0].mxu0
        %v5278 = vpop.f32.mrb[0].mxu0
        %v5279 = vadd.f32 %v4992, %v5278
        %v5280 = vpop.f32.mrb[0].mxu0
        %5281 = vmatprep.mubr.bf16.mxu0 0
        %5282 = vmatmul.mubr.bf16.gmra.mrb[0].mxu0 %v4983
        %v5283 = vpop.f32.mrb[0].mxu0
        %v5284 = vadd.f32 %v4992, %v5283
        %v5285 = vpop.f32.mrb[0].mxu0
        %v5286 = vpop.f32.mrb[0].mxu0
        %v5287 = vadd.f32 %v4992, %v5286
        %v5288 = vpop.f32.mrb[0].mxu0
        %5289 = vmatprep.mubr.bf16.mxu0 0
        %5290 = vmatmul.mubr.bf16.gmra.mrb[0].mxu0 %v4984
        %v5291 = vpop.f32.mrb[0].mxu0
        %v5292 = vadd.f32 %v4992, %v5291
        %v5293 = vpop.f32.mrb[0].mxu0
        %v5294 = vpop.f32.mrb[0].mxu0
        %v5295 = vadd.f32 %v4992, %v5294
        %v5296 = vpop.f32.mrb[0].mxu0
        %5297 = vmatprep.mubr.bf16.mxu0 0
        %5298 = vmatmul.mubr.bf16.gmra.mrb[0].mxu0 %v4985
        %v5299 = vpop.f32.mrb[0].mxu0
        %v5300 = vadd.f32 %v4992, %v5299
        %v5301 = vpop.f32.mrb[0].mxu0
        %v5302 = vpop.f32.mrb[0].mxu0
        %v5303 = vadd.f32 %v4992, %v5302
        %v5304 = vpop.f32.mrb[0].mxu0
        %5305 = vmatprep.mubr.bf16.mxu0 0
        %5306 = vmatmul.mubr.bf16.gmra.mrb[0].mxu0 %v4986
        %v5307 = vpop.f32.mrb[0].mxu0
        %v5308 = vadd.f32 %v4992, %v5307
        %v5309 = vpop.f32.mrb[0].mxu0
        %v5310 = vpop.f32.mrb[0].mxu0
        %v5311 = vadd.f32 %v4992, %v5310
        %v5312 = vpop.f32.mrb[0].mxu0
        %5313 = vmatprep.mubr.bf16.mxu0 0
        %5314 = vmatmul.mubr.bf16.gmra.mrb[0].mxu0 %v4987
        %v5315 = vpop.f32.mrb[0].mxu0
        %v5316 = vadd.f32 %v4992, %v5315
        %v5317 = vpop.f32.mrb[0].mxu0
        %v5318 = vpop.f32.mrb[0].mxu0
        %v5319 = vadd.f32 %v4992, %v5318
        %v5320 = vpop.f32.mrb[0].mxu0
        %5321 = vmatprep.mubr.bf16.mxu0 0
        %5322 = vmatmul.mubr.bf16.gmra.mrb[0].mxu0 %v4988
        %v5323 = vpop.f32.mrb[0].mxu0
        %v5324 = vadd.f32 %v4992, %v5323
        %v5325 = vpop.f32.mrb[0].mxu0
        %v5326 = vpop.f32.mrb[0].mxu0
        %v5327 = vadd.f32 %v4992, %v5326
        %v5328 = vpop.f32.mrb[0].mxu0
        %5329 = vdwg.mxu0
        %v5330 = vlaneseq
        %v5331 = vshrl.u32 %v5330, 7
        %v5332 = vsub.s32 0, %v5331
        %v5333 = vrot.slane %v4420, %v5332
        %v5334 = vmul.f32 %v5333, %v5076
        %v5335 = vmul.f32 %v5333, %v5079
        %v5336 = vmul.f32 %v5333, %v5084
        %v5337 = vmul.f32 %v5333, %v5087
        %v5338 = vmul.f32 %v5333, %v5092
        %v5339 = vmul.f32 %v5333, %v5095
        %v5340 = vmul.f32 %v5333, %v5100
        %v5341 = vmul.f32 %v5333, %v5103
        %v5342 = vmul.f32 %v5333, %v5108
        %v5343 = vmul.f32 %v5333, %v5111
        %v5344 = vmul.f32 %v5333, %v5116
        %v5345 = vmul.f32 %v5333, %v5119
        %v5346 = vmul.f32 %v5333, %v5124
        %v5347 = vmul.f32 %v5333, %v5127
        %v5348 = vmul.f32 %v5333, %v5132
        %v5349 = vmul.f32 %v5333, %v5135
        %v5350 = vmul.f32 %v5333, %v5140
        %v5351 = vmul.f32 %v5333, %v5143
        %v5352 = vmul.f32 %v5333, %v5148
        %v5353 = vmul.f32 %v5333, %v5151
        %v5354 = vmul.f32 %v5333, %v5156
        %v5355 = vmul.f32 %v5333, %v5159
        %v5356 = vmul.f32 %v5333, %v5164
        %v5357 = vmul.f32 %v5333, %v5167
        %v5358 = vmul.f32 %v5333, %v5172
        %v5359 = vmul.f32 %v5333, %v5175
        %v5360 = vmul.f32 %v5333, %v5180
        %v5361 = vmul.f32 %v5333, %v5183
        %v5362 = vmul.f32 %v5333, %v5188
        %v5363 = vmul.f32 %v5333, %v5191
        %v5364 = vmul.f32 %v5333, %v5196
        %v5365 = vmul.f32 %v5333, %v5199
        %v5366 = vmul.f32 %v5333, %v5204
        %v5367 = vmul.f32 %v5333, %v5207
        %v5368 = vmul.f32 %v5333, %v5212
        %v5369 = vmul.f32 %v5333, %v5215
        %v5370 = vmul.f32 %v5333, %v5220
        %v5371 = vmul.f32 %v5333, %v5223
        %v5372 = vmul.f32 %v5333, %v5228
        %v5373 = vmul.f32 %v5333, %v5231
        %v5374 = vmul.f32 %v5333, %v5236
        %v5375 = vmul.f32 %v5333, %v5239
        %v5376 = vmul.f32 %v5333, %v5244
        %v5377 = vmul.f32 %v5333, %v5247
        %v5378 = vmul.f32 %v5333, %v5252
        %v5379 = vmul.f32 %v5333, %v5255
        %v5380 = vmul.f32 %v5333, %v5260
        %v5381 = vmul.f32 %v5333, %v5263
        %v5382 = vmul.f32 %v5333, %v5268
        %v5383 = vmul.f32 %v5333, %v5271
        %v5384 = vmul.f32 %v5333, %v5276
        %v5385 = vmul.f32 %v5333, %v5279
        %v5386 = vmul.f32 %v5333, %v5284
        %v5387 = vmul.f32 %v5333, %v5287
        %v5388 = vmul.f32 %v5333, %v5292
        %v5389 = vmul.f32 %v5333, %v5295
        %v5390 = vmul.f32 %v5333, %v5300
        %v5391 = vmul.f32 %v5333, %v5303
        %v5392 = vmul.f32 %v5333, %v5308
        %v5393 = vmul.f32 %v5333, %v5311
        %v5394 = vmul.f32 %v5333, %v5316
        %v5395 = vmul.f32 %v5333, %v5319
        %v5396 = vmul.f32 %v5333, %v5324
        %v5397 = vmul.f32 %v5333, %v5327
        %v5398 = vsub.f32 0.0, %v5334
        %v5399 = vsub.f32 0.0, %v5335
        %v5400 = vsub.f32 0.0, %v5336
        %v5401 = vsub.f32 0.0, %v5337
        %v5402 = vsub.f32 0.0, %v5338
        %v5403 = vsub.f32 0.0, %v5339
        %v5404 = vsub.f32 0.0, %v5340
        %v5405 = vsub.f32 0.0, %v5341
        %v5406 = vsub.f32 0.0, %v5342
        %v5407 = vsub.f32 0.0, %v5343
        %v5408 = vsub.f32 0.0, %v5344
        %v5409 = vsub.f32 0.0, %v5345
        %v5410 = vsub.f32 0.0, %v5346
        %v5411 = vsub.f32 0.0, %v5347
        %v5412 = vsub.f32 0.0, %v5348
        %v5413 = vsub.f32 0.0, %v5349
        %v5414 = vsub.f32 0.0, %v5350
        %v5415 = vsub.f32 0.0, %v5351
        %v5416 = vsub.f32 0.0, %v5352
        %v5417 = vsub.f32 0.0, %v5353
        %v5418 = vsub.f32 0.0, %v5354
        %v5419 = vsub.f32 0.0, %v5355
        %v5420 = vsub.f32 0.0, %v5356
        %v5421 = vsub.f32 0.0, %v5357
        %v5422 = vsub.f32 0.0, %v5358
        %v5423 = vsub.f32 0.0, %v5359
        %v5424 = vsub.f32 0.0, %v5360
        %v5425 = vsub.f32 0.0, %v5361
        %v5426 = vsub.f32 0.0, %v5362
        %v5427 = vsub.f32 0.0, %v5363
        %v5428 = vsub.f32 0.0, %v5364
        %v5429 = vsub.f32 0.0, %v5365
        %v5430 = vsub.f32 0.0, %v5366
        %v5431 = vsub.f32 0.0, %v5367
        %v5432 = vsub.f32 0.0, %v5368
        %v5433 = vsub.f32 0.0, %v5369
        %v5434 = vsub.f32 0.0, %v5370
        %v5435 = vsub.f32 0.0, %v5371
        %v5436 = vsub.f32 0.0, %v5372
        %v5437 = vsub.f32 0.0, %v5373
        %v5438 = vsub.f32 0.0, %v5374
        %v5439 = vsub.f32 0.0, %v5375
        %v5440 = vsub.f32 0.0, %v5376
        %v5441 = vsub.f32 0.0, %v5377
        %v5442 = vsub.f32 0.0, %v5378
        %v5443 = vsub.f32 0.0, %v5379
        %v5444 = vsub.f32 0.0, %v5380
        %v5445 = vsub.f32 0.0, %v5381
        %v5446 = vsub.f32 0.0, %v5382
        %v5447 = vsub.f32 0.0, %v5383
        %v5448 = vsub.f32 0.0, %v5384
        %v5449 = vsub.f32 0.0, %v5385
        %v5450 = vsub.f32 0.0, %v5386
        %v5451 = vsub.f32 0.0, %v5387
        %v5452 = vsub.f32 0.0, %v5388
        %v5453 = vsub.f32 0.0, %v5389
        %v5454 = vsub.f32 0.0, %v5390
        %v5455 = vsub.f32 0.0, %v5391
        %v5456 = vsub.f32 0.0, %v5392
        %v5457 = vsub.f32 0.0, %v5393
        %v5458 = vsub.f32 0.0, %v5394
        %v5459 = vsub.f32 0.0, %v5395
        %v5460 = vsub.f32 0.0, %v5396
        %v5461 = vsub.f32 0.0, %v5397
        %v5462 = vmul.f32 %v5398, 1.442695
        %v5463 = vpow.pop %v5462
        %v5464 = vmul.f32 %v5399, 1.442695
        %v5465 = vpow.pop %v5464
        %v5466 = vmul.f32 %v5400, 1.442695
        %v5467 = vpow.pop %v5466
        %v5468 = vmul.f32 %v5401, 1.442695
        %v5469 = vpow.pop %v5468
        %v5470 = vmul.f32 %v5402, 1.442695
        %v5471 = vpow.pop %v5470
        %v5472 = vmul.f32 %v5403, 1.442695
        %v5473 = vpow.pop %v5472
        %v5474 = vmul.f32 %v5404, 1.442695
        %v5475 = vpow.pop %v5474
        %v5476 = vmul.f32 %v5405, 1.442695
        %v5477 = vpow.pop %v5476
        %v5478 = vmul.f32 %v5406, 1.442695
        %v5479 = vpow.pop %v5478
        %v5480 = vmul.f32 %v5407, 1.442695
        %v5481 = vpow.pop %v5480
        %v5482 = vmul.f32 %v5408, 1.442695
        %v5483 = vpow.pop %v5482
        %v5484 = vmul.f32 %v5409, 1.442695
        %v5485 = vpow.pop %v5484
        %v5486 = vmul.f32 %v5410, 1.442695
        %v5487 = vpow.pop %v5486
        %v5488 = vmul.f32 %v5411, 1.442695
        %v5489 = vpow.pop %v5488
        %v5490 = vmul.f32 %v5412, 1.442695
        %v5491 = vpow.pop %v5490
        %v5492 = vmul.f32 %v5413, 1.442695
        %v5493 = vpow.pop %v5492
        %v5494 = vmul.f32 %v5414, 1.442695
        %v5495 = vpow.pop %v5494
        %v5496 = vmul.f32 %v5415, 1.442695
        %v5497 = vpow.pop %v5496
        %v5498 = vmul.f32 %v5416, 1.442695
        %v5499 = vpow.pop %v5498
        %v5500 = vmul.f32 %v5417, 1.442695
        %v5501 = vpow.pop %v5500
        %v5502 = vmul.f32 %v5418, 1.442695
        %v5503 = vpow.pop %v5502
        %v5504 = vmul.f32 %v5419, 1.442695
        %v5505 = vpow.pop %v5504
        %v5506 = vmul.f32 %v5420, 1.442695
        %v5507 = vpow.pop %v5506
        %v5508 = vmul.f32 %v5421, 1.442695
        %v5509 = vpow.pop %v5508
        %v5510 = vmul.f32 %v5422, 1.442695
        %v5511 = vpow.pop %v5510
        %v5512 = vmul.f32 %v5423, 1.442695
        %v5513 = vpow.pop %v5512
        %v5514 = vmul.f32 %v5424, 1.442695
        %v5515 = vpow.pop %v5514
        %v5516 = vmul.f32 %v5425, 1.442695
        %v5517 = vpow.pop %v5516
        %v5518 = vmul.f32 %v5426, 1.442695
        %v5519 = vpow.pop %v5518
        %v5520 = vmul.f32 %v5427, 1.442695
        %v5521 = vpow.pop %v5520
        %v5522 = vmul.f32 %v5428, 1.442695
        %v5523 = vpow.pop %v5522
        %v5524 = vmul.f32 %v5429, 1.442695
        %v5525 = vpow.pop %v5524
        %v5526 = vmul.f32 %v5430, 1.442695
        %v5527 = vpow.pop %v5526
        %v5528 = vmul.f32 %v5431, 1.442695
        %v5529 = vpow.pop %v5528
        %v5530 = vmul.f32 %v5432, 1.442695
        %v5531 = vpow.pop %v5530
        %v5532 = vmul.f32 %v5433, 1.442695
        %v5533 = vpow.pop %v5532
        %v5534 = vmul.f32 %v5434, 1.442695
        %v5535 = vpow.pop %v5534
        %v5536 = vmul.f32 %v5435, 1.442695
        %v5537 = vpow.pop %v5536
        %v5538 = vmul.f32 %v5436, 1.442695
        %v5539 = vpow.pop %v5538
        %v5540 = vmul.f32 %v5437, 1.442695
        %v5541 = vpow.pop %v5540
        %v5542 = vmul.f32 %v5438, 1.442695
        %v5543 = vpow.pop %v5542
        %v5544 = vmul.f32 %v5439, 1.442695
        %v5545 = vpow.pop %v5544
        %v5546 = vmul.f32 %v5440, 1.442695
        %v5547 = vpow.pop %v5546
        %v5548 = vmul.f32 %v5441, 1.442695
        %v5549 = vpow.pop %v5548
        %v5550 = vmul.f32 %v5442, 1.442695
        %v5551 = vpow.pop %v5550
        %v5552 = vmul.f32 %v5443, 1.442695
        %v5553 = vpow.pop %v5552
        %v5554 = vmul.f32 %v5444, 1.442695
        %v5555 = vpow.pop %v5554
        %v5556 = vmul.f32 %v5445, 1.442695
        %v5557 = vpow.pop %v5556
        %v5558 = vmul.f32 %v5446, 1.442695
        %v5559 = vpow.pop %v5558
        %v5560 = vmul.f32 %v5447, 1.442695
        %v5561 = vpow.pop %v5560
        %v5562 = vmul.f32 %v5448, 1.442695
        %v5563 = vpow.pop %v5562
        %v5564 = vmul.f32 %v5449, 1.442695
        %v5565 = vpow.pop %v5564
        %v5566 = vmul.f32 %v5450, 1.442695
        %v5567 = vpow.pop %v5566
        %v5568 = vmul.f32 %v5451, 1.442695
        %v5569 = vpow.pop %v5568
        %v5570 = vmul.f32 %v5452, 1.442695
        %v5571 = vpow.pop %v5570
        %v5572 = vmul.f32 %v5453, 1.442695
        %v5573 = vpow.pop %v5572
        %v5574 = vmul.f32 %v5454, 1.442695
        %v5575 = vpow.pop %v5574
        %v5576 = vmul.f32 %v5455, 1.442695
        %v5577 = vpow.pop %v5576
        %v5578 = vmul.f32 %v5456, 1.442695
        %v5579 = vpow.pop %v5578
        %v5580 = vmul.f32 %v5457, 1.442695
        %v5581 = vpow.pop %v5580
        %v5582 = vmul.f32 %v5458, 1.442695
        %v5583 = vpow.pop %v5582
        %v5584 = vmul.f32 %v5459, 1.442695
        %v5585 = vpow.pop %v5584
        %v5586 = vmul.f32 %v5460, 1.442695
        %v5587 = vpow.pop %v5586
        %v5588 = vmul.f32 %v5461, 1.442695
        %v5589 = vpow.pop %v5588
        %v5590 = vadd.f32 %v5463, 1.0
        %v5591 = vadd.f32 %v5465, 1.0
        %v5592 = vadd.f32 %v5467, 1.0
        %v5593 = vadd.f32 %v5469, 1.0
        %v5594 = vadd.f32 %v5471, 1.0
        %v5595 = vadd.f32 %v5473, 1.0
        %v5596 = vadd.f32 %v5475, 1.0
        %v5597 = vadd.f32 %v5477, 1.0
        %v5598 = vadd.f32 %v5479, 1.0
        %v5599 = vadd.f32 %v5481, 1.0
        %v5600 = vadd.f32 %v5483, 1.0
        %v5601 = vadd.f32 %v5485, 1.0
        %v5602 = vadd.f32 %v5487, 1.0
        %v5603 = vadd.f32 %v5489, 1.0
        %v5604 = vadd.f32 %v5491, 1.0
        %v5605 = vadd.f32 %v5493, 1.0
        %v5606 = vadd.f32 %v5495, 1.0
        %v5607 = vadd.f32 %v5497, 1.0
        %v5608 = vadd.f32 %v5499, 1.0
        %v5609 = vadd.f32 %v5501, 1.0
        %v5610 = vadd.f32 %v5503, 1.0
        %v5611 = vadd.f32 %v5505, 1.0
        %v5612 = vadd.f32 %v5507, 1.0
        %v5613 = vadd.f32 %v5509, 1.0
        %v5614 = vadd.f32 %v5511, 1.0
        %v5615 = vadd.f32 %v5513, 1.0
        %v5616 = vadd.f32 %v5515, 1.0
        %v5617 = vadd.f32 %v5517, 1.0
        %v5618 = vadd.f32 %v5519, 1.0
        %v5619 = vadd.f32 %v5521, 1.0
        %v5620 = vadd.f32 %v5523, 1.0
        %v5621 = vadd.f32 %v5525, 1.0
        %v5622 = vadd.f32 %v5527, 1.0
        %v5623 = vadd.f32 %v5529, 1.0
        %v5624 = vadd.f32 %v5531, 1.0
        %v5625 = vadd.f32 %v5533, 1.0
        %v5626 = vadd.f32 %v5535, 1.0
        %v5627 = vadd.f32 %v5537, 1.0
        %v5628 = vadd.f32 %v5539, 1.0
        %v5629 = vadd.f32 %v5541, 1.0
        %v5630 = vadd.f32 %v5543, 1.0
        %v5631 = vadd.f32 %v5545, 1.0
        %v5632 = vadd.f32 %v5547, 1.0
        %v5633 = vadd.f32 %v5549, 1.0
        %v5634 = vadd.f32 %v5551, 1.0
        %v5635 = vadd.f32 %v5553, 1.0
        %v5636 = vadd.f32 %v5555, 1.0
        %v5637 = vadd.f32 %v5557, 1.0
        %v5638 = vadd.f32 %v5559, 1.0
        %v5639 = vadd.f32 %v5561, 1.0
        %v5640 = vadd.f32 %v5563, 1.0
        %v5641 = vadd.f32 %v5565, 1.0
        %v5642 = vadd.f32 %v5567, 1.0
        %v5643 = vadd.f32 %v5569, 1.0
        %v5644 = vadd.f32 %v5571, 1.0
        %v5645 = vadd.f32 %v5573, 1.0
        %v5646 = vadd.f32 %v5575, 1.0
        %v5647 = vadd.f32 %v5577, 1.0
        %v5648 = vadd.f32 %v5579, 1.0
        %v5649 = vadd.f32 %v5581, 1.0
        %v5650 = vadd.f32 %v5583, 1.0
        %v5651 = vadd.f32 %v5585, 1.0
        %v5652 = vadd.f32 %v5587, 1.0
        %v5653 = vadd.f32 %v5589, 1.0
        %v5654 = vrcp.pop %v5590
        %v5655 = vrcp.pop %v5591
        %v5656 = vrcp.pop %v5592
        %v5657 = vrcp.pop %v5593
        %v5658 = vrcp.pop %v5594
        %v5659 = vrcp.pop %v5595
        %v5660 = vrcp.pop %v5596
        %v5661 = vrcp.pop %v5597
        %v5662 = vrcp.pop %v5598
        %v5663 = vrcp.pop %v5599
        %v5664 = vrcp.pop %v5600
        %v5665 = vrcp.pop %v5601
        %v5666 = vrcp.pop %v5602
        %v5667 = vrcp.pop %v5603
        %v5668 = vrcp.pop %v5604
        %v5669 = vrcp.pop %v5605
        %v5670 = vrcp.pop %v5606
        %v5671 = vrcp.pop %v5607
        %v5672 = vrcp.pop %v5608
        %v5673 = vrcp.pop %v5609
        %v5674 = vrcp.pop %v5610
        %v5675 = vrcp.pop %v5611
        %v5676 = vrcp.pop %v5612
        %v5677 = vrcp.pop %v5613
        %v5678 = vrcp.pop %v5614
        %v5679 = vrcp.pop %v5615
        %v5680 = vrcp.pop %v5616
        %v5681 = vrcp.pop %v5617
        %v5682 = vrcp.pop %v5618
        %v5683 = vrcp.pop %v5619
        %v5684 = vrcp.pop %v5620
        %v5685 = vrcp.pop %v5621
        %v5686 = vrcp.pop %v5622
        %v5687 = vrcp.pop %v5623
        %v5688 = vrcp.pop %v5624
        %v5689 = vrcp.pop %v5625
        %v5690 = vrcp.pop %v5626
        %v5691 = vrcp.pop %v5627
        %v5692 = vrcp.pop %v5628
        %v5693 = vrcp.pop %v5629
        %v5694 = vrcp.pop %v5630
        %v5695 = vrcp.pop %v5631
        %v5696 = vrcp.pop %v5632
        %v5697 = vrcp.pop %v5633
        %v5698 = vrcp.pop %v5634
        %v5699 = vrcp.pop %v5635
        %v5700 = vrcp.pop %v5636
        %v5701 = vrcp.pop %v5637
        %v5702 = vrcp.pop %v5638
        %v5703 = vrcp.pop %v5639
        %v5704 = vrcp.pop %v5640
        %v5705 = vrcp.pop %v5641
        %v5706 = vrcp.pop %v5642
        %v5707 = vrcp.pop %v5643
        %v5708 = vrcp.pop %v5644
        %v5709 = vrcp.pop %v5645
        %v5710 = vrcp.pop %v5646
        %v5711 = vrcp.pop %v5647
        %v5712 = vrcp.pop %v5648
        %v5713 = vrcp.pop %v5649
        %v5714 = vrcp.pop %v5650
        %v5715 = vrcp.pop %v5651
        %v5716 = vrcp.pop %v5652
        %v5717 = vrcp.pop %v5653
        %v5718 = vlaneseq
        %v5719 = vshrl.u32 %v5718, 7
        %v5720 = vsub.s32 0, %v5719
        %v5721 = vrot.slane %v4419, %v5720
        %v5722 = vmul.f32 %v5721, %v5076
        %v5723 = vmul.f32 %v5721, %v5079
        %v5724 = vmul.f32 %v5721, %v5084
        %v5725 = vmul.f32 %v5721, %v5087
        %v5726 = vmul.f32 %v5721, %v5092
        %v5727 = vmul.f32 %v5721, %v5095
        %v5728 = vmul.f32 %v5721, %v5100
        %v5729 = vmul.f32 %v5721, %v5103
        %v5730 = vmul.f32 %v5721, %v5108
        %v5731 = vmul.f32 %v5721, %v5111
        %v5732 = vmul.f32 %v5721, %v5116
        %v5733 = vmul.f32 %v5721, %v5119
        %v5734 = vmul.f32 %v5721, %v5124
        %v5735 = vmul.f32 %v5721, %v5127
        %v5736 = vmul.f32 %v5721, %v5132
        %v5737 = vmul.f32 %v5721, %v5135
        %v5738 = vmul.f32 %v5721, %v5140
        %v5739 = vmul.f32 %v5721, %v5143
        %v5740 = vmul.f32 %v5721, %v5148
        %v5741 = vmul.f32 %v5721, %v5151
        %v5742 = vmul.f32 %v5721, %v5156
        %v5743 = vmul.f32 %v5721, %v5159
        %v5744 = vmul.f32 %v5721, %v5164
        %v5745 = vmul.f32 %v5721, %v5167
        %v5746 = vmul.f32 %v5721, %v5172
        %v5747 = vmul.f32 %v5721, %v5175
        %v5748 = vmul.f32 %v5721, %v5180
        %v5749 = vmul.f32 %v5721, %v5183
        %v5750 = vmul.f32 %v5721, %v5188
        %v5751 = vmul.f32 %v5721, %v5191
        %v5752 = vmul.f32 %v5721, %v5196
        %v5753 = vmul.f32 %v5721, %v5199
        %v5754 = vmul.f32 %v5721, %v5204
        %v5755 = vmul.f32 %v5721, %v5207
        %v5756 = vmul.f32 %v5721, %v5212
        %v5757 = vmul.f32 %v5721, %v5215
        %v5758 = vmul.f32 %v5721, %v5220
        %v5759 = vmul.f32 %v5721, %v5223
        %v5760 = vmul.f32 %v5721, %v5228
        %v5761 = vmul.f32 %v5721, %v5231
        %v5762 = vmul.f32 %v5721, %v5236
        %v5763 = vmul.f32 %v5721, %v5239
        %v5764 = vmul.f32 %v5721, %v5244
        %v5765 = vmul.f32 %v5721, %v5247
        %v5766 = vmul.f32 %v5721, %v5252
        %v5767 = vmul.f32 %v5721, %v5255
        %v5768 = vmul.f32 %v5721, %v5260
        %v5769 = vmul.f32 %v5721, %v5263
        %v5770 = vmul.f32 %v5721, %v5268
        %v5771 = vmul.f32 %v5721, %v5271
        %v5772 = vmul.f32 %v5721, %v5276
        %v5773 = vmul.f32 %v5721, %v5279
        %v5774 = vmul.f32 %v5721, %v5284
        %v5775 = vmul.f32 %v5721, %v5287
        %v5776 = vmul.f32 %v5721, %v5292
        %v5777 = vmul.f32 %v5721, %v5295
        %v5778 = vmul.f32 %v5721, %v5300
        %v5779 = vmul.f32 %v5721, %v5303
        %v5780 = vmul.f32 %v5721, %v5308
        %v5781 = vmul.f32 %v5721, %v5311
        %v5782 = vmul.f32 %v5721, %v5316
        %v5783 = vmul.f32 %v5721, %v5319
        %v5784 = vmul.f32 %v5721, %v5324
        %v5785 = vmul.f32 %v5721, %v5327
        %v5786 = vmul.f32 %v5722, %v5654
        %v5787 = vmul.f32 %v5723, %v5655
        %v5788 = vmul.f32 %v5724, %v5656
        %v5789 = vmul.f32 %v5725, %v5657
        %v5790 = vmul.f32 %v5726, %v5658
        %v5791 = vmul.f32 %v5727, %v5659
        %v5792 = vmul.f32 %v5728, %v5660
        %v5793 = vmul.f32 %v5729, %v5661
        %v5794 = vmul.f32 %v5730, %v5662
        %v5795 = vmul.f32 %v5731, %v5663
        %v5796 = vmul.f32 %v5732, %v5664
        %v5797 = vmul.f32 %v5733, %v5665
        %v5798 = vmul.f32 %v5734, %v5666
        %v5799 = vmul.f32 %v5735, %v5667
        %v5800 = vmul.f32 %v5736, %v5668
        %v5801 = vmul.f32 %v5737, %v5669
        %v5802 = vmul.f32 %v5738, %v5670
        %v5803 = vmul.f32 %v5739, %v5671
        %v5804 = vmul.f32 %v5740, %v5672
        %v5805 = vmul.f32 %v5741, %v5673
        %v5806 = vmul.f32 %v5742, %v5674
        %v5807 = vmul.f32 %v5743, %v5675
        %v5808 = vmul.f32 %v5744, %v5676
        %v5809 = vmul.f32 %v5745, %v5677
        %v5810 = vmul.f32 %v5746, %v5678
        %v5811 = vmul.f32 %v5747, %v5679
        %v5812 = vmul.f32 %v5748, %v5680
        %v5813 = vmul.f32 %v5749, %v5681
        %v5814 = vmul.f32 %v5750, %v5682
        %v5815 = vmul.f32 %v5751, %v5683
        %v5816 = vmul.f32 %v5752, %v5684
        %v5817 = vmul.f32 %v5753, %v5685
        %v5818 = vmul.f32 %v5754, %v5686
        %v5819 = vmul.f32 %v5755, %v5687
        %v5820 = vmul.f32 %v5756, %v5688
        %v5821 = vmul.f32 %v5757, %v5689
        %v5822 = vmul.f32 %v5758, %v5690
        %v5823 = vmul.f32 %v5759, %v5691
        %v5824 = vmul.f32 %v5760, %v5692
        %v5825 = vmul.f32 %v5761, %v5693
        %v5826 = vmul.f32 %v5762, %v5694
        %v5827 = vmul.f32 %v5763, %v5695
        %v5828 = vmul.f32 %v5764, %v5696
        %v5829 = vmul.f32 %v5765, %v5697
        %v5830 = vmul.f32 %v5766, %v5698
        %v5831 = vmul.f32 %v5767, %v5699
        %v5832 = vmul.f32 %v5768, %v5700
        %v5833 = vmul.f32 %v5769, %v5701
        %v5834 = vmul.f32 %v5770, %v5702
        %v5835 = vmul.f32 %v5771, %v5703
        %v5836 = vmul.f32 %v5772, %v5704
        %v5837 = vmul.f32 %v5773, %v5705
        %v5838 = vmul.f32 %v5774, %v5706
        %v5839 = vmul.f32 %v5775, %v5707
        %v5840 = vmul.f32 %v5776, %v5708
        %v5841 = vmul.f32 %v5777, %v5709
        %v5842 = vmul.f32 %v5778, %v5710
        %v5843 = vmul.f32 %v5779, %v5711
        %v5844 = vmul.f32 %v5780, %v5712
        %v5845 = vmul.f32 %v5781, %v5713
        %v5846 = vmul.f32 %v5782, %v5714
        %v5847 = vmul.f32 %v5783, %v5715
        %v5848 = vmul.f32 %v5784, %v5716
        %v5849 = vmul.f32 %v5785, %v5717
        %s5850 = scalar_lea.vmem %s3, 64
        %v5851 = vld [vmem:[%s5850] sm:$0xf]
        %v5852 = vld [vmem:[%s5850 + $0x4] sm:$0xf]
        %v5853 = vld [vmem:[%s5850 + $0x8] sm:$0xf]
        %v5854 = vld [vmem:[%s5850 + $0xc] sm:$0xf]
        %v5855 = vld [vmem:[%s5850 + $0x10] sm:$0xf]
        %v5856 = vld [vmem:[%s5850 + $0x14] sm:$0xf]
        %v5857 = vld [vmem:[%s5850 + $0x18] sm:$0xf]
        %v5858 = vld [vmem:[%s5850 + $0x1c] sm:$0xf]
        %v5859 = vld [vmem:[%s5850 + $0x20] sm:$0xf]
        %v5860 = vld [vmem:[%s5850 + $0x24] sm:$0xf]
        %v5861 = vld [vmem:[%s5850 + $0x28] sm:$0xf]
        %v5862 = vld [vmem:[%s5850 + $0x2c] sm:$0xf]
        %v5863 = vld [vmem:[%s5850 + $0x30] sm:$0xf]
        %v5864 = vld [vmem:[%s5850 + $0x34] sm:$0xf]
        %v5865 = vld [vmem:[%s5850 + $0x38] sm:$0xf]
        %v5866 = vld [vmem:[%s5850 + $0x3c] sm:$0xf]
        %v5867 = vlaneseq
        %v5868 = vshrl.u32 %v5867, 7
        %v5869 = vsub.s32 1, %v5868
        %v5870 = vrot.slane %v4418, %v5869
        %v5871 = vmul.f32 %v5870, %v5786
        %v5872 = vmul.f32 %v5870, %v5787
        %v5873 = vmul.f32 %v5870, %v5788
        %v5874 = vmul.f32 %v5870, %v5789
        %v5875 = vmul.f32 %v5870, %v5790
        %v5876 = vmul.f32 %v5870, %v5791
        %v5877 = vmul.f32 %v5870, %v5792
        %v5878 = vmul.f32 %v5870, %v5793
        %v5879 = vmul.f32 %v5870, %v5794
        %v5880 = vmul.f32 %v5870, %v5795
        %v5881 = vmul.f32 %v5870, %v5796
        %v5882 = vmul.f32 %v5870, %v5797
        %v5883 = vmul.f32 %v5870, %v5798
        %v5884 = vmul.f32 %v5870, %v5799
        %v5885 = vmul.f32 %v5870, %v5800
        %v5886 = vmul.f32 %v5870, %v5801
        %v5887 = vmul.f32 %v5870, %v5802
        %v5888 = vmul.f32 %v5870, %v5803
        %v5889 = vmul.f32 %v5870, %v5804
        %v5890 = vmul.f32 %v5870, %v5805
        %v5891 = vmul.f32 %v5870, %v5806
        %v5892 = vmul.f32 %v5870, %v5807
        %v5893 = vmul.f32 %v5870, %v5808
        %v5894 = vmul.f32 %v5870, %v5809
        %v5895 = vmul.f32 %v5870, %v5810
        %v5896 = vmul.f32 %v5870, %v5811
        %v5897 = vmul.f32 %v5870, %v5812
        %v5898 = vmul.f32 %v5870, %v5813
        %v5899 = vmul.f32 %v5870, %v5814
        %v5900 = vmul.f32 %v5870, %v5815
        %v5901 = vmul.f32 %v5870, %v5816
        %v5902 = vmul.f32 %v5870, %v5817
        %v5903 = vmul.f32 %v5870, %v5818
        %v5904 = vmul.f32 %v5870, %v5819
        %v5905 = vmul.f32 %v5870, %v5820
        %v5906 = vmul.f32 %v5870, %v5821
        %v5907 = vmul.f32 %v5870, %v5822
        %v5908 = vmul.f32 %v5870, %v5823
        %v5909 = vmul.f32 %v5870, %v5824
        %v5910 = vmul.f32 %v5870, %v5825
        %v5911 = vmul.f32 %v5870, %v5826
        %v5912 = vmul.f32 %v5870, %v5827
        %v5913 = vmul.f32 %v5870, %v5828
        %v5914 = vmul.f32 %v5870, %v5829
        %v5915 = vmul.f32 %v5870, %v5830
        %v5916 = vmul.f32 %v5870, %v5831
        %v5917 = vmul.f32 %v5870, %v5832
        %v5918 = vmul.f32 %v5870, %v5833
        %v5919 = vmul.f32 %v5870, %v5834
        %v5920 = vmul.f32 %v5870, %v5835
        %v5921 = vmul.f32 %v5870, %v5836
        %v5922 = vmul.f32 %v5870, %v5837
        %v5923 = vmul.f32 %v5870, %v5838
        %v5924 = vmul.f32 %v5870, %v5839
        %v5925 = vmul.f32 %v5870, %v5840
        %v5926 = vmul.f32 %v5870, %v5841
        %v5927 = vmul.f32 %v5870, %v5842
        %v5928 = vmul.f32 %v5870, %v5843
        %v5929 = vmul.f32 %v5870, %v5844
        %v5930 = vmul.f32 %v5870, %v5845
        %v5931 = vmul.f32 %v5870, %v5846
        %v5932 = vmul.f32 %v5870, %v5847
        %v5933 = vmul.f32 %v5870, %v5848
        %v5934 = vmul.f32 %v5870, %v5849
        %v5935 = vsub.f32 0.0, %v5871
        %v5936 = vsub.f32 0.0, %v5872
        %v5937 = vsub.f32 0.0, %v5873
        %v5938 = vsub.f32 0.0, %v5874
        %v5939 = vsub.f32 0.0, %v5875
        %v5940 = vsub.f32 0.0, %v5876
        %v5941 = vsub.f32 0.0, %v5877
        %v5942 = vsub.f32 0.0, %v5878
        %v5943 = vsub.f32 0.0, %v5879
        %v5944 = vsub.f32 0.0, %v5880
        %v5945 = vsub.f32 0.0, %v5881
        %v5946 = vsub.f32 0.0, %v5882
        %v5947 = vsub.f32 0.0, %v5883
        %v5948 = vsub.f32 0.0, %v5884
        %v5949 = vsub.f32 0.0, %v5885
        %v5950 = vsub.f32 0.0, %v5886
        %v5951 = vsub.f32 0.0, %v5887
        %v5952 = vsub.f32 0.0, %v5888
        %v5953 = vsub.f32 0.0, %v5889
        %v5954 = vsub.f32 0.0, %v5890
        %v5955 = vsub.f32 0.0, %v5891
        %v5956 = vsub.f32 0.0, %v5892
        %v5957 = vsub.f32 0.0, %v5893
        %v5958 = vsub.f32 0.0, %v5894
        %v5959 = vsub.f32 0.0, %v5895
        %v5960 = vsub.f32 0.0, %v5896
        %v5961 = vsub.f32 0.0, %v5897
        %v5962 = vsub.f32 0.0, %v5898
        %v5963 = vsub.f32 0.0, %v5899
        %v5964 = vsub.f32 0.0, %v5900
        %v5965 = vsub.f32 0.0, %v5901
        %v5966 = vsub.f32 0.0, %v5902
        %v5967 = vsub.f32 0.0, %v5903
        %v5968 = vsub.f32 0.0, %v5904
        %v5969 = vsub.f32 0.0, %v5905
        %v5970 = vsub.f32 0.0, %v5906
        %v5971 = vsub.f32 0.0, %v5907
        %v5972 = vsub.f32 0.0, %v5908
        %v5973 = vsub.f32 0.0, %v5909
        %v5974 = vsub.f32 0.0, %v5910
        %v5975 = vsub.f32 0.0, %v5911
        %v5976 = vsub.f32 0.0, %v5912
        %v5977 = vsub.f32 0.0, %v5913
        %v5978 = vsub.f32 0.0, %v5914
        %v5979 = vsub.f32 0.0, %v5915
        %v5980 = vsub.f32 0.0, %v5916
        %v5981 = vsub.f32 0.0, %v5917
        %v5982 = vsub.f32 0.0, %v5918
        %v5983 = vsub.f32 0.0, %v5919
        %v5984 = vsub.f32 0.0, %v5920
        %v5985 = vsub.f32 0.0, %v5921
        %v5986 = vsub.f32 0.0, %v5922
        %v5987 = vsub.f32 0.0, %v5923
        %v5988 = vsub.f32 0.0, %v5924
        %v5989 = vsub.f32 0.0, %v5925
        %v5990 = vsub.f32 0.0, %v5926
        %v5991 = vsub.f32 0.0, %v5927
        %v5992 = vsub.f32 0.0, %v5928
        %v5993 = vsub.f32 0.0, %v5929
        %v5994 = vsub.f32 0.0, %v5930
        %v5995 = vsub.f32 0.0, %v5931
        %v5996 = vsub.f32 0.0, %v5932
        %v5997 = vsub.f32 0.0, %v5933
        %v5998 = vsub.f32 0.0, %v5934
        %v5999 = vmul.f32 %v5935, 1.442695
        %v6000 = vpow.pop %v5999
        %v6001 = vmul.f32 %v5936, 1.442695
        %v6002 = vpow.pop %v6001
        %v6003 = vmul.f32 %v5937, 1.442695
        %v6004 = vpow.pop %v6003
        %v6005 = vmul.f32 %v5938, 1.442695
        %v6006 = vpow.pop %v6005
        %v6007 = vmul.f32 %v5939, 1.442695
        %v6008 = vpow.pop %v6007
        %v6009 = vmul.f32 %v5940, 1.442695
        %v6010 = vpow.pop %v6009
        %v6011 = vmul.f32 %v5941, 1.442695
        %v6012 = vpow.pop %v6011
        %v6013 = vmul.f32 %v5942, 1.442695
        %v6014 = vpow.pop %v6013
        %v6015 = vmul.f32 %v5943, 1.442695
        %v6016 = vpow.pop %v6015
        %v6017 = vmul.f32 %v5944, 1.442695
        %v6018 = vpow.pop %v6017
        %v6019 = vmul.f32 %v5945, 1.442695
        %v6020 = vpow.pop %v6019
        %v6021 = vmul.f32 %v5946, 1.442695
        %v6022 = vpow.pop %v6021
        %v6023 = vmul.f32 %v5947, 1.442695
        %v6024 = vpow.pop %v6023
        %v6025 = vmul.f32 %v5948, 1.442695
        %v6026 = vpow.pop %v6025
        %v6027 = vmul.f32 %v5949, 1.442695
        %v6028 = vpow.pop %v6027
        %v6029 = vmul.f32 %v5950, 1.442695
        %v6030 = vpow.pop %v6029
        %v6031 = vmul.f32 %v5951, 1.442695
        %v6032 = vpow.pop %v6031
        %v6033 = vmul.f32 %v5952, 1.442695
        %v6034 = vpow.pop %v6033
        %v6035 = vmul.f32 %v5953, 1.442695
        %v6036 = vpow.pop %v6035
        %v6037 = vmul.f32 %v5954, 1.442695
        %v6038 = vpow.pop %v6037
        %v6039 = vmul.f32 %v5955, 1.442695
        %v6040 = vpow.pop %v6039
        %v6041 = vmul.f32 %v5956, 1.442695
        %v6042 = vpow.pop %v6041
        %v6043 = vmul.f32 %v5957, 1.442695
        %v6044 = vpow.pop %v6043
        %v6045 = vmul.f32 %v5958, 1.442695
        %v6046 = vpow.pop %v6045
        %v6047 = vmul.f32 %v5959, 1.442695
        %v6048 = vpow.pop %v6047
        %v6049 = vmul.f32 %v5960, 1.442695
        %v6050 = vpow.pop %v6049
        %v6051 = vmul.f32 %v5961, 1.442695
        %v6052 = vpow.pop %v6051
        %v6053 = vmul.f32 %v5962, 1.442695
        %v6054 = vpow.pop %v6053
        %v6055 = vmul.f32 %v5963, 1.442695
        %v6056 = vpow.pop %v6055
        %v6057 = vmul.f32 %v5964, 1.442695
        %v6058 = vpow.pop %v6057
        %v6059 = vmul.f32 %v5965, 1.442695
        %v6060 = vpow.pop %v6059
        %v6061 = vmul.f32 %v5966, 1.442695
        %v6062 = vpow.pop %v6061
        %v6063 = vmul.f32 %v5967, 1.442695
        %v6064 = vpow.pop %v6063
        %v6065 = vmul.f32 %v5968, 1.442695
        %v6066 = vpow.pop %v6065
        %v6067 = vmul.f32 %v5969, 1.442695
        %v6068 = vpow.pop %v6067
        %v6069 = vmul.f32 %v5970, 1.442695
        %v6070 = vpow.pop %v6069
        %v6071 = vmul.f32 %v5971, 1.442695
        %v6072 = vpow.pop %v6071
        %v6073 = vmul.f32 %v5972, 1.442695
        %v6074 = vpow.pop %v6073
        %v6075 = vmul.f32 %v5973, 1.442695
        %v6076 = vpow.pop %v6075
        %v6077 = vmul.f32 %v5974, 1.442695
        %v6078 = vpow.pop %v6077
        %v6079 = vmul.f32 %v5975, 1.442695
        %v6080 = vpow.pop %v6079
        %v6081 = vmul.f32 %v5976, 1.442695
        %v6082 = vpow.pop %v6081
        %v6083 = vmul.f32 %v5977, 1.442695
        %v6084 = vpow.pop %v6083
        %v6085 = vmul.f32 %v5978, 1.442695
        %v6086 = vpow.pop %v6085
        %v6087 = vmul.f32 %v5979, 1.442695
        %v6088 = vpow.pop %v6087
        %v6089 = vmul.f32 %v5980, 1.442695
        %v6090 = vpow.pop %v6089
        %v6091 = vmul.f32 %v5981, 1.442695
        %v6092 = vpow.pop %v6091
        %v6093 = vmul.f32 %v5982, 1.442695
        %v6094 = vpow.pop %v6093
        %v6095 = vmul.f32 %v5983, 1.442695
        %v6096 = vpow.pop %v6095
        %v6097 = vmul.f32 %v5984, 1.442695
        %v6098 = vpow.pop %v6097
        %v6099 = vmul.f32 %v5985, 1.442695
        %v6100 = vpow.pop %v6099
        %v6101 = vmul.f32 %v5986, 1.442695
        %v6102 = vpow.pop %v6101
        %v6103 = vmul.f32 %v5987, 1.442695
        %v6104 = vpow.pop %v6103
        %v6105 = vmul.f32 %v5988, 1.442695
        %v6106 = vpow.pop %v6105
        %v6107 = vmul.f32 %v5989, 1.442695
        %v6108 = vpow.pop %v6107
        %v6109 = vmul.f32 %v5990, 1.442695
        %v6110 = vpow.pop %v6109
        %v6111 = vmul.f32 %v5991, 1.442695
        %v6112 = vpow.pop %v6111
        %v6113 = vmul.f32 %v5992, 1.442695
        %v6114 = vpow.pop %v6113
        %v6115 = vmul.f32 %v5993, 1.442695
        %v6116 = vpow.pop %v6115
        %v6117 = vmul.f32 %v5994, 1.442695
        %v6118 = vpow.pop %v6117
        %v6119 = vmul.f32 %v5995, 1.442695
        %v6120 = vpow.pop %v6119
        %v6121 = vmul.f32 %v5996, 1.442695
        %v6122 = vpow.pop %v6121
        %v6123 = vmul.f32 %v5997, 1.442695
        %v6124 = vpow.pop %v6123
        %v6125 = vmul.f32 %v5998, 1.442695
        %v6126 = vpow.pop %v6125
        %v6127 = vadd.f32 %v6000, 1.0
        %v6128 = vadd.f32 %v6002, 1.0
        %v6129 = vadd.f32 %v6004, 1.0
        %v6130 = vadd.f32 %v6006, 1.0
        %v6131 = vadd.f32 %v6008, 1.0
        %v6132 = vadd.f32 %v6010, 1.0
        %v6133 = vadd.f32 %v6012, 1.0
        %v6134 = vadd.f32 %v6014, 1.0
        %v6135 = vadd.f32 %v6016, 1.0
        %v6136 = vadd.f32 %v6018, 1.0
        %v6137 = vadd.f32 %v6020, 1.0
        %v6138 = vadd.f32 %v6022, 1.0
        %v6139 = vadd.f32 %v6024, 1.0
        %v6140 = vadd.f32 %v6026, 1.0
        %v6141 = vadd.f32 %v6028, 1.0
        %v6142 = vadd.f32 %v6030, 1.0
        %v6143 = vadd.f32 %v6032, 1.0
        %v6144 = vadd.f32 %v6034, 1.0
        %v6145 = vadd.f32 %v6036, 1.0
        %v6146 = vadd.f32 %v6038, 1.0
        %v6147 = vadd.f32 %v6040, 1.0
        %v6148 = vadd.f32 %v6042, 1.0
        %v6149 = vadd.f32 %v6044, 1.0
        %v6150 = vadd.f32 %v6046, 1.0
        %v6151 = vadd.f32 %v6048, 1.0
        %v6152 = vadd.f32 %v6050, 1.0
        %v6153 = vadd.f32 %v6052, 1.0
        %v6154 = vadd.f32 %v6054, 1.0
        %v6155 = vadd.f32 %v6056, 1.0
        %v6156 = vadd.f32 %v6058, 1.0
        %v6157 = vadd.f32 %v6060, 1.0
        %v6158 = vadd.f32 %v6062, 1.0
        %v6159 = vadd.f32 %v6064, 1.0
        %v6160 = vadd.f32 %v6066, 1.0
        %v6161 = vadd.f32 %v6068, 1.0
        %v6162 = vadd.f32 %v6070, 1.0
        %v6163 = vadd.f32 %v6072, 1.0
        %v6164 = vadd.f32 %v6074, 1.0
        %v6165 = vadd.f32 %v6076, 1.0
        %v6166 = vadd.f32 %v6078, 1.0
        %v6167 = vadd.f32 %v6080, 1.0
        %v6168 = vadd.f32 %v6082, 1.0
        %v6169 = vadd.f32 %v6084, 1.0
        %v6170 = vadd.f32 %v6086, 1.0
        %v6171 = vadd.f32 %v6088, 1.0
        %v6172 = vadd.f32 %v6090, 1.0
        %v6173 = vadd.f32 %v6092, 1.0
        %v6174 = vadd.f32 %v6094, 1.0
        %v6175 = vadd.f32 %v6096, 1.0
        %v6176 = vadd.f32 %v6098, 1.0
        %v6177 = vadd.f32 %v6100, 1.0
        %v6178 = vadd.f32 %v6102, 1.0
        %v6179 = vadd.f32 %v6104, 1.0
        %v6180 = vadd.f32 %v6106, 1.0
        %v6181 = vadd.f32 %v6108, 1.0
        %v6182 = vadd.f32 %v6110, 1.0
        %v6183 = vadd.f32 %v6112, 1.0
        %v6184 = vadd.f32 %v6114, 1.0
        %v6185 = vadd.f32 %v6116, 1.0
        %v6186 = vadd.f32 %v6118, 1.0
        %v6187 = vadd.f32 %v6120, 1.0
        %v6188 = vadd.f32 %v6122, 1.0
        %v6189 = vadd.f32 %v6124, 1.0
        %v6190 = vadd.f32 %v6126, 1.0
        %v6191 = vrcp.pop %v6127
        %v6192 = vrcp.pop %v6128
        %v6193 = vrcp.pop %v6129
        %v6194 = vrcp.pop %v6130
        %v6195 = vrcp.pop %v6131
        %v6196 = vrcp.pop %v6132
        %v6197 = vrcp.pop %v6133
        %v6198 = vrcp.pop %v6134
        %v6199 = vrcp.pop %v6135
        %v6200 = vrcp.pop %v6136
        %v6201 = vrcp.pop %v6137
        %v6202 = vrcp.pop %v6138
        %v6203 = vrcp.pop %v6139
        %v6204 = vrcp.pop %v6140
        %v6205 = vrcp.pop %v6141
        %v6206 = vrcp.pop %v6142
        %v6207 = vrcp.pop %v6143
        %v6208 = vrcp.pop %v6144
        %v6209 = vrcp.pop %v6145
        %v6210 = vrcp.pop %v6146
        %v6211 = vrcp.pop %v6147
        %v6212 = vrcp.pop %v6148
        %v6213 = vrcp.pop %v6149
        %v6214 = vrcp.pop %v6150
        %v6215 = vrcp.pop %v6151
        %v6216 = vrcp.pop %v6152
        %v6217 = vrcp.pop %v6153
        %v6218 = vrcp.pop %v6154
        %v6219 = vrcp.pop %v6155
        %v6220 = vrcp.pop %v6156
        %v6221 = vrcp.pop %v6157
        %v6222 = vrcp.pop %v6158
        %v6223 = vrcp.pop %v6159
        %v6224 = vrcp.pop %v6160
        %v6225 = vrcp.pop %v6161
        %v6226 = vrcp.pop %v6162
        %v6227 = vrcp.pop %v6163
        %v6228 = vrcp.pop %v6164
        %v6229 = vrcp.pop %v6165
        %v6230 = vrcp.pop %v6166
        %v6231 = vrcp.pop %v6167
        %v6232 = vrcp.pop %v6168
        %v6233 = vrcp.pop %v6169
        %v6234 = vrcp.pop %v6170
        %v6235 = vrcp.pop %v6171
        %v6236 = vrcp.pop %v6172
        %v6237 = vrcp.pop %v6173
        %v6238 = vrcp.pop %v6174
        %v6239 = vrcp.pop %v6175
        %v6240 = vrcp.pop %v6176
        %v6241 = vrcp.pop %v6177
        %v6242 = vrcp.pop %v6178
        %v6243 = vrcp.pop %v6179
        %v6244 = vrcp.pop %v6180
        %v6245 = vrcp.pop %v6181
        %v6246 = vrcp.pop %v6182
        %v6247 = vrcp.pop %v6183
        %v6248 = vrcp.pop %v6184
        %v6249 = vrcp.pop %v6185
        %v6250 = vrcp.pop %v6186
        %v6251 = vrcp.pop %v6187
        %v6252 = vrcp.pop %v6188
        %v6253 = vrcp.pop %v6189
        %v6254 = vrcp.pop %v6190
        %v6255 = vlaneseq
        %v6256 = vshrl.u32 %v6255, 7
        %v6257 = vsub.s32 1, %v6256
        %v6258 = vrot.slane %v4417, %v6257
        %v6259 = vmul.f32 %v6258, %v5786
        %v6260 = vmul.f32 %v6258, %v5787
        %v6261 = vmul.f32 %v6258, %v5788
        %v6262 = vmul.f32 %v6258, %v5789
        %v6263 = vmul.f32 %v6258, %v5790
        %v6264 = vmul.f32 %v6258, %v5791
        %v6265 = vmul.f32 %v6258, %v5792
        %v6266 = vmul.f32 %v6258, %v5793
        %v6267 = vmul.f32 %v6258, %v5794
        %v6268 = vmul.f32 %v6258, %v5795
        %v6269 = vmul.f32 %v6258, %v5796
        %v6270 = vmul.f32 %v6258, %v5797
        %v6271 = vmul.f32 %v6258, %v5798
        %v6272 = vmul.f32 %v6258, %v5799
        %v6273 = vmul.f32 %v6258, %v5800
        %v6274 = vmul.f32 %v6258, %v5801
        %v6275 = vmul.f32 %v6258, %v5802
        %v6276 = vmul.f32 %v6258, %v5803
        %v6277 = vmul.f32 %v6258, %v5804
        %v6278 = vmul.f32 %v6258, %v5805
        %v6279 = vmul.f32 %v6258, %v5806
        %v6280 = vmul.f32 %v6258, %v5807
        %v6281 = vmul.f32 %v6258, %v5808
        %v6282 = vmul.f32 %v6258, %v5809
        %v6283 = vmul.f32 %v6258, %v5810
        %v6284 = vmul.f32 %v6258, %v5811
        %v6285 = vmul.f32 %v6258, %v5812
        %v6286 = vmul.f32 %v6258, %v5813
        %v6287 = vmul.f32 %v6258, %v5814
        %v6288 = vmul.f32 %v6258, %v5815
        %v6289 = vmul.f32 %v6258, %v5816
        %v6290 = vmul.f32 %v6258, %v5817
        %v6291 = vmul.f32 %v6258, %v5818
        %v6292 = vmul.f32 %v6258, %v5819
        %v6293 = vmul.f32 %v6258, %v5820
        %v6294 = vmul.f32 %v6258, %v5821
        %v6295 = vmul.f32 %v6258, %v5822
        %v6296 = vmul.f32 %v6258, %v5823
        %v6297 = vmul.f32 %v6258, %v5824
        %v6298 = vmul.f32 %v6258, %v5825
        %v6299 = vmul.f32 %v6258, %v5826
        %v6300 = vmul.f32 %v6258, %v5827
        %v6301 = vmul.f32 %v6258, %v5828
        %v6302 = vmul.f32 %v6258, %v5829
        %v6303 = vmul.f32 %v6258, %v5830
        %v6304 = vmul.f32 %v6258, %v5831
        %v6305 = vmul.f32 %v6258, %v5832
        %v6306 = vmul.f32 %v6258, %v5833
        %v6307 = vmul.f32 %v6258, %v5834
        %v6308 = vmul.f32 %v6258, %v5835
        %v6309 = vmul.f32 %v6258, %v5836
        %v6310 = vmul.f32 %v6258, %v5837
        %v6311 = vmul.f32 %v6258, %v5838
        %v6312 = vmul.f32 %v6258, %v5839
        %v6313 = vmul.f32 %v6258, %v5840
        %v6314 = vmul.f32 %v6258, %v5841
        %v6315 = vmul.f32 %v6258, %v5842
        %v6316 = vmul.f32 %v6258, %v5843
        %v6317 = vmul.f32 %v6258, %v5844
        %v6318 = vmul.f32 %v6258, %v5845
        %v6319 = vmul.f32 %v6258, %v5846
        %v6320 = vmul.f32 %v6258, %v5847
        %v6321 = vmul.f32 %v6258, %v5848
        %v6322 = vmul.f32 %v6258, %v5849
        %v6323 = vmul.f32 %v6259, %v6191
        %v6324 = vmul.f32 %v6260, %v6192
        %v6325 = vmul.f32 %v6261, %v6193
        %v6326 = vmul.f32 %v6262, %v6194
        %v6327 = vmul.f32 %v6263, %v6195
        %v6328 = vmul.f32 %v6264, %v6196
        %v6329 = vmul.f32 %v6265, %v6197
        %v6330 = vmul.f32 %v6266, %v6198
        %v6331 = vmul.f32 %v6267, %v6199
        %v6332 = vmul.f32 %v6268, %v6200
        %v6333 = vmul.f32 %v6269, %v6201
        %v6334 = vmul.f32 %v6270, %v6202
        %v6335 = vmul.f32 %v6271, %v6203
        %v6336 = vmul.f32 %v6272, %v6204
        %v6337 = vmul.f32 %v6273, %v6205
        %v6338 = vmul.f32 %v6274, %v6206
        %v6339 = vmul.f32 %v6275, %v6207
        %v6340 = vmul.f32 %v6276, %v6208
        %v6341 = vmul.f32 %v6277, %v6209
        %v6342 = vmul.f32 %v6278, %v6210
        %v6343 = vmul.f32 %v6279, %v6211
        %v6344 = vmul.f32 %v6280, %v6212
        %v6345 = vmul.f32 %v6281, %v6213
        %v6346 = vmul.f32 %v6282, %v6214
        %v6347 = vmul.f32 %v6283, %v6215
        %v6348 = vmul.f32 %v6284, %v6216
        %v6349 = vmul.f32 %v6285, %v6217
        %v6350 = vmul.f32 %v6286, %v6218
        %v6351 = vmul.f32 %v6287, %v6219
        %v6352 = vmul.f32 %v6288, %v6220
        %v6353 = vmul.f32 %v6289, %v6221
        %v6354 = vmul.f32 %v6290, %v6222
        %v6355 = vmul.f32 %v6291, %v6223
        %v6356 = vmul.f32 %v6292, %v6224
        %v6357 = vmul.f32 %v6293, %v6225
        %v6358 = vmul.f32 %v6294, %v6226
        %v6359 = vmul.f32 %v6295, %v6227
        %v6360 = vmul.f32 %v6296, %v6228
        %v6361 = vmul.f32 %v6297, %v6229
        %v6362 = vmul.f32 %v6298, %v6230
        %v6363 = vmul.f32 %v6299, %v6231
        %v6364 = vmul.f32 %v6300, %v6232
        %v6365 = vmul.f32 %v6301, %v6233
        %v6366 = vmul.f32 %v6302, %v6234
        %v6367 = vmul.f32 %v6303, %v6235
        %v6368 = vmul.f32 %v6304, %v6236
        %v6369 = vmul.f32 %v6305, %v6237
        %v6370 = vmul.f32 %v6306, %v6238
        %v6371 = vmul.f32 %v6307, %v6239
        %v6372 = vmul.f32 %v6308, %v6240
        %v6373 = vmul.f32 %v6309, %v6241
        %v6374 = vmul.f32 %v6310, %v6242
        %v6375 = vmul.f32 %v6311, %v6243
        %v6376 = vmul.f32 %v6312, %v6244
        %v6377 = vmul.f32 %v6313, %v6245
        %v6378 = vmul.f32 %v6314, %v6246
        %v6379 = vmul.f32 %v6315, %v6247
        %v6380 = vmul.f32 %v6316, %v6248
        %v6381 = vmul.f32 %v6317, %v6249
        %v6382 = vmul.f32 %v6318, %v6250
        %v6383 = vmul.f32 %v6319, %v6251
        %v6384 = vmul.f32 %v6320, %v6252
        %v6385 = vmul.f32 %v6321, %v6253
        %v6386 = vmul.f32 %v6322, %v6254
        %v6387 = vpack.c.bf16 %v6324, %v6323
        %v6388 = vpack.c.bf16 %v6326, %v6325
        %v6389 = vpack.c.bf16 %v6328, %v6327
        %v6390 = vpack.c.bf16 %v6330, %v6329
        %v6391 = vpack.c.bf16 %v6332, %v6331
        %v6392 = vpack.c.bf16 %v6334, %v6333
        %v6393 = vpack.c.bf16 %v6336, %v6335
        %v6394 = vpack.c.bf16 %v6338, %v6337
        %v6395 = vpack.c.bf16 %v6340, %v6339
        %v6396 = vpack.c.bf16 %v6342, %v6341
        %v6397 = vpack.c.bf16 %v6344, %v6343
        %v6398 = vpack.c.bf16 %v6346, %v6345
        %v6399 = vpack.c.bf16 %v6348, %v6347
        %v6400 = vpack.c.bf16 %v6350, %v6349
        %v6401 = vpack.c.bf16 %v6352, %v6351
        %v6402 = vpack.c.bf16 %v6354, %v6353
        %v6403 = vpack.c.bf16 %v6356, %v6355
        %v6404 = vpack.c.bf16 %v6358, %v6357
        %v6405 = vpack.c.bf16 %v6360, %v6359
        %v6406 = vpack.c.bf16 %v6362, %v6361
        %v6407 = vpack.c.bf16 %v6364, %v6363
        %v6408 = vpack.c.bf16 %v6366, %v6365
        %v6409 = vpack.c.bf16 %v6368, %v6367
        %v6410 = vpack.c.bf16 %v6370, %v6369
        %v6411 = vpack.c.bf16 %v6372, %v6371
        %v6412 = vpack.c.bf16 %v6374, %v6373
        %v6413 = vpack.c.bf16 %v6376, %v6375
        %v6414 = vpack.c.bf16 %v6378, %v6377
        %v6415 = vpack.c.bf16 %v6380, %v6379
        %v6416 = vpack.c.bf16 %v6382, %v6381
        %v6417 = vpack.c.bf16 %v6384, %v6383
        %v6418 = vpack.c.bf16 %v6386, %v6385
        %v6419 = vlaneseq
        %v6420 = vshrl.u32 %v6419, 7
        %v6421 = vsub.s32 1, %v6420
        %v6422 = vrot.slane %v4416, %v6421
        %v6439 = vunpack.c.l.b16 %v5851
        %v6440 = vunpack.c.l.b16 %v5852
        %v6441 = vunpack.c.l.b16 %v5853
        %v6442 = vunpack.c.l.b16 %v5854
        %v6443 = vunpack.c.l.b16 %v5855
        %v6444 = vunpack.c.l.b16 %v5856
        %v6445 = vunpack.c.l.b16 %v5857
        %v6446 = vunpack.c.l.b16 %v5858
        %v6447 = vunpack.c.l.b16 %v5859
        %v6448 = vunpack.c.l.b16 %v5860
        %v6449 = vunpack.c.l.b16 %v5861
        %v6450 = vunpack.c.l.b16 %v5862
        %v6451 = vunpack.c.l.b16 %v5863
        %v6452 = vunpack.c.l.b16 %v5864
        %v6453 = vunpack.c.l.b16 %v5865
        %v6454 = vunpack.c.l.b16 %v5866
        %v6455 = vpack.c.b16 %v6440, %v6439
        %v6456 = vpack.c.b16 %v6442, %v6441
        %v6457 = vpack.c.b16 %v6444, %v6443
        %v6458 = vpack.c.b16 %v6446, %v6445
        %v6459 = vpack.c.b16 %v6448, %v6447
        %v6460 = vpack.c.b16 %v6450, %v6449
        %v6461 = vpack.c.b16 %v6452, %v6451
        %v6462 = vpack.c.b16 %v6454, %v6453
        %6471 = vmatprep.subr.bf16.mxu0 0
        %6472 = vmatpush1.bf16.msra.mxu0 %v6455
        %6473 = vmatprep.subr.bf16.mxu0 0
        %6474 = vmatpush1.bf16.msra.mxu0 %v6456
        %6475 = vmatprep.subr.bf16.mxu0 0
        %6476 = vmatpush1.bf16.msra.mxu0 %v6457
        %6477 = vmatprep.subr.bf16.mxu0 0
        %6478 = vmatpush1.bf16.msra.mxu0 %v6458
        %6479 = vmatprep.subr.bf16.mxu0 0
        %6480 = vmatpush1.bf16.msra.mxu0 %v6459
        %6481 = vmatprep.subr.bf16.mxu0 0
        %6482 = vmatpush1.bf16.msra.mxu0 %v6460
        %6483 = vmatprep.subr.bf16.mxu0 0
        %6484 = vmatpush1.bf16.msra.mxu0 %v6461
        %6485 = vmatprep.subr.bf16.mxu0 0
        %6486 = vmatpush1.bf16.msra.mxu0 %v6462
        %6487 = vmatprep.subr.bf16.mxu0 0
        %6488 = vmatpush1.bf16.msra.mxu0 0
        %6489 = vmatprep.subr.bf16.mxu0 0
        %6490 = vmatpush1.bf16.msra.mxu0 0
        %6491 = vmatprep.subr.bf16.mxu0 0
        %6492 = vmatpush1.bf16.msra.mxu0 0
        %6493 = vmatprep.subr.bf16.mxu0 0
        %6494 = vmatpush1.bf16.msra.mxu0 0
        %6495 = vmatprep.subr.bf16.mxu0 0
        %6496 = vmatpush1.bf16.msra.mxu0 0
        %6497 = vmatprep.subr.bf16.mxu0 0
        %6498 = vmatpush1.bf16.msra.mxu0 0
        %6499 = vmatprep.subr.bf16.mxu0 0
        %6500 = vmatpush1.bf16.msra.mxu0 0
        %6501 = vmatprep.subr.bf16.mxu0 0
        %6502 = vmatpush1.bf16.msra.mxu0 0
        %6503 = vmatprep.mubr.bf16.mxu0 0
        %6504 = vmatmul.mubr.bf16.gmra.mrb[0].mxu0 %v6387
        %v6505 = vpop.f32.mrb[0].mxu0
        %v6506 = vadd.f32 %v6422, %v6505
        %v6507 = vpop.f32.mrb[0].mxu0
        %v6508 = vpop.f32.mrb[0].mxu0
        %v6509 = vadd.f32 %v6422, %v6508
        %v6510 = vpop.f32.mrb[0].mxu0
        %6511 = vmatprep.mubr.bf16.mxu0 0
        %6512 = vmatmul.mubr.bf16.gmra.mrb[0].mxu0 %v6388
        %v6513 = vpop.f32.mrb[0].mxu0
        %v6514 = vadd.f32 %v6422, %v6513
        %v6515 = vpop.f32.mrb[0].mxu0
        %v6516 = vpop.f32.mrb[0].mxu0
        %v6517 = vadd.f32 %v6422, %v6516
        %v6518 = vpop.f32.mrb[0].mxu0
        %6519 = vmatprep.mubr.bf16.mxu0 0
        %6520 = vmatmul.mubr.bf16.gmra.mrb[0].mxu0 %v6389
        %v6521 = vpop.f32.mrb[0].mxu0
        %v6522 = vadd.f32 %v6422, %v6521
        %v6523 = vpop.f32.mrb[0].mxu0
        %v6524 = vpop.f32.mrb[0].mxu0
        %v6525 = vadd.f32 %v6422, %v6524
        %v6526 = vpop.f32.mrb[0].mxu0
        %6527 = vmatprep.mubr.bf16.mxu0 0
        %6528 = vmatmul.mubr.bf16.gmra.mrb[0].mxu0 %v6390
        %v6529 = vpop.f32.mrb[0].mxu0
        %v6530 = vadd.f32 %v6422, %v6529
        %v6531 = vpop.f32.mrb[0].mxu0
        %v6532 = vpop.f32.mrb[0].mxu0
        %v6533 = vadd.f32 %v6422, %v6532
        %v6534 = vpop.f32.mrb[0].mxu0
        %6535 = vmatprep.mubr.bf16.mxu0 0
        %6536 = vmatmul.mubr.bf16.gmra.mrb[0].mxu0 %v6391
        %v6537 = vpop.f32.mrb[0].mxu0
        %v6538 = vadd.f32 %v6422, %v6537
        %v6539 = vpop.f32.mrb[0].mxu0
        %v6540 = vpop.f32.mrb[0].mxu0
        %v6541 = vadd.f32 %v6422, %v6540
        %v6542 = vpop.f32.mrb[0].mxu0
        %6543 = vmatprep.mubr.bf16.mxu0 0
        %6544 = vmatmul.mubr.bf16.gmra.mrb[0].mxu0 %v6392
        %v6545 = vpop.f32.mrb[0].mxu0
        %v6546 = vadd.f32 %v6422, %v6545
        %v6547 = vpop.f32.mrb[0].mxu0
        %v6548 = vpop.f32.mrb[0].mxu0
        %v6549 = vadd.f32 %v6422, %v6548
        %v6550 = vpop.f32.mrb[0].mxu0
        %6551 = vmatprep.mubr.bf16.mxu0 0
        %6552 = vmatmul.mubr.bf16.gmra.mrb[0].mxu0 %v6393
        %v6553 = vpop.f32.mrb[0].mxu0
        %v6554 = vadd.f32 %v6422, %v6553
        %v6555 = vpop.f32.mrb[0].mxu0
        %v6556 = vpop.f32.mrb[0].mxu0
        %v6557 = vadd.f32 %v6422, %v6556
        %v6558 = vpop.f32.mrb[0].mxu0
        %6559 = vmatprep.mubr.bf16.mxu0 0
        %6560 = vmatmul.mubr.bf16.gmra.mrb[0].mxu0 %v6394
        %v6561 = vpop.f32.mrb[0].mxu0
        %v6562 = vadd.f32 %v6422, %v6561
        %v6563 = vpop.f32.mrb[0].mxu0
        %v6564 = vpop.f32.mrb[0].mxu0
        %v6565 = vadd.f32 %v6422, %v6564
        %v6566 = vpop.f32.mrb[0].mxu0
        %6567 = vmatprep.mubr.bf16.mxu0 0
        %6568 = vmatmul.mubr.bf16.gmra.mrb[0].mxu0 %v6395
        %v6569 = vpop.f32.mrb[0].mxu0
        %v6570 = vadd.f32 %v6422, %v6569
        %v6571 = vpop.f32.mrb[0].mxu0
        %v6572 = vpop.f32.mrb[0].mxu0
        %v6573 = vadd.f32 %v6422, %v6572
        %v6574 = vpop.f32.mrb[0].mxu0
        %6575 = vmatprep.mubr.bf16.mxu0 0
        %6576 = vmatmul.mubr.bf16.gmra.mrb[0].mxu0 %v6396
        %v6577 = vpop.f32.mrb[0].mxu0
        %v6578 = vadd.f32 %v6422, %v6577
        %v6579 = vpop.f32.mrb[0].mxu0
        %v6580 = vpop.f32.mrb[0].mxu0
        %v6581 = vadd.f32 %v6422, %v6580
        %v6582 = vpop.f32.mrb[0].mxu0
        %6583 = vmatprep.mubr.bf16.mxu0 0
        %6584 = vmatmul.mubr.bf16.gmra.mrb[0].mxu0 %v6397
        %v6585 = vpop.f32.mrb[0].mxu0
        %v6586 = vadd.f32 %v6422, %v6585
        %v6587 = vpop.f32.mrb[0].mxu0
        %v6588 = vpop.f32.mrb[0].mxu0
        %v6589 = vadd.f32 %v6422, %v6588
        %v6590 = vpop.f32.mrb[0].mxu0
        %6591 = vmatprep.mubr.bf16.mxu0 0
        %6592 = vmatmul.mubr.bf16.gmra.mrb[0].mxu0 %v6398
        %v6593 = vpop.f32.mrb[0].mxu0
        %v6594 = vadd.f32 %v6422, %v6593
        %v6595 = vpop.f32.mrb[0].mxu0
        %v6596 = vpop.f32.mrb[0].mxu0
        %v6597 = vadd.f32 %v6422, %v6596
        %v6598 = vpop.f32.mrb[0].mxu0
        %6599 = vmatprep.mubr.bf16.mxu0 0
        %6600 = vmatmul.mubr.bf16.gmra.mrb[0].mxu0 %v6399
        %v6601 = vpop.f32.mrb[0].mxu0
        %v6602 = vadd.f32 %v6422, %v6601
        %v6603 = vpop.f32.mrb[0].mxu0
        %v6604 = vpop.f32.mrb[0].mxu0
        %v6605 = vadd.f32 %v6422, %v6604
        %v6606 = vpop.f32.mrb[0].mxu0
        %6607 = vmatprep.mubr.bf16.mxu0 0
        %6608 = vmatmul.mubr.bf16.gmra.mrb[0].mxu0 %v6400
        %v6609 = vpop.f32.mrb[0].mxu0
        %v6610 = vadd.f32 %v6422, %v6609
        %v6611 = vpop.f32.mrb[0].mxu0
        %v6612 = vpop.f32.mrb[0].mxu0
        %v6613 = vadd.f32 %v6422, %v6612
        %v6614 = vpop.f32.mrb[0].mxu0
        %6615 = vmatprep.mubr.bf16.mxu0 0
        %6616 = vmatmul.mubr.bf16.gmra.mrb[0].mxu0 %v6401
        %v6617 = vpop.f32.mrb[0].mxu0
        %v6618 = vadd.f32 %v6422, %v6617
        %v6619 = vpop.f32.mrb[0].mxu0
        %v6620 = vpop.f32.mrb[0].mxu0
        %v6621 = vadd.f32 %v6422, %v6620
        %v6622 = vpop.f32.mrb[0].mxu0
        %6623 = vmatprep.mubr.bf16.mxu0 0
        %6624 = vmatmul.mubr.bf16.gmra.mrb[0].mxu0 %v6402
        %v6625 = vpop.f32.mrb[0].mxu0
        %v6626 = vadd.f32 %v6422, %v6625
        %v6627 = vpop.f32.mrb[0].mxu0
        %v6628 = vpop.f32.mrb[0].mxu0
        %v6629 = vadd.f32 %v6422, %v6628
        %v6630 = vpop.f32.mrb[0].mxu0
        %6631 = vmatprep.mubr.bf16.mxu0 0
        %6632 = vmatmul.mubr.bf16.gmra.mrb[0].mxu0 %v6403
        %v6633 = vpop.f32.mrb[0].mxu0
        %v6634 = vadd.f32 %v6422, %v6633
        %v6635 = vpop.f32.mrb[0].mxu0
        %v6636 = vpop.f32.mrb[0].mxu0
        %v6637 = vadd.f32 %v6422, %v6636
        %v6638 = vpop.f32.mrb[0].mxu0
        %6639 = vmatprep.mubr.bf16.mxu0 0
        %6640 = vmatmul.mubr.bf16.gmra.mrb[0].mxu0 %v6404
        %v6641 = vpop.f32.mrb[0].mxu0
        %v6642 = vadd.f32 %v6422, %v6641
        %v6643 = vpop.f32.mrb[0].mxu0
        %v6644 = vpop.f32.mrb[0].mxu0
        %v6645 = vadd.f32 %v6422, %v6644
        %v6646 = vpop.f32.mrb[0].mxu0
        %6647 = vmatprep.mubr.bf16.mxu0 0
        %6648 = vmatmul.mubr.bf16.gmra.mrb[0].mxu0 %v6405
        %v6649 = vpop.f32.mrb[0].mxu0
        %v6650 = vadd.f32 %v6422, %v6649
        %v6651 = vpop.f32.mrb[0].mxu0
        %v6652 = vpop.f32.mrb[0].mxu0
        %v6653 = vadd.f32 %v6422, %v6652
        %v6654 = vpop.f32.mrb[0].mxu0
        %6655 = vmatprep.mubr.bf16.mxu0 0
        %6656 = vmatmul.mubr.bf16.gmra.mrb[0].mxu0 %v6406
        %v6657 = vpop.f32.mrb[0].mxu0
        %v6658 = vadd.f32 %v6422, %v6657
        %v6659 = vpop.f32.mrb[0].mxu0
        %v6660 = vpop.f32.mrb[0].mxu0
        %v6661 = vadd.f32 %v6422, %v6660
        %v6662 = vpop.f32.mrb[0].mxu0
        %6663 = vmatprep.mubr.bf16.mxu0 0
        %6664 = vmatmul.mubr.bf16.gmra.mrb[0].mxu0 %v6407
        %v6665 = vpop.f32.mrb[0].mxu0
        %v6666 = vadd.f32 %v6422, %v6665
        %v6667 = vpop.f32.mrb[0].mxu0
        %v6668 = vpop.f32.mrb[0].mxu0
        %v6669 = vadd.f32 %v6422, %v6668
        %v6670 = vpop.f32.mrb[0].mxu0
        %6671 = vmatprep.mubr.bf16.mxu0 0
        %6672 = vmatmul.mubr.bf16.gmra.mrb[0].mxu0 %v6408
        %v6673 = vpop.f32.mrb[0].mxu0
        %v6674 = vadd.f32 %v6422, %v6673
        %v6675 = vpop.f32.mrb[0].mxu0
        %v6676 = vpop.f32.mrb[0].mxu0
        %v6677 = vadd.f32 %v6422, %v6676
        %v6678 = vpop.f32.mrb[0].mxu0
        %6679 = vmatprep.mubr.bf16.mxu0 0
        %6680 = vmatmul.mubr.bf16.gmra.mrb[0].mxu0 %v6409
        %v6681 = vpop.f32.mrb[0].mxu0
        %v6682 = vadd.f32 %v6422, %v6681
        %v6683 = vpop.f32.mrb[0].mxu0
        %v6684 = vpop.f32.mrb[0].mxu0
        %v6685 = vadd.f32 %v6422, %v6684
        %v6686 = vpop.f32.mrb[0].mxu0
        %6687 = vmatprep.mubr.bf16.mxu0 0
        %6688 = vmatmul.mubr.bf16.gmra.mrb[0].mxu0 %v6410
        %v6689 = vpop.f32.mrb[0].mxu0
        %v6690 = vadd.f32 %v6422, %v6689
        %v6691 = vpop.f32.mrb[0].mxu0
        %v6692 = vpop.f32.mrb[0].mxu0
        %v6693 = vadd.f32 %v6422, %v6692
        %v6694 = vpop.f32.mrb[0].mxu0
        %6695 = vmatprep.mubr.bf16.mxu0 0
        %6696 = vmatmul.mubr.bf16.gmra.mrb[0].mxu0 %v6411
        %v6697 = vpop.f32.mrb[0].mxu0
        %v6698 = vadd.f32 %v6422, %v6697
        %v6699 = vpop.f32.mrb[0].mxu0
        %v6700 = vpop.f32.mrb[0].mxu0
        %v6701 = vadd.f32 %v6422, %v6700
        %v6702 = vpop.f32.mrb[0].mxu0
        %6703 = vmatprep.mubr.bf16.mxu0 0
        %6704 = vmatmul.mubr.bf16.gmra.mrb[0].mxu0 %v6412
        %v6705 = vpop.f32.mrb[0].mxu0
        %v6706 = vadd.f32 %v6422, %v6705
        %v6707 = vpop.f32.mrb[0].mxu0
        %v6708 = vpop.f32.mrb[0].mxu0
        %v6709 = vadd.f32 %v6422, %v6708
        %v6710 = vpop.f32.mrb[0].mxu0
        %6711 = vmatprep.mubr.bf16.mxu0 0
        %6712 = vmatmul.mubr.bf16.gmra.mrb[0].mxu0 %v6413
        %v6713 = vpop.f32.mrb[0].mxu0
        %v6714 = vadd.f32 %v6422, %v6713
        %v6715 = vpop.f32.mrb[0].mxu0
        %v6716 = vpop.f32.mrb[0].mxu0
        %v6717 = vadd.f32 %v6422, %v6716
        %v6718 = vpop.f32.mrb[0].mxu0
        %6719 = vmatprep.mubr.bf16.mxu0 0
        %6720 = vmatmul.mubr.bf16.gmra.mrb[0].mxu0 %v6414
        %v6721 = vpop.f32.mrb[0].mxu0
        %v6722 = vadd.f32 %v6422, %v6721
        %v6723 = vpop.f32.mrb[0].mxu0
        %v6724 = vpop.f32.mrb[0].mxu0
        %v6725 = vadd.f32 %v6422, %v6724
        %v6726 = vpop.f32.mrb[0].mxu0
        %6727 = vmatprep.mubr.bf16.mxu0 0
        %6728 = vmatmul.mubr.bf16.gmra.mrb[0].mxu0 %v6415
        %v6729 = vpop.f32.mrb[0].mxu0
        %v6730 = vadd.f32 %v6422, %v6729
        %v6731 = vpop.f32.mrb[0].mxu0
        %v6732 = vpop.f32.mrb[0].mxu0
        %v6733 = vadd.f32 %v6422, %v6732
        %v6734 = vpop.f32.mrb[0].mxu0
        %6735 = vmatprep.mubr.bf16.mxu0 0
        %6736 = vmatmul.mubr.bf16.gmra.mrb[0].mxu0 %v6416
        %v6737 = vpop.f32.mrb[0].mxu0
        %v6738 = vadd.f32 %v6422, %v6737
        %v6739 = vpop.f32.mrb[0].mxu0
        %v6740 = vpop.f32.mrb[0].mxu0
        %v6741 = vadd.f32 %v6422, %v6740
        %v6742 = vpop.f32.mrb[0].mxu0
        %6743 = vmatprep.mubr.bf16.mxu0 0
        %6744 = vmatmul.mubr.bf16.gmra.mrb[0].mxu0 %v6417
        %v6745 = vpop.f32.mrb[0].mxu0
        %v6746 = vadd.f32 %v6422, %v6745
        %v6747 = vpop.f32.mrb[0].mxu0
        %v6748 = vpop.f32.mrb[0].mxu0
        %v6749 = vadd.f32 %v6422, %v6748
        %v6750 = vpop.f32.mrb[0].mxu0
        %6751 = vmatprep.mubr.bf16.mxu0 0
        %6752 = vmatmul.mubr.bf16.gmra.mrb[0].mxu0 %v6418
        %v6753 = vpop.f32.mrb[0].mxu0
        %v6754 = vadd.f32 %v6422, %v6753
        %v6755 = vpop.f32.mrb[0].mxu0
        %v6756 = vpop.f32.mrb[0].mxu0
        %v6757 = vadd.f32 %v6422, %v6756
        %v6758 = vpop.f32.mrb[0].mxu0
        %6759 = vdwg.mxu0
        %v6760 = vlaneseq
        %v6761 = vshrl.u32 %v6760, 7
        %v6762 = vsub.s32 1, %v6761
        %v6763 = vrot.slane %v4420, %v6762
        %v6764 = vmul.f32 %v6763, %v6506
        %v6765 = vmul.f32 %v6763, %v6509
        %v6766 = vmul.f32 %v6763, %v6514
        %v6767 = vmul.f32 %v6763, %v6517
        %v6768 = vmul.f32 %v6763, %v6522
        %v6769 = vmul.f32 %v6763, %v6525
        %v6770 = vmul.f32 %v6763, %v6530
        %v6771 = vmul.f32 %v6763, %v6533
        %v6772 = vmul.f32 %v6763, %v6538
        %v6773 = vmul.f32 %v6763, %v6541
        %v6774 = vmul.f32 %v6763, %v6546
        %v6775 = vmul.f32 %v6763, %v6549
        %v6776 = vmul.f32 %v6763, %v6554
        %v6777 = vmul.f32 %v6763, %v6557
        %v6778 = vmul.f32 %v6763, %v6562
        %v6779 = vmul.f32 %v6763, %v6565
        %v6780 = vmul.f32 %v6763, %v6570
        %v6781 = vmul.f32 %v6763, %v6573
        %v6782 = vmul.f32 %v6763, %v6578
        %v6783 = vmul.f32 %v6763, %v6581
        %v6784 = vmul.f32 %v6763, %v6586
        %v6785 = vmul.f32 %v6763, %v6589
        %v6786 = vmul.f32 %v6763, %v6594
        %v6787 = vmul.f32 %v6763, %v6597
        %v6788 = vmul.f32 %v6763, %v6602
        %v6789 = vmul.f32 %v6763, %v6605
        %v6790 = vmul.f32 %v6763, %v6610
        %v6791 = vmul.f32 %v6763, %v6613
        %v6792 = vmul.f32 %v6763, %v6618
        %v6793 = vmul.f32 %v6763, %v6621
        %v6794 = vmul.f32 %v6763, %v6626
        %v6795 = vmul.f32 %v6763, %v6629
        %v6796 = vmul.f32 %v6763, %v6634
        %v6797 = vmul.f32 %v6763, %v6637
        %v6798 = vmul.f32 %v6763, %v6642
        %v6799 = vmul.f32 %v6763, %v6645
        %v6800 = vmul.f32 %v6763, %v6650
        %v6801 = vmul.f32 %v6763, %v6653
        %v6802 = vmul.f32 %v6763, %v6658
        %v6803 = vmul.f32 %v6763, %v6661
        %v6804 = vmul.f32 %v6763, %v6666
        %v6805 = vmul.f32 %v6763, %v6669
        %v6806 = vmul.f32 %v6763, %v6674
        %v6807 = vmul.f32 %v6763, %v6677
        %v6808 = vmul.f32 %v6763, %v6682
        %v6809 = vmul.f32 %v6763, %v6685
        %v6810 = vmul.f32 %v6763, %v6690
        %v6811 = vmul.f32 %v6763, %v6693
        %v6812 = vmul.f32 %v6763, %v6698
        %v6813 = vmul.f32 %v6763, %v6701
        %v6814 = vmul.f32 %v6763, %v6706
        %v6815 = vmul.f32 %v6763, %v6709
        %v6816 = vmul.f32 %v6763, %v6714
        %v6817 = vmul.f32 %v6763, %v6717
        %v6818 = vmul.f32 %v6763, %v6722
        %v6819 = vmul.f32 %v6763, %v6725
        %v6820 = vmul.f32 %v6763, %v6730
        %v6821 = vmul.f32 %v6763, %v6733
        %v6822 = vmul.f32 %v6763, %v6738
        %v6823 = vmul.f32 %v6763, %v6741
        %v6824 = vmul.f32 %v6763, %v6746
        %v6825 = vmul.f32 %v6763, %v6749
        %v6826 = vmul.f32 %v6763, %v6754
        %v6827 = vmul.f32 %v6763, %v6757
        %v6828 = vsub.f32 0.0, %v6764
        %v6829 = vsub.f32 0.0, %v6765
        %v6830 = vsub.f32 0.0, %v6766
        %v6831 = vsub.f32 0.0, %v6767
        %v6832 = vsub.f32 0.0, %v6768
        %v6833 = vsub.f32 0.0, %v6769
        %v6834 = vsub.f32 0.0, %v6770
        %v6835 = vsub.f32 0.0, %v6771
        %v6836 = vsub.f32 0.0, %v6772
        %v6837 = vsub.f32 0.0, %v6773
        %v6838 = vsub.f32 0.0, %v6774
        %v6839 = vsub.f32 0.0, %v6775
        %v6840 = vsub.f32 0.0, %v6776
        %v6841 = vsub.f32 0.0, %v6777
        %v6842 = vsub.f32 0.0, %v6778
        %v6843 = vsub.f32 0.0, %v6779
        %v6844 = vsub.f32 0.0, %v6780
        %v6845 = vsub.f32 0.0, %v6781
        %v6846 = vsub.f32 0.0, %v6782
        %v6847 = vsub.f32 0.0, %v6783
        %v6848 = vsub.f32 0.0, %v6784
        %v6849 = vsub.f32 0.0, %v6785
        %v6850 = vsub.f32 0.0, %v6786
        %v6851 = vsub.f32 0.0, %v6787
        %v6852 = vsub.f32 0.0, %v6788
        %v6853 = vsub.f32 0.0, %v6789
        %v6854 = vsub.f32 0.0, %v6790
        %v6855 = vsub.f32 0.0, %v6791
        %v6856 = vsub.f32 0.0, %v6792
        %v6857 = vsub.f32 0.0, %v6793
        %v6858 = vsub.f32 0.0, %v6794
        %v6859 = vsub.f32 0.0, %v6795
        %v6860 = vsub.f32 0.0, %v6796
        %v6861 = vsub.f32 0.0, %v6797
        %v6862 = vsub.f32 0.0, %v6798
        %v6863 = vsub.f32 0.0, %v6799
        %v6864 = vsub.f32 0.0, %v6800
        %v6865 = vsub.f32 0.0, %v6801
        %v6866 = vsub.f32 0.0, %v6802
        %v6867 = vsub.f32 0.0, %v6803
        %v6868 = vsub.f32 0.0, %v6804
        %v6869 = vsub.f32 0.0, %v6805
        %v6870 = vsub.f32 0.0, %v6806
        %v6871 = vsub.f32 0.0, %v6807
        %v6872 = vsub.f32 0.0, %v6808
        %v6873 = vsub.f32 0.0, %v6809
        %v6874 = vsub.f32 0.0, %v6810
        %v6875 = vsub.f32 0.0, %v6811
        %v6876 = vsub.f32 0.0, %v6812
        %v6877 = vsub.f32 0.0, %v6813
        %v6878 = vsub.f32 0.0, %v6814
        %v6879 = vsub.f32 0.0, %v6815
        %v6880 = vsub.f32 0.0, %v6816
        %v6881 = vsub.f32 0.0, %v6817
        %v6882 = vsub.f32 0.0, %v6818
        %v6883 = vsub.f32 0.0, %v6819
        %v6884 = vsub.f32 0.0, %v6820
        %v6885 = vsub.f32 0.0, %v6821
        %v6886 = vsub.f32 0.0, %v6822
        %v6887 = vsub.f32 0.0, %v6823
        %v6888 = vsub.f32 0.0, %v6824
        %v6889 = vsub.f32 0.0, %v6825
        %v6890 = vsub.f32 0.0, %v6826
        %v6891 = vsub.f32 0.0, %v6827
        %v6892 = vmul.f32 %v6828, 1.442695
        %v6893 = vpow.pop %v6892
        %v6894 = vmul.f32 %v6829, 1.442695
        %v6895 = vpow.pop %v6894
        %v6896 = vmul.f32 %v6830, 1.442695
        %v6897 = vpow.pop %v6896
        %v6898 = vmul.f32 %v6831, 1.442695
        %v6899 = vpow.pop %v6898
        %v6900 = vmul.f32 %v6832, 1.442695
        %v6901 = vpow.pop %v6900
        %v6902 = vmul.f32 %v6833, 1.442695
        %v6903 = vpow.pop %v6902
        %v6904 = vmul.f32 %v6834, 1.442695
        %v6905 = vpow.pop %v6904
        %v6906 = vmul.f32 %v6835, 1.442695
        %v6907 = vpow.pop %v6906
        %v6908 = vmul.f32 %v6836, 1.442695
        %v6909 = vpow.pop %v6908
        %v6910 = vmul.f32 %v6837, 1.442695
        %v6911 = vpow.pop %v6910
        %v6912 = vmul.f32 %v6838, 1.442695
        %v6913 = vpow.pop %v6912
        %v6914 = vmul.f32 %v6839, 1.442695
        %v6915 = vpow.pop %v6914
        %v6916 = vmul.f32 %v6840, 1.442695
        %v6917 = vpow.pop %v6916
        %v6918 = vmul.f32 %v6841, 1.442695
        %v6919 = vpow.pop %v6918
        %v6920 = vmul.f32 %v6842, 1.442695
        %v6921 = vpow.pop %v6920
        %v6922 = vmul.f32 %v6843, 1.442695
        %v6923 = vpow.pop %v6922
        %v6924 = vmul.f32 %v6844, 1.442695
        %v6925 = vpow.pop %v6924
        %v6926 = vmul.f32 %v6845, 1.442695
        %v6927 = vpow.pop %v6926
        %v6928 = vmul.f32 %v6846, 1.442695
        %v6929 = vpow.pop %v6928
        %v6930 = vmul.f32 %v6847, 1.442695
        %v6931 = vpow.pop %v6930
        %v6932 = vmul.f32 %v6848, 1.442695
        %v6933 = vpow.pop %v6932
        %v6934 = vmul.f32 %v6849, 1.442695
        %v6935 = vpow.pop %v6934
        %v6936 = vmul.f32 %v6850, 1.442695
        %v6937 = vpow.pop %v6936
        %v6938 = vmul.f32 %v6851, 1.442695
        %v6939 = vpow.pop %v6938
        %v6940 = vmul.f32 %v6852, 1.442695
        %v6941 = vpow.pop %v6940
        %v6942 = vmul.f32 %v6853, 1.442695
        %v6943 = vpow.pop %v6942
        %v6944 = vmul.f32 %v6854, 1.442695
        %v6945 = vpow.pop %v6944
        %v6946 = vmul.f32 %v6855, 1.442695
        %v6947 = vpow.pop %v6946
        %v6948 = vmul.f32 %v6856, 1.442695
        %v6949 = vpow.pop %v6948
        %v6950 = vmul.f32 %v6857, 1.442695
        %v6951 = vpow.pop %v6950
        %v6952 = vmul.f32 %v6858, 1.442695
        %v6953 = vpow.pop %v6952
        %v6954 = vmul.f32 %v6859, 1.442695
        %v6955 = vpow.pop %v6954
        %v6956 = vmul.f32 %v6860, 1.442695
        %v6957 = vpow.pop %v6956
        %v6958 = vmul.f32 %v6861, 1.442695
        %v6959 = vpow.pop %v6958
        %v6960 = vmul.f32 %v6862, 1.442695
        %v6961 = vpow.pop %v6960
        %v6962 = vmul.f32 %v6863, 1.442695
        %v6963 = vpow.pop %v6962
        %v6964 = vmul.f32 %v6864, 1.442695
        %v6965 = vpow.pop %v6964
        %v6966 = vmul.f32 %v6865, 1.442695
        %v6967 = vpow.pop %v6966
        %v6968 = vmul.f32 %v6866, 1.442695
        %v6969 = vpow.pop %v6968
        %v6970 = vmul.f32 %v6867, 1.442695
        %v6971 = vpow.pop %v6970
        %v6972 = vmul.f32 %v6868, 1.442695
        %v6973 = vpow.pop %v6972
        %v6974 = vmul.f32 %v6869, 1.442695
        %v6975 = vpow.pop %v6974
        %v6976 = vmul.f32 %v6870, 1.442695
        %v6977 = vpow.pop %v6976
        %v6978 = vmul.f32 %v6871, 1.442695
        %v6979 = vpow.pop %v6978
        %v6980 = vmul.f32 %v6872, 1.442695
        %v6981 = vpow.pop %v6980
        %v6982 = vmul.f32 %v6873, 1.442695
        %v6983 = vpow.pop %v6982
        %v6984 = vmul.f32 %v6874, 1.442695
        %v6985 = vpow.pop %v6984
        %v6986 = vmul.f32 %v6875, 1.442695
        %v6987 = vpow.pop %v6986
        %v6988 = vmul.f32 %v6876, 1.442695
        %v6989 = vpow.pop %v6988
        %v6990 = vmul.f32 %v6877, 1.442695
        %v6991 = vpow.pop %v6990
        %v6992 = vmul.f32 %v6878, 1.442695
        %v6993 = vpow.pop %v6992
        %v6994 = vmul.f32 %v6879, 1.442695
        %v6995 = vpow.pop %v6994
        %v6996 = vmul.f32 %v6880, 1.442695
        %v6997 = vpow.pop %v6996
        %v6998 = vmul.f32 %v6881, 1.442695
        %v6999 = vpow.pop %v6998
        %v7000 = vmul.f32 %v6882, 1.442695
        %v7001 = vpow.pop %v7000
        %v7002 = vmul.f32 %v6883, 1.442695
        %v7003 = vpow.pop %v7002
        %v7004 = vmul.f32 %v6884, 1.442695
        %v7005 = vpow.pop %v7004
        %v7006 = vmul.f32 %v6885, 1.442695
        %v7007 = vpow.pop %v7006
        %v7008 = vmul.f32 %v6886, 1.442695
        %v7009 = vpow.pop %v7008
        %v7010 = vmul.f32 %v6887, 1.442695
        %v7011 = vpow.pop %v7010
        %v7012 = vmul.f32 %v6888, 1.442695
        %v7013 = vpow.pop %v7012
        %v7014 = vmul.f32 %v6889, 1.442695
        %v7015 = vpow.pop %v7014
        %v7016 = vmul.f32 %v6890, 1.442695
        %v7017 = vpow.pop %v7016
        %v7018 = vmul.f32 %v6891, 1.442695
        %v7019 = vpow.pop %v7018
        %v7020 = vadd.f32 %v6893, 1.0
        %v7021 = vadd.f32 %v6895, 1.0
        %v7022 = vadd.f32 %v6897, 1.0
        %v7023 = vadd.f32 %v6899, 1.0
        %v7024 = vadd.f32 %v6901, 1.0
        %v7025 = vadd.f32 %v6903, 1.0
        %v7026 = vadd.f32 %v6905, 1.0
        %v7027 = vadd.f32 %v6907, 1.0
        %v7028 = vadd.f32 %v6909, 1.0
        %v7029 = vadd.f32 %v6911, 1.0
        %v7030 = vadd.f32 %v6913, 1.0
        %v7031 = vadd.f32 %v6915, 1.0
        %v7032 = vadd.f32 %v6917, 1.0
        %v7033 = vadd.f32 %v6919, 1.0
        %v7034 = vadd.f32 %v6921, 1.0
        %v7035 = vadd.f32 %v6923, 1.0
        %v7036 = vadd.f32 %v6925, 1.0
        %v7037 = vadd.f32 %v6927, 1.0
        %v7038 = vadd.f32 %v6929, 1.0
        %v7039 = vadd.f32 %v6931, 1.0
        %v7040 = vadd.f32 %v6933, 1.0
        %v7041 = vadd.f32 %v6935, 1.0
        %v7042 = vadd.f32 %v6937, 1.0
        %v7043 = vadd.f32 %v6939, 1.0
        %v7044 = vadd.f32 %v6941, 1.0
        %v7045 = vadd.f32 %v6943, 1.0
        %v7046 = vadd.f32 %v6945, 1.0
        %v7047 = vadd.f32 %v6947, 1.0
        %v7048 = vadd.f32 %v6949, 1.0
        %v7049 = vadd.f32 %v6951, 1.0
        %v7050 = vadd.f32 %v6953, 1.0
        %v7051 = vadd.f32 %v6955, 1.0
        %v7052 = vadd.f32 %v6957, 1.0
        %v7053 = vadd.f32 %v6959, 1.0
        %v7054 = vadd.f32 %v6961, 1.0
        %v7055 = vadd.f32 %v6963, 1.0
        %v7056 = vadd.f32 %v6965, 1.0
        %v7057 = vadd.f32 %v6967, 1.0
        %v7058 = vadd.f32 %v6969, 1.0
        %v7059 = vadd.f32 %v6971, 1.0
        %v7060 = vadd.f32 %v6973, 1.0
        %v7061 = vadd.f32 %v6975, 1.0
        %v7062 = vadd.f32 %v6977, 1.0
        %v7063 = vadd.f32 %v6979, 1.0
        %v7064 = vadd.f32 %v6981, 1.0
        %v7065 = vadd.f32 %v6983, 1.0
        %v7066 = vadd.f32 %v6985, 1.0
        %v7067 = vadd.f32 %v6987, 1.0
        %v7068 = vadd.f32 %v6989, 1.0
        %v7069 = vadd.f32 %v6991, 1.0
        %v7070 = vadd.f32 %v6993, 1.0
        %v7071 = vadd.f32 %v6995, 1.0
        %v7072 = vadd.f32 %v6997, 1.0
        %v7073 = vadd.f32 %v6999, 1.0
        %v7074 = vadd.f32 %v7001, 1.0
        %v7075 = vadd.f32 %v7003, 1.0
        %v7076 = vadd.f32 %v7005, 1.0
        %v7077 = vadd.f32 %v7007, 1.0
        %v7078 = vadd.f32 %v7009, 1.0
        %v7079 = vadd.f32 %v7011, 1.0
        %v7080 = vadd.f32 %v7013, 1.0
        %v7081 = vadd.f32 %v7015, 1.0
        %v7082 = vadd.f32 %v7017, 1.0
        %v7083 = vadd.f32 %v7019, 1.0
        %v7084 = vrcp.pop %v7020
        %v7085 = vrcp.pop %v7021
        %v7086 = vrcp.pop %v7022
        %v7087 = vrcp.pop %v7023
        %v7088 = vrcp.pop %v7024
        %v7089 = vrcp.pop %v7025
        %v7090 = vrcp.pop %v7026
        %v7091 = vrcp.pop %v7027
        %v7092 = vrcp.pop %v7028
        %v7093 = vrcp.pop %v7029
        %v7094 = vrcp.pop %v7030
        %v7095 = vrcp.pop %v7031
        %v7096 = vrcp.pop %v7032
        %v7097 = vrcp.pop %v7033
        %v7098 = vrcp.pop %v7034
        %v7099 = vrcp.pop %v7035
        %v7100 = vrcp.pop %v7036
        %v7101 = vrcp.pop %v7037
        %v7102 = vrcp.pop %v7038
        %v7103 = vrcp.pop %v7039
        %v7104 = vrcp.pop %v7040
        %v7105 = vrcp.pop %v7041
        %v7106 = vrcp.pop %v7042
        %v7107 = vrcp.pop %v7043
        %v7108 = vrcp.pop %v7044
        %v7109 = vrcp.pop %v7045
        %v7110 = vrcp.pop %v7046
        %v7111 = vrcp.pop %v7047
        %v7112 = vrcp.pop %v7048
        %v7113 = vrcp.pop %v7049
        %v7114 = vrcp.pop %v7050
        %v7115 = vrcp.pop %v7051
        %v7116 = vrcp.pop %v7052
        %v7117 = vrcp.pop %v7053
        %v7118 = vrcp.pop %v7054
        %v7119 = vrcp.pop %v7055
        %v7120 = vrcp.pop %v7056
        %v7121 = vrcp.pop %v7057
        %v7122 = vrcp.pop %v7058
        %v7123 = vrcp.pop %v7059
        %v7124 = vrcp.pop %v7060
        %v7125 = vrcp.pop %v7061
        %v7126 = vrcp.pop %v7062
        %v7127 = vrcp.pop %v7063
        %v7128 = vrcp.pop %v7064
        %v7129 = vrcp.pop %v7065
        %v7130 = vrcp.pop %v7066
        %v7131 = vrcp.pop %v7067
        %v7132 = vrcp.pop %v7068
        %v7133 = vrcp.pop %v7069
        %v7134 = vrcp.pop %v7070
        %v7135 = vrcp.pop %v7071
        %v7136 = vrcp.pop %v7072
        %v7137 = vrcp.pop %v7073
        %v7138 = vrcp.pop %v7074
        %v7139 = vrcp.pop %v7075
        %v7140 = vrcp.pop %v7076
        %v7141 = vrcp.pop %v7077
        %v7142 = vrcp.pop %v7078
        %v7143 = vrcp.pop %v7079
        %v7144 = vrcp.pop %v7080
        %v7145 = vrcp.pop %v7081
        %v7146 = vrcp.pop %v7082
        %v7147 = vrcp.pop %v7083
        %v7148 = vlaneseq
        %v7149 = vshrl.u32 %v7148, 7
        %v7150 = vsub.s32 1, %v7149
        %v7151 = vrot.slane %v4419, %v7150
        %v7152 = vmul.f32 %v7151, %v6506
        %v7153 = vmul.f32 %v7151, %v6509
        %v7154 = vmul.f32 %v7151, %v6514
        %v7155 = vmul.f32 %v7151, %v6517
        %v7156 = vmul.f32 %v7151, %v6522
        %v7157 = vmul.f32 %v7151, %v6525
        %v7158 = vmul.f32 %v7151, %v6530
        %v7159 = vmul.f32 %v7151, %v6533
        %v7160 = vmul.f32 %v7151, %v6538
        %v7161 = vmul.f32 %v7151, %v6541
        %v7162 = vmul.f32 %v7151, %v6546
        %v7163 = vmul.f32 %v7151, %v6549
        %v7164 = vmul.f32 %v7151, %v6554
        %v7165 = vmul.f32 %v7151, %v6557
        %v7166 = vmul.f32 %v7151, %v6562
        %v7167 = vmul.f32 %v7151, %v6565
        %v7168 = vmul.f32 %v7151, %v6570
        %v7169 = vmul.f32 %v7151, %v6573
        %v7170 = vmul.f32 %v7151, %v6578
        %v7171 = vmul.f32 %v7151, %v6581
        %v7172 = vmul.f32 %v7151, %v6586
        %v7173 = vmul.f32 %v7151, %v6589
        %v7174 = vmul.f32 %v7151, %v6594
        %v7175 = vmul.f32 %v7151, %v6597
        %v7176 = vmul.f32 %v7151, %v6602
        %v7177 = vmul.f32 %v7151, %v6605
        %v7178 = vmul.f32 %v7151, %v6610
        %v7179 = vmul.f32 %v7151, %v6613
        %v7180 = vmul.f32 %v7151, %v6618
        %v7181 = vmul.f32 %v7151, %v6621
        %v7182 = vmul.f32 %v7151, %v6626
        %v7183 = vmul.f32 %v7151, %v6629
        %v7184 = vmul.f32 %v7151, %v6634
        %v7185 = vmul.f32 %v7151, %v6637
        %v7186 = vmul.f32 %v7151, %v6642
        %v7187 = vmul.f32 %v7151, %v6645
        %v7188 = vmul.f32 %v7151, %v6650
        %v7189 = vmul.f32 %v7151, %v6653
        %v7190 = vmul.f32 %v7151, %v6658
        %v7191 = vmul.f32 %v7151, %v6661
        %v7192 = vmul.f32 %v7151, %v6666
        %v7193 = vmul.f32 %v7151, %v6669
        %v7194 = vmul.f32 %v7151, %v6674
        %v7195 = vmul.f32 %v7151, %v6677
        %v7196 = vmul.f32 %v7151, %v6682
        %v7197 = vmul.f32 %v7151, %v6685
        %v7198 = vmul.f32 %v7151, %v6690
        %v7199 = vmul.f32 %v7151, %v6693
        %v7200 = vmul.f32 %v7151, %v6698
        %v7201 = vmul.f32 %v7151, %v6701
        %v7202 = vmul.f32 %v7151, %v6706
        %v7203 = vmul.f32 %v7151, %v6709
        %v7204 = vmul.f32 %v7151, %v6714
        %v7205 = vmul.f32 %v7151, %v6717
        %v7206 = vmul.f32 %v7151, %v6722
        %v7207 = vmul.f32 %v7151, %v6725
        %v7208 = vmul.f32 %v7151, %v6730
        %v7209 = vmul.f32 %v7151, %v6733
        %v7210 = vmul.f32 %v7151, %v6738
        %v7211 = vmul.f32 %v7151, %v6741
        %v7212 = vmul.f32 %v7151, %v6746
        %v7213 = vmul.f32 %v7151, %v6749
        %v7214 = vmul.f32 %v7151, %v6754
        %v7215 = vmul.f32 %v7151, %v6757
        %v7216 = vmul.f32 %v7152, %v7084
        %v7217 = vmul.f32 %v7153, %v7085
        %v7218 = vmul.f32 %v7154, %v7086
        %v7219 = vmul.f32 %v7155, %v7087
        %v7220 = vmul.f32 %v7156, %v7088
        %v7221 = vmul.f32 %v7157, %v7089
        %v7222 = vmul.f32 %v7158, %v7090
        %v7223 = vmul.f32 %v7159, %v7091
        %v7224 = vmul.f32 %v7160, %v7092
        %v7225 = vmul.f32 %v7161, %v7093
        %v7226 = vmul.f32 %v7162, %v7094
        %v7227 = vmul.f32 %v7163, %v7095
        %v7228 = vmul.f32 %v7164, %v7096
        %v7229 = vmul.f32 %v7165, %v7097
        %v7230 = vmul.f32 %v7166, %v7098
        %v7231 = vmul.f32 %v7167, %v7099
        %v7232 = vmul.f32 %v7168, %v7100
        %v7233 = vmul.f32 %v7169, %v7101
        %v7234 = vmul.f32 %v7170, %v7102
        %v7235 = vmul.f32 %v7171, %v7103
        %v7236 = vmul.f32 %v7172, %v7104
        %v7237 = vmul.f32 %v7173, %v7105
        %v7238 = vmul.f32 %v7174, %v7106
        %v7239 = vmul.f32 %v7175, %v7107
        %v7240 = vmul.f32 %v7176, %v7108
        %v7241 = vmul.f32 %v7177, %v7109
        %v7242 = vmul.f32 %v7178, %v7110
        %v7243 = vmul.f32 %v7179, %v7111
        %v7244 = vmul.f32 %v7180, %v7112
        %v7245 = vmul.f32 %v7181, %v7113
        %v7246 = vmul.f32 %v7182, %v7114
        %v7247 = vmul.f32 %v7183, %v7115
        %v7248 = vmul.f32 %v7184, %v7116
        %v7249 = vmul.f32 %v7185, %v7117
        %v7250 = vmul.f32 %v7186, %v7118
        %v7251 = vmul.f32 %v7187, %v7119
        %v7252 = vmul.f32 %v7188, %v7120
        %v7253 = vmul.f32 %v7189, %v7121
        %v7254 = vmul.f32 %v7190, %v7122
        %v7255 = vmul.f32 %v7191, %v7123
        %v7256 = vmul.f32 %v7192, %v7124
        %v7257 = vmul.f32 %v7193, %v7125
        %v7258 = vmul.f32 %v7194, %v7126
        %v7259 = vmul.f32 %v7195, %v7127
        %v7260 = vmul.f32 %v7196, %v7128
        %v7261 = vmul.f32 %v7197, %v7129
        %v7262 = vmul.f32 %v7198, %v7130
        %v7263 = vmul.f32 %v7199, %v7131
        %v7264 = vmul.f32 %v7200, %v7132
        %v7265 = vmul.f32 %v7201, %v7133
        %v7266 = vmul.f32 %v7202, %v7134
        %v7267 = vmul.f32 %v7203, %v7135
        %v7268 = vmul.f32 %v7204, %v7136
        %v7269 = vmul.f32 %v7205, %v7137
        %v7270 = vmul.f32 %v7206, %v7138
        %v7271 = vmul.f32 %v7207, %v7139
        %v7272 = vmul.f32 %v7208, %v7140
        %v7273 = vmul.f32 %v7209, %v7141
        %v7274 = vmul.f32 %v7210, %v7142
        %v7275 = vmul.f32 %v7211, %v7143
        %v7276 = vmul.f32 %v7212, %v7144
        %v7277 = vmul.f32 %v7213, %v7145
        %v7278 = vmul.f32 %v7214, %v7146
        %v7279 = vmul.f32 %v7215, %v7147
        %s7280 = scalar_lea.vmem %s3, 128
        %v7281 = vld [vmem:[%s7280] sm:$0xf]
        %v7282 = vld [vmem:[%s7280 + $0x4] sm:$0xf]
        %v7283 = vld [vmem:[%s7280 + $0x8] sm:$0xf]
        %v7284 = vld [vmem:[%s7280 + $0xc] sm:$0xf]
        %v7285 = vld [vmem:[%s7280 + $0x10] sm:$0xf]
        %v7286 = vld [vmem:[%s7280 + $0x14] sm:$0xf]
        %v7287 = vld [vmem:[%s7280 + $0x18] sm:$0xf]
        %v7288 = vld [vmem:[%s7280 + $0x1c] sm:$0xf]
        %v7289 = vld [vmem:[%s7280 + $0x20] sm:$0xf]
        %v7290 = vld [vmem:[%s7280 + $0x24] sm:$0xf]
        %v7291 = vld [vmem:[%s7280 + $0x28] sm:$0xf]
        %v7292 = vld [vmem:[%s7280 + $0x2c] sm:$0xf]
        %v7293 = vld [vmem:[%s7280 + $0x30] sm:$0xf]
        %v7294 = vld [vmem:[%s7280 + $0x34] sm:$0xf]
        %v7295 = vld [vmem:[%s7280 + $0x38] sm:$0xf]
        %v7296 = vld [vmem:[%s7280 + $0x3c] sm:$0xf]
        %v7297 = vlaneseq
        %v7298 = vshrl.u32 %v7297, 7
        %v7299 = vsub.s32 2, %v7298
        %v7300 = vrot.slane %v4418, %v7299
        %v7301 = vmul.f32 %v7300, %v7216
        %v7302 = vmul.f32 %v7300, %v7217
        %v7303 = vmul.f32 %v7300, %v7218
        %v7304 = vmul.f32 %v7300, %v7219
        %v7305 = vmul.f32 %v7300, %v7220
        %v7306 = vmul.f32 %v7300, %v7221
        %v7307 = vmul.f32 %v7300, %v7222
        %v7308 = vmul.f32 %v7300, %v7223
        %v7309 = vmul.f32 %v7300, %v7224
        %v7310 = vmul.f32 %v7300, %v7225
        %v7311 = vmul.f32 %v7300, %v7226
        %v7312 = vmul.f32 %v7300, %v7227
        %v7313 = vmul.f32 %v7300, %v7228
        %v7314 = vmul.f32 %v7300, %v7229
        %v7315 = vmul.f32 %v7300, %v7230
        %v7316 = vmul.f32 %v7300, %v7231
        %v7317 = vmul.f32 %v7300, %v7232
        %v7318 = vmul.f32 %v7300, %v7233
        %v7319 = vmul.f32 %v7300, %v7234
        %v7320 = vmul.f32 %v7300, %v7235
        %v7321 = vmul.f32 %v7300, %v7236
        %v7322 = vmul.f32 %v7300, %v7237
        %v7323 = vmul.f32 %v7300, %v7238
        %v7324 = vmul.f32 %v7300, %v7239
        %v7325 = vmul.f32 %v7300, %v7240
        %v7326 = vmul.f32 %v7300, %v7241
        %v7327 = vmul.f32 %v7300, %v7242
        %v7328 = vmul.f32 %v7300, %v7243
        %v7329 = vmul.f32 %v7300, %v7244
        %v7330 = vmul.f32 %v7300, %v7245
        %v7331 = vmul.f32 %v7300, %v7246
        %v7332 = vmul.f32 %v7300, %v7247
        %v7333 = vmul.f32 %v7300, %v7248
        %v7334 = vmul.f32 %v7300, %v7249
        %v7335 = vmul.f32 %v7300, %v7250
        %v7336 = vmul.f32 %v7300, %v7251
        %v7337 = vmul.f32 %v7300, %v7252
        %v7338 = vmul.f32 %v7300, %v7253
        %v7339 = vmul.f32 %v7300, %v7254
        %v7340 = vmul.f32 %v7300, %v7255
        %v7341 = vmul.f32 %v7300, %v7256
        %v7342 = vmul.f32 %v7300, %v7257
        %v7343 = vmul.f32 %v7300, %v7258
        %v7344 = vmul.f32 %v7300, %v7259
        %v7345 = vmul.f32 %v7300, %v7260
        %v7346 = vmul.f32 %v7300, %v7261
        %v7347 = vmul.f32 %v7300, %v7262
        %v7348 = vmul.f32 %v7300, %v7263
        %v7349 = vmul.f32 %v7300, %v7264
        %v7350 = vmul.f32 %v7300, %v7265
        %v7351 = vmul.f32 %v7300, %v7266
        %v7352 = vmul.f32 %v7300, %v7267
        %v7353 = vmul.f32 %v7300, %v7268
        %v7354 = vmul.f32 %v7300, %v7269
        %v7355 = vmul.f32 %v7300, %v7270
        %v7356 = vmul.f32 %v7300, %v7271
        %v7357 = vmul.f32 %v7300, %v7272
        %v7358 = vmul.f32 %v7300, %v7273
        %v7359 = vmul.f32 %v7300, %v7274
        %v7360 = vmul.f32 %v7300, %v7275
        %v7361 = vmul.f32 %v7300, %v7276
        %v7362 = vmul.f32 %v7300, %v7277
        %v7363 = vmul.f32 %v7300, %v7278
        %v7364 = vmul.f32 %v7300, %v7279
        %v7365 = vsub.f32 0.0, %v7301
        %v7366 = vsub.f32 0.0, %v7302
        %v7367 = vsub.f32 0.0, %v7303
        %v7368 = vsub.f32 0.0, %v7304
        %v7369 = vsub.f32 0.0, %v7305
        %v7370 = vsub.f32 0.0, %v7306
        %v7371 = vsub.f32 0.0, %v7307
        %v7372 = vsub.f32 0.0, %v7308
        %v7373 = vsub.f32 0.0, %v7309
        %v7374 = vsub.f32 0.0, %v7310
        %v7375 = vsub.f32 0.0, %v7311
        %v7376 = vsub.f32 0.0, %v7312
        %v7377 = vsub.f32 0.0, %v7313
        %v7378 = vsub.f32 0.0, %v7314
        %v7379 = vsub.f32 0.0, %v7315
        %v7380 = vsub.f32 0.0, %v7316
        %v7381 = vsub.f32 0.0, %v7317
        %v7382 = vsub.f32 0.0, %v7318
        %v7383 = vsub.f32 0.0, %v7319
        %v7384 = vsub.f32 0.0, %v7320
        %v7385 = vsub.f32 0.0, %v7321
        %v7386 = vsub.f32 0.0, %v7322
        %v7387 = vsub.f32 0.0, %v7323
        %v7388 = vsub.f32 0.0, %v7324
        %v7389 = vsub.f32 0.0, %v7325
        %v7390 = vsub.f32 0.0, %v7326
        %v7391 = vsub.f32 0.0, %v7327
        %v7392 = vsub.f32 0.0, %v7328
        %v7393 = vsub.f32 0.0, %v7329
        %v7394 = vsub.f32 0.0, %v7330
        %v7395 = vsub.f32 0.0, %v7331
        %v7396 = vsub.f32 0.0, %v7332
        %v7397 = vsub.f32 0.0, %v7333
        %v7398 = vsub.f32 0.0, %v7334
        %v7399 = vsub.f32 0.0, %v7335
        %v7400 = vsub.f32 0.0, %v7336
        %v7401 = vsub.f32 0.0, %v7337
        %v7402 = vsub.f32 0.0, %v7338
        %v7403 = vsub.f32 0.0, %v7339
        %v7404 = vsub.f32 0.0, %v7340
        %v7405 = vsub.f32 0.0, %v7341
        %v7406 = vsub.f32 0.0, %v7342
        %v7407 = vsub.f32 0.0, %v7343
        %v7408 = vsub.f32 0.0, %v7344
        %v7409 = vsub.f32 0.0, %v7345
        %v7410 = vsub.f32 0.0, %v7346
        %v7411 = vsub.f32 0.0, %v7347
        %v7412 = vsub.f32 0.0, %v7348
        %v7413 = vsub.f32 0.0, %v7349
        %v7414 = vsub.f32 0.0, %v7350
        %v7415 = vsub.f32 0.0, %v7351
        %v7416 = vsub.f32 0.0, %v7352
        %v7417 = vsub.f32 0.0, %v7353
        %v7418 = vsub.f32 0.0, %v7354
        %v7419 = vsub.f32 0.0, %v7355
        %v7420 = vsub.f32 0.0, %v7356
        %v7421 = vsub.f32 0.0, %v7357
        %v7422 = vsub.f32 0.0, %v7358
        %v7423 = vsub.f32 0.0, %v7359
        %v7424 = vsub.f32 0.0, %v7360
        %v7425 = vsub.f32 0.0, %v7361
        %v7426 = vsub.f32 0.0, %v7362
        %v7427 = vsub.f32 0.0, %v7363
        %v7428 = vsub.f32 0.0, %v7364
        %v7429 = vmul.f32 %v7365, 1.442695
        %v7430 = vpow.pop %v7429
        %v7431 = vmul.f32 %v7366, 1.442695
        %v7432 = vpow.pop %v7431
        %v7433 = vmul.f32 %v7367, 1.442695
        %v7434 = vpow.pop %v7433
        %v7435 = vmul.f32 %v7368, 1.442695
        %v7436 = vpow.pop %v7435
        %v7437 = vmul.f32 %v7369, 1.442695
        %v7438 = vpow.pop %v7437
        %v7439 = vmul.f32 %v7370, 1.442695
        %v7440 = vpow.pop %v7439
        %v7441 = vmul.f32 %v7371, 1.442695
        %v7442 = vpow.pop %v7441
        %v7443 = vmul.f32 %v7372, 1.442695
        %v7444 = vpow.pop %v7443
        %v7445 = vmul.f32 %v7373, 1.442695
        %v7446 = vpow.pop %v7445
        %v7447 = vmul.f32 %v7374, 1.442695
        %v7448 = vpow.pop %v7447
        %v7449 = vmul.f32 %v7375, 1.442695
        %v7450 = vpow.pop %v7449
        %v7451 = vmul.f32 %v7376, 1.442695
        %v7452 = vpow.pop %v7451
        %v7453 = vmul.f32 %v7377, 1.442695
        %v7454 = vpow.pop %v7453
        %v7455 = vmul.f32 %v7378, 1.442695
        %v7456 = vpow.pop %v7455
        %v7457 = vmul.f32 %v7379, 1.442695
        %v7458 = vpow.pop %v7457
        %v7459 = vmul.f32 %v7380, 1.442695
        %v7460 = vpow.pop %v7459
        %v7461 = vmul.f32 %v7381, 1.442695
        %v7462 = vpow.pop %v7461
        %v7463 = vmul.f32 %v7382, 1.442695
        %v7464 = vpow.pop %v7463
        %v7465 = vmul.f32 %v7383, 1.442695
        %v7466 = vpow.pop %v7465
        %v7467 = vmul.f32 %v7384, 1.442695
        %v7468 = vpow.pop %v7467
        %v7469 = vmul.f32 %v7385, 1.442695
        %v7470 = vpow.pop %v7469
        %v7471 = vmul.f32 %v7386, 1.442695
        %v7472 = vpow.pop %v7471
        %v7473 = vmul.f32 %v7387, 1.442695
        %v7474 = vpow.pop %v7473
        %v7475 = vmul.f32 %v7388, 1.442695
        %v7476 = vpow.pop %v7475
        %v7477 = vmul.f32 %v7389, 1.442695
        %v7478 = vpow.pop %v7477
        %v7479 = vmul.f32 %v7390, 1.442695
        %v7480 = vpow.pop %v7479
        %v7481 = vmul.f32 %v7391, 1.442695
        %v7482 = vpow.pop %v7481
        %v7483 = vmul.f32 %v7392, 1.442695
        %v7484 = vpow.pop %v7483
        %v7485 = vmul.f32 %v7393, 1.442695
        %v7486 = vpow.pop %v7485
        %v7487 = vmul.f32 %v7394, 1.442695
        %v7488 = vpow.pop %v7487
        %v7489 = vmul.f32 %v7395, 1.442695
        %v7490 = vpow.pop %v7489
        %v7491 = vmul.f32 %v7396, 1.442695
        %v7492 = vpow.pop %v7491
        %v7493 = vmul.f32 %v7397, 1.442695
        %v7494 = vpow.pop %v7493
        %v7495 = vmul.f32 %v7398, 1.442695
        %v7496 = vpow.pop %v7495
        %v7497 = vmul.f32 %v7399, 1.442695
        %v7498 = vpow.pop %v7497
        %v7499 = vmul.f32 %v7400, 1.442695
        %v7500 = vpow.pop %v7499
        %v7501 = vmul.f32 %v7401, 1.442695
        %v7502 = vpow.pop %v7501
        %v7503 = vmul.f32 %v7402, 1.442695
        %v7504 = vpow.pop %v7503
        %v7505 = vmul.f32 %v7403, 1.442695
        %v7506 = vpow.pop %v7505
        %v7507 = vmul.f32 %v7404, 1.442695
        %v7508 = vpow.pop %v7507
        %v7509 = vmul.f32 %v7405, 1.442695
        %v7510 = vpow.pop %v7509
        %v7511 = vmul.f32 %v7406, 1.442695
        %v7512 = vpow.pop %v7511
        %v7513 = vmul.f32 %v7407, 1.442695
        %v7514 = vpow.pop %v7513
        %v7515 = vmul.f32 %v7408, 1.442695
        %v7516 = vpow.pop %v7515
        %v7517 = vmul.f32 %v7409, 1.442695
        %v7518 = vpow.pop %v7517
        %v7519 = vmul.f32 %v7410, 1.442695
        %v7520 = vpow.pop %v7519
        %v7521 = vmul.f32 %v7411, 1.442695
        %v7522 = vpow.pop %v7521
        %v7523 = vmul.f32 %v7412, 1.442695
        %v7524 = vpow.pop %v7523
        %v7525 = vmul.f32 %v7413, 1.442695
        %v7526 = vpow.pop %v7525
        %v7527 = vmul.f32 %v7414, 1.442695
        %v7528 = vpow.pop %v7527
        %v7529 = vmul.f32 %v7415, 1.442695
        %v7530 = vpow.pop %v7529
        %v7531 = vmul.f32 %v7416, 1.442695
        %v7532 = vpow.pop %v7531
        %v7533 = vmul.f32 %v7417, 1.442695
        %v7534 = vpow.pop %v7533
        %v7535 = vmul.f32 %v7418, 1.442695
        %v7536 = vpow.pop %v7535
        %v7537 = vmul.f32 %v7419, 1.442695
        %v7538 = vpow.pop %v7537
        %v7539 = vmul.f32 %v7420, 1.442695
        %v7540 = vpow.pop %v7539
        %v7541 = vmul.f32 %v7421, 1.442695
        %v7542 = vpow.pop %v7541
        %v7543 = vmul.f32 %v7422, 1.442695
        %v7544 = vpow.pop %v7543
        %v7545 = vmul.f32 %v7423, 1.442695
        %v7546 = vpow.pop %v7545
        %v7547 = vmul.f32 %v7424, 1.442695
        %v7548 = vpow.pop %v7547
        %v7549 = vmul.f32 %v7425, 1.442695
        %v7550 = vpow.pop %v7549
        %v7551 = vmul.f32 %v7426, 1.442695
        %v7552 = vpow.pop %v7551
        %v7553 = vmul.f32 %v7427, 1.442695
        %v7554 = vpow.pop %v7553
        %v7555 = vmul.f32 %v7428, 1.442695
        %v7556 = vpow.pop %v7555
        %v7557 = vadd.f32 %v7430, 1.0
        %v7558 = vadd.f32 %v7432, 1.0
        %v7559 = vadd.f32 %v7434, 1.0
        %v7560 = vadd.f32 %v7436, 1.0
        %v7561 = vadd.f32 %v7438, 1.0
        %v7562 = vadd.f32 %v7440, 1.0
        %v7563 = vadd.f32 %v7442, 1.0
        %v7564 = vadd.f32 %v7444, 1.0
        %v7565 = vadd.f32 %v7446, 1.0
        %v7566 = vadd.f32 %v7448, 1.0
        %v7567 = vadd.f32 %v7450, 1.0
        %v7568 = vadd.f32 %v7452, 1.0
        %v7569 = vadd.f32 %v7454, 1.0
        %v7570 = vadd.f32 %v7456, 1.0
        %v7571 = vadd.f32 %v7458, 1.0
        %v7572 = vadd.f32 %v7460, 1.0
        %v7573 = vadd.f32 %v7462, 1.0
        %v7574 = vadd.f32 %v7464, 1.0
        %v7575 = vadd.f32 %v7466, 1.0
        %v7576 = vadd.f32 %v7468, 1.0
        %v7577 = vadd.f32 %v7470, 1.0
        %v7578 = vadd.f32 %v7472, 1.0
        %v7579 = vadd.f32 %v7474, 1.0
        %v7580 = vadd.f32 %v7476, 1.0
        %v7581 = vadd.f32 %v7478, 1.0
        %v7582 = vadd.f32 %v7480, 1.0
        %v7583 = vadd.f32 %v7482, 1.0
        %v7584 = vadd.f32 %v7484, 1.0
        %v7585 = vadd.f32 %v7486, 1.0
        %v7586 = vadd.f32 %v7488, 1.0
        %v7587 = vadd.f32 %v7490, 1.0
        %v7588 = vadd.f32 %v7492, 1.0
        %v7589 = vadd.f32 %v7494, 1.0
        %v7590 = vadd.f32 %v7496, 1.0
        %v7591 = vadd.f32 %v7498, 1.0
        %v7592 = vadd.f32 %v7500, 1.0
        %v7593 = vadd.f32 %v7502, 1.0
        %v7594 = vadd.f32 %v7504, 1.0
        %v7595 = vadd.f32 %v7506, 1.0
        %v7596 = vadd.f32 %v7508, 1.0
        %v7597 = vadd.f32 %v7510, 1.0
        %v7598 = vadd.f32 %v7512, 1.0
        %v7599 = vadd.f32 %v7514, 1.0
        %v7600 = vadd.f32 %v7516, 1.0
        %v7601 = vadd.f32 %v7518, 1.0
        %v7602 = vadd.f32 %v7520, 1.0
        %v7603 = vadd.f32 %v7522, 1.0
        %v7604 = vadd.f32 %v7524, 1.0
        %v7605 = vadd.f32 %v7526, 1.0
        %v7606 = vadd.f32 %v7528, 1.0
        %v7607 = vadd.f32 %v7530, 1.0
        %v7608 = vadd.f32 %v7532, 1.0
        %v7609 = vadd.f32 %v7534, 1.0
        %v7610 = vadd.f32 %v7536, 1.0
        %v7611 = vadd.f32 %v7538, 1.0
        %v7612 = vadd.f32 %v7540, 1.0
        %v7613 = vadd.f32 %v7542, 1.0
        %v7614 = vadd.f32 %v7544, 1.0
        %v7615 = vadd.f32 %v7546, 1.0
        %v7616 = vadd.f32 %v7548, 1.0
        %v7617 = vadd.f32 %v7550, 1.0
        %v7618 = vadd.f32 %v7552, 1.0
        %v7619 = vadd.f32 %v7554, 1.0
        %v7620 = vadd.f32 %v7556, 1.0
        %v7621 = vrcp.pop %v7557
        %v7622 = vrcp.pop %v7558
        %v7623 = vrcp.pop %v7559
        %v7624 = vrcp.pop %v7560
        %v7625 = vrcp.pop %v7561
        %v7626 = vrcp.pop %v7562
        %v7627 = vrcp.pop %v7563
        %v7628 = vrcp.pop %v7564
        %v7629 = vrcp.pop %v7565
        %v7630 = vrcp.pop %v7566
        %v7631 = vrcp.pop %v7567
        %v7632 = vrcp.pop %v7568
        %v7633 = vrcp.pop %v7569
        %v7634 = vrcp.pop %v7570
        %v7635 = vrcp.pop %v7571
        %v7636 = vrcp.pop %v7572
        %v7637 = vrcp.pop %v7573
        %v7638 = vrcp.pop %v7574
        %v7639 = vrcp.pop %v7575
        %v7640 = vrcp.pop %v7576
        %v7641 = vrcp.pop %v7577
        %v7642 = vrcp.pop %v7578
        %v7643 = vrcp.pop %v7579
        %v7644 = vrcp.pop %v7580
        %v7645 = vrcp.pop %v7581
        %v7646 = vrcp.pop %v7582
        %v7647 = vrcp.pop %v7583
        %v7648 = vrcp.pop %v7584
        %v7649 = vrcp.pop %v7585
        %v7650 = vrcp.pop %v7586
        %v7651 = vrcp.pop %v7587
        %v7652 = vrcp.pop %v7588
        %v7653 = vrcp.pop %v7589
        %v7654 = vrcp.pop %v7590
        %v7655 = vrcp.pop %v7591
        %v7656 = vrcp.pop %v7592
        %v7657 = vrcp.pop %v7593
        %v7658 = vrcp.pop %v7594
        %v7659 = vrcp.pop %v7595
        %v7660 = vrcp.pop %v7596
        %v7661 = vrcp.pop %v7597
        %v7662 = vrcp.pop %v7598
        %v7663 = vrcp.pop %v7599
        %v7664 = vrcp.pop %v7600
        %v7665 = vrcp.pop %v7601
        %v7666 = vrcp.pop %v7602
        %v7667 = vrcp.pop %v7603
        %v7668 = vrcp.pop %v7604
        %v7669 = vrcp.pop %v7605
        %v7670 = vrcp.pop %v7606
        %v7671 = vrcp.pop %v7607
        %v7672 = vrcp.pop %v7608
        %v7673 = vrcp.pop %v7609
        %v7674 = vrcp.pop %v7610
        %v7675 = vrcp.pop %v7611
        %v7676 = vrcp.pop %v7612
        %v7677 = vrcp.pop %v7613
        %v7678 = vrcp.pop %v7614
        %v7679 = vrcp.pop %v7615
        %v7680 = vrcp.pop %v7616
        %v7681 = vrcp.pop %v7617
        %v7682 = vrcp.pop %v7618
        %v7683 = vrcp.pop %v7619
        %v7684 = vrcp.pop %v7620
        %v7685 = vlaneseq
        %v7686 = vshrl.u32 %v7685, 7
        %v7687 = vsub.s32 2, %v7686
        %v7688 = vrot.slane %v4417, %v7687
        %v7689 = vmul.f32 %v7688, %v7216
        %v7690 = vmul.f32 %v7688, %v7217
        %v7691 = vmul.f32 %v7688, %v7218
        %v7692 = vmul.f32 %v7688, %v7219
        %v7693 = vmul.f32 %v7688, %v7220
        %v7694 = vmul.f32 %v7688, %v7221
        %v7695 = vmul.f32 %v7688, %v7222
        %v7696 = vmul.f32 %v7688, %v7223
        %v7697 = vmul.f32 %v7688, %v7224
        %v7698 = vmul.f32 %v7688, %v7225
        %v7699 = vmul.f32 %v7688, %v7226
        %v7700 = vmul.f32 %v7688, %v7227
        %v7701 = vmul.f32 %v7688, %v7228
        %v7702 = vmul.f32 %v7688, %v7229
        %v7703 = vmul.f32 %v7688, %v7230
        %v7704 = vmul.f32 %v7688, %v7231
        %v7705 = vmul.f32 %v7688, %v7232
        %v7706 = vmul.f32 %v7688, %v7233
        %v7707 = vmul.f32 %v7688, %v7234
        %v7708 = vmul.f32 %v7688, %v7235
        %v7709 = vmul.f32 %v7688, %v7236
        %v7710 = vmul.f32 %v7688, %v7237
        %v7711 = vmul.f32 %v7688, %v7238
        %v7712 = vmul.f32 %v7688, %v7239
        %v7713 = vmul.f32 %v7688, %v7240
        %v7714 = vmul.f32 %v7688, %v7241
        %v7715 = vmul.f32 %v7688, %v7242
        %v7716 = vmul.f32 %v7688, %v7243
        %v7717 = vmul.f32 %v7688, %v7244
        %v7718 = vmul.f32 %v7688, %v7245
        %v7719 = vmul.f32 %v7688, %v7246
        %v7720 = vmul.f32 %v7688, %v7247
        %v7721 = vmul.f32 %v7688, %v7248
        %v7722 = vmul.f32 %v7688, %v7249
        %v7723 = vmul.f32 %v7688, %v7250
        %v7724 = vmul.f32 %v7688, %v7251
        %v7725 = vmul.f32 %v7688, %v7252
        %v7726 = vmul.f32 %v7688, %v7253
        %v7727 = vmul.f32 %v7688, %v7254
        %v7728 = vmul.f32 %v7688, %v7255
        %v7729 = vmul.f32 %v7688, %v7256
        %v7730 = vmul.f32 %v7688, %v7257
        %v7731 = vmul.f32 %v7688, %v7258
        %v7732 = vmul.f32 %v7688, %v7259
        %v7733 = vmul.f32 %v7688, %v7260
        %v7734 = vmul.f32 %v7688, %v7261
        %v7735 = vmul.f32 %v7688, %v7262
        %v7736 = vmul.f32 %v7688, %v7263
        %v7737 = vmul.f32 %v7688, %v7264
        %v7738 = vmul.f32 %v7688, %v7265
        %v7739 = vmul.f32 %v7688, %v7266
        %v7740 = vmul.f32 %v7688, %v7267
        %v7741 = vmul.f32 %v7688, %v7268
        %v7742 = vmul.f32 %v7688, %v7269
        %v7743 = vmul.f32 %v7688, %v7270
        %v7744 = vmul.f32 %v7688, %v7271
        %v7745 = vmul.f32 %v7688, %v7272
        %v7746 = vmul.f32 %v7688, %v7273
        %v7747 = vmul.f32 %v7688, %v7274
        %v7748 = vmul.f32 %v7688, %v7275
        %v7749 = vmul.f32 %v7688, %v7276
        %v7750 = vmul.f32 %v7688, %v7277
        %v7751 = vmul.f32 %v7688, %v7278
        %v7752 = vmul.f32 %v7688, %v7279
        %v7753 = vmul.f32 %v7689, %v7621
        %v7754 = vmul.f32 %v7690, %v7622
        %v7755 = vmul.f32 %v7691, %v7623
        %v7756 = vmul.f32 %v7692, %v7624
        %v7757 = vmul.f32 %v7693, %v7625
        %v7758 = vmul.f32 %v7694, %v7626
        %v7759 = vmul.f32 %v7695, %v7627
        %v7760 = vmul.f32 %v7696, %v7628
        %v7761 = vmul.f32 %v7697, %v7629
        %v7762 = vmul.f32 %v7698, %v7630
        %v7763 = vmul.f32 %v7699, %v7631
        %v7764 = vmul.f32 %v7700, %v7632
        %v7765 = vmul.f32 %v7701, %v7633
        %v7766 = vmul.f32 %v7702, %v7634
        %v7767 = vmul.f32 %v7703, %v7635
        %v7768 = vmul.f32 %v7704, %v7636
        %v7769 = vmul.f32 %v7705, %v7637
        %v7770 = vmul.f32 %v7706, %v7638
        %v7771 = vmul.f32 %v7707, %v7639
        %v7772 = vmul.f32 %v7708, %v7640
        %v7773 = vmul.f32 %v7709, %v7641
        %v7774 = vmul.f32 %v7710, %v7642
        %v7775 = vmul.f32 %v7711, %v7643
        %v7776 = vmul.f32 %v7712, %v7644
        %v7777 = vmul.f32 %v7713, %v7645
        %v7778 = vmul.f32 %v7714, %v7646
        %v7779 = vmul.f32 %v7715, %v7647
        %v7780 = vmul.f32 %v7716, %v7648
        %v7781 = vmul.f32 %v7717, %v7649
        %v7782 = vmul.f32 %v7718, %v7650
        %v7783 = vmul.f32 %v7719, %v7651
        %v7784 = vmul.f32 %v7720, %v7652
        %v7785 = vmul.f32 %v7721, %v7653
        %v7786 = vmul.f32 %v7722, %v7654
        %v7787 = vmul.f32 %v7723, %v7655
        %v7788 = vmul.f32 %v7724, %v7656
        %v7789 = vmul.f32 %v7725, %v7657
        %v7790 = vmul.f32 %v7726, %v7658
        %v7791 = vmul.f32 %v7727, %v7659
        %v7792 = vmul.f32 %v7728, %v7660
        %v7793 = vmul.f32 %v7729, %v7661
        %v7794 = vmul.f32 %v7730, %v7662
        %v7795 = vmul.f32 %v7731, %v7663
        %v7796 = vmul.f32 %v7732, %v7664
        %v7797 = vmul.f32 %v7733, %v7665
        %v7798 = vmul.f32 %v7734, %v7666
        %v7799 = vmul.f32 %v7735, %v7667
        %v7800 = vmul.f32 %v7736, %v7668
        %v7801 = vmul.f32 %v7737, %v7669
        %v7802 = vmul.f32 %v7738, %v7670
        %v7803 = vmul.f32 %v7739, %v7671
        %v7804 = vmul.f32 %v7740, %v7672
        %v7805 = vmul.f32 %v7741, %v7673
        %v7806 = vmul.f32 %v7742, %v7674
        %v7807 = vmul.f32 %v7743, %v7675
        %v7808 = vmul.f32 %v7744, %v7676
        %v7809 = vmul.f32 %v7745, %v7677
        %v7810 = vmul.f32 %v7746, %v7678
        %v7811 = vmul.f32 %v7747, %v7679
        %v7812 = vmul.f32 %v7748, %v7680
        %v7813 = vmul.f32 %v7749, %v7681
        %v7814 = vmul.f32 %v7750, %v7682
        %v7815 = vmul.f32 %v7751, %v7683
        %v7816 = vmul.f32 %v7752, %v7684
        %v7817 = vpack.c.bf16 %v7754, %v7753
        %v7818 = vpack.c.bf16 %v7756, %v7755
        %v7819 = vpack.c.bf16 %v7758, %v7757
        %v7820 = vpack.c.bf16 %v7760, %v7759
        %v7821 = vpack.c.bf16 %v7762, %v7761
        %v7822 = vpack.c.bf16 %v7764, %v7763
        %v7823 = vpack.c.bf16 %v7766, %v7765
        %v7824 = vpack.c.bf16 %v7768, %v7767
        %v7825 = vpack.c.bf16 %v7770, %v7769
        %v7826 = vpack.c.bf16 %v7772, %v7771
        %v7827 = vpack.c.bf16 %v7774, %v7773
        %v7828 = vpack.c.bf16 %v7776, %v7775
        %v7829 = vpack.c.bf16 %v7778, %v7777
        %v7830 = vpack.c.bf16 %v7780, %v7779
        %v7831 = vpack.c.bf16 %v7782, %v7781
        %v7832 = vpack.c.bf16 %v7784, %v7783
        %v7833 = vpack.c.bf16 %v7786, %v7785
        %v7834 = vpack.c.bf16 %v7788, %v7787
        %v7835 = vpack.c.bf16 %v7790, %v7789
        %v7836 = vpack.c.bf16 %v7792, %v7791
        %v7837 = vpack.c.bf16 %v7794, %v7793
        %v7838 = vpack.c.bf16 %v7796, %v7795
        %v7839 = vpack.c.bf16 %v7798, %v7797
        %v7840 = vpack.c.bf16 %v7800, %v7799
        %v7841 = vpack.c.bf16 %v7802, %v7801
        %v7842 = vpack.c.bf16 %v7804, %v7803
        %v7843 = vpack.c.bf16 %v7806, %v7805
        %v7844 = vpack.c.bf16 %v7808, %v7807
        %v7845 = vpack.c.bf16 %v7810, %v7809
        %v7846 = vpack.c.bf16 %v7812, %v7811
        %v7847 = vpack.c.bf16 %v7814, %v7813
        %v7848 = vpack.c.bf16 %v7816, %v7815
        %v7849 = vlaneseq
        %v7850 = vshrl.u32 %v7849, 7
        %v7851 = vsub.s32 2, %v7850
        %v7852 = vrot.slane %v4416, %v7851
        %v7869 = vunpack.c.l.b16 %v7281
        %v7870 = vunpack.c.l.b16 %v7282
        %v7871 = vunpack.c.l.b16 %v7283
        %v7872 = vunpack.c.l.b16 %v7284
        %v7873 = vunpack.c.l.b16 %v7285
        %v7874 = vunpack.c.l.b16 %v7286
        %v7875 = vunpack.c.l.b16 %v7287
        %v7876 = vunpack.c.l.b16 %v7288
        %v7877 = vunpack.c.l.b16 %v7289
        %v7878 = vunpack.c.l.b16 %v7290
        %v7879 = vunpack.c.l.b16 %v7291
        %v7880 = vunpack.c.l.b16 %v7292
        %v7881 = vunpack.c.l.b16 %v7293
        %v7882 = vunpack.c.l.b16 %v7294
        %v7883 = vunpack.c.l.b16 %v7295
        %v7884 = vunpack.c.l.b16 %v7296
        %v7885 = vpack.c.b16 %v7870, %v7869
        %v7886 = vpack.c.b16 %v7872, %v7871
        %v7887 = vpack.c.b16 %v7874, %v7873
        %v7888 = vpack.c.b16 %v7876, %v7875
        %v7889 = vpack.c.b16 %v7878, %v7877
        %v7890 = vpack.c.b16 %v7880, %v7879
        %v7891 = vpack.c.b16 %v7882, %v7881
        %v7892 = vpack.c.b16 %v7884, %v7883
        %7901 = vmatprep.subr.bf16.mxu0 0
        %7902 = vmatpush1.bf16.msra.mxu0 %v7885
        %7903 = vmatprep.subr.bf16.mxu0 0
        %7904 = vmatpush1.bf16.msra.mxu0 %v7886
        %7905 = vmatprep.subr.bf16.mxu0 0
        %7906 = vmatpush1.bf16.msra.mxu0 %v7887
        %7907 = vmatprep.subr.bf16.mxu0 0
        %7908 = vmatpush1.bf16.msra.mxu0 %v7888
        %7909 = vmatprep.subr.bf16.mxu0 0
        %7910 = vmatpush1.bf16.msra.mxu0 %v7889
        %7911 = vmatprep.subr.bf16.mxu0 0
        %7912 = vmatpush1.bf16.msra.mxu0 %v7890
        %7913 = vmatprep.subr.bf16.mxu0 0
        %7914 = vmatpush1.bf16.msra.mxu0 %v7891
        %7915 = vmatprep.subr.bf16.mxu0 0
        %7916 = vmatpush1.bf16.msra.mxu0 %v7892
        %7917 = vmatprep.subr.bf16.mxu0 0
        %7918 = vmatpush1.bf16.msra.mxu0 0
        %7919 = vmatprep.subr.bf16.mxu0 0
        %7920 = vmatpush1.bf16.msra.mxu0 0
        %7921 = vmatprep.subr.bf16.mxu0 0
        %7922 = vmatpush1.bf16.msra.mxu0 0
        %7923 = vmatprep.subr.bf16.mxu0 0
        %7924 = vmatpush1.bf16.msra.mxu0 0
        %7925 = vmatprep.subr.bf16.mxu0 0
        %7926 = vmatpush1.bf16.msra.mxu0 0
        %7927 = vmatprep.subr.bf16.mxu0 0
        %7928 = vmatpush1.bf16.msra.mxu0 0
        %7929 = vmatprep.subr.bf16.mxu0 0
        %7930 = vmatpush1.bf16.msra.mxu0 0
        %7931 = vmatprep.subr.bf16.mxu0 0
        %7932 = vmatpush1.bf16.msra.mxu0 0
        %7933 = vmatprep.mubr.bf16.mxu0 0
        %7934 = vmatmul.mubr.bf16.gmra.mrb[0].mxu0 %v7817
        %v7935 = vpop.f32.mrb[0].mxu0
        %v7936 = vadd.f32 %v7852, %v7935
        %v7937 = vpop.f32.mrb[0].mxu0
        %v7938 = vpop.f32.mrb[0].mxu0
        %v7939 = vadd.f32 %v7852, %v7938
        %v7940 = vpop.f32.mrb[0].mxu0
        %7941 = vmatprep.mubr.bf16.mxu0 0
        %7942 = vmatmul.mubr.bf16.gmra.mrb[0].mxu0 %v7818
        %v7943 = vpop.f32.mrb[0].mxu0
        %v7944 = vadd.f32 %v7852, %v7943
        %v7945 = vpop.f32.mrb[0].mxu0
        %v7946 = vpop.f32.mrb[0].mxu0
        %v7947 = vadd.f32 %v7852, %v7946
        %v7948 = vpop.f32.mrb[0].mxu0
        %7949 = vmatprep.mubr.bf16.mxu0 0
        %7950 = vmatmul.mubr.bf16.gmra.mrb[0].mxu0 %v7819
        %v7951 = vpop.f32.mrb[0].mxu0
        %v7952 = vadd.f32 %v7852, %v7951
        %v7953 = vpop.f32.mrb[0].mxu0
        %v7954 = vpop.f32.mrb[0].mxu0
        %v7955 = vadd.f32 %v7852, %v7954
        %v7956 = vpop.f32.mrb[0].mxu0
        %7957 = vmatprep.mubr.bf16.mxu0 0
        %7958 = vmatmul.mubr.bf16.gmra.mrb[0].mxu0 %v7820
        %v7959 = vpop.f32.mrb[0].mxu0
        %v7960 = vadd.f32 %v7852, %v7959
        %v7961 = vpop.f32.mrb[0].mxu0
        %v7962 = vpop.f32.mrb[0].mxu0
        %v7963 = vadd.f32 %v7852, %v7962
        %v7964 = vpop.f32.mrb[0].mxu0
        %7965 = vmatprep.mubr.bf16.mxu0 0
        %7966 = vmatmul.mubr.bf16.gmra.mrb[0].mxu0 %v7821
        %v7967 = vpop.f32.mrb[0].mxu0
        %v7968 = vadd.f32 %v7852, %v7967
        %v7969 = vpop.f32.mrb[0].mxu0
        %v7970 = vpop.f32.mrb[0].mxu0
        %v7971 = vadd.f32 %v7852, %v7970
        %v7972 = vpop.f32.mrb[0].mxu0
        %7973 = vmatprep.mubr.bf16.mxu0 0
        %7974 = vmatmul.mubr.bf16.gmra.mrb[0].mxu0 %v7822
        %v7975 = vpop.f32.mrb[0].mxu0
        %v7976 = vadd.f32 %v7852, %v7975
        %v7977 = vpop.f32.mrb[0].mxu0
        %v7978 = vpop.f32.mrb[0].mxu0
        %v7979 = vadd.f32 %v7852, %v7978
        %v7980 = vpop.f32.mrb[0].mxu0
        %7981 = vmatprep.mubr.bf16.mxu0 0
        %7982 = vmatmul.mubr.bf16.gmra.mrb[0].mxu0 %v7823
        %v7983 = vpop.f32.mrb[0].mxu0
        %v7984 = vadd.f32 %v7852, %v7983
        %v7985 = vpop.f32.mrb[0].mxu0
        %v7986 = vpop.f32.mrb[0].mxu0
        %v7987 = vadd.f32 %v7852, %v7986
        %v7988 = vpop.f32.mrb[0].mxu0
        %7989 = vmatprep.mubr.bf16.mxu0 0
        %7990 = vmatmul.mubr.bf16.gmra.mrb[0].mxu0 %v7824
        %v7991 = vpop.f32.mrb[0].mxu0
        %v7992 = vadd.f32 %v7852, %v7991
        %v7993 = vpop.f32.mrb[0].mxu0
        %v7994 = vpop.f32.mrb[0].mxu0
        %v7995 = vadd.f32 %v7852, %v7994
        %v7996 = vpop.f32.mrb[0].mxu0
        %7997 = vmatprep.mubr.bf16.mxu0 0
        %7998 = vmatmul.mubr.bf16.gmra.mrb[0].mxu0 %v7825
        %v7999 = vpop.f32.mrb[0].mxu0
        %v8000 = vadd.f32 %v7852, %v7999
        %v8001 = vpop.f32.mrb[0].mxu0
        %v8002 = vpop.f32.mrb[0].mxu0
        %v8003 = vadd.f32 %v7852, %v8002
        %v8004 = vpop.f32.mrb[0].mxu0
        %8005 = vmatprep.mubr.bf16.mxu0 0
        %8006 = vmatmul.mubr.bf16.gmra.mrb[0].mxu0 %v7826
        %v8007 = vpop.f32.mrb[0].mxu0
        %v8008 = vadd.f32 %v7852, %v8007
        %v8009 = vpop.f32.mrb[0].mxu0
        %v8010 = vpop.f32.mrb[0].mxu0
        %v8011 = vadd.f32 %v7852, %v8010
        %v8012 = vpop.f32.mrb[0].mxu0
        %8013 = vmatprep.mubr.bf16.mxu0 0
        %8014 = vmatmul.mubr.bf16.gmra.mrb[0].mxu0 %v7827
        %v8015 = vpop.f32.mrb[0].mxu0
        %v8016 = vadd.f32 %v7852, %v8015
        %v8017 = vpop.f32.mrb[0].mxu0
        %v8018 = vpop.f32.mrb[0].mxu0
        %v8019 = vadd.f32 %v7852, %v8018
        %v8020 = vpop.f32.mrb[0].mxu0
        %8021 = vmatprep.mubr.bf16.mxu0 0
        %8022 = vmatmul.mubr.bf16.gmra.mrb[0].mxu0 %v7828
        %v8023 = vpop.f32.mrb[0].mxu0
        %v8024 = vadd.f32 %v7852, %v8023
        %v8025 = vpop.f32.mrb[0].mxu0
        %v8026 = vpop.f32.mrb[0].mxu0
        %v8027 = vadd.f32 %v7852, %v8026
        %v8028 = vpop.f32.mrb[0].mxu0
        %8029 = vmatprep.mubr.bf16.mxu0 0
        %8030 = vmatmul.mubr.bf16.gmra.mrb[0].mxu0 %v7829
        %v8031 = vpop.f32.mrb[0].mxu0
        %v8032 = vadd.f32 %v7852, %v8031
        %v8033 = vpop.f32.mrb[0].mxu0
        %v8034 = vpop.f32.mrb[0].mxu0
        %v8035 = vadd.f32 %v7852, %v8034
        %v8036 = vpop.f32.mrb[0].mxu0
        %8037 = vmatprep.mubr.bf16.mxu0 0
        %8038 = vmatmul.mubr.bf16.gmra.mrb[0].mxu0 %v7830
        %v8039 = vpop.f32.mrb[0].mxu0
        %v8040 = vadd.f32 %v7852, %v8039
        %v8041 = vpop.f32.mrb[0].mxu0
        %v8042 = vpop.f32.mrb[0].mxu0
        %v8043 = vadd.f32 %v7852, %v8042
        %v8044 = vpop.f32.mrb[0].mxu0
        %8045 = vmatprep.mubr.bf16.mxu0 0
        %8046 = vmatmul.mubr.bf16.gmra.mrb[0].mxu0 %v7831
        %v8047 = vpop.f32.mrb[0].mxu0
        %v8048 = vadd.f32 %v7852, %v8047
        %v8049 = vpop.f32.mrb[0].mxu0
        %v8050 = vpop.f32.mrb[0].mxu0
        %v8051 = vadd.f32 %v7852, %v8050
        %v8052 = vpop.f32.mrb[0].mxu0
        %8053 = vmatprep.mubr.bf16.mxu0 0
        %8054 = vmatmul.mubr.bf16.gmra.mrb[0].mxu0 %v7832
        %v8055 = vpop.f32.mrb[0].mxu0
        %v8056 = vadd.f32 %v7852, %v8055
        %v8057 = vpop.f32.mrb[0].mxu0
        %v8058 = vpop.f32.mrb[0].mxu0
        %v8059 = vadd.f32 %v7852, %v8058
        %v8060 = vpop.f32.mrb[0].mxu0
        %8061 = vmatprep.mubr.bf16.mxu0 0
        %8062 = vmatmul.mubr.bf16.gmra.mrb[0].mxu0 %v7833
        %v8063 = vpop.f32.mrb[0].mxu0
        %v8064 = vadd.f32 %v7852, %v8063
        %v8065 = vpop.f32.mrb[0].mxu0
        %v8066 = vpop.f32.mrb[0].mxu0
        %v8067 = vadd.f32 %v7852, %v8066
        %v8068 = vpop.f32.mrb[0].mxu0
        %8069 = vmatprep.mubr.bf16.mxu0 0
        %8070 = vmatmul.mubr.bf16.gmra.mrb[0].mxu0 %v7834
        %v8071 = vpop.f32.mrb[0].mxu0
        %v8072 = vadd.f32 %v7852, %v8071
        %v8073 = vpop.f32.mrb[0].mxu0
        %v8074 = vpop.f32.mrb[0].mxu0
        %v8075 = vadd.f32 %v7852, %v8074
        %v8076 = vpop.f32.mrb[0].mxu0
        %8077 = vmatprep.mubr.bf16.mxu0 0
        %8078 = vmatmul.mubr.bf16.gmra.mrb[0].mxu0 %v7835
        %v8079 = vpop.f32.mrb[0].mxu0
        %v8080 = vadd.f32 %v7852, %v8079
        %v8081 = vpop.f32.mrb[0].mxu0
        %v8082 = vpop.f32.mrb[0].mxu0
        %v8083 = vadd.f32 %v7852, %v8082
        %v8084 = vpop.f32.mrb[0].mxu0
        %8085 = vmatprep.mubr.bf16.mxu0 0
        %8086 = vmatmul.mubr.bf16.gmra.mrb[0].mxu0 %v7836
        %v8087 = vpop.f32.mrb[0].mxu0
        %v8088 = vadd.f32 %v7852, %v8087
        %v8089 = vpop.f32.mrb[0].mxu0
        %v8090 = vpop.f32.mrb[0].mxu0
        %v8091 = vadd.f32 %v7852, %v8090
        %v8092 = vpop.f32.mrb[0].mxu0
        %8093 = vmatprep.mubr.bf16.mxu0 0
        %8094 = vmatmul.mubr.bf16.gmra.mrb[0].mxu0 %v7837
        %v8095 = vpop.f32.mrb[0].mxu0
        %v8096 = vadd.f32 %v7852, %v8095
        %v8097 = vpop.f32.mrb[0].mxu0
        %v8098 = vpop.f32.mrb[0].mxu0
        %v8099 = vadd.f32 %v7852, %v8098
        %v8100 = vpop.f32.mrb[0].mxu0
        %8101 = vmatprep.mubr.bf16.mxu0 0
        %8102 = vmatmul.mubr.bf16.gmra.mrb[0].mxu0 %v7838
        %v8103 = vpop.f32.mrb[0].mxu0
        %v8104 = vadd.f32 %v7852, %v8103
        %v8105 = vpop.f32.mrb[0].mxu0
        %v8106 = vpop.f32.mrb[0].mxu0
        %v8107 = vadd.f32 %v7852, %v8106
        %v8108 = vpop.f32.mrb[0].mxu0
        %8109 = vmatprep.mubr.bf16.mxu0 0
        %8110 = vmatmul.mubr.bf16.gmra.mrb[0].mxu0 %v7839
        %v8111 = vpop.f32.mrb[0].mxu0
        %v8112 = vadd.f32 %v7852, %v8111
        %v8113 = vpop.f32.mrb[0].mxu0
        %v8114 = vpop.f32.mrb[0].mxu0
        %v8115 = vadd.f32 %v7852, %v8114
        %v8116 = vpop.f32.mrb[0].mxu0
        %8117 = vmatprep.mubr.bf16.mxu0 0
        %8118 = vmatmul.mubr.bf16.gmra.mrb[0].mxu0 %v7840
        %v8119 = vpop.f32.mrb[0].mxu0
        %v8120 = vadd.f32 %v7852, %v8119
        %v8121 = vpop.f32.mrb[0].mxu0
        %v8122 = vpop.f32.mrb[0].mxu0
        %v8123 = vadd.f32 %v7852, %v8122
        %v8124 = vpop.f32.mrb[0].mxu0
        %8125 = vmatprep.mubr.bf16.mxu0 0
        %8126 = vmatmul.mubr.bf16.gmra.mrb[0].mxu0 %v7841
        %v8127 = vpop.f32.mrb[0].mxu0
        %v8128 = vadd.f32 %v7852, %v8127
        %v8129 = vpop.f32.mrb[0].mxu0
        %v8130 = vpop.f32.mrb[0].mxu0
        %v8131 = vadd.f32 %v7852, %v8130
        %v8132 = vpop.f32.mrb[0].mxu0
        %8133 = vmatprep.mubr.bf16.mxu0 0
        %8134 = vmatmul.mubr.bf16.gmra.mrb[0].mxu0 %v7842
        %v8135 = vpop.f32.mrb[0].mxu0
        %v8136 = vadd.f32 %v7852, %v8135
        %v8137 = vpop.f32.mrb[0].mxu0
        %v8138 = vpop.f32.mrb[0].mxu0
        %v8139 = vadd.f32 %v7852, %v8138
        %v8140 = vpop.f32.mrb[0].mxu0
        %8141 = vmatprep.mubr.bf16.mxu0 0
        %8142 = vmatmul.mubr.bf16.gmra.mrb[0].mxu0 %v7843
        %v8143 = vpop.f32.mrb[0].mxu0
        %v8144 = vadd.f32 %v7852, %v8143
        %v8145 = vpop.f32.mrb[0].mxu0
        %v8146 = vpop.f32.mrb[0].mxu0
        %v8147 = vadd.f32 %v7852, %v8146
        %v8148 = vpop.f32.mrb[0].mxu0
        %8149 = vmatprep.mubr.bf16.mxu0 0
        %8150 = vmatmul.mubr.bf16.gmra.mrb[0].mxu0 %v7844
        %v8151 = vpop.f32.mrb[0].mxu0
        %v8152 = vadd.f32 %v7852, %v8151
        %v8153 = vpop.f32.mrb[0].mxu0
        %v8154 = vpop.f32.mrb[0].mxu0
        %v8155 = vadd.f32 %v7852, %v8154
        %v8156 = vpop.f32.mrb[0].mxu0
        %8157 = vmatprep.mubr.bf16.mxu0 0
        %8158 = vmatmul.mubr.bf16.gmra.mrb[0].mxu0 %v7845
        %v8159 = vpop.f32.mrb[0].mxu0
        %v8160 = vadd.f32 %v7852, %v8159
        %v8161 = vpop.f32.mrb[0].mxu0
        %v8162 = vpop.f32.mrb[0].mxu0
        %v8163 = vadd.f32 %v7852, %v8162
        %v8164 = vpop.f32.mrb[0].mxu0
        %8165 = vmatprep.mubr.bf16.mxu0 0
        %8166 = vmatmul.mubr.bf16.gmra.mrb[0].mxu0 %v7846
        %v8167 = vpop.f32.mrb[0].mxu0
        %v8168 = vadd.f32 %v7852, %v8167
        %v8169 = vpop.f32.mrb[0].mxu0
        %v8170 = vpop.f32.mrb[0].mxu0
        %v8171 = vadd.f32 %v7852, %v8170
        %v8172 = vpop.f32.mrb[0].mxu0
        %8173 = vmatprep.mubr.bf16.mxu0 0
        %8174 = vmatmul.mubr.bf16.gmra.mrb[0].mxu0 %v7847
        %v8175 = vpop.f32.mrb[0].mxu0
        %v8176 = vadd.f32 %v7852, %v8175
        %v8177 = vpop.f32.mrb[0].mxu0
        %v8178 = vpop.f32.mrb[0].mxu0
        %v8179 = vadd.f32 %v7852, %v8178
        %v8180 = vpop.f32.mrb[0].mxu0
        %8181 = vmatprep.mubr.bf16.mxu0 0
        %8182 = vmatmul.mubr.bf16.gmra.mrb[0].mxu0 %v7848
        %v8183 = vpop.f32.mrb[0].mxu0
        %v8184 = vadd.f32 %v7852, %v8183
        %v8185 = vpop.f32.mrb[0].mxu0
        %v8186 = vpop.f32.mrb[0].mxu0
        %v8187 = vadd.f32 %v7852, %v8186
        %v8188 = vpop.f32.mrb[0].mxu0
        %8189 = vdwg.mxu0
        %v8190 = vlaneseq
        %v8191 = vshrl.u32 %v8190, 7
        %v8192 = vsub.s32 2, %v8191
        %v8193 = vrot.slane %v4420, %v8192
        %v8194 = vmul.f32 %v8193, %v7936
        %v8195 = vmul.f32 %v8193, %v7939
        %v8196 = vmul.f32 %v8193, %v7944
        %v8197 = vmul.f32 %v8193, %v7947
        %v8198 = vmul.f32 %v8193, %v7952
        %v8199 = vmul.f32 %v8193, %v7955
        %v8200 = vmul.f32 %v8193, %v7960
        %v8201 = vmul.f32 %v8193, %v7963
        %v8202 = vmul.f32 %v8193, %v7968
        %v8203 = vmul.f32 %v8193, %v7971
        %v8204 = vmul.f32 %v8193, %v7976
        %v8205 = vmul.f32 %v8193, %v7979
        %v8206 = vmul.f32 %v8193, %v7984
        %v8207 = vmul.f32 %v8193, %v7987
        %v8208 = vmul.f32 %v8193, %v7992
        %v8209 = vmul.f32 %v8193, %v7995
        %v8210 = vmul.f32 %v8193, %v8000
        %v8211 = vmul.f32 %v8193, %v8003
        %v8212 = vmul.f32 %v8193, %v8008
        %v8213 = vmul.f32 %v8193, %v8011
        %v8214 = vmul.f32 %v8193, %v8016
        %v8215 = vmul.f32 %v8193, %v8019
        %v8216 = vmul.f32 %v8193, %v8024
        %v8217 = vmul.f32 %v8193, %v8027
        %v8218 = vmul.f32 %v8193, %v8032
        %v8219 = vmul.f32 %v8193, %v8035
        %v8220 = vmul.f32 %v8193, %v8040
        %v8221 = vmul.f32 %v8193, %v8043
        %v8222 = vmul.f32 %v8193, %v8048
        %v8223 = vmul.f32 %v8193, %v8051
        %v8224 = vmul.f32 %v8193, %v8056
        %v8225 = vmul.f32 %v8193, %v8059
        %v8226 = vmul.f32 %v8193, %v8064
        %v8227 = vmul.f32 %v8193, %v8067
        %v8228 = vmul.f32 %v8193, %v8072
        %v8229 = vmul.f32 %v8193, %v8075
        %v8230 = vmul.f32 %v8193, %v8080
        %v8231 = vmul.f32 %v8193, %v8083
        %v8232 = vmul.f32 %v8193, %v8088
        %v8233 = vmul.f32 %v8193, %v8091
        %v8234 = vmul.f32 %v8193, %v8096
        %v8235 = vmul.f32 %v8193, %v8099
        %v8236 = vmul.f32 %v8193, %v8104
        %v8237 = vmul.f32 %v8193, %v8107
        %v8238 = vmul.f32 %v8193, %v8112
        %v8239 = vmul.f32 %v8193, %v8115
        %v8240 = vmul.f32 %v8193, %v8120
        %v8241 = vmul.f32 %v8193, %v8123
        %v8242 = vmul.f32 %v8193, %v8128
        %v8243 = vmul.f32 %v8193, %v8131
        %v8244 = vmul.f32 %v8193, %v8136
        %v8245 = vmul.f32 %v8193, %v8139
        %v8246 = vmul.f32 %v8193, %v8144
        %v8247 = vmul.f32 %v8193, %v8147
        %v8248 = vmul.f32 %v8193, %v8152
        %v8249 = vmul.f32 %v8193, %v8155
        %v8250 = vmul.f32 %v8193, %v8160
        %v8251 = vmul.f32 %v8193, %v8163
        %v8252 = vmul.f32 %v8193, %v8168
        %v8253 = vmul.f32 %v8193, %v8171
        %v8254 = vmul.f32 %v8193, %v8176
        %v8255 = vmul.f32 %v8193, %v8179
        %v8256 = vmul.f32 %v8193, %v8184
        %v8257 = vmul.f32 %v8193, %v8187
        %v8258 = vsub.f32 0.0, %v8194
        %v8259 = vsub.f32 0.0, %v8195
        %v8260 = vsub.f32 0.0, %v8196
        %v8261 = vsub.f32 0.0, %v8197
        %v8262 = vsub.f32 0.0, %v8198
        %v8263 = vsub.f32 0.0, %v8199
        %v8264 = vsub.f32 0.0, %v8200
        %v8265 = vsub.f32 0.0, %v8201
        %v8266 = vsub.f32 0.0, %v8202
        %v8267 = vsub.f32 0.0, %v8203
        %v8268 = vsub.f32 0.0, %v8204
        %v8269 = vsub.f32 0.0, %v8205
        %v8270 = vsub.f32 0.0, %v8206
        %v8271 = vsub.f32 0.0, %v8207
        %v8272 = vsub.f32 0.0, %v8208
        %v8273 = vsub.f32 0.0, %v8209
        %v8274 = vsub.f32 0.0, %v8210
        %v8275 = vsub.f32 0.0, %v8211
        %v8276 = vsub.f32 0.0, %v8212
        %v8277 = vsub.f32 0.0, %v8213
        %v8278 = vsub.f32 0.0, %v8214
        %v8279 = vsub.f32 0.0, %v8215
        %v8280 = vsub.f32 0.0, %v8216
        %v8281 = vsub.f32 0.0, %v8217
        %v8282 = vsub.f32 0.0, %v8218
        %v8283 = vsub.f32 0.0, %v8219
        %v8284 = vsub.f32 0.0, %v8220
        %v8285 = vsub.f32 0.0, %v8221
        %v8286 = vsub.f32 0.0, %v8222
        %v8287 = vsub.f32 0.0, %v8223
        %v8288 = vsub.f32 0.0, %v8224
        %v8289 = vsub.f32 0.0, %v8225
        %v8290 = vsub.f32 0.0, %v8226
        %v8291 = vsub.f32 0.0, %v8227
        %v8292 = vsub.f32 0.0, %v8228
        %v8293 = vsub.f32 0.0, %v8229
        %v8294 = vsub.f32 0.0, %v8230
        %v8295 = vsub.f32 0.0, %v8231
        %v8296 = vsub.f32 0.0, %v8232
        %v8297 = vsub.f32 0.0, %v8233
        %v8298 = vsub.f32 0.0, %v8234
        %v8299 = vsub.f32 0.0, %v8235
        %v8300 = vsub.f32 0.0, %v8236
        %v8301 = vsub.f32 0.0, %v8237
        %v8302 = vsub.f32 0.0, %v8238
        %v8303 = vsub.f32 0.0, %v8239
        %v8304 = vsub.f32 0.0, %v8240
        %v8305 = vsub.f32 0.0, %v8241
        %v8306 = vsub.f32 0.0, %v8242
        %v8307 = vsub.f32 0.0, %v8243
        %v8308 = vsub.f32 0.0, %v8244
        %v8309 = vsub.f32 0.0, %v8245
        %v8310 = vsub.f32 0.0, %v8246
        %v8311 = vsub.f32 0.0, %v8247
        %v8312 = vsub.f32 0.0, %v8248
        %v8313 = vsub.f32 0.0, %v8249
        %v8314 = vsub.f32 0.0, %v8250
        %v8315 = vsub.f32 0.0, %v8251
        %v8316 = vsub.f32 0.0, %v8252
        %v8317 = vsub.f32 0.0, %v8253
        %v8318 = vsub.f32 0.0, %v8254
        %v8319 = vsub.f32 0.0, %v8255
        %v8320 = vsub.f32 0.0, %v8256
        %v8321 = vsub.f32 0.0, %v8257
        %v8322 = vmul.f32 %v8258, 1.442695
        %v8323 = vpow.pop %v8322
        %v8324 = vmul.f32 %v8259, 1.442695
        %v8325 = vpow.pop %v8324
        %v8326 = vmul.f32 %v8260, 1.442695
        %v8327 = vpow.pop %v8326
        %v8328 = vmul.f32 %v8261, 1.442695
        %v8329 = vpow.pop %v8328
        %v8330 = vmul.f32 %v8262, 1.442695
        %v8331 = vpow.pop %v8330
        %v8332 = vmul.f32 %v8263, 1.442695
        %v8333 = vpow.pop %v8332
        %v8334 = vmul.f32 %v8264, 1.442695
        %v8335 = vpow.pop %v8334
        %v8336 = vmul.f32 %v8265, 1.442695
        %v8337 = vpow.pop %v8336
        %v8338 = vmul.f32 %v8266, 1.442695
        %v8339 = vpow.pop %v8338
        %v8340 = vmul.f32 %v8267, 1.442695
        %v8341 = vpow.pop %v8340
        %v8342 = vmul.f32 %v8268, 1.442695
        %v8343 = vpow.pop %v8342
        %v8344 = vmul.f32 %v8269, 1.442695
        %v8345 = vpow.pop %v8344
        %v8346 = vmul.f32 %v8270, 1.442695
        %v8347 = vpow.pop %v8346
        %v8348 = vmul.f32 %v8271, 1.442695
        %v8349 = vpow.pop %v8348
        %v8350 = vmul.f32 %v8272, 1.442695
        %v8351 = vpow.pop %v8350
        %v8352 = vmul.f32 %v8273, 1.442695
        %v8353 = vpow.pop %v8352
        %v8354 = vmul.f32 %v8274, 1.442695
        %v8355 = vpow.pop %v8354
        %v8356 = vmul.f32 %v8275, 1.442695
        %v8357 = vpow.pop %v8356
        %v8358 = vmul.f32 %v8276, 1.442695
        %v8359 = vpow.pop %v8358
        %v8360 = vmul.f32 %v8277, 1.442695
        %v8361 = vpow.pop %v8360
        %v8362 = vmul.f32 %v8278, 1.442695
        %v8363 = vpow.pop %v8362
        %v8364 = vmul.f32 %v8279, 1.442695
        %v8365 = vpow.pop %v8364
        %v8366 = vmul.f32 %v8280, 1.442695
        %v8367 = vpow.pop %v8366
        %v8368 = vmul.f32 %v8281, 1.442695
        %v8369 = vpow.pop %v8368
        %v8370 = vmul.f32 %v8282, 1.442695
        %v8371 = vpow.pop %v8370
        %v8372 = vmul.f32 %v8283, 1.442695
        %v8373 = vpow.pop %v8372
        %v8374 = vmul.f32 %v8284, 1.442695
        %v8375 = vpow.pop %v8374
        %v8376 = vmul.f32 %v8285, 1.442695
        %v8377 = vpow.pop %v8376
        %v8378 = vmul.f32 %v8286, 1.442695
        %v8379 = vpow.pop %v8378
        %v8380 = vmul.f32 %v8287, 1.442695
        %v8381 = vpow.pop %v8380
        %v8382 = vmul.f32 %v8288, 1.442695
        %v8383 = vpow.pop %v8382
        %v8384 = vmul.f32 %v8289, 1.442695
        %v8385 = vpow.pop %v8384
        %v8386 = vmul.f32 %v8290, 1.442695
        %v8387 = vpow.pop %v8386
        %v8388 = vmul.f32 %v8291, 1.442695
        %v8389 = vpow.pop %v8388
        %v8390 = vmul.f32 %v8292, 1.442695
        %v8391 = vpow.pop %v8390
        %v8392 = vmul.f32 %v8293, 1.442695
        %v8393 = vpow.pop %v8392
        %v8394 = vmul.f32 %v8294, 1.442695
        %v8395 = vpow.pop %v8394
        %v8396 = vmul.f32 %v8295, 1.442695
        %v8397 = vpow.pop %v8396
        %v8398 = vmul.f32 %v8296, 1.442695
        %v8399 = vpow.pop %v8398
        %v8400 = vmul.f32 %v8297, 1.442695
        %v8401 = vpow.pop %v8400
        %v8402 = vmul.f32 %v8298, 1.442695
        %v8403 = vpow.pop %v8402
        %v8404 = vmul.f32 %v8299, 1.442695
        %v8405 = vpow.pop %v8404
        %v8406 = vmul.f32 %v8300, 1.442695
        %v8407 = vpow.pop %v8406
        %v8408 = vmul.f32 %v8301, 1.442695
        %v8409 = vpow.pop %v8408
        %v8410 = vmul.f32 %v8302, 1.442695
        %v8411 = vpow.pop %v8410
        %v8412 = vmul.f32 %v8303, 1.442695
        %v8413 = vpow.pop %v8412
        %v8414 = vmul.f32 %v8304, 1.442695
        %v8415 = vpow.pop %v8414
        %v8416 = vmul.f32 %v8305, 1.442695
        %v8417 = vpow.pop %v8416
        %v8418 = vmul.f32 %v8306, 1.442695
        %v8419 = vpow.pop %v8418
        %v8420 = vmul.f32 %v8307, 1.442695
        %v8421 = vpow.pop %v8420
        %v8422 = vmul.f32 %v8308, 1.442695
        %v8423 = vpow.pop %v8422
        %v8424 = vmul.f32 %v8309, 1.442695
        %v8425 = vpow.pop %v8424
        %v8426 = vmul.f32 %v8310, 1.442695
        %v8427 = vpow.pop %v8426
        %v8428 = vmul.f32 %v8311, 1.442695
        %v8429 = vpow.pop %v8428
        %v8430 = vmul.f32 %v8312, 1.442695
        %v8431 = vpow.pop %v8430
        %v8432 = vmul.f32 %v8313, 1.442695
        %v8433 = vpow.pop %v8432
        %v8434 = vmul.f32 %v8314, 1.442695
        %v8435 = vpow.pop %v8434
        %v8436 = vmul.f32 %v8315, 1.442695
        %v8437 = vpow.pop %v8436
        %v8438 = vmul.f32 %v8316, 1.442695
        %v8439 = vpow.pop %v8438
        %v8440 = vmul.f32 %v8317, 1.442695
        %v8441 = vpow.pop %v8440
        %v8442 = vmul.f32 %v8318, 1.442695
        %v8443 = vpow.pop %v8442
        %v8444 = vmul.f32 %v8319, 1.442695
        %v8445 = vpow.pop %v8444
        %v8446 = vmul.f32 %v8320, 1.442695
        %v8447 = vpow.pop %v8446
        %v8448 = vmul.f32 %v8321, 1.442695
        %v8449 = vpow.pop %v8448
        %v8450 = vadd.f32 %v8323, 1.0
        %v8451 = vadd.f32 %v8325, 1.0
        %v8452 = vadd.f32 %v8327, 1.0
        %v8453 = vadd.f32 %v8329, 1.0
        %v8454 = vadd.f32 %v8331, 1.0
        %v8455 = vadd.f32 %v8333, 1.0
        %v8456 = vadd.f32 %v8335, 1.0
        %v8457 = vadd.f32 %v8337, 1.0
        %v8458 = vadd.f32 %v8339, 1.0
        %v8459 = vadd.f32 %v8341, 1.0
        %v8460 = vadd.f32 %v8343, 1.0
        %v8461 = vadd.f32 %v8345, 1.0
        %v8462 = vadd.f32 %v8347, 1.0
        %v8463 = vadd.f32 %v8349, 1.0
        %v8464 = vadd.f32 %v8351, 1.0
        %v8465 = vadd.f32 %v8353, 1.0
        %v8466 = vadd.f32 %v8355, 1.0
        %v8467 = vadd.f32 %v8357, 1.0
        %v8468 = vadd.f32 %v8359, 1.0
        %v8469 = vadd.f32 %v8361, 1.0
        %v8470 = vadd.f32 %v8363, 1.0
        %v8471 = vadd.f32 %v8365, 1.0
        %v8472 = vadd.f32 %v8367, 1.0
        %v8473 = vadd.f32 %v8369, 1.0
        %v8474 = vadd.f32 %v8371, 1.0
        %v8475 = vadd.f32 %v8373, 1.0
        %v8476 = vadd.f32 %v8375, 1.0
        %v8477 = vadd.f32 %v8377, 1.0
        %v8478 = vadd.f32 %v8379, 1.0
        %v8479 = vadd.f32 %v8381, 1.0
        %v8480 = vadd.f32 %v8383, 1.0
        %v8481 = vadd.f32 %v8385, 1.0
        %v8482 = vadd.f32 %v8387, 1.0
        %v8483 = vadd.f32 %v8389, 1.0
        %v8484 = vadd.f32 %v8391, 1.0
        %v8485 = vadd.f32 %v8393, 1.0
        %v8486 = vadd.f32 %v8395, 1.0
        %v8487 = vadd.f32 %v8397, 1.0
        %v8488 = vadd.f32 %v8399, 1.0
        %v8489 = vadd.f32 %v8401, 1.0
        %v8490 = vadd.f32 %v8403, 1.0
        %v8491 = vadd.f32 %v8405, 1.0
        %v8492 = vadd.f32 %v8407, 1.0
        %v8493 = vadd.f32 %v8409, 1.0
        %v8494 = vadd.f32 %v8411, 1.0
        %v8495 = vadd.f32 %v8413, 1.0
        %v8496 = vadd.f32 %v8415, 1.0
        %v8497 = vadd.f32 %v8417, 1.0
        %v8498 = vadd.f32 %v8419, 1.0
        %v8499 = vadd.f32 %v8421, 1.0
        %v8500 = vadd.f32 %v8423, 1.0
        %v8501 = vadd.f32 %v8425, 1.0
        %v8502 = vadd.f32 %v8427, 1.0
        %v8503 = vadd.f32 %v8429, 1.0
        %v8504 = vadd.f32 %v8431, 1.0
        %v8505 = vadd.f32 %v8433, 1.0
        %v8506 = vadd.f32 %v8435, 1.0
        %v8507 = vadd.f32 %v8437, 1.0
        %v8508 = vadd.f32 %v8439, 1.0
        %v8509 = vadd.f32 %v8441, 1.0
        %v8510 = vadd.f32 %v8443, 1.0
        %v8511 = vadd.f32 %v8445, 1.0
        %v8512 = vadd.f32 %v8447, 1.0
        %v8513 = vadd.f32 %v8449, 1.0
        %v8514 = vrcp.pop %v8450
        %v8515 = vrcp.pop %v8451
        %v8516 = vrcp.pop %v8452
        %v8517 = vrcp.pop %v8453
        %v8518 = vrcp.pop %v8454
        %v8519 = vrcp.pop %v8455
        %v8520 = vrcp.pop %v8456
        %v8521 = vrcp.pop %v8457
        %v8522 = vrcp.pop %v8458
        %v8523 = vrcp.pop %v8459
        %v8524 = vrcp.pop %v8460
        %v8525 = vrcp.pop %v8461
        %v8526 = vrcp.pop %v8462
        %v8527 = vrcp.pop %v8463
        %v8528 = vrcp.pop %v8464
        %v8529 = vrcp.pop %v8465
        %v8530 = vrcp.pop %v8466
        %v8531 = vrcp.pop %v8467
        %v8532 = vrcp.pop %v8468
        %v8533 = vrcp.pop %v8469
        %v8534 = vrcp.pop %v8470
        %v8535 = vrcp.pop %v8471
        %v8536 = vrcp.pop %v8472
        %v8537 = vrcp.pop %v8473
        %v8538 = vrcp.pop %v8474
        %v8539 = vrcp.pop %v8475
        %v8540 = vrcp.pop %v8476
        %v8541 = vrcp.pop %v8477
        %v8542 = vrcp.pop %v8478
        %v8543 = vrcp.pop %v8479
        %v8544 = vrcp.pop %v8480
        %v8545 = vrcp.pop %v8481
        %v8546 = vrcp.pop %v8482
        %v8547 = vrcp.pop %v8483
        %v8548 = vrcp.pop %v8484
        %v8549 = vrcp.pop %v8485
        %v8550 = vrcp.pop %v8486
        %v8551 = vrcp.pop %v8487
        %v8552 = vrcp.pop %v8488
        %v8553 = vrcp.pop %v8489
        %v8554 = vrcp.pop %v8490
        %v8555 = vrcp.pop %v8491
        %v8556 = vrcp.pop %v8492
        %v8557 = vrcp.pop %v8493
        %v8558 = vrcp.pop %v8494
        %v8559 = vrcp.pop %v8495
        %v8560 = vrcp.pop %v8496
        %v8561 = vrcp.pop %v8497
        %v8562 = vrcp.pop %v8498
        %v8563 = vrcp.pop %v8499
        %v8564 = vrcp.pop %v8500
        %v8565 = vrcp.pop %v8501
        %v8566 = vrcp.pop %v8502
        %v8567 = vrcp.pop %v8503
        %v8568 = vrcp.pop %v8504
        %v8569 = vrcp.pop %v8505
        %v8570 = vrcp.pop %v8506
        %v8571 = vrcp.pop %v8507
        %v8572 = vrcp.pop %v8508
        %v8573 = vrcp.pop %v8509
        %v8574 = vrcp.pop %v8510
        %v8575 = vrcp.pop %v8511
        %v8576 = vrcp.pop %v8512
        %v8577 = vrcp.pop %v8513
        %v8578 = vlaneseq
        %v8579 = vshrl.u32 %v8578, 7
        %v8580 = vsub.s32 2, %v8579
        %v8581 = vrot.slane %v4419, %v8580
        %v8582 = vmul.f32 %v8581, %v7936
        %v8583 = vmul.f32 %v8581, %v7939
        %v8584 = vmul.f32 %v8581, %v7944
        %v8585 = vmul.f32 %v8581, %v7947
        %v8586 = vmul.f32 %v8581, %v7952
        %v8587 = vmul.f32 %v8581, %v7955
        %v8588 = vmul.f32 %v8581, %v7960
        %v8589 = vmul.f32 %v8581, %v7963
        %v8590 = vmul.f32 %v8581, %v7968
        %v8591 = vmul.f32 %v8581, %v7971
        %v8592 = vmul.f32 %v8581, %v7976
        %v8593 = vmul.f32 %v8581, %v7979
        %v8594 = vmul.f32 %v8581, %v7984
        %v8595 = vmul.f32 %v8581, %v7987
        %v8596 = vmul.f32 %v8581, %v7992
        %v8597 = vmul.f32 %v8581, %v7995
        %v8598 = vmul.f32 %v8581, %v8000
        %v8599 = vmul.f32 %v8581, %v8003
        %v8600 = vmul.f32 %v8581, %v8008
        %v8601 = vmul.f32 %v8581, %v8011
        %v8602 = vmul.f32 %v8581, %v8016
        %v8603 = vmul.f32 %v8581, %v8019
        %v8604 = vmul.f32 %v8581, %v8024
        %v8605 = vmul.f32 %v8581, %v8027
        %v8606 = vmul.f32 %v8581, %v8032
        %v8607 = vmul.f32 %v8581, %v8035
        %v8608 = vmul.f32 %v8581, %v8040
        %v8609 = vmul.f32 %v8581, %v8043
        %v8610 = vmul.f32 %v8581, %v8048
        %v8611 = vmul.f32 %v8581, %v8051
        %v8612 = vmul.f32 %v8581, %v8056
        %v8613 = vmul.f32 %v8581, %v8059
        %v8614 = vmul.f32 %v8581, %v8064
        %v8615 = vmul.f32 %v8581, %v8067
        %v8616 = vmul.f32 %v8581, %v8072
        %v8617 = vmul.f32 %v8581, %v8075
        %v8618 = vmul.f32 %v8581, %v8080
        %v8619 = vmul.f32 %v8581, %v8083
        %v8620 = vmul.f32 %v8581, %v8088
        %v8621 = vmul.f32 %v8581, %v8091
        %v8622 = vmul.f32 %v8581, %v8096
        %v8623 = vmul.f32 %v8581, %v8099
        %v8624 = vmul.f32 %v8581, %v8104
        %v8625 = vmul.f32 %v8581, %v8107
        %v8626 = vmul.f32 %v8581, %v8112
        %v8627 = vmul.f32 %v8581, %v8115
        %v8628 = vmul.f32 %v8581, %v8120
        %v8629 = vmul.f32 %v8581, %v8123
        %v8630 = vmul.f32 %v8581, %v8128
        %v8631 = vmul.f32 %v8581, %v8131
        %v8632 = vmul.f32 %v8581, %v8136
        %v8633 = vmul.f32 %v8581, %v8139
        %v8634 = vmul.f32 %v8581, %v8144
        %v8635 = vmul.f32 %v8581, %v8147
        %v8636 = vmul.f32 %v8581, %v8152
        %v8637 = vmul.f32 %v8581, %v8155
        %v8638 = vmul.f32 %v8581, %v8160
        %v8639 = vmul.f32 %v8581, %v8163
        %v8640 = vmul.f32 %v8581, %v8168
        %v8641 = vmul.f32 %v8581, %v8171
        %v8642 = vmul.f32 %v8581, %v8176
        %v8643 = vmul.f32 %v8581, %v8179
        %v8644 = vmul.f32 %v8581, %v8184
        %v8645 = vmul.f32 %v8581, %v8187
        %v8646 = vmul.f32 %v8582, %v8514
        %v8647 = vmul.f32 %v8583, %v8515
        %v8648 = vmul.f32 %v8584, %v8516
        %v8649 = vmul.f32 %v8585, %v8517
        %v8650 = vmul.f32 %v8586, %v8518
        %v8651 = vmul.f32 %v8587, %v8519
        %v8652 = vmul.f32 %v8588, %v8520
        %v8653 = vmul.f32 %v8589, %v8521
        %v8654 = vmul.f32 %v8590, %v8522
        %v8655 = vmul.f32 %v8591, %v8523
        %v8656 = vmul.f32 %v8592, %v8524
        %v8657 = vmul.f32 %v8593, %v8525
        %v8658 = vmul.f32 %v8594, %v8526
        %v8659 = vmul.f32 %v8595, %v8527
        %v8660 = vmul.f32 %v8596, %v8528
        %v8661 = vmul.f32 %v8597, %v8529
        %v8662 = vmul.f32 %v8598, %v8530
        %v8663 = vmul.f32 %v8599, %v8531
        %v8664 = vmul.f32 %v8600, %v8532
        %v8665 = vmul.f32 %v8601, %v8533
        %v8666 = vmul.f32 %v8602, %v8534
        %v8667 = vmul.f32 %v8603, %v8535
        %v8668 = vmul.f32 %v8604, %v8536
        %v8669 = vmul.f32 %v8605, %v8537
        %v8670 = vmul.f32 %v8606, %v8538
        %v8671 = vmul.f32 %v8607, %v8539
        %v8672 = vmul.f32 %v8608, %v8540
        %v8673 = vmul.f32 %v8609, %v8541
        %v8674 = vmul.f32 %v8610, %v8542
        %v8675 = vmul.f32 %v8611, %v8543
        %v8676 = vmul.f32 %v8612, %v8544
        %v8677 = vmul.f32 %v8613, %v8545
        %v8678 = vmul.f32 %v8614, %v8546
        %v8679 = vmul.f32 %v8615, %v8547
        %v8680 = vmul.f32 %v8616, %v8548
        %v8681 = vmul.f32 %v8617, %v8549
        %v8682 = vmul.f32 %v8618, %v8550
        %v8683 = vmul.f32 %v8619, %v8551
        %v8684 = vmul.f32 %v8620, %v8552
        %v8685 = vmul.f32 %v8621, %v8553
        %v8686 = vmul.f32 %v8622, %v8554
        %v8687 = vmul.f32 %v8623, %v8555
        %v8688 = vmul.f32 %v8624, %v8556
        %v8689 = vmul.f32 %v8625, %v8557
        %v8690 = vmul.f32 %v8626, %v8558
        %v8691 = vmul.f32 %v8627, %v8559
        %v8692 = vmul.f32 %v8628, %v8560
        %v8693 = vmul.f32 %v8629, %v8561
        %v8694 = vmul.f32 %v8630, %v8562
        %v8695 = vmul.f32 %v8631, %v8563
        %v8696 = vmul.f32 %v8632, %v8564
        %v8697 = vmul.f32 %v8633, %v8565
        %v8698 = vmul.f32 %v8634, %v8566
        %v8699 = vmul.f32 %v8635, %v8567
        %v8700 = vmul.f32 %v8636, %v8568
        %v8701 = vmul.f32 %v8637, %v8569
        %v8702 = vmul.f32 %v8638, %v8570
        %v8703 = vmul.f32 %v8639, %v8571
        %v8704 = vmul.f32 %v8640, %v8572
        %v8705 = vmul.f32 %v8641, %v8573
        %v8706 = vmul.f32 %v8642, %v8574
        %v8707 = vmul.f32 %v8643, %v8575
        %v8708 = vmul.f32 %v8644, %v8576
        %v8709 = vmul.f32 %v8645, %v8577
        %v8710 = vld [vmem:[#allocation2] sm:$0xff]
        %v8711 = vld [vmem:[#allocation2 + $0x8] sm:$0xff]
        %v8712 = vld [vmem:[#allocation2 + $0x10] sm:$0xff]
        %v8713 = vld [vmem:[#allocation2 + $0x18] sm:$0xff]
        %v8714 = vld [vmem:[#allocation2 + $0x20] sm:$0xff]
        %v8715 = vld [vmem:[#allocation2 + $0x28] sm:$0xff]
        %v8716 = vld [vmem:[#allocation2 + $0x30] sm:$0xff]
        %v8717 = vld [vmem:[#allocation2 + $0x38] sm:$0xff]
        %v8718 = vld [vmem:[#allocation2 + $0x40] sm:$0xff]
        %v8719 = vld [vmem:[#allocation2 + $0x48] sm:$0xff]
        %v8720 = vld [vmem:[#allocation2 + $0x50] sm:$0xff]
        %v8721 = vld [vmem:[#allocation2 + $0x58] sm:$0xff]
        %v8722 = vld [vmem:[#allocation2 + $0x60] sm:$0xff]
        %v8723 = vld [vmem:[#allocation2 + $0x68] sm:$0xff]
        %v8724 = vld [vmem:[#allocation2 + $0x70] sm:$0xff]
        %v8725 = vld [vmem:[#allocation2 + $0x78] sm:$0xff]
        %v8726 = vld [vmem:[#allocation2 + $0x80] sm:$0xff]
        %v8727 = vld [vmem:[#allocation2 + $0x88] sm:$0xff]
        %v8728 = vld [vmem:[#allocation2 + $0x90] sm:$0xff]
        %v8729 = vld [vmem:[#allocation2 + $0x98] sm:$0xff]
        %v8730 = vld [vmem:[#allocation2 + $0xa0] sm:$0xff]
        %v8731 = vld [vmem:[#allocation2 + $0xa8] sm:$0xff]
        %v8732 = vld [vmem:[#allocation2 + $0xb0] sm:$0xff]
        %v8733 = vld [vmem:[#allocation2 + $0xb8] sm:$0xff]
        %v8734 = vld [vmem:[#allocation2 + $0xc0] sm:$0xff]
        %v8735 = vld [vmem:[#allocation2 + $0xc8] sm:$0xff]
        %v8736 = vld [vmem:[#allocation2 + $0xd0] sm:$0xff]
        %v8737 = vld [vmem:[#allocation2 + $0xd8] sm:$0xff]
        %v8738 = vld [vmem:[#allocation2 + $0xe0] sm:$0xff]
        %v8739 = vld [vmem:[#allocation2 + $0xe8] sm:$0xff]
        %v8740 = vld [vmem:[#allocation2 + $0xf0] sm:$0xff]
        %v8741 = vld [vmem:[#allocation2 + $0xf8] sm:$0xff]
        %v8742 = vld [vmem:[#allocation2 + $0x100] sm:$0xff]
        %v8743 = vld [vmem:[#allocation2 + $0x108] sm:$0xff]
        %v8744 = vld [vmem:[#allocation2 + $0x110] sm:$0xff]
        %v8745 = vld [vmem:[#allocation2 + $0x118] sm:$0xff]
        %v8746 = vld [vmem:[#allocation2 + $0x120] sm:$0xff]
        %v8747 = vld [vmem:[#allocation2 + $0x128] sm:$0xff]
        %v8748 = vld [vmem:[#allocation2 + $0x130] sm:$0xff]
        %v8749 = vld [vmem:[#allocation2 + $0x138] sm:$0xff]
        %v8750 = vld [vmem:[#allocation2 + $0x140] sm:$0xff]
        %v8751 = vld [vmem:[#allocation2 + $0x148] sm:$0xff]
        %v8752 = vld [vmem:[#allocation2 + $0x150] sm:$0xff]
        %v8753 = vld [vmem:[#allocation2 + $0x158] sm:$0xff]
        %v8754 = vld [vmem:[#allocation2 + $0x160] sm:$0xff]
        %v8755 = vld [vmem:[#allocation2 + $0x168] sm:$0xff]
        %v8756 = vld [vmem:[#allocation2 + $0x170] sm:$0xff]
        %v8757 = vld [vmem:[#allocation2 + $0x178] sm:$0xff]
        %v8758 = vld [vmem:[#allocation2 + $0x180] sm:$0xff]
        %v8759 = vld [vmem:[#allocation2 + $0x188] sm:$0xff]
        %v8760 = vld [vmem:[#allocation2 + $0x190] sm:$0xff]
        %v8761 = vld [vmem:[#allocation2 + $0x198] sm:$0xff]
        %v8762 = vld [vmem:[#allocation2 + $0x1a0] sm:$0xff]
        %v8763 = vld [vmem:[#allocation2 + $0x1a8] sm:$0xff]
        %v8764 = vld [vmem:[#allocation2 + $0x1b0] sm:$0xff]
        %v8765 = vld [vmem:[#allocation2 + $0x1b8] sm:$0xff]
        %v8766 = vld [vmem:[#allocation2 + $0x1c0] sm:$0xff]
        %v8767 = vld [vmem:[#allocation2 + $0x1c8] sm:$0xff]
        %v8768 = vld [vmem:[#allocation2 + $0x1d0] sm:$0xff]
        %v8769 = vld [vmem:[#allocation2 + $0x1d8] sm:$0xff]
        %v8770 = vld [vmem:[#allocation2 + $0x1e0] sm:$0xff]
        %v8771 = vld [vmem:[#allocation2 + $0x1e8] sm:$0xff]
        %v8772 = vld [vmem:[#allocation2 + $0x1f0] sm:$0xff]
        %v8773 = vld [vmem:[#allocation2 + $0x1f8] sm:$0xff]
        %v8774 = vadd.f32 %v8710, %v8646
        %v8775 = vadd.f32 %v8711, %v8647
        %v8776 = vadd.f32 %v8712, %v8648
        %v8777 = vadd.f32 %v8713, %v8649
        %v8778 = vadd.f32 %v8714, %v8650
        %v8779 = vadd.f32 %v8715, %v8651
        %v8780 = vadd.f32 %v8716, %v8652
        %v8781 = vadd.f32 %v8717, %v8653
        %v8782 = vadd.f32 %v8718, %v8654
        %v8783 = vadd.f32 %v8719, %v8655
        %v8784 = vadd.f32 %v8720, %v8656
        %v8785 = vadd.f32 %v8721, %v8657
        %v8786 = vadd.f32 %v8722, %v8658
        %v8787 = vadd.f32 %v8723, %v8659
        %v8788 = vadd.f32 %v8724, %v8660
        %v8789 = vadd.f32 %v8725, %v8661
        %v8790 = vadd.f32 %v8726, %v8662
        %v8791 = vadd.f32 %v8727, %v8663
        %v8792 = vadd.f32 %v8728, %v8664
        %v8793 = vadd.f32 %v8729, %v8665
        %v8794 = vadd.f32 %v8730, %v8666
        %v8795 = vadd.f32 %v8731, %v8667
        %v8796 = vadd.f32 %v8732, %v8668
        %v8797 = vadd.f32 %v8733, %v8669
        %v8798 = vadd.f32 %v8734, %v8670
        %v8799 = vadd.f32 %v8735, %v8671
        %v8800 = vadd.f32 %v8736, %v8672
        %v8801 = vadd.f32 %v8737, %v8673
        %v8802 = vadd.f32 %v8738, %v8674
        %v8803 = vadd.f32 %v8739, %v8675
        %v8804 = vadd.f32 %v8740, %v8676
        %v8805 = vadd.f32 %v8741, %v8677
        %v8806 = vadd.f32 %v8742, %v8678
        %v8807 = vadd.f32 %v8743, %v8679
        %v8808 = vadd.f32 %v8744, %v8680
        %v8809 = vadd.f32 %v8745, %v8681
        %v8810 = vadd.f32 %v8746, %v8682
        %v8811 = vadd.f32 %v8747, %v8683
        %v8812 = vadd.f32 %v8748, %v8684
        %v8813 = vadd.f32 %v8749, %v8685
        %v8814 = vadd.f32 %v8750, %v8686
        %v8815 = vadd.f32 %v8751, %v8687
        %v8816 = vadd.f32 %v8752, %v8688
        %v8817 = vadd.f32 %v8753, %v8689
        %v8818 = vadd.f32 %v8754, %v8690
        %v8819 = vadd.f32 %v8755, %v8691
        %v8820 = vadd.f32 %v8756, %v8692
        %v8821 = vadd.f32 %v8757, %v8693
        %v8822 = vadd.f32 %v8758, %v8694
        %v8823 = vadd.f32 %v8759, %v8695
        %v8824 = vadd.f32 %v8760, %v8696
        %v8825 = vadd.f32 %v8761, %v8697
        %v8826 = vadd.f32 %v8762, %v8698
        %v8827 = vadd.f32 %v8763, %v8699
        %v8828 = vadd.f32 %v8764, %v8700
        %v8829 = vadd.f32 %v8765, %v8701
        %v8830 = vadd.f32 %v8766, %v8702
        %v8831 = vadd.f32 %v8767, %v8703
        %v8832 = vadd.f32 %v8768, %v8704
        %v8833 = vadd.f32 %v8769, %v8705
        %v8834 = vadd.f32 %v8770, %v8706
        %v8835 = vadd.f32 %v8771, %v8707
        %v8836 = vadd.f32 %v8772, %v8708
        %v8837 = vadd.f32 %v8773, %v8709
        %8838 = vst [vmem:[%s326] sm:$0xff] %v8774
        %8839 = vst [vmem:[%s326 + $0x8] sm:$0xff] %v8775
        %8840 = vst [vmem:[%s326 + $0x10] sm:$0xff] %v8776
        %8841 = vst [vmem:[%s326 + $0x18] sm:$0xff] %v8777
        %8842 = vst [vmem:[%s326 + $0x20] sm:$0xff] %v8778
        %8843 = vst [vmem:[%s326 + $0x28] sm:$0xff] %v8779
        %8844 = vst [vmem:[%s326 + $0x30] sm:$0xff] %v8780
        %8845 = vst [vmem:[%s326 + $0x38] sm:$0xff] %v8781
        %8846 = vst [vmem:[%s326 + $0x40] sm:$0xff] %v8782
        %8847 = vst [vmem:[%s326 + $0x48] sm:$0xff] %v8783
        %8848 = vst [vmem:[%s326 + $0x50] sm:$0xff] %v8784
        %8849 = vst [vmem:[%s326 + $0x58] sm:$0xff] %v8785
        %8850 = vst [vmem:[%s326 + $0x60] sm:$0xff] %v8786
        %8851 = vst [vmem:[%s326 + $0x68] sm:$0xff] %v8787
        %8852 = vst [vmem:[%s326 + $0x70] sm:$0xff] %v8788
        %8853 = vst [vmem:[%s326 + $0x78] sm:$0xff] %v8789
        %8854 = vst [vmem:[%s326 + $0x80] sm:$0xff] %v8790
        %8855 = vst [vmem:[%s326 + $0x88] sm:$0xff] %v8791
        %8856 = vst [vmem:[%s326 + $0x90] sm:$0xff] %v8792
        %8857 = vst [vmem:[%s326 + $0x98] sm:$0xff] %v8793
        %8858 = vst [vmem:[%s326 + $0xa0] sm:$0xff] %v8794
        %8859 = vst [vmem:[%s326 + $0xa8] sm:$0xff] %v8795
        %8860 = vst [vmem:[%s326 + $0xb0] sm:$0xff] %v8796
        %8861 = vst [vmem:[%s326 + $0xb8] sm:$0xff] %v8797
        %8862 = vst [vmem:[%s326 + $0xc0] sm:$0xff] %v8798
        %8863 = vst [vmem:[%s326 + $0xc8] sm:$0xff] %v8799
        %8864 = vst [vmem:[%s326 + $0xd0] sm:$0xff] %v8800
        %8865 = vst [vmem:[%s326 + $0xd8] sm:$0xff] %v8801
        %8866 = vst [vmem:[%s326 + $0xe0] sm:$0xff] %v8802
        %8867 = vst [vmem:[%s326 + $0xe8] sm:$0xff] %v8803
        %8868 = vst [vmem:[%s326 + $0xf0] sm:$0xff] %v8804
        %8869 = vst [vmem:[%s326 + $0xf8] sm:$0xff] %v8805
        %8870 = vst [vmem:[%s326 + $0x100] sm:$0xff] %v8806
        %8871 = vst [vmem:[%s326 + $0x108] sm:$0xff] %v8807
        %8872 = vst [vmem:[%s326 + $0x110] sm:$0xff] %v8808
        %8873 = vst [vmem:[%s326 + $0x118] sm:$0xff] %v8809
        %8874 = vst [vmem:[%s326 + $0x120] sm:$0xff] %v8810
        %8875 = vst [vmem:[%s326 + $0x128] sm:$0xff] %v8811
        %8876 = vst [vmem:[%s326 + $0x130] sm:$0xff] %v8812
        %8877 = vst [vmem:[%s326 + $0x138] sm:$0xff] %v8813
        %8878 = vst [vmem:[%s326 + $0x140] sm:$0xff] %v8814
        %8879 = vst [vmem:[%s326 + $0x148] sm:$0xff] %v8815
        %8880 = vst [vmem:[%s326 + $0x150] sm:$0xff] %v8816
        %8881 = vst [vmem:[%s326 + $0x158] sm:$0xff] %v8817
        %8882 = vst [vmem:[%s326 + $0x160] sm:$0xff] %v8818
        %8883 = vst [vmem:[%s326 + $0x168] sm:$0xff] %v8819
        %8884 = vst [vmem:[%s326 + $0x170] sm:$0xff] %v8820
        %8885 = vst [vmem:[%s326 + $0x178] sm:$0xff] %v8821
        %8886 = vst [vmem:[%s326 + $0x180] sm:$0xff] %v8822
        %8887 = vst [vmem:[%s326 + $0x188] sm:$0xff] %v8823
        %8888 = vst [vmem:[%s326 + $0x190] sm:$0xff] %v8824
        %8889 = vst [vmem:[%s326 + $0x198] sm:$0xff] %v8825
        %8890 = vst [vmem:[%s326 + $0x1a0] sm:$0xff] %v8826
        %8891 = vst [vmem:[%s326 + $0x1a8] sm:$0xff] %v8827
        %8892 = vst [vmem:[%s326 + $0x1b0] sm:$0xff] %v8828
        %8893 = vst [vmem:[%s326 + $0x1b8] sm:$0xff] %v8829
        %8894 = vst [vmem:[%s326 + $0x1c0] sm:$0xff] %v8830
        %8895 = vst [vmem:[%s326 + $0x1c8] sm:$0xff] %v8831
        %8896 = vst [vmem:[%s326 + $0x1d0] sm:$0xff] %v8832
        %8897 = vst [vmem:[%s326 + $0x1d8] sm:$0xff] %v8833
        %8898 = vst [vmem:[%s326 + $0x1e0] sm:$0xff] %v8834
        %8899 = vst [vmem:[%s326 + $0x1e8] sm:$0xff] %v8835
        %8900 = vst [vmem:[%s326 + $0x1f0] sm:$0xff] %v8836
        %8901 = vst [vmem:[%s326 + $0x1f8] sm:$0xff] %v8837
        %s8902 = sand.u32 %s225, 1
        %s8903 = scalar_lea.sflag [#allocation4], %s8902
        %s8904 = sand.u32 %s225, 1
        %s8905 = smul.addr %s8904, 512
        %s8906 = scalar_lea.vmem [#allocation3], %s8905
        // Predicated region
        $region57: #{tpu_custom_call.1} parent=55 // pred_check
          %p8907 = pneg %p235
        $region58: #{tpu_custom_call.1} parent=55 // pred_check_branch
          %8909 = sbr.rel (%p8907) target = $region60
        $region59: #{tpu_custom_call.1} parent=55 // pred_region
          %s8910 = smul.u32 64, %s23
          %s8912 = ssub.s32 8192, 8192
          %8913 = vsyncadd %s8903, %s8912
          %s8914 = smul.addr %s8910, 128
          %s8915 = scalar_lea.hbm %s9, %s8914
          %s8916 = sshll.u32 %s8906, 4
          %s8917 = int_to_ptr.vmem [resolvable:$true] %s8916
          %8922 = dma.vmem_to_hbm [thread:$0]  %s8917, 8192, %s8915, %s8903, 128, 128, 8
        $region60: #{tpu_custom_call.1} parent=55 // pred_fallthru
          _
      $region56: #{tpu_custom_call.1} parent=5 // pred_fallthru
        _
      %p8923 = scmp.le.s32.totalorder 2, %s18
      // Predicated region
      $region61: #{tpu_custom_call.1} parent=5 // pred_check
        %p8924 = pneg %p8923
      $region62: #{tpu_custom_call.1} parent=5 // pred_check_branch
        %8926 = sbr.rel (%p8924) target = $region64
      $region63: #{tpu_custom_call.1} parent=5 // pred_region
        %s8927 = ssub.s32 %s18, 2
        // Predicated region
        $region65: #{tpu_custom_call.1} parent=63 // pred_check
          %p8928 = pneg %p241
        $region66: #{tpu_custom_call.1} parent=63 // pred_check_branch
          %8930 = sbr.rel (%p8928) target = $region68
        $region67: #{tpu_custom_call.1} parent=63 // pred_region
          %s8931 = sand.u32 %s226, 1
          %s8932 = scalar_lea.sflag [#allocation4], %s8931
          %s8933 = sand.u32 %s226, 1
          %s8934 = smul.addr %s8933, 512
          %s8935 = scalar_lea.vmem [#allocation3], %s8934
          %8936 = dma.done %s8932, 8192
        $region68: #{tpu_custom_call.1} parent=63 // pred_fallthru
          _
      $region64: #{tpu_custom_call.1} parent=5 // pred_fallthru
        _
    $region6: #{tpu_custom_call.1} parent=1 // loop_footer
      %s22 = sadd.s32 1, %s18
    $region7: #{tpu_custom_call.1} parent=1 // loop_footer_branch
      %17 = sbr.rel target = $region3
    $region8: #{tpu_custom_call.1} parent=1 // loop_exit
      _
    %8937 = vsyncpa [#allocation4], 1
    %s8938 = scalar_lea.sflag [#allocation4], 1
    %8939 = vsyncpa %s8938, 1

</llo_original>
